<compile_context>
chip_gen: v7x
topology: tpu7x:2x2x1
jax: 0.10.0
libtpu: 0.0.40
codegen_flags: <defaults>
</compile_context>

<pallas_src>
import functools
import math

import jax
import jax.numpy as jnp
import numpy as np
from jax import lax
from jax.experimental import pallas as pl
from jax.experimental.pallas import tpu as pltpu


# ----------------------------------------------------------------------------- helpers

def _ceil_to(x, m):
    return ((x + m - 1) // m) * m


def _pack_lanes(chunks, dtype, lane_pad):
    """Concat (R, Ci) chunks along lanes; each chunk padded to a multiple of lane_pad."""
    parts, offs, off = [], {}, 0
    rows = chunks[0][1].shape[0]
    for name, a in chunks:
        c = a.shape[1]
        cpad = _ceil_to(c, lane_pad)
        buf = a if cpad == c else jnp.zeros((rows, cpad), jnp.float32).at[:, :c].set(a)
        parts.append(buf)
        offs[name] = (off, c)
        off += cpad
    return jnp.concatenate(parts, axis=1).astype(dtype), offs


def _pack_rows(chunks, dtype, row_pad):
    """Concat (Ri, C) chunks along rows; each chunk padded to a multiple of row_pad."""
    parts, offs, off = [], {}, 0
    cols = chunks[0][1].shape[1]
    for name, a in chunks:
        r = a.shape[0]
        rpad = _ceil_to(r, row_pad)
        buf = a if rpad == r else jnp.zeros((rpad, cols), jnp.float32).at[:r, :].set(a)
        parts.append(buf)
        offs[name] = (off, r)
        off += rpad
    return jnp.concatenate(parts, axis=0).astype(dtype), offs


# ----------------------------------------------------------------------------- fused kernel

def fused_kernel(samples_ref, preds_ref, joins_ref, masks_ref,
                 win_ref, wh_ref, bias_ref, out_ref, *,
                 BT, Ns, Np, Nj, H, Fs, Fp, Fj, scale,
                 win_off, wh_off, b_off, mm_dtype):
    """One grid step = B_TILE samples end-to-end; all intermediates stay in VMEM/vregs."""

    # -------- static slab accessors (offsets are Python ints -> static slices) --------
    def w_h(name):                         # fan-in == H weight, lane chunk (128-aligned)
        off, width = wh_off[name]
        return wh_ref[:, off:off + width]

    def w_in(name):                        # variable fan-in weight, row chunk (8-aligned)
        off, rows = win_off[name]
        return win_ref[off:off + rows, :]

    def bias(name):                        # (1, width) f32 bias
        off, width = b_off[name]
        return bias_ref[:, off:off + width]

    def mm(x, w):                          # MXU matmul, f32 accumulation
        return jnp.dot(x.astype(mm_dtype), w, preferred_element_type=jnp.float32)

    def relu(x):
        return jnp.maximum(x, 0.0)

    def masked_mean(h, mask, eps):
        # h: (BT, N, H), mask: (BT, 1, N) -> (BT, H). Masked sum as a batched matmul.
        s = lax.dot_general(mask, h, (((2,), (1,)), ((0,), (0,))),
                            preferred_element_type=jnp.float32)          # (BT, 1, H)
        denom = jnp.sum(mask, axis=-1, keepdims=True) + eps               # (BT, 1, 1)
        return (s / denom)[:, 0, :]                                       # exact reciprocal

    def softmax_lastdim(scores):
        m = jnp.max(scores, axis=-1, keepdims=True)
        e = jnp.exp(scores - m)
        return e * pl.reciprocal(jnp.sum(e, axis=-1, keepdims=True), approx=True)

    def self_attn(h_flat, N, add_mask, prefix):
        # h_flat: (BT*N, H); add_mask: (BT, 1, N) additive 0 / -1e30.
        qkv = mm(h_flat, w_h(prefix + '_qkv')) + bias(prefix + '_bqkv')    # (BT*N, 3H)
        qkv = qkv.reshape(BT, N, 3 * H)
        q, k, v = qkv[..., :H], qkv[..., H:2 * H], qkv[..., 2 * H:]
        s = jnp.einsum('bqh,bkh->bqk', q.astype(mm_dtype), k.astype(mm_dtype),
                       preferred_element_type=jnp.float32) * scale        # (BT, N, N)
        p = softmax_lastdim(s + add_mask)
        ctx = jnp.einsum('bqk,bkh->bqh', p.astype(mm_dtype), v.astype(mm_dtype),
                         preferred_element_type=jnp.float32)               # (BT, N, H)
        o = mm(ctx.reshape(BT * N, H), w_h(prefix + '_o')) + bias(prefix + '_bo')
        return o.reshape(BT, N, H)

    def cross_attn(qvec, kvh, add_mask, N, prefix):
        # qvec: (BT, H) single query per sample; kvh: (BT, N, H) keys/values.
        q = (mm(qvec, w_h(prefix + '_q')) + bias(prefix + '_bq'))[:, None, :]   # (BT,1,H)
        kv = mm(kvh.reshape(BT * N, H), w_h(prefix + '_kv')) + bias(prefix + '_bkv')
        kv = kv.reshape(BT, N, 2 * H)
        k, v = kv[..., :H], kv[..., H:]
        s = jnp.einsum('bqh,bkh->bqk', q.astype(mm_dtype), k.astype(mm_dtype),
                       preferred_element_type=jnp.float32) * scale             # (BT,1,N)
        p = softmax_lastdim(s + add_mask)
        ctx = jnp.einsum('bqk,bkh->bqh', p.astype(mm_dtype), v.astype(mm_dtype),
                         preferred_element_type=jnp.float32)                    # (BT,1,H)
        return mm(ctx[:, 0, :], w_h(prefix + '_o')) + bias(prefix + '_bo')      # (BT, H)

    # -------- masks: one packed input; additive masks built once per tile --------
    smask = masks_ref[:, 0:1, :Ns]                                       # (BT, 1, Ns)
    pmask = masks_ref[:, 1:2, :Np]
    jmask = masks_ref[:, 2:3, :Nj]
    p_add = jnp.where(pmask > 0.5, 0.0, -1e30)
    j_add = jnp.where(jmask > 0.5, 0.0, -1e30)

    # -------- sample branch: MLP on (BT*Ns) rows, masked mean (eps=0 like reference) ---
    xs = samples_ref[...].reshape(BT * Ns, Fs)
    hs = relu(mm(xs, w_in('s_w1')) + bias('s_b1'))
    hs = relu(mm(hs, w_h('s_w2')) + bias('s_b2'))                         # (BT*Ns, H)
    hs_agg = masked_mean(hs.reshape(BT, Ns, H), smask, 0.0)               # (BT, H)

    # -------- predicate branch: MLP -> self-attention -> masked mean (+1e-8) --------
    xp = preds_ref[...].reshape(BT * Np, Fp)
    hp = relu(mm(xp, w_in('p_w1')) + bias('p_b1'))
    hp = relu(mm(hp, w_h('p_w2')) + bias('p_b2'))                         # (BT*Np, H)
    rp = self_attn(hp, Np, p_add, 'psa')                                  # (BT, Np, H)
    pa = masked_mean(rp, pmask, 1e-8)                                     # (BT, H)

    # -------- join branch --------
    xj = joins_ref[...].reshape(BT * Nj, Fj)
    hj = relu(mm(xj, w_in('j_w1')) + bias('j_b1'))
    hj = relu(mm(hj, w_h('j_w2')) + bias('j_b2'))
    rj = self_attn(hj, Nj, j_add, 'jsa')                                  # (BT, Nj, H)
    ja = masked_mean(rj, jmask, 1e-8)                                     # (BT, H)

    # -------- query projection: cat(pa, ja) @ W + b via split matmuls --------
    qpw = w_in('qproj')                                                   # (2H, H)
    qvec = mm(pa, qpw[:H, :]) + mm(ja, qpw[H:, :]) + bias('qp_b')         # (BT, H)

    # -------- cross-attention of the query over each refined set --------
    ap = cross_attn(qvec, rp, p_add, Np, 'cp')                            # (BT, H)
    aj = cross_attn(qvec, rj, j_add, Nj, 'cj')                            # (BT, H)

    # -------- output head --------
    ow1 = w_in('o_w1')                                                    # (3H, H)
    z = (mm(hs_agg, ow1[:H, :]) + mm(ap, ow1[H:2 * H, :])
         + mm(aj, ow1[2 * H:, :]) + bias('o_b1'))
    hid = relu(z)
    logit = mm(hid, w_h('o_w2')) + bias('o_b2')                           # (BT, 1)
    out_ref[...] = jax.nn.sigmoid(logit).reshape(1, 1, BT)                # lane-dense store


# ----------------------------------------------------------------------------- wrapper

def set_conv_with_attention(params, samples, predicates, joins,
                            sample_mask, predicate_mask, join_mask,
                            *, compute_dtype=jnp.bfloat16, batch_tile=8):
    p = params
    f32 = jnp.float32
    B, Ns, Fs = samples.shape
    _, Np, Fp = predicates.shape
    _, Nj, Fj = joins.shape
    H = p['sample_w2'].shape[0]

    BT = batch_tile
    B_pad = _ceil_to(B, BT)
    G = B_pad // BT

    # Pad set sizes to multiples of 8 (padded rows are masked out -> semantics unchanged,
    # and every in-kernel reshape becomes an aligned sublane-tile collapse).
    Ns_k, Np_k, Nj_k = _ceil_to(Ns, 8), _ceil_to(Np, 8), _ceil_to(Nj, 8)
    Nmax = max(Ns_k, Np_k, Nj_k)

    def pad_set(x, n_to):
        n = x.shape[1]
        return x if n == n_to else jnp.pad(x, ((0, 0), (0, n_to - n), (0, 0)))

    samples = pad_set(samples.astype(f32), Ns_k)
    predicates = pad_set(predicates.astype(f32), Np_k)
    joins = pad_set(joins.astype(f32), Nj_k)

    # Pack the three masks into one (B, 3, Nmax) input (padding positions stay 0 = masked).
    def mask2d(m):
        m = m[..., 0] if m.ndim == 3 else m
        return m.astype(f32)

    masks = jnp.zeros((B, 3, Nmax), f32)
    masks = masks.at[:, 0, :Ns].set(mask2d(sample_mask))
    masks = masks.at[:, 1, :Np].set(mask2d(predicate_mask))
    masks = masks.at[:, 2, :Nj].set(mask2d(join_mask))

    # Pad the batch to a multiple of the tile; padded rows get all-ones masks so every
    # denominator stays finite (their outputs are sliced away below).
    if B_pad != B:
        padb = B_pad - B
        samples = jnp.pad(samples, ((0, padb), (0, 0), (0, 0)))
        predicates = jnp.pad(predicates, ((0, padb), (0, 0), (0, 0)))
        joins = jnp.pad(joins, ((0, padb), (0, 0), (0, 0)))
        masks = jnp.pad(masks, ((0, padb), (0, 0), (0, 0)), constant_values=1.0)

    # Pack attention projections: Q|K|V -> (H,3H) for self-attn, K|V -> (H,2H) for cross.
    def self_qkv(attn):
        wq, bq, wk, bk, wv, bv, wo, bo = attn
        return (jnp.concatenate([wq, wk, wv], 1), jnp.concatenate([bq, bk, bv], 1), wo, bo)

    def cross_kv(attn):
        wq, bq, wk, bk, wv, bv, wo, bo = attn
        return (wq, bq, jnp.concatenate([wk, wv], 1), jnp.concatenate([bk, bv], 1), wo, bo)

    psa_qkv, psa_bqkv, psa_wo, psa_bo = self_qkv(p['pred_self_attn'])
    jsa_qkv, jsa_bqkv, jsa_wo, jsa_bo = self_qkv(p['join_self_attn'])
    cp_wq, cp_bq, cp_wkv, cp_bkv, cp_wo, cp_bo = cross_kv(p['cross_pred'])
    cj_wq, cj_bq, cj_wkv, cj_bkv, cj_wo, cj_bo = cross_kv(p['cross_join'])

    # Slab 1: every fan-in==H weight, lane-concatenated with 128-lane-aligned chunks.
    wh_slab, wh_off = _pack_lanes([
        ('s_w2', p['sample_w2']), ('p_w2', p['pred_w2']), ('j_w2', p['join_w2']),
        ('psa_qkv', psa_qkv), ('psa_o', psa_wo),
        ('jsa_qkv', jsa_qkv), ('jsa_o', jsa_wo),
        ('cp_q', cp_wq), ('cp_kv', cp_wkv), ('cp_o', cp_wo),
        ('cj_q', cj_wq), ('cj_kv', cj_wkv), ('cj_o', cj_wo),
        ('o_w2', p['out_w2']),
    ], compute_dtype, 128)

    # Slab 2: variable fan-in weights, row-concatenated with 8-sublane-aligned chunks.
    win_slab, win_off = _pack_rows([
        ('s_w1', p['sample_w1']), ('p_w1', p['pred_w1']), ('j_w1', p['join_w1']),
        ('qproj', p['qproj_w']), ('o_w1', p['out_w1']),
    ], compute_dtype, 8)

    # Slab 3: every bias, lane-concatenated, kept in f32 (added to f32 accumulators).
    bias_slab, b_off = _pack_lanes([
        ('s_b1', p['sample_b1']), ('s_b2', p['sample_b2']),
        ('p_b1', p['pred_b1']), ('p_b2', p['pred_b2']),
        ('j_b1', p['join_b1']), ('j_b2', p['join_b2']),
        ('psa_bqkv', psa_bqkv), ('psa_bo', psa_bo),
        ('jsa_bqkv', jsa_bqkv), ('jsa_bo', jsa_bo),
        ('qp_b', p['qproj_b']),
        ('cp_bq', cp_bq), ('cp_bkv', cp_bkv), ('cp_bo', cp_bo),
        ('cj_bq', cj_bq), ('cj_bkv', cj_bkv), ('cj_bo', cj_bo),
        ('o_b1', p['out_b1']), ('o_b2', p['out_b2']),
    ], f32, 1)

    def tiled(arr):
        return pl.BlockSpec((BT,) + arr.shape[1:],
                            lambda g, _nd=arr.ndim: (g,) + (0,) * (_nd - 1))

    def whole(arr):
        return pl.BlockSpec(arr.shape, lambda g, _nd=arr.ndim: (0,) * _nd)

    kernel = functools.partial(
        fused_kernel,
        BT=BT, Ns=Ns_k, Np=Np_k, Nj=Nj_k, H=H, Fs=Fs, Fp=Fp, Fj=Fj,
        scale=1.0 / math.sqrt(H),
        win_off=win_off, wh_off=wh_off, b_off=b_off, mm_dtype=compute_dtype)

    out = pl.pallas_call(
        kernel,
        out_shape=jax.ShapeDtypeStruct((G, 1, BT), jnp.float32),
        grid=(G,),
        in_specs=[tiled(samples), tiled(predicates), tiled(joins), tiled(masks),
                  whole(win_slab), whole(wh_slab), whole(bias_slab)],
        out_specs=pl.BlockSpec((1, 1, BT), lambda g: (g, 0, 0)),
        compiler_params=pltpu.CompilerParams(dimension_semantics=("parallel",)),
    )(samples, predicates, joins, masks, win_slab, wh_slab, bias_slab)

    return out.reshape(B_pad, 1)[:B]                                     # (B, 1)


# ----------------------------------------------------------------------------- params / reference

def init_params(key, sample_feats, predicate_feats, join_feats, H):
    keys = iter(jax.random.split(key, 64))

    def lin(fan_in, fan_out):
        k1, k2 = jax.random.split(next(keys))
        bound = 1.0 / math.sqrt(fan_in)
        w = jax.random.uniform(k1, (fan_in, fan_out), jnp.float32, -bound, bound)
        b = jax.random.uniform(k2, (1, fan_out), jnp.float32, -bound, bound)
        return w, b

    def attn():
        wq, bq = lin(H, H)
        wk, bk = lin(H, H)
        wv, bv = lin(H, H)
        wo, bo = lin(H, H)
        return (wq, bq, wk, bk, wv, bv, wo, bo)

    p = {}
    p['sample_w1'], p['sample_b1'] = lin(sample_feats, H)
    p['sample_w2'], p['sample_b2'] = lin(H, H)
    p['pred_w1'], p['pred_b1'] = lin(predicate_feats, H)
    p['pred_w2'], p['pred_b2'] = lin(H, H)
    p['join_w1'], p['join_b1'] = lin(join_feats, H)
    p['join_w2'], p['join_b2'] = lin(H, H)
    p['pred_self_attn'] = attn()
    p['join_self_attn'] = attn()
    p['cross_pred'] = attn()
    p['cross_join'] = attn()
    p['qproj_w'], p['qproj_b'] = lin(2 * H, H)
    p['out_w1'], p['out_b1'] = lin(3 * H, H)
    p['out_w2'], p['out_b2'] = lin(H, 1)
    return p


def reference_forward(params, samples, predicates, joins,
                      sample_mask, predicate_mask, join_mask):
    p = params

    def mlp2(x, w1, b1, w2, b2):
        return jax.nn.relu(jax.nn.relu(x @ w1 + b1) @ w2 + b2)

    def attn(q_in, kv, mask2d, prm):
        wq, bq, wk, bk, wv, bv, wo, bo = prm
        H = q_in.shape[-1]
        q, k, v = q_in @ wq + bq, kv @ wk + bk, kv @ wv + bv
        s = jnp.einsum('bqh,bkh->bqk', q, k) / math.sqrt(H)
        s = jnp.where(mask2d[:, None, :] > 0.5, s, -1e30)
        a = jax.nn.softmax(s, axis=-1)
        return jnp.einsum('bqk,bkh->bqh', a, v) @ wo + bo

    hs = mlp2(samples, p['sample_w1'], p['sample_b1'], p['sample_w2'], p['sample_b2'])
    hs = jnp.sum(hs * sample_mask, axis=1) / jnp.sum(sample_mask, axis=1)
    hp = mlp2(predicates, p['pred_w1'], p['pred_b1'], p['pred_w2'], p['pred_b2'])
    hj = mlp2(joins, p['join_w1'], p['join_b1'], p['join_w2'], p['join_b2'])
    pm, jm = predicate_mask[..., 0], join_mask[..., 0]
    rp = attn(hp, hp, pm, p['pred_self_attn'])
    rj = attn(hj, hj, jm, p['join_self_attn'])
    pa = jnp.sum(rp * pm[..., None], axis=1) / (jnp.sum(pm, axis=1, keepdims=True) + 1e-8)
    ja = jnp.sum(rj * jm[..., None], axis=1) / (jnp.sum(jm, axis=1, keepdims=True) + 1e-8)
    qv = jnp.concatenate([pa, ja], axis=-1) @ p['qproj_w'] + p['qproj_b']
    ap = attn(qv[:, None, :], rp, pm, p['cross_pred'])[:, 0, :]
    aj = attn(qv[:, None, :], rj, jm, p['cross_join'])[:, 0, :]
    comb = jnp.concatenate([hs, ap, aj], axis=1)
    hid = jax.nn.relu(comb @ p['out_w1'] + p['out_b1'])
    return jax.nn.sigmoid(hid @ p['out_w2'] + p['out_b2'])


# ----------------------------------------------------------------------------- main

if __name__ == "__main__":
    B = 13                                     # non-multiple of the batch tile (exercises padding)
    sample_feats, predicate_feats, join_feats = 6, 9, 5
    hid_units = 32
    Ns, Np, Nj = 8, 8, 4                       # Np = max_num_predicates, Nj = max_num_joins

    key = jax.random.PRNGKey(0)
    k0, k1, k2, k3, k4, k5 = jax.random.split(key, 6)
    samples = jax.random.normal(k0, (B, Ns, sample_feats), jnp.float32)
    predicates = jax.random.normal(k1, (B, Np, predicate_feats), jnp.float32)
    joins = jax.random.normal(k2, (B, Nj, join_feats), jnp.float32)

    def make_mask(k, N, B):
        lens = jax.random.randint(k, (B,), 1, N + 1)
        idx = jnp.arange(N)[None, :]
        return (idx < lens[:, None]).astype(jnp.float32)[..., None]      # (B, N, 1)

    sample_mask = make_mask(k3, Ns, B)
    predicate_mask = make_mask(k4, Np, B)
    join_mask = make_mask(k5, Nj, B)

    params = init_params(jax.random.PRNGKey(42),
                         sample_feats, predicate_feats, join_feats, hid_units)

    ref = reference_forward(params, samples, predicates, joins,
                            sample_mask, predicate_mask, join_mask)

    # f32 MXU path: tight agreement with the pure-JAX reference.
    fwd_f32 = jax.jit(functools.partial(set_conv_with_attention, compute_dtype=jnp.float32))
    out_f32 = jax.block_until_ready(fwd_f32(params, samples, predicates, joins,
                                            sample_mask, predicate_mask, join_mask))
    assert out_f32.shape == (B, 1)
    np.testing.assert_allclose(np.asarray(out_f32), np.asarray(ref), rtol=1e-3, atol=1e-3)

    # bf16 MXU operands (default perf config for v6e/v7x); f32 accumulation + f32 softmax.
    fwd_bf16 = jax.jit(functools.partial(set_conv_with_attention, compute_dtype=jnp.bfloat16))
    out_bf16 = jax.block_until_ready(fwd_bf16(params, samples, predicates, joins,
                                              sample_mask, predicate_mask, join_mask))
    assert out_bf16.shape == (B, 1)
    np.testing.assert_allclose(np.asarray(out_bf16), np.asarray(ref), rtol=2e-2, atol=2e-2)

    print("KERNEL_OK")
</pallas_src>

<mosaic_0001>
module attributes {stable_mosaic.version = 11 : i64} {
  func.func @fused_kernel(%arg0: i32, %arg1: memref<8x8x6xf32, #tpu.memory_space<vmem>>, %arg2: memref<8x8x9xf32, #tpu.memory_space<vmem>>, %arg3: memref<8x8x5xf32, #tpu.memory_space<vmem>>, %arg4: memref<8x3x8xf32, #tpu.memory_space<vmem>>, %arg5: memref<192x32xf32, #tpu.memory_space<vmem>>, %arg6: memref<32x1792xf32, #tpu.memory_space<vmem>>, %arg7: memref<1x769xf32, #tpu.memory_space<vmem>>, %arg8: memref<1x1x8xf32, #tpu.memory_space<vmem>>) attributes {dimension_semantics = [#tpu.dimension_semantics<parallel>], iteration_bounds = array<i64: 2>, scalar_prefetch = 0 : i64, scratch_operands = 0 : i64, tpu.core_type = #tpu.core_type<tc>, window_params = [{transform_indices = @transform_0, window_bounds = array<i64: 8, 8, 6>}, {transform_indices = @transform_1, window_bounds = array<i64: 8, 8, 9>}, {transform_indices = @transform_2, window_bounds = array<i64: 8, 8, 5>}, {transform_indices = @transform_3, window_bounds = array<i64: 8, 3, 8>}, {pipeline_mode = #tpu.pipeline_mode<synchronous>, transform_indices = @transform_4, window_bounds = array<i64: 192, 32>}, {pipeline_mode = #tpu.pipeline_mode<synchronous>, transform_indices = @transform_5, window_bounds = array<i64: 32, 1792>}, {pipeline_mode = #tpu.pipeline_mode<synchronous>, transform_indices = @transform_6, window_bounds = array<i64: 1, 769>}, {transform_indices = @transform_7, window_bounds = array<i64: 1, 1, 8>}]} {
    %c0 = arith.constant 0 : index
    %c0_0 = arith.constant 0 : index
    %c0_1 = arith.constant 0 : index
    %0 = vector.load %arg4[%c0, %c0_0, %c0_1] : memref<8x3x8xf32, #tpu.memory_space<vmem>>, vector<8x1x8xf32>
    %c0_2 = arith.constant 0 : index
    %c1 = arith.constant 1 : index
    %c0_3 = arith.constant 0 : index
    %1 = vector.load %arg4[%c0_2, %c1, %c0_3] : memref<8x3x8xf32, #tpu.memory_space<vmem>>, vector<8x1x8xf32>
    %c0_4 = arith.constant 0 : index
    %c2 = arith.constant 2 : index
    %c0_5 = arith.constant 0 : index
    %2 = vector.load %arg4[%c0_4, %c2, %c0_5] : memref<8x3x8xf32, #tpu.memory_space<vmem>>, vector<8x1x8xf32>
    %cst = arith.constant 5.000000e-01 : f32
    %3 = vector.broadcast %cst : f32 to vector<8x1x8xf32>
    %4 = arith.cmpf ogt, %1, %3 : vector<8x1x8xf32>
    %cst_6 = arith.constant 0.000000e+00 : f32
    %cst_7 = arith.constant -1.000000e+30 : f32
    %5 = vector.broadcast %cst_6 : f32 to vector<8x1x8xf32>
    %6 = vector.broadcast %cst_7 : f32 to vector<8x1x8xf32>
    %7 = arith.select %4, %5, %6 : vector<8x1x8xi1>, vector<8x1x8xf32>
    %cst_8 = arith.constant 5.000000e-01 : f32
    %8 = vector.broadcast %cst_8 : f32 to vector<8x1x8xf32>
    %9 = arith.cmpf ogt, %2, %8 : vector<8x1x8xf32>
    %cst_9 = arith.constant 0.000000e+00 : f32
    %cst_10 = arith.constant -1.000000e+30 : f32
    %10 = vector.broadcast %cst_9 : f32 to vector<8x1x8xf32>
    %11 = vector.broadcast %cst_10 : f32 to vector<8x1x8xf32>
    %12 = arith.select %9, %10, %11 : vector<8x1x8xi1>, vector<8x1x8xf32>
    %c0_11 = arith.constant 0 : index
    %c0_12 = arith.constant 0 : index
    %c0_13 = arith.constant 0 : index
    %13 = vector.load %arg1[%c0_11, %c0_12, %c0_13] : memref<8x8x6xf32, #tpu.memory_space<vmem>>, vector<8x8x6xf32>
    %14 = vector.shape_cast %13 : vector<8x8x6xf32> to vector<64x6xf32>
    %c0_14 = arith.constant 0 : index
    %c0_15 = arith.constant 0 : index
    %15 = vector.load %arg5[%c0_14, %c0_15] : memref<192x32xf32, #tpu.memory_space<vmem>>, vector<6x32xf32>
    %cst_16 = arith.constant dense<0.000000e+00> : vector<64x32xf32>
    %16 = tpu.matmul %14, %15, %cst_16 {dimension_numbers = #tpu.dot_dimension_numbers<[1], [0], [0], [1], [0, 0, 1, 1], [], []>} : vector<64x6xf32>, vector<6x32xf32>, vector<64x32xf32> -> vector<64x32xf32>
    %c0_17 = arith.constant 0 : index
    %c0_18 = arith.constant 0 : index
    %17 = vector.load %arg7[%c0_17, %c0_18] : memref<1x769xf32, #tpu.memory_space<vmem>>, vector<1x32xf32>
    %18 = vector.broadcast %17 : vector<1x32xf32> to vector<64x32xf32>
    %19 = arith.addf %16, %18 : vector<64x32xf32>
    %cst_19 = arith.constant 0.000000e+00 : f32
    %20 = vector.broadcast %cst_19 : f32 to vector<64x32xf32>
    %21 = arith.maximumf %19, %20 : vector<64x32xf32>
    %c0_20 = arith.constant 0 : index
    %c0_21 = arith.constant 0 : index
    %22 = vector.load %arg6[%c0_20, %c0_21] : memref<32x1792xf32, #tpu.memory_space<vmem>>, vector<32x32xf32>
    %cst_22 = arith.constant dense<0.000000e+00> : vector<64x32xf32>
    %23 = tpu.matmul %21, %22, %cst_22 {dimension_numbers = #tpu.dot_dimension_numbers<[1], [0], [0], [1], [0, 0, 1, 1], [], []>} : vector<64x32xf32>, vector<32x32xf32>, vector<64x32xf32> -> vector<64x32xf32>
    %c0_23 = arith.constant 0 : index
    %c32 = arith.constant 32 : index
    %24 = vector.load %arg7[%c0_23, %c32] : memref<1x769xf32, #tpu.memory_space<vmem>>, vector<1x32xf32>
    %25 = vector.broadcast %24 : vector<1x32xf32> to vector<64x32xf32>
    %26 = arith.addf %23, %25 : vector<64x32xf32>
    %cst_24 = arith.constant 0.000000e+00 : f32
    %27 = vector.broadcast %cst_24 : f32 to vector<64x32xf32>
    %28 = arith.maximumf %26, %27 : vector<64x32xf32>
    %29 = vector.shape_cast %28 : vector<64x32xf32> to vector<8x8x32xf32>
    %cst_25 = arith.constant dense<0.000000e+00> : vector<8x1x32xf32>
    %30 = tpu.matmul %0, %29, %cst_25 {dimension_numbers = #tpu.dot_dimension_numbers<[2], [1], [1], [2], [0, 0, 0, 1, 1, 2], [0], [0]>} : vector<8x1x8xf32>, vector<8x8x32xf32>, vector<8x1x32xf32> -> vector<8x1x32xf32>
    %cst_26 = arith.constant dense<0.000000e+00> : vector<8x1xf32>
    %31 = vector.multi_reduction <add>, %0, %cst_26 [2] : vector<8x1x8xf32> to vector<8x1xf32>
    %32 = vector.shape_cast %31 : vector<8x1xf32> to vector<8x1x1xf32>
    %cst_27 = arith.constant 0.000000e+00 : f32
    %33 = vector.broadcast %cst_27 : f32 to vector<8x1x1xf32>
    %34 = arith.addf %32, %33 : vector<8x1x1xf32>
    %35 = vector.broadcast %34 : vector<8x1x1xf32> to vector<8x1x32xf32>
    %36 = arith.divf %30, %35 : vector<8x1x32xf32>
    %37 = vector.shape_cast %36 : vector<8x1x32xf32> to vector<8x32xf32>
    %c0_28 = arith.constant 0 : index
    %c0_29 = arith.constant 0 : index
    %c0_30 = arith.constant 0 : index
    %38 = vector.load %arg2[%c0_28, %c0_29, %c0_30] : memref<8x8x9xf32, #tpu.memory_space<vmem>>, vector<8x8x9xf32>
    %39 = vector.shape_cast %38 : vector<8x8x9xf32> to vector<64x9xf32>
    %c8 = arith.constant 8 : index
    %c0_31 = arith.constant 0 : index
    %40 = vector.load %arg5[%c8, %c0_31] : memref<192x32xf32, #tpu.memory_space<vmem>>, vector<9x32xf32>
    %cst_32 = arith.constant dense<0.000000e+00> : vector<64x32xf32>
    %41 = tpu.matmul %39, %40, %cst_32 {dimension_numbers = #tpu.dot_dimension_numbers<[1], [0], [0], [1], [0, 0, 1, 1], [], []>} : vector<64x9xf32>, vector<9x32xf32>, vector<64x32xf32> -> vector<64x32xf32>
    %c0_33 = arith.constant 0 : index
    %c64 = arith.constant 64 : index
    %42 = vector.load %arg7[%c0_33, %c64] : memref<1x769xf32, #tpu.memory_space<vmem>>, vector<1x32xf32>
    %43 = vector.broadcast %42 : vector<1x32xf32> to vector<64x32xf32>
    %44 = arith.addf %41, %43 : vector<64x32xf32>
    %cst_34 = arith.constant 0.000000e+00 : f32
    %45 = vector.broadcast %cst_34 : f32 to vector<64x32xf32>
    %46 = arith.maximumf %44, %45 : vector<64x32xf32>
    %c0_35 = arith.constant 0 : index
    %c128 = arith.constant 128 : index
    %47 = vector.load %arg6[%c0_35, %c128] : memref<32x1792xf32, #tpu.memory_space<vmem>>, vector<32x32xf32>
    %cst_36 = arith.constant dense<0.000000e+00> : vector<64x32xf32>
    %48 = tpu.matmul %46, %47, %cst_36 {dimension_numbers = #tpu.dot_dimension_numbers<[1], [0], [0], [1], [0, 0, 1, 1], [], []>} : vector<64x32xf32>, vector<32x32xf32>, vector<64x32xf32> -> vector<64x32xf32>
    %c0_37 = arith.constant 0 : index
    %c96 = arith.constant 96 : index
    %49 = vector.load %arg7[%c0_37, %c96] : memref<1x769xf32, #tpu.memory_space<vmem>>, vector<1x32xf32>
    %50 = vector.broadcast %49 : vector<1x32xf32> to vector<64x32xf32>
    %51 = arith.addf %48, %50 : vector<64x32xf32>
    %cst_38 = arith.constant 0.000000e+00 : f32
    %52 = vector.broadcast %cst_38 : f32 to vector<64x32xf32>
    %53 = arith.maximumf %51, %52 : vector<64x32xf32>
    %c0_39 = arith.constant 0 : index
    %c384 = arith.constant 384 : index
    %54 = vector.load %arg6[%c0_39, %c384] : memref<32x1792xf32, #tpu.memory_space<vmem>>, vector<32x96xf32>
    %cst_40 = arith.constant dense<0.000000e+00> : vector<64x96xf32>
    %55 = tpu.matmul %53, %54, %cst_40 {dimension_numbers = #tpu.dot_dimension_numbers<[1], [0], [0], [1], [0, 0, 1, 1], [], []>} : vector<64x32xf32>, vector<32x96xf32>, vector<64x96xf32> -> vector<64x96xf32>
    %c0_41 = arith.constant 0 : index
    %c192 = arith.constant 192 : index
    %56 = vector.load %arg7[%c0_41, %c192] : memref<1x769xf32, #tpu.memory_space<vmem>>, vector<1x96xf32>
    %57 = vector.broadcast %56 : vector<1x96xf32> to vector<64x96xf32>
    %58 = arith.addf %55, %57 : vector<64x96xf32>
    %59 = vector.shape_cast %58 : vector<64x96xf32> to vector<8x8x96xf32>
    %60 = vector.extract_strided_slice %59 {offsets = [0, 0, 0], sizes = [8, 8, 32], strides = [1, 1, 1]} : vector<8x8x96xf32> to vector<8x8x32xf32>
    %61 = vector.extract_strided_slice %59 {offsets = [0, 0, 32], sizes = [8, 8, 32], strides = [1, 1, 1]} : vector<8x8x96xf32> to vector<8x8x32xf32>
    %62 = vector.extract_strided_slice %59 {offsets = [0, 0, 64], sizes = [8, 8, 32], strides = [1, 1, 1]} : vector<8x8x96xf32> to vector<8x8x32xf32>
    "tpu.trace_start"() <{level = 10 : i32, message = "bqh,bkh->bqk"}> : () -> ()
    %cst_42 = arith.constant dense<0.000000e+00> : vector<8x8x8xf32>
    %63 = tpu.matmul %60, %61, %cst_42 {dimension_numbers = #tpu.dot_dimension_numbers<[2], [2], [1], [1], [0, 0, 0, 1, 1, 1], [0], [0]>} : vector<8x8x32xf32>, vector<8x8x32xf32>, vector<8x8x8xf32> -> vector<8x8x8xf32>
    "tpu.trace_stop"() : () -> ()
    %cst_43 = arith.constant 0.176776692 : f32
    %64 = vector.broadcast %cst_43 : f32 to vector<8x8x8xf32>
    %65 = arith.mulf %63, %64 : vector<8x8x8xf32>
    %66 = vector.broadcast %7 : vector<8x1x8xf32> to vector<8x8x8xf32>
    %67 = arith.addf %65, %66 : vector<8x8x8xf32>
    %cst_44 = arith.constant dense<0xFF800000> : vector<8x8xf32>
    %68 = vector.multi_reduction <maximumf>, %67, %cst_44 [2] : vector<8x8x8xf32> to vector<8x8xf32>
    %69 = vector.shape_cast %68 : vector<8x8xf32> to vector<8x8x1xf32>
    %70 = vector.broadcast %69 : vector<8x8x1xf32> to vector<8x8x8xf32>
    %71 = arith.subf %67, %70 : vector<8x8x8xf32>
    %72 = math.exp %71 : vector<8x8x8xf32>
    %cst_45 = arith.constant dense<0.000000e+00> : vector<8x8xf32>
    %73 = vector.multi_reduction <add>, %72, %cst_45 [2] : vector<8x8x8xf32> to vector<8x8xf32>
    %74 = vector.shape_cast %73 : vector<8x8xf32> to vector<8x8x1xf32>
    %75 = tpu.reciprocal %74 {approx = true} : vector<8x8x1xf32> -> vector<8x8x1xf32>
    %76 = vector.broadcast %75 : vector<8x8x1xf32> to vector<8x8x8xf32>
    %77 = arith.mulf %72, %76 : vector<8x8x8xf32>
    "tpu.trace_start"() <{level = 10 : i32, message = "bqk,bkh->bqh"}> : () -> ()
    %cst_46 = arith.constant dense<0.000000e+00> : vector<8x8x32xf32>
    %78 = tpu.matmul %77, %62, %cst_46 {dimension_numbers = #tpu.dot_dimension_numbers<[2], [1], [1], [2], [0, 0, 0, 1, 1, 2], [0], [0]>} : vector<8x8x8xf32>, vector<8x8x32xf32>, vector<8x8x32xf32> -> vector<8x8x32xf32>
    "tpu.trace_stop"() : () -> ()
    %79 = vector.shape_cast %78 : vector<8x8x32xf32> to vector<64x32xf32>
    %c0_47 = arith.constant 0 : index
    %c512 = arith.constant 512 : index
    %80 = vector.load %arg6[%c0_47, %c512] : memref<32x1792xf32, #tpu.memory_space<vmem>>, vector<32x32xf32>
    %cst_48 = arith.constant dense<0.000000e+00> : vector<64x32xf32>
    %81 = tpu.matmul %79, %80, %cst_48 {dimension_numbers = #tpu.dot_dimension_numbers<[1], [0], [0], [1], [0, 0, 1, 1], [], []>} : vector<64x32xf32>, vector<32x32xf32>, vector<64x32xf32> -> vector<64x32xf32>
    %c0_49 = arith.constant 0 : index
    %c288 = arith.constant 288 : index
    %82 = vector.load %arg7[%c0_49, %c288] : memref<1x769xf32, #tpu.memory_space<vmem>>, vector<1x32xf32>
    %83 = vector.broadcast %82 : vector<1x32xf32> to vector<64x32xf32>
    %84 = arith.addf %81, %83 : vector<64x32xf32>
    %85 = vector.shape_cast %84 : vector<64x32xf32> to vector<8x8x32xf32>
    %cst_50 = arith.constant dense<0.000000e+00> : vector<8x1x32xf32>
    %86 = tpu.matmul %1, %85, %cst_50 {dimension_numbers = #tpu.dot_dimension_numbers<[2], [1], [1], [2], [0, 0, 0, 1, 1, 2], [0], [0]>} : vector<8x1x8xf32>, vector<8x8x32xf32>, vector<8x1x32xf32> -> vector<8x1x32xf32>
    %cst_51 = arith.constant dense<0.000000e+00> : vector<8x1xf32>
    %87 = vector.multi_reduction <add>, %1, %cst_51 [2] : vector<8x1x8xf32> to vector<8x1xf32>
    %88 = vector.shape_cast %87 : vector<8x1xf32> to vector<8x1x1xf32>
    %cst_52 = arith.constant 9.99999993E-9 : f32
    %89 = vector.broadcast %cst_52 : f32 to vector<8x1x1xf32>
    %90 = arith.addf %88, %89 : vector<8x1x1xf32>
    %91 = vector.broadcast %90 : vector<8x1x1xf32> to vector<8x1x32xf32>
    %92 = arith.divf %86, %91 : vector<8x1x32xf32>
    %93 = vector.shape_cast %92 : vector<8x1x32xf32> to vector<8x32xf32>
    %c0_53 = arith.constant 0 : index
    %c0_54 = arith.constant 0 : index
    %c0_55 = arith.constant 0 : index
    %94 = vector.load %arg3[%c0_53, %c0_54, %c0_55] : memref<8x8x5xf32, #tpu.memory_space<vmem>>, vector<8x8x5xf32>
    %95 = vector.shape_cast %94 : vector<8x8x5xf32> to vector<64x5xf32>
    %c24 = arith.constant 24 : index
    %c0_56 = arith.constant 0 : index
    %96 = vector.load %arg5[%c24, %c0_56] : memref<192x32xf32, #tpu.memory_space<vmem>>, vector<5x32xf32>
    %cst_57 = arith.constant dense<0.000000e+00> : vector<64x32xf32>
    %97 = tpu.matmul %95, %96, %cst_57 {dimension_numbers = #tpu.dot_dimension_numbers<[1], [0], [0], [1], [0, 0, 1, 1], [], []>} : vector<64x5xf32>, vector<5x32xf32>, vector<64x32xf32> -> vector<64x32xf32>
    %c0_58 = arith.constant 0 : index
    %c128_59 = arith.constant 128 : index
    %98 = vector.load %arg7[%c0_58, %c128_59] : memref<1x769xf32, #tpu.memory_space<vmem>>, vector<1x32xf32>
    %99 = vector.broadcast %98 : vector<1x32xf32> to vector<64x32xf32>
    %100 = arith.addf %97, %99 : vector<64x32xf32>
    %cst_60 = arith.constant 0.000000e+00 : f32
    %101 = vector.broadcast %cst_60 : f32 to vector<64x32xf32>
    %102 = arith.maximumf %100, %101 : vector<64x32xf32>
    %c0_61 = arith.constant 0 : index
    %c256 = arith.constant 256 : index
    %103 = vector.load %arg6[%c0_61, %c256] : memref<32x1792xf32, #tpu.memory_space<vmem>>, vector<32x32xf32>
    %cst_62 = arith.constant dense<0.000000e+00> : vector<64x32xf32>
    %104 = tpu.matmul %102, %103, %cst_62 {dimension_numbers = #tpu.dot_dimension_numbers<[1], [0], [0], [1], [0, 0, 1, 1], [], []>} : vector<64x32xf32>, vector<32x32xf32>, vector<64x32xf32> -> vector<64x32xf32>
    %c0_63 = arith.constant 0 : index
    %c160 = arith.constant 160 : index
    %105 = vector.load %arg7[%c0_63, %c160] : memref<1x769xf32, #tpu.memory_space<vmem>>, vector<1x32xf32>
    %106 = vector.broadcast %105 : vector<1x32xf32> to vector<64x32xf32>
    %107 = arith.addf %104, %106 : vector<64x32xf32>
    %cst_64 = arith.constant 0.000000e+00 : f32
    %108 = vector.broadcast %cst_64 : f32 to vector<64x32xf32>
    %109 = arith.maximumf %107, %108 : vector<64x32xf32>
    %c0_65 = arith.constant 0 : index
    %c640 = arith.constant 640 : index
    %110 = vector.load %arg6[%c0_65, %c640] : memref<32x1792xf32, #tpu.memory_space<vmem>>, vector<32x96xf32>
    %cst_66 = arith.constant dense<0.000000e+00> : vector<64x96xf32>
    %111 = tpu.matmul %109, %110, %cst_66 {dimension_numbers = #tpu.dot_dimension_numbers<[1], [0], [0], [1], [0, 0, 1, 1], [], []>} : vector<64x32xf32>, vector<32x96xf32>, vector<64x96xf32> -> vector<64x96xf32>
    %c0_67 = arith.constant 0 : index
    %c320 = arith.constant 320 : index
    %112 = vector.load %arg7[%c0_67, %c320] : memref<1x769xf32, #tpu.memory_space<vmem>>, vector<1x96xf32>
    %113 = vector.broadcast %112 : vector<1x96xf32> to vector<64x96xf32>
    %114 = arith.addf %111, %113 : vector<64x96xf32>
    %115 = vector.shape_cast %114 : vector<64x96xf32> to vector<8x8x96xf32>
    %116 = vector.extract_strided_slice %115 {offsets = [0, 0, 0], sizes = [8, 8, 32], strides = [1, 1, 1]} : vector<8x8x96xf32> to vector<8x8x32xf32>
    %117 = vector.extract_strided_slice %115 {offsets = [0, 0, 32], sizes = [8, 8, 32], strides = [1, 1, 1]} : vector<8x8x96xf32> to vector<8x8x32xf32>
    %118 = vector.extract_strided_slice %115 {offsets = [0, 0, 64], sizes = [8, 8, 32], strides = [1, 1, 1]} : vector<8x8x96xf32> to vector<8x8x32xf32>
    "tpu.trace_start"() <{level = 10 : i32, message = "bqh,bkh->bqk"}> : () -> ()
    %cst_68 = arith.constant dense<0.000000e+00> : vector<8x8x8xf32>
    %119 = tpu.matmul %116, %117, %cst_68 {dimension_numbers = #tpu.dot_dimension_numbers<[2], [2], [1], [1], [0, 0, 0, 1, 1, 1], [0], [0]>} : vector<8x8x32xf32>, vector<8x8x32xf32>, vector<8x8x8xf32> -> vector<8x8x8xf32>
    "tpu.trace_stop"() : () -> ()
    %cst_69 = arith.constant 0.176776692 : f32
    %120 = vector.broadcast %cst_69 : f32 to vector<8x8x8xf32>
    %121 = arith.mulf %119, %120 : vector<8x8x8xf32>
    %122 = vector.broadcast %12 : vector<8x1x8xf32> to vector<8x8x8xf32>
    %123 = arith.addf %121, %122 : vector<8x8x8xf32>
    %cst_70 = arith.constant dense<0xFF800000> : vector<8x8xf32>
    %124 = vector.multi_reduction <maximumf>, %123, %cst_70 [2] : vector<8x8x8xf32> to vector<8x8xf32>
    %125 = vector.shape_cast %124 : vector<8x8xf32> to vector<8x8x1xf32>
    %126 = vector.broadcast %125 : vector<8x8x1xf32> to vector<8x8x8xf32>
    %127 = arith.subf %123, %126 : vector<8x8x8xf32>
    %128 = math.exp %127 : vector<8x8x8xf32>
    %cst_71 = arith.constant dense<0.000000e+00> : vector<8x8xf32>
    %129 = vector.multi_reduction <add>, %128, %cst_71 [2] : vector<8x8x8xf32> to vector<8x8xf32>
    %130 = vector.shape_cast %129 : vector<8x8xf32> to vector<8x8x1xf32>
    %131 = tpu.reciprocal %130 {approx = true} : vector<8x8x1xf32> -> vector<8x8x1xf32>
    %132 = vector.broadcast %131 : vector<8x8x1xf32> to vector<8x8x8xf32>
    %133 = arith.mulf %128, %132 : vector<8x8x8xf32>
    "tpu.trace_start"() <{level = 10 : i32, message = "bqk,bkh->bqh"}> : () -> ()
    %cst_72 = arith.constant dense<0.000000e+00> : vector<8x8x32xf32>
    %134 = tpu.matmul %133, %118, %cst_72 {dimension_numbers = #tpu.dot_dimension_numbers<[2], [1], [1], [2], [0, 0, 0, 1, 1, 2], [0], [0]>} : vector<8x8x8xf32>, vector<8x8x32xf32>, vector<8x8x32xf32> -> vector<8x8x32xf32>
    "tpu.trace_stop"() : () -> ()
    %135 = vector.shape_cast %134 : vector<8x8x32xf32> to vector<64x32xf32>
    %c0_73 = arith.constant 0 : index
    %c768 = arith.constant 768 : index
    %136 = vector.load %arg6[%c0_73, %c768] : memref<32x1792xf32, #tpu.memory_space<vmem>>, vector<32x32xf32>
    %cst_74 = arith.constant dense<0.000000e+00> : vector<64x32xf32>
    %137 = tpu.matmul %135, %136, %cst_74 {dimension_numbers = #tpu.dot_dimension_numbers<[1], [0], [0], [1], [0, 0, 1, 1], [], []>} : vector<64x32xf32>, vector<32x32xf32>, vector<64x32xf32> -> vector<64x32xf32>
    %c0_75 = arith.constant 0 : index
    %c416 = arith.constant 416 : index
    %138 = vector.load %arg7[%c0_75, %c416] : memref<1x769xf32, #tpu.memory_space<vmem>>, vector<1x32xf32>
    %139 = vector.broadcast %138 : vector<1x32xf32> to vector<64x32xf32>
    %140 = arith.addf %137, %139 : vector<64x32xf32>
    %141 = vector.shape_cast %140 : vector<64x32xf32> to vector<8x8x32xf32>
    %cst_76 = arith.constant dense<0.000000e+00> : vector<8x1x32xf32>
    %142 = tpu.matmul %2, %141, %cst_76 {dimension_numbers = #tpu.dot_dimension_numbers<[2], [1], [1], [2], [0, 0, 0, 1, 1, 2], [0], [0]>} : vector<8x1x8xf32>, vector<8x8x32xf32>, vector<8x1x32xf32> -> vector<8x1x32xf32>
    %cst_77 = arith.constant dense<0.000000e+00> : vector<8x1xf32>
    %143 = vector.multi_reduction <add>, %2, %cst_77 [2] : vector<8x1x8xf32> to vector<8x1xf32>
    %144 = vector.shape_cast %143 : vector<8x1xf32> to vector<8x1x1xf32>
    %cst_78 = arith.constant 9.99999993E-9 : f32
    %145 = vector.broadcast %cst_78 : f32 to vector<8x1x1xf32>
    %146 = arith.addf %144, %145 : vector<8x1x1xf32>
    %147 = vector.broadcast %146 : vector<8x1x1xf32> to vector<8x1x32xf32>
    %148 = arith.divf %142, %147 : vector<8x1x32xf32>
    %149 = vector.shape_cast %148 : vector<8x1x32xf32> to vector<8x32xf32>
    %c32_79 = arith.constant 32 : index
    %c0_80 = arith.constant 0 : index
    %150 = vector.load %arg5[%c32_79, %c0_80] : memref<192x32xf32, #tpu.memory_space<vmem>>, vector<64x32xf32>
    %151 = vector.extract_strided_slice %150 {offsets = [0, 0], sizes = [32, 32], strides = [1, 1]} : vector<64x32xf32> to vector<32x32xf32>
    %cst_81 = arith.constant dense<0.000000e+00> : vector<8x32xf32>
    %152 = tpu.matmul %93, %151, %cst_81 {dimension_numbers = #tpu.dot_dimension_numbers<[1], [0], [0], [1], [0, 0, 1, 1], [], []>} : vector<8x32xf32>, vector<32x32xf32>, vector<8x32xf32> -> vector<8x32xf32>
    %153 = vector.extract_strided_slice %150 {offsets = [32, 0], sizes = [32, 32], strides = [1, 1]} : vector<64x32xf32> to vector<32x32xf32>
    %cst_82 = arith.constant dense<0.000000e+00> : vector<8x32xf32>
    %154 = tpu.matmul %149, %153, %cst_82 {dimension_numbers = #tpu.dot_dimension_numbers<[1], [0], [0], [1], [0, 0, 1, 1], [], []>} : vector<8x32xf32>, vector<32x32xf32>, vector<8x32xf32> -> vector<8x32xf32>
    %155 = arith.addf %152, %154 : vector<8x32xf32>
    %c0_83 = arith.constant 0 : index
    %c448 = arith.constant 448 : index
    %156 = vector.load %arg7[%c0_83, %c448] : memref<1x769xf32, #tpu.memory_space<vmem>>, vector<1x32xf32>
    %157 = vector.broadcast %156 : vector<1x32xf32> to vector<8x32xf32>
    %158 = arith.addf %155, %157 : vector<8x32xf32>
    %c0_84 = arith.constant 0 : index
    %c896 = arith.constant 896 : index
    %159 = vector.load %arg6[%c0_84, %c896] : memref<32x1792xf32, #tpu.memory_space<vmem>>, vector<32x32xf32>
    %cst_85 = arith.constant dense<0.000000e+00> : vector<8x32xf32>
    %160 = tpu.matmul %158, %159, %cst_85 {dimension_numbers = #tpu.dot_dimension_numbers<[1], [0], [0], [1], [0, 0, 1, 1], [], []>} : vector<8x32xf32>, vector<32x32xf32>, vector<8x32xf32> -> vector<8x32xf32>
    %c0_86 = arith.constant 0 : index
    %c480 = arith.constant 480 : index
    %161 = vector.load %arg7[%c0_86, %c480] : memref<1x769xf32, #tpu.memory_space<vmem>>, vector<1x32xf32>
    %162 = vector.broadcast %161 : vector<1x32xf32> to vector<8x32xf32>
    %163 = arith.addf %160, %162 : vector<8x32xf32>
    %164 = vector.shape_cast %163 : vector<8x32xf32> to vector<8x1x32xf32>
    %165 = vector.shape_cast %85 : vector<8x8x32xf32> to vector<64x32xf32>
    %c0_87 = arith.constant 0 : index
    %c1024 = arith.constant 1024 : index
    %166 = vector.load %arg6[%c0_87, %c1024] : memref<32x1792xf32, #tpu.memory_space<vmem>>, vector<32x64xf32>
    %cst_88 = arith.constant dense<0.000000e+00> : vector<64x64xf32>
    %167 = tpu.matmul %165, %166, %cst_88 {dimension_numbers = #tpu.dot_dimension_numbers<[1], [0], [0], [1], [0, 0, 1, 1], [], []>} : vector<64x32xf32>, vector<32x64xf32>, vector<64x64xf32> -> vector<64x64xf32>
    %c0_89 = arith.constant 0 : index
    %c512_90 = arith.constant 512 : index
    %168 = vector.load %arg7[%c0_89, %c512_90] : memref<1x769xf32, #tpu.memory_space<vmem>>, vector<1x64xf32>
    %169 = vector.broadcast %168 : vector<1x64xf32> to vector<64x64xf32>
    %170 = arith.addf %167, %169 : vector<64x64xf32>
    %171 = vector.shape_cast %170 : vector<64x64xf32> to vector<8x8x64xf32>
    %172 = vector.extract_strided_slice %171 {offsets = [0, 0, 0], sizes = [8, 8, 32], strides = [1, 1, 1]} : vector<8x8x64xf32> to vector<8x8x32xf32>
    %173 = vector.extract_strided_slice %171 {offsets = [0, 0, 32], sizes = [8, 8, 32], strides = [1, 1, 1]} : vector<8x8x64xf32> to vector<8x8x32xf32>
    "tpu.trace_start"() <{level = 10 : i32, message = "bqh,bkh->bqk"}> : () -> ()
    %cst_91 = arith.constant dense<0.000000e+00> : vector<8x1x8xf32>
    %174 = tpu.matmul %164, %172, %cst_91 {dimension_numbers = #tpu.dot_dimension_numbers<[2], [2], [1], [1], [0, 0, 0, 1, 1, 1], [0], [0]>} : vector<8x1x32xf32>, vector<8x8x32xf32>, vector<8x1x8xf32> -> vector<8x1x8xf32>
    "tpu.trace_stop"() : () -> ()
    %cst_92 = arith.constant 0.176776692 : f32
    %175 = vector.broadcast %cst_92 : f32 to vector<8x1x8xf32>
    %176 = arith.mulf %174, %175 : vector<8x1x8xf32>
    %177 = arith.addf %176, %7 : vector<8x1x8xf32>
    %cst_93 = arith.constant dense<0xFF800000> : vector<8x1xf32>
    %178 = vector.multi_reduction <maximumf>, %177, %cst_93 [2] : vector<8x1x8xf32> to vector<8x1xf32>
    %179 = vector.shape_cast %178 : vector<8x1xf32> to vector<8x1x1xf32>
    %180 = vector.broadcast %179 : vector<8x1x1xf32> to vector<8x1x8xf32>
    %181 = arith.subf %177, %180 : vector<8x1x8xf32>
    %182 = math.exp %181 : vector<8x1x8xf32>
    %cst_94 = arith.constant dense<0.000000e+00> : vector<8x1xf32>
    %183 = vector.multi_reduction <add>, %182, %cst_94 [2] : vector<8x1x8xf32> to vector<8x1xf32>
    %184 = vector.shape_cast %183 : vector<8x1xf32> to vector<8x1x1xf32>
    %185 = tpu.reciprocal %184 {approx = true} : vector<8x1x1xf32> -> vector<8x1x1xf32>
    %186 = vector.broadcast %185 : vector<8x1x1xf32> to vector<8x1x8xf32>
    %187 = arith.mulf %182, %186 : vector<8x1x8xf32>
    "tpu.trace_start"() <{level = 10 : i32, message = "bqk,bkh->bqh"}> : () -> ()
    %cst_95 = arith.constant dense<0.000000e+00> : vector<8x1x32xf32>
    %188 = tpu.matmul %187, %173, %cst_95 {dimension_numbers = #tpu.dot_dimension_numbers<[2], [1], [1], [2], [0, 0, 0, 1, 1, 2], [0], [0]>} : vector<8x1x8xf32>, vector<8x8x32xf32>, vector<8x1x32xf32> -> vector<8x1x32xf32>
    "tpu.trace_stop"() : () -> ()
    %189 = vector.shape_cast %188 : vector<8x1x32xf32> to vector<8x32xf32>
    %c0_96 = arith.constant 0 : index
    %c1152 = arith.constant 1152 : index
    %190 = vector.load %arg6[%c0_96, %c1152] : memref<32x1792xf32, #tpu.memory_space<vmem>>, vector<32x32xf32>
    %cst_97 = arith.constant dense<0.000000e+00> : vector<8x32xf32>
    %191 = tpu.matmul %189, %190, %cst_97 {dimension_numbers = #tpu.dot_dimension_numbers<[1], [0], [0], [1], [0, 0, 1, 1], [], []>} : vector<8x32xf32>, vector<32x32xf32>, vector<8x32xf32> -> vector<8x32xf32>
    %c0_98 = arith.constant 0 : index
    %c576 = arith.constant 576 : index
    %192 = vector.load %arg7[%c0_98, %c576] : memref<1x769xf32, #tpu.memory_space<vmem>>, vector<1x32xf32>
    %193 = vector.broadcast %192 : vector<1x32xf32> to vector<8x32xf32>
    %194 = arith.addf %191, %193 : vector<8x32xf32>
    %c0_99 = arith.constant 0 : index
    %c1280 = arith.constant 1280 : index
    %195 = vector.load %arg6[%c0_99, %c1280] : memref<32x1792xf32, #tpu.memory_space<vmem>>, vector<32x32xf32>
    %cst_100 = arith.constant dense<0.000000e+00> : vector<8x32xf32>
    %196 = tpu.matmul %158, %195, %cst_100 {dimension_numbers = #tpu.dot_dimension_numbers<[1], [0], [0], [1], [0, 0, 1, 1], [], []>} : vector<8x32xf32>, vector<32x32xf32>, vector<8x32xf32> -> vector<8x32xf32>
    %c0_101 = arith.constant 0 : index
    %c608 = arith.constant 608 : index
    %197 = vector.load %arg7[%c0_101, %c608] : memref<1x769xf32, #tpu.memory_space<vmem>>, vector<1x32xf32>
    %198 = vector.broadcast %197 : vector<1x32xf32> to vector<8x32xf32>
    %199 = arith.addf %196, %198 : vector<8x32xf32>
    %200 = vector.shape_cast %199 : vector<8x32xf32> to vector<8x1x32xf32>
    %201 = vector.shape_cast %141 : vector<8x8x32xf32> to vector<64x32xf32>
    %c0_102 = arith.constant 0 : index
    %c1408 = arith.constant 1408 : index
    %202 = vector.load %arg6[%c0_102, %c1408] : memref<32x1792xf32, #tpu.memory_space<vmem>>, vector<32x64xf32>
    %cst_103 = arith.constant dense<0.000000e+00> : vector<64x64xf32>
    %203 = tpu.matmul %201, %202, %cst_103 {dimension_numbers = #tpu.dot_dimension_numbers<[1], [0], [0], [1], [0, 0, 1, 1], [], []>} : vector<64x32xf32>, vector<32x64xf32>, vector<64x64xf32> -> vector<64x64xf32>
    %c0_104 = arith.constant 0 : index
    %c640_105 = arith.constant 640 : index
    %204 = vector.load %arg7[%c0_104, %c640_105] : memref<1x769xf32, #tpu.memory_space<vmem>>, vector<1x64xf32>
    %205 = vector.broadcast %204 : vector<1x64xf32> to vector<64x64xf32>
    %206 = arith.addf %203, %205 : vector<64x64xf32>
    %207 = vector.shape_cast %206 : vector<64x64xf32> to vector<8x8x64xf32>
    %208 = vector.extract_strided_slice %207 {offsets = [0, 0, 0], sizes = [8, 8, 32], strides = [1, 1, 1]} : vector<8x8x64xf32> to vector<8x8x32xf32>
    %209 = vector.extract_strided_slice %207 {offsets = [0, 0, 32], sizes = [8, 8, 32], strides = [1, 1, 1]} : vector<8x8x64xf32> to vector<8x8x32xf32>
    "tpu.trace_start"() <{level = 10 : i32, message = "bqh,bkh->bqk"}> : () -> ()
    %cst_106 = arith.constant dense<0.000000e+00> : vector<8x1x8xf32>
    %210 = tpu.matmul %200, %208, %cst_106 {dimension_numbers = #tpu.dot_dimension_numbers<[2], [2], [1], [1], [0, 0, 0, 1, 1, 1], [0], [0]>} : vector<8x1x32xf32>, vector<8x8x32xf32>, vector<8x1x8xf32> -> vector<8x1x8xf32>
    "tpu.trace_stop"() : () -> ()
    %cst_107 = arith.constant 0.176776692 : f32
    %211 = vector.broadcast %cst_107 : f32 to vector<8x1x8xf32>
    %212 = arith.mulf %210, %211 : vector<8x1x8xf32>
    %213 = arith.addf %212, %12 : vector<8x1x8xf32>
    %cst_108 = arith.constant dense<0xFF800000> : vector<8x1xf32>
    %214 = vector.multi_reduction <maximumf>, %213, %cst_108 [2] : vector<8x1x8xf32> to vector<8x1xf32>
    %215 = vector.shape_cast %214 : vector<8x1xf32> to vector<8x1x1xf32>
    %216 = vector.broadcast %215 : vector<8x1x1xf32> to vector<8x1x8xf32>
    %217 = arith.subf %213, %216 : vector<8x1x8xf32>
    %218 = math.exp %217 : vector<8x1x8xf32>
    %cst_109 = arith.constant dense<0.000000e+00> : vector<8x1xf32>
    %219 = vector.multi_reduction <add>, %218, %cst_109 [2] : vector<8x1x8xf32> to vector<8x1xf32>
    %220 = vector.shape_cast %219 : vector<8x1xf32> to vector<8x1x1xf32>
    %221 = tpu.reciprocal %220 {approx = true} : vector<8x1x1xf32> -> vector<8x1x1xf32>
    %222 = vector.broadcast %221 : vector<8x1x1xf32> to vector<8x1x8xf32>
    %223 = arith.mulf %218, %222 : vector<8x1x8xf32>
    "tpu.trace_start"() <{level = 10 : i32, message = "bqk,bkh->bqh"}> : () -> ()
    %cst_110 = arith.constant dense<0.000000e+00> : vector<8x1x32xf32>
    %224 = tpu.matmul %223, %209, %cst_110 {dimension_numbers = #tpu.dot_dimension_numbers<[2], [1], [1], [2], [0, 0, 0, 1, 1, 2], [0], [0]>} : vector<8x1x8xf32>, vector<8x8x32xf32>, vector<8x1x32xf32> -> vector<8x1x32xf32>
    "tpu.trace_stop"() : () -> ()
    %225 = vector.shape_cast %224 : vector<8x1x32xf32> to vector<8x32xf32>
    %c0_111 = arith.constant 0 : index
    %c1536 = arith.constant 1536 : index
    %226 = vector.load %arg6[%c0_111, %c1536] : memref<32x1792xf32, #tpu.memory_space<vmem>>, vector<32x32xf32>
    %cst_112 = arith.constant dense<0.000000e+00> : vector<8x32xf32>
    %227 = tpu.matmul %225, %226, %cst_112 {dimension_numbers = #tpu.dot_dimension_numbers<[1], [0], [0], [1], [0, 0, 1, 1], [], []>} : vector<8x32xf32>, vector<32x32xf32>, vector<8x32xf32> -> vector<8x32xf32>
    %c0_113 = arith.constant 0 : index
    %c704 = arith.constant 704 : index
    %228 = vector.load %arg7[%c0_113, %c704] : memref<1x769xf32, #tpu.memory_space<vmem>>, vector<1x32xf32>
    %229 = vector.broadcast %228 : vector<1x32xf32> to vector<8x32xf32>
    %230 = arith.addf %227, %229 : vector<8x32xf32>
    %c96_114 = arith.constant 96 : index
    %c0_115 = arith.constant 0 : index
    %231 = vector.load %arg5[%c96_114, %c0_115] : memref<192x32xf32, #tpu.memory_space<vmem>>, vector<96x32xf32>
    %232 = vector.extract_strided_slice %231 {offsets = [0, 0], sizes = [32, 32], strides = [1, 1]} : vector<96x32xf32> to vector<32x32xf32>
    %cst_116 = arith.constant dense<0.000000e+00> : vector<8x32xf32>
    %233 = tpu.matmul %37, %232, %cst_116 {dimension_numbers = #tpu.dot_dimension_numbers<[1], [0], [0], [1], [0, 0, 1, 1], [], []>} : vector<8x32xf32>, vector<32x32xf32>, vector<8x32xf32> -> vector<8x32xf32>
    %234 = vector.extract_strided_slice %231 {offsets = [32, 0], sizes = [32, 32], strides = [1, 1]} : vector<96x32xf32> to vector<32x32xf32>
    %cst_117 = arith.constant dense<0.000000e+00> : vector<8x32xf32>
    %235 = tpu.matmul %194, %234, %cst_117 {dimension_numbers = #tpu.dot_dimension_numbers<[1], [0], [0], [1], [0, 0, 1, 1], [], []>} : vector<8x32xf32>, vector<32x32xf32>, vector<8x32xf32> -> vector<8x32xf32>
    %236 = arith.addf %233, %235 : vector<8x32xf32>
    %237 = vector.extract_strided_slice %231 {offsets = [64, 0], sizes = [32, 32], strides = [1, 1]} : vector<96x32xf32> to vector<32x32xf32>
    %cst_118 = arith.constant dense<0.000000e+00> : vector<8x32xf32>
    %238 = tpu.matmul %230, %237, %cst_118 {dimension_numbers = #tpu.dot_dimension_numbers<[1], [0], [0], [1], [0, 0, 1, 1], [], []>} : vector<8x32xf32>, vector<32x32xf32>, vector<8x32xf32> -> vector<8x32xf32>
    %239 = arith.addf %236, %238 : vector<8x32xf32>
    %c0_119 = arith.constant 0 : index
    %c736 = arith.constant 736 : index
    %240 = vector.load %arg7[%c0_119, %c736] : memref<1x769xf32, #tpu.memory_space<vmem>>, vector<1x32xf32>
    %241 = vector.broadcast %240 : vector<1x32xf32> to vector<8x32xf32>
    %242 = arith.addf %239, %241 : vector<8x32xf32>
    %cst_120 = arith.constant 0.000000e+00 : f32
    %243 = vector.broadcast %cst_120 : f32 to vector<8x32xf32>
    %244 = arith.maximumf %242, %243 : vector<8x32xf32>
    %c0_121 = arith.constant 0 : index
    %c1664 = arith.constant 1664 : index
    %245 = vector.load %arg6[%c0_121, %c1664] : memref<32x1792xf32, #tpu.memory_space<vmem>>, vector<32x1xf32>
    %cst_122 = arith.constant dense<0.000000e+00> : vector<8x1xf32>
    %246 = tpu.matmul %244, %245, %cst_122 {dimension_numbers = #tpu.dot_dimension_numbers<[1], [0], [0], [1], [0, 0, 1, 1], [], []>} : vector<8x32xf32>, vector<32x1xf32>, vector<8x1xf32> -> vector<8x1xf32>
    %c0_123 = arith.constant 0 : index
    %c768_124 = arith.constant 768 : index
    %247 = vector.load %arg7[%c0_123, %c768_124] : memref<1x769xf32, #tpu.memory_space<vmem>>, vector<1x1xf32>
    %248 = vector.broadcast %247 : vector<1x1xf32> to vector<8x1xf32>
    %249 = arith.addf %246, %248 : vector<8x1xf32>
    %250 = arith.negf %249 : vector<8x1xf32>
    %251 = math.exp %250 : vector<8x1xf32>
    %cst_125 = arith.constant 1.000000e+00 : f32
    %252 = vector.broadcast %cst_125 : f32 to vector<8x1xf32>
    %253 = arith.addf %252, %251 : vector<8x1xf32>
    %254 = arith.divf %252, %253 : vector<8x1xf32>
    %255 = vector.shape_cast %254 : vector<8x1xf32> to vector<1x1x8xf32>
    %c0_126 = arith.constant 0 : index
    %c0_127 = arith.constant 0 : index
    %c0_128 = arith.constant 0 : index
    %256 = vector.load %arg8[%c0_126, %c0_127, %c0_128] : memref<1x1x8xf32, #tpu.memory_space<vmem>>, vector<1x1x8xf32>
    tpu.vector_store %arg8[%c0_126, %c0_127, %c0_128], %255 {strides = array<i32>} : memref<1x1x8xf32, #tpu.memory_space<vmem>>, vector<1x1x8xf32>,
    return
  }
  func.func @transform_0(%arg0: i32) -> (i32, i32, i32) {
    %c0_i32 = arith.constant 0 : i32
    %c0_i32_0 = arith.constant 0 : i32
    %c0_i32_1 = arith.constant 0 : i32
    return %arg0, %c0_i32, %c0_i32_0 : i32, i32, i32
  }
  func.func @transform_1(%arg0: i32) -> (i32, i32, i32) {
    %c0_i32 = arith.constant 0 : i32
    %c0_i32_0 = arith.constant 0 : i32
    %c0_i32_1 = arith.constant 0 : i32
    return %arg0, %c0_i32, %c0_i32_0 : i32, i32, i32
  }
  func.func @transform_2(%arg0: i32) -> (i32, i32, i32) {
    %c0_i32 = arith.constant 0 : i32
    %c0_i32_0 = arith.constant 0 : i32
    %c0_i32_1 = arith.constant 0 : i32
    return %arg0, %c0_i32, %c0_i32_0 : i32, i32, i32
  }
  func.func @transform_3(%arg0: i32) -> (i32, i32, i32) {
    %c0_i32 = arith.constant 0 : i32
    %c0_i32_0 = arith.constant 0 : i32
    %c0_i32_1 = arith.constant 0 : i32
    return %arg0, %c0_i32, %c0_i32_0 : i32, i32, i32
  }
  func.func @transform_4(%arg0: i32) -> (i32, i32) {
    %c0_i32 = arith.constant 0 : i32
    %c0_i32_0 = arith.constant 0 : i32
    %c0_i32_1 = arith.constant 0 : i32
    return %c0_i32, %c0_i32_0 : i32, i32
  }
  func.func @transform_5(%arg0: i32) -> (i32, i32) {
    %c0_i32 = arith.constant 0 : i32
    %c0_i32_0 = arith.constant 0 : i32
    %c0_i32_1 = arith.constant 0 : i32
    return %c0_i32, %c0_i32_0 : i32, i32
  }
  func.func @transform_6(%arg0: i32) -> (i32, i32) {
    %c0_i32 = arith.constant 0 : i32
    %c0_i32_0 = arith.constant 0 : i32
    %c0_i32_1 = arith.constant 0 : i32
    return %c0_i32, %c0_i32_0 : i32, i32
  }
  func.func @transform_7(%arg0: i32) -> (i32, i32, i32) {
    %c0_i32 = arith.constant 0 : i32
    %c0_i32_0 = arith.constant 0 : i32
    %c0_i32_1 = arith.constant 0 : i32
    return %arg0, %c0_i32, %c0_i32_0 : i32, i32, i32
  }
}

</mosaic_0001>

<llo_original>
// kernel: set_conv_with_attention.1
$region0: #{set_conv_with_attention.1}
  #allocation0 [shape = 'u32[]', space=smem, size = 0x4, offset = 0x4, fixed_abs, tag = 'smem constant byte address 0x4 - core index']
  #allocation1 [shape = 'u32[144,128]{1,0:T(1,128)}', space=vmem, size = 0x12000, scoped, tag = 'internal scratch']
  %s0 = inlined_call_operand.vmem [shape: f32[16,8,6], index: 0, kind: input, shape index: {}]
  %s1 = inlined_call_operand.vmem [shape: f32[16,8,9], index: 1, kind: input, shape index: {}]
  %s2 = inlined_call_operand.vmem [shape: f32[16,8,5], index: 2, kind: input, shape index: {}]
  %s3 = inlined_call_operand.vmem [shape: f32[16,3,8], index: 3, kind: input, shape index: {}]
  %s4 = inlined_call_operand.vmem [shape: f32[192,32], index: 4, kind: input, shape index: {}]
  %s5 = inlined_call_operand.vmem [shape: f32[32,1792], index: 5, kind: input, shape index: {}]
  %s6 = inlined_call_operand.vmem [shape: f32[1,769], index: 6, kind: input, shape index: {}]
  %s7 = inlined_call_operand.vmem [shape: f32[2,1,8], index: 7, kind: output, shape index: {}]
  %s8 = sld [smem:[#allocation0]]
  $region61: #{set_conv_with_attention.1} parent=0
    _
  %s10 = ssub.s32 1, %s8
  %s11 = scalar_select 0, %s10, %s8
  loop: start=0, step=1, limit=4
  $region2: #{set_conv_with_attention.1} parent=0 // loop_pre_header
    _
  $region3: #{set_conv_with_attention.1} parent=0 // loop_header
    %s13 = sphi 0, %s17
    %p14 = scmp.ge.s32.totalorder %s13, 4
    %s23 = sphi 0, %s25
    %s26 = sphi 0, %s23
    %s27 = sphi 0, %s26
    %s43 = sphi 0, %s27
    %s49 = sphi 0, %s51
    %s52 = sphi 0, %s49
    %s53 = sphi 0, %s52
    %s69 = sphi 0, %s53
    %s75 = sphi 0, %s77
    %s78 = sphi 0, %s75
    %s79 = sphi 0, %s78
    %s95 = sphi 0, %s79
    %s101 = sphi 0, %s103
    %s104 = sphi 0, %s101
    %s105 = sphi 0, %s104
    %s121 = sphi 0, %s105
    %s125 = sphi 0, %s125
    %s127 = sphi 0, %s125
    %s128 = sphi 0, %s127
    %s142 = sphi 0, %s128
    %s146 = sphi 0, %s146
    %s148 = sphi 0, %s146
    %s149 = sphi 0, %s148
    %s163 = sphi 0, %s149
    %s167 = sphi 0, %s167
    %s169 = sphi 0, %s167
    %s170 = sphi 0, %s169
    %s184 = sphi 0, %s170
    %s190 = sphi 0, %s192
    %s193 = sphi 0, %s190
    %s194 = sphi 0, %s193
    %s210 = sphi 0, %s194
  $region4: #{set_conv_with_attention.1} parent=0 // loop_header_branch
    %16 = sbr.rel (%p14) target = $region8
  $region5: #{set_conv_with_attention.1} parent=0 // loop_body
    %s18 = ssub.s32 %s13, 1
    %s19 = ssub.s32 %s13, 2
    %s20 = sadd.s32 %s13, 1
    %s21 = ssub.s32 %s13, %s20
    %p22 = scmp.eq.s32.totalorder %s21, 0
    %s24 = sadd.s32 %s23, 1
    %s25 = scalar_select %p22, %s23, %s24
    %p28 = pneg %p22
    %p29 = scmp.eq.s32.totalorder %s13, 1
    %p30 = por %p28, %p29
    %p31 = scmp.ne.s32.totalorder %s23, %s26
    %p32 = scmp.eq.s32.totalorder %s13, 0
    %p33 = por %p31, %p32
    %p34 = scmp.ne.s32.totalorder %s23, %s26
    %p35 = scmp.eq.s32.totalorder %s18, 1
    %p36 = por %p34, %p35
    %p37 = scmp.ne.s32.totalorder %s26, %s27
    %p38 = scmp.eq.s32.totalorder %s18, 0
    %p39 = por %p37, %p38
    %p40 = scmp.ne.s32.totalorder %s26, %s27
    %p41 = scmp.eq.s32.totalorder %s19, 1
    %p42 = por %p40, %p41
    %p44 = scmp.ne.s32.totalorder %s27, %s43
    %p45 = scmp.eq.s32.totalorder %s19, 0
    %p46 = por %p44, %p45
    %s47 = ssub.s32 %s13, %s20
    %p48 = scmp.eq.s32.totalorder %s47, 0
    %s50 = sadd.s32 %s49, 1
    %s51 = scalar_select %p48, %s49, %s50
    %p54 = pneg %p48
    %p55 = scmp.eq.s32.totalorder %s13, 1
    %p56 = por %p54, %p55
    %p57 = scmp.ne.s32.totalorder %s49, %s52
    %p58 = scmp.eq.s32.totalorder %s13, 0
    %p59 = por %p57, %p58
    %p60 = scmp.ne.s32.totalorder %s49, %s52
    %p61 = scmp.eq.s32.totalorder %s18, 1
    %p62 = por %p60, %p61
    %p63 = scmp.ne.s32.totalorder %s52, %s53
    %p64 = scmp.eq.s32.totalorder %s18, 0
    %p65 = por %p63, %p64
    %p66 = scmp.ne.s32.totalorder %s52, %s53
    %p67 = scmp.eq.s32.totalorder %s19, 1
    %p68 = por %p66, %p67
    %p70 = scmp.ne.s32.totalorder %s53, %s69
    %p71 = scmp.eq.s32.totalorder %s19, 0
    %p72 = por %p70, %p71
    %s73 = ssub.s32 %s13, %s20
    %p74 = scmp.eq.s32.totalorder %s73, 0
    %s76 = sadd.s32 %s75, 1
    %s77 = scalar_select %p74, %s75, %s76
    %p80 = pneg %p74
    %p81 = scmp.eq.s32.totalorder %s13, 1
    %p82 = por %p80, %p81
    %p83 = scmp.ne.s32.totalorder %s75, %s78
    %p84 = scmp.eq.s32.totalorder %s13, 0
    %p85 = por %p83, %p84
    %p86 = scmp.ne.s32.totalorder %s75, %s78
    %p87 = scmp.eq.s32.totalorder %s18, 1
    %p88 = por %p86, %p87
    %p89 = scmp.ne.s32.totalorder %s78, %s79
    %p90 = scmp.eq.s32.totalorder %s18, 0
    %p91 = por %p89, %p90
    %p92 = scmp.ne.s32.totalorder %s78, %s79
    %p93 = scmp.eq.s32.totalorder %s19, 1
    %p94 = por %p92, %p93
    %p96 = scmp.ne.s32.totalorder %s79, %s95
    %p97 = scmp.eq.s32.totalorder %s19, 0
    %p98 = por %p96, %p97
    %s99 = ssub.s32 %s13, %s20
    %p100 = scmp.eq.s32.totalorder %s99, 0
    %s102 = sadd.s32 %s101, 1
    %s103 = scalar_select %p100, %s101, %s102
    %p106 = pneg %p100
    %p107 = scmp.eq.s32.totalorder %s13, 1
    %p108 = por %p106, %p107
    %p109 = scmp.ne.s32.totalorder %s101, %s104
    %p110 = scmp.eq.s32.totalorder %s13, 0
    %p111 = por %p109, %p110
    %p112 = scmp.ne.s32.totalorder %s101, %s104
    %p113 = scmp.eq.s32.totalorder %s18, 1
    %p114 = por %p112, %p113
    %p115 = scmp.ne.s32.totalorder %s104, %s105
    %p116 = scmp.eq.s32.totalorder %s18, 0
    %p117 = por %p115, %p116
    %p118 = scmp.ne.s32.totalorder %s104, %s105
    %p119 = scmp.eq.s32.totalorder %s19, 1
    %p120 = por %p118, %p119
    %p122 = scmp.ne.s32.totalorder %s105, %s121
    %p123 = scmp.eq.s32.totalorder %s19, 0
    %p124 = por %p122, %p123
    %s126 = sadd.s32 %s125, 1
    %p129 = scmp.eq.s32.totalorder %s13, 1
    %p130 = scmp.ne.s32.totalorder %s125, %s127
    %p131 = scmp.eq.s32.totalorder %s13, 0
    %p132 = por %p130, %p131
    %p133 = scmp.ne.s32.totalorder %s125, %s127
    %p134 = scmp.eq.s32.totalorder %s18, 1
    %p135 = por %p133, %p134
    %p136 = scmp.ne.s32.totalorder %s127, %s128
    %p137 = scmp.eq.s32.totalorder %s18, 0
    %p138 = por %p136, %p137
    %p139 = scmp.ne.s32.totalorder %s127, %s128
    %p140 = scmp.eq.s32.totalorder %s19, 1
    %p141 = por %p139, %p140
    %p143 = scmp.ne.s32.totalorder %s128, %s142
    %p144 = scmp.eq.s32.totalorder %s19, 0
    %p145 = por %p143, %p144
    %s147 = sadd.s32 %s146, 1
    %p150 = scmp.eq.s32.totalorder %s13, 1
    %p151 = scmp.ne.s32.totalorder %s146, %s148
    %p152 = scmp.eq.s32.totalorder %s13, 0
    %p153 = por %p151, %p152
    %p154 = scmp.ne.s32.totalorder %s146, %s148
    %p155 = scmp.eq.s32.totalorder %s18, 1
    %p156 = por %p154, %p155
    %p157 = scmp.ne.s32.totalorder %s148, %s149
    %p158 = scmp.eq.s32.totalorder %s18, 0
    %p159 = por %p157, %p158
    %p160 = scmp.ne.s32.totalorder %s148, %s149
    %p161 = scmp.eq.s32.totalorder %s19, 1
    %p162 = por %p160, %p161
    %p164 = scmp.ne.s32.totalorder %s149, %s163
    %p165 = scmp.eq.s32.totalorder %s19, 0
    %p166 = por %p164, %p165
    %s168 = sadd.s32 %s167, 1
    %p171 = scmp.eq.s32.totalorder %s13, 1
    %p172 = scmp.ne.s32.totalorder %s167, %s169
    %p173 = scmp.eq.s32.totalorder %s13, 0
    %p174 = por %p172, %p173
    %p175 = scmp.ne.s32.totalorder %s167, %s169
    %p176 = scmp.eq.s32.totalorder %s18, 1
    %p177 = por %p175, %p176
    %p178 = scmp.ne.s32.totalorder %s169, %s170
    %p179 = scmp.eq.s32.totalorder %s18, 0
    %p180 = por %p178, %p179
    %p181 = scmp.ne.s32.totalorder %s169, %s170
    %p182 = scmp.eq.s32.totalorder %s19, 1
    %p183 = por %p181, %p182
    %p185 = scmp.ne.s32.totalorder %s170, %s184
    %p186 = scmp.eq.s32.totalorder %s19, 0
    %p187 = por %p185, %p186
    %s188 = ssub.s32 %s13, %s20
    %p189 = scmp.eq.s32.totalorder %s188, 0
    %s191 = sadd.s32 %s190, 1
    %s192 = scalar_select %p189, %s190, %s191
    %p195 = pneg %p189
    %p196 = scmp.eq.s32.totalorder %s13, 1
    %p197 = por %p195, %p196
    %p198 = scmp.ne.s32.totalorder %s190, %s193
    %p199 = scmp.eq.s32.totalorder %s13, 0
    %p200 = por %p198, %p199
    %p201 = scmp.ne.s32.totalorder %s190, %s193
    %p202 = scmp.eq.s32.totalorder %s18, 1
    %p203 = por %p201, %p202
    %p204 = scmp.ne.s32.totalorder %s193, %s194
    %p205 = scmp.eq.s32.totalorder %s18, 0
    %p206 = por %p204, %p205
    %p207 = scmp.ne.s32.totalorder %s193, %s194
    %p208 = scmp.eq.s32.totalorder %s19, 1
    %p209 = por %p207, %p208
    %p211 = scmp.ne.s32.totalorder %s194, %s210
    %p212 = scmp.eq.s32.totalorder %s19, 0
    %p213 = por %p211, %p212
    %p214 = scmp.le.s32.totalorder 1, %s13
    %p215 = scmp.lt.s32.totalorder %s13, 3
    %p216 = pnand %p214, %p215
    %p217 = pneg %p216
    // Predicated region
    $region9: #{set_conv_with_attention.1} parent=5 // pred_check
      _
    $region10: #{set_conv_with_attention.1} parent=5 // pred_check_branch
      %219 = sbr.rel (%p216) target = $region12
    $region11: #{set_conv_with_attention.1} parent=5 // pred_region
      %s220 = ssub.s32 %s13, 1
      // Predicated region
      $region13: #{set_conv_with_attention.1} parent=11 // pred_check
        %p221 = pneg %p138
      $region14: #{set_conv_with_attention.1} parent=11 // pred_check_branch
        %223 = sbr.rel (%p221) target = $region16
      $region15: #{set_conv_with_attention.1} parent=11 // pred_region
        _
      $region16: #{set_conv_with_attention.1} parent=11 // pred_fallthru
        _
      // Predicated region
      $region17: #{set_conv_with_attention.1} parent=11 // pred_check
        %p224 = pneg %p159
      $region18: #{set_conv_with_attention.1} parent=11 // pred_check_branch
        %226 = sbr.rel (%p224) target = $region20
      $region19: #{set_conv_with_attention.1} parent=11 // pred_region
        _
      $region20: #{set_conv_with_attention.1} parent=11 // pred_fallthru
        _
      // Predicated region
      $region21: #{set_conv_with_attention.1} parent=11 // pred_check
        %p227 = pneg %p180
      $region22: #{set_conv_with_attention.1} parent=11 // pred_check_branch
        %229 = sbr.rel (%p227) target = $region24
      $region23: #{set_conv_with_attention.1} parent=11 // pred_region
        _
      $region24: #{set_conv_with_attention.1} parent=11 // pred_fallthru
        _
    $region12: #{set_conv_with_attention.1} parent=5 // pred_fallthru
      _
    %p230 = scmp.lt.s32.totalorder %s13, 2
    // Predicated region
    $region25: #{set_conv_with_attention.1} parent=5 // pred_check
      %p231 = pneg %p230
    $region26: #{set_conv_with_attention.1} parent=5 // pred_check_branch
      %233 = sbr.rel (%p231) target = $region28
    $region27: #{set_conv_with_attention.1} parent=5 // pred_region
      // Predicated region
      $region29: #{set_conv_with_attention.1} parent=27 // pred_check
        %p234 = pneg %p33
      $region30: #{set_conv_with_attention.1} parent=27 // pred_check_branch
        %236 = sbr.rel (%p234) target = $region32
      $region31: #{set_conv_with_attention.1} parent=27 // pred_region
        %s237 = smul.u32 8, %s13
        %p238 = scmp.lt.s32.totalorder %s237, 15
        %s239 = scalar_select %p238, %s237, 15
        %s240 = smul.addr %s239, 8
        %s241 = scalar_lea.vmem %s0, %s240
        %s242 = smul.u32 8, %s13
      $region32: #{set_conv_with_attention.1} parent=27 // pred_fallthru
        _
      // Predicated region
      $region33: #{set_conv_with_attention.1} parent=27 // pred_check
        %p243 = pneg %p59
      $region34: #{set_conv_with_attention.1} parent=27 // pred_check_branch
        %245 = sbr.rel (%p243) target = $region36
      $region35: #{set_conv_with_attention.1} parent=27 // pred_region
        %s246 = smul.u32 8, %s13
        %p247 = scmp.lt.s32.totalorder %s246, 15
        %s248 = scalar_select %p247, %s246, 15
        %s249 = smul.addr %s248, 8
        %s250 = scalar_lea.vmem %s1, %s249
        %s251 = smul.u32 8, %s13
      $region36: #{set_conv_with_attention.1} parent=27 // pred_fallthru
        _
      // Predicated region
      $region37: #{set_conv_with_attention.1} parent=27 // pred_check
        %p252 = pneg %p85
      $region38: #{set_conv_with_attention.1} parent=27 // pred_check_branch
        %254 = sbr.rel (%p252) target = $region40
      $region39: #{set_conv_with_attention.1} parent=27 // pred_region
        %s255 = smul.u32 8, %s13
        %p256 = scmp.lt.s32.totalorder %s255, 15
        %s257 = scalar_select %p256, %s255, 15
        %s258 = smul.addr %s257, 8
        %s259 = scalar_lea.vmem %s2, %s258
        %s260 = smul.u32 8, %s13
      $region40: #{set_conv_with_attention.1} parent=27 // pred_fallthru
        _
      // Predicated region
      $region41: #{set_conv_with_attention.1} parent=27 // pred_check
        %p261 = pneg %p111
      $region42: #{set_conv_with_attention.1} parent=27 // pred_check_branch
        %263 = sbr.rel (%p261) target = $region44
      $region43: #{set_conv_with_attention.1} parent=27 // pred_region
        %s264 = smul.u32 8, %s13
        %p265 = scmp.lt.s32.totalorder %s264, 15
        %s266 = scalar_select %p265, %s264, 15
        %s267 = smul.addr %s266, 4
        %s268 = scalar_lea.vmem %s3, %s267
        %s269 = smul.u32 8, %s13
      $region44: #{set_conv_with_attention.1} parent=27 // pred_fallthru
        _
    $region28: #{set_conv_with_attention.1} parent=5 // pred_fallthru
      _
    %p270 = scmp.le.s32.totalorder 1, %s13
    %p271 = scmp.lt.s32.totalorder %s13, 3
    %p272 = pnand %p270, %p271
    %p273 = pneg %p272
    // Predicated region
    $region45: #{set_conv_with_attention.1} parent=5 // pred_check
      _
    $region46: #{set_conv_with_attention.1} parent=5 // pred_check_branch
      %275 = sbr.rel (%p272) target = $region48
    $region47: #{set_conv_with_attention.1} parent=5 // pred_region
      %s276 = ssub.s32 %s13, 1
      %s277 = smul.u32 8, %s18
      %p278 = scmp.lt.s32.totalorder %s277, 15
      %s279 = scalar_select %p278, %s277, 15
      %s280 = smul.addr %s279, 8
      %s281 = scalar_lea.vmem %s0, %s280
      %p282 = pneg %p39
      %p283 = pneg %p36
      %s284 = smul.u32 8, %s18
      %p285 = scmp.lt.s32.totalorder %s284, 15
      %s286 = scalar_select %p285, %s284, 15
      %s287 = smul.addr %s286, 8
      %s288 = scalar_lea.vmem %s1, %s287
      %p289 = pneg %p65
      %p290 = pneg %p62
      %s291 = smul.u32 8, %s18
      %p292 = scmp.lt.s32.totalorder %s291, 15
      %s293 = scalar_select %p292, %s291, 15
      %s294 = smul.addr %s293, 8
      %s295 = scalar_lea.vmem %s2, %s294
      %p296 = pneg %p91
      %p297 = pneg %p88
      %s298 = smul.u32 8, %s18
      %p299 = scmp.lt.s32.totalorder %s298, 15
      %s300 = scalar_select %p299, %s298, 15
      %s301 = smul.addr %s300, 4
      %s302 = scalar_lea.vmem %s3, %s301
      %p303 = pneg %p117
      %p304 = pneg %p114
      %p305 = pneg %p138
      %p306 = pneg %p135
      %p307 = pneg %p159
      %p308 = pneg %p156
      %p309 = pneg %p180
      %p310 = pneg %p177
      %p311 = pneg %p206
      %p312 = pneg %p203
      %p313 = scmp.lt.s32.totalorder %s18, 1
      %s314 = scalar_select %p313, %s18, 1
      %s315 = scalar_lea.vmem %s7, %s314
      %s316 = smul.u32 8, %s18
      %p317 = scmp.lt.s32.totalorder %s316, 15
      %s318 = scalar_select %p317, %s316, 15
      %s319 = smul.addr %s318, 8
      %s320 = scalar_lea.vmem %s0, %s319
      %s321 = smul.u32 8, %s18
      %s322 = smul.u32 8, %s18
      %p323 = scmp.lt.s32.totalorder %s322, 15
      %s324 = scalar_select %p323, %s322, 15
      %s325 = smul.addr %s324, 8
      %s326 = scalar_lea.vmem %s1, %s325
      %s327 = smul.u32 8, %s18
      %s328 = smul.u32 8, %s18
      %p329 = scmp.lt.s32.totalorder %s328, 15
      %s330 = scalar_select %p329, %s328, 15
      %s331 = smul.addr %s330, 8
      %s332 = scalar_lea.vmem %s2, %s331
      %s333 = smul.u32 8, %s18
      %s334 = smul.u32 8, %s18
      %p335 = scmp.lt.s32.totalorder %s334, 15
      %s336 = scalar_select %p335, %s334, 15
      %s337 = smul.addr %s336, 4
      %s338 = scalar_lea.vmem %s3, %s337
      %s339 = smul.u32 8, %s18
      %p340 = scmp.lt.s32.totalorder %s18, 1
      %s341 = scalar_select %p340, %s18, 1
      %s342 = scalar_lea.vmem %s7, %s341
      %v343 = vld [vmem:[%s338] sm:$0x1]
      %v344 = vld [vmem:[%s338 + $0x4] sm:$0x1]
      %v345 = vld [vmem:[%s338 + $0x8] sm:$0x1]
      %v346 = vld [vmem:[%s338 + $0xc] sm:$0x1]
      %v347 = vld [vmem:[%s338 + $0x10] sm:$0x1]
      %v348 = vld [vmem:[%s338 + $0x14] sm:$0x1]
      %v349 = vld [vmem:[%s338 + $0x18] sm:$0x1]
      %v350 = vld [vmem:[%s338 + $0x1c] sm:$0x1]
      %v351 = vld [vmem:[%s338 + $0x1] sm:$0x1]
      %v352 = vld [vmem:[%s338 + $0x5] sm:$0x1]
      %v353 = vld [vmem:[%s338 + $0x9] sm:$0x1]
      %v354 = vld [vmem:[%s338 + $0xd] sm:$0x1]
      %v355 = vld [vmem:[%s338 + $0x11] sm:$0x1]
      %v356 = vld [vmem:[%s338 + $0x15] sm:$0x1]
      %v357 = vld [vmem:[%s338 + $0x19] sm:$0x1]
      %v358 = vld [vmem:[%s338 + $0x1d] sm:$0x1]
      %v359 = vld [vmem:[%s338 + $0x2] sm:$0x1]
      %v360 = vld [vmem:[%s338 + $0x6] sm:$0x1]
      %v361 = vld [vmem:[%s338 + $0xa] sm:$0x1]
      %v362 = vld [vmem:[%s338 + $0xe] sm:$0x1]
      %v363 = vld [vmem:[%s338 + $0x12] sm:$0x1]
      %v364 = vld [vmem:[%s338 + $0x16] sm:$0x1]
      %v365 = vld [vmem:[%s338 + $0x1a] sm:$0x1]
      %v366 = vld [vmem:[%s338 + $0x1e] sm:$0x1]
      %vm367 = vcmp.gt.f32.partialorder %v351, 0.5
      %vm368 = vcmp.gt.f32.partialorder %v352, 0.5
      %vm369 = vcmp.gt.f32.partialorder %v353, 0.5
      %vm370 = vcmp.gt.f32.partialorder %v354, 0.5
      %vm371 = vcmp.gt.f32.partialorder %v355, 0.5
      %vm372 = vcmp.gt.f32.partialorder %v356, 0.5
      %vm373 = vcmp.gt.f32.partialorder %v357, 0.5
      %vm374 = vcmp.gt.f32.partialorder %v358, 0.5
      %v375 = vsel %vm367, 0.0, -1e+30
      %v376 = vsel %vm368, 0.0, -1e+30
      %v377 = vsel %vm369, 0.0, -1e+30
      %v378 = vsel %vm370, 0.0, -1e+30
      %v379 = vsel %vm371, 0.0, -1e+30
      %v380 = vsel %vm372, 0.0, -1e+30
      %v381 = vsel %vm373, 0.0, -1e+30
      %v382 = vsel %vm374, 0.0, -1e+30
      %vm383 = vcmp.gt.f32.partialorder %v359, 0.5
      %vm384 = vcmp.gt.f32.partialorder %v360, 0.5
      %vm385 = vcmp.gt.f32.partialorder %v361, 0.5
      %vm386 = vcmp.gt.f32.partialorder %v362, 0.5
      %vm387 = vcmp.gt.f32.partialorder %v363, 0.5
      %vm388 = vcmp.gt.f32.partialorder %v364, 0.5
      %vm389 = vcmp.gt.f32.partialorder %v365, 0.5
      %vm390 = vcmp.gt.f32.partialorder %v366, 0.5
      %v391 = vsel %vm383, 0.0, -1e+30
      %v392 = vsel %vm384, 0.0, -1e+30
      %v393 = vsel %vm385, 0.0, -1e+30
      %v394 = vsel %vm386, 0.0, -1e+30
      %v395 = vsel %vm387, 0.0, -1e+30
      %v396 = vsel %vm388, 0.0, -1e+30
      %v397 = vsel %vm389, 0.0, -1e+30
      %v398 = vsel %vm390, 0.0, -1e+30
      %v399 = vld [vmem:[%s320] sm:$0xff]
      %v400 = vld [vmem:[%s320 + $0x8] sm:$0xff]
      %v401 = vld [vmem:[%s320 + $0x10] sm:$0xff]
      %v402 = vld [vmem:[%s320 + $0x18] sm:$0xff]
      %v403 = vld [vmem:[%s320 + $0x20] sm:$0xff]
      %v404 = vld [vmem:[%s320 + $0x28] sm:$0xff]
      %v405 = vld [vmem:[%s320 + $0x30] sm:$0xff]
      %v406 = vld [vmem:[%s320 + $0x38] sm:$0xff]
      %v407 = vld [vmem:[%s4] sm:$0x3f]
      %v408 = vld [vmem:[%s6] sm:$0x1]
      %v410 = vlaneseq
      %v411 = vshrl.u32 %v410, 7
      %v412 = vsub.s32 0, %v411
      %v413 = vrot.slane %v408, %v412
      %vm415 = vcmask 48128
      %v417 = vsel %vm415, %v399, 0
      %v420 = vsel %vm415, %v400, 0
      %v423 = vsel %vm415, %v401, 0
      %v426 = vsel %vm415, %v402, 0
      %v429 = vsel %vm415, %v403, 0
      %v432 = vsel %vm415, %v404, 0
      %v435 = vsel %vm415, %v405, 0
      %v438 = vsel %vm415, %v406, 0
      %vm440 = vcmask 1045504
      %v442 = vsel %vm440, %v407, 0
      %444 = vmatprep.subr.mxu0 0.0
      %445 = vmatpush1.msra.mxu0 %v442
      %446 = vmatprep.subr.mxu0 0.0
      %447 = vmatpush1.msra.mxu0 0.0
      %448 = vmatprep.subr.mxu0 0.0
      %449 = vmatpush1.msra.mxu0 0.0
      %450 = vmatprep.subr.mxu0 0.0
      %451 = vmatpush1.msra.mxu0 0.0
      %452 = vmatprep.subr.mxu0 0.0
      %453 = vmatpush1.msra.mxu0 0.0
      %454 = vmatprep.subr.mxu0 0.0
      %455 = vmatpush1.msra.mxu0 0.0
      %456 = vmatprep.subr.mxu0 0.0
      %457 = vmatpush1.msra.mxu0 0.0
      %458 = vmatprep.subr.mxu0 0.0
      %459 = vmatpush1.msra.mxu0 0.0
      %460 = vmatprep.subr.mxu0 0.0
      %461 = vmatpush1.msra.mxu0 0.0
      %462 = vmatprep.subr.mxu0 0.0
      %463 = vmatpush1.msra.mxu0 0.0
      %464 = vmatprep.subr.mxu0 0.0
      %465 = vmatpush1.msra.mxu0 0.0
      %466 = vmatprep.subr.mxu0 0.0
      %467 = vmatpush1.msra.mxu0 0.0
      %468 = vmatprep.subr.mxu0 0.0
      %469 = vmatpush1.msra.mxu0 0.0
      %470 = vmatprep.subr.mxu0 0.0
      %471 = vmatpush1.msra.mxu0 0.0
      %472 = vmatprep.subr.mxu0 0.0
      %473 = vmatpush1.msra.mxu0 0.0
      %474 = vmatprep.subr.mxu0 0.0
      %475 = vmatpush1.msra.mxu0 0.0
      %476 = vmatprep.subr.mxu0 0.0
      %477 = vmatpush1.msra.mxu0 0.0
      %478 = vmatprep.subr.mxu0 0.0
      %479 = vmatpush1.msra.mxu0 0.0
      %480 = vmatprep.subr.mxu0 0.0
      %481 = vmatpush1.msra.mxu0 0.0
      %482 = vmatprep.subr.mxu0 0.0
      %483 = vmatpush1.msra.mxu0 0.0
      %484 = vmatprep.subr.mxu0 0.0
      %485 = vmatpush1.msra.mxu0 0.0
      %486 = vmatprep.subr.mxu0 0.0
      %487 = vmatpush1.msra.mxu0 0.0
      %488 = vmatprep.subr.mxu0 0.0
      %489 = vmatpush1.msra.mxu0 0.0
      %490 = vmatprep.subr.mxu0 0.0
      %491 = vmatpush1.msra.mxu0 0.0
      %492 = vmatprep.subr.mxu0 0.0
      %493 = vmatpush1.msra.mxu0 0.0
      %494 = vmatprep.subr.mxu0 0.0
      %495 = vmatpush1.msra.mxu0 0.0
      %496 = vmatprep.subr.mxu0 0.0
      %497 = vmatpush1.msra.mxu0 0.0
      %498 = vmatprep.subr.mxu0 0.0
      %499 = vmatpush1.msra.mxu0 0.0
      %500 = vmatprep.subr.mxu0 0.0
      %501 = vmatpush1.msra.mxu0 0.0
      %502 = vmatprep.subr.mxu0 0.0
      %503 = vmatpush1.msra.mxu0 0.0
      %504 = vmatprep.subr.mxu0 0.0
      %505 = vmatpush1.msra.mxu0 0.0
      %506 = vmatprep.subr.mxu0 0.0
      %507 = vmatpush1.msra.mxu0 0.0
      %508 = vmatprep.mubr.f32.mxu0 0.0
      %509 = vmatmul.mubr.f32.gmra.mrb[0].mxu0 %v417
      %v510 = vpop.f32.mrb[0].mxu0
      %v511 = vadd.f32 %v413, %v510
      %v512 = vpop.f32.mrb[0].mxu0
      %513 = vmatprep.mubr.f32.mxu0 0.0
      %514 = vmatmul.mubr.f32.gmra.mrb[0].mxu0 %v420
      %v515 = vpop.f32.mrb[0].mxu0
      %v516 = vadd.f32 %v413, %v515
      %v517 = vpop.f32.mrb[0].mxu0
      %518 = vmatprep.mubr.f32.mxu0 0.0
      %519 = vmatmul.mubr.f32.gmra.mrb[0].mxu0 %v423
      %v520 = vpop.f32.mrb[0].mxu0
      %v521 = vadd.f32 %v413, %v520
      %v522 = vpop.f32.mrb[0].mxu0
      %523 = vmatprep.mubr.f32.mxu0 0.0
      %524 = vmatmul.mubr.f32.gmra.mrb[0].mxu0 %v426
      %v525 = vpop.f32.mrb[0].mxu0
      %v526 = vadd.f32 %v413, %v525
      %v527 = vpop.f32.mrb[0].mxu0
      %528 = vmatprep.mubr.f32.mxu0 0.0
      %529 = vmatmul.mubr.f32.gmra.mrb[0].mxu0 %v429
      %v530 = vpop.f32.mrb[0].mxu0
      %v531 = vadd.f32 %v413, %v530
      %v532 = vpop.f32.mrb[0].mxu0
      %533 = vmatprep.mubr.f32.mxu0 0.0
      %534 = vmatmul.mubr.f32.gmra.mrb[0].mxu0 %v432
      %v535 = vpop.f32.mrb[0].mxu0
      %v536 = vadd.f32 %v413, %v535
      %v537 = vpop.f32.mrb[0].mxu0
      %538 = vmatprep.mubr.f32.mxu0 0.0
      %539 = vmatmul.mubr.f32.gmra.mrb[0].mxu0 %v435
      %v540 = vpop.f32.mrb[0].mxu0
      %v541 = vadd.f32 %v413, %v540
      %v542 = vpop.f32.mrb[0].mxu0
      %543 = vmatprep.mubr.f32.mxu0 0.0
      %544 = vmatmul.mubr.f32.gmra.mrb[0].mxu0 %v438
      %v545 = vpop.f32.mrb[0].mxu0
      %v546 = vadd.f32 %v413, %v545
      %v547 = vpop.f32.mrb[0].mxu0
      %548 = vdwg.mxu0
      %v549 = vmax.f32 %v511, 0.0
      %v550 = vmax.f32 %v516, 0.0
      %v551 = vmax.f32 %v521, 0.0
      %v552 = vmax.f32 %v526, 0.0
      %v553 = vmax.f32 %v531, 0.0
      %v554 = vmax.f32 %v536, 0.0
      %v555 = vmax.f32 %v541, 0.0
      %v556 = vmax.f32 %v546, 0.0
      %v557 = vld [vmem:[%s5] sm:$0xff]
      %v558 = vld [vmem:[%s5 + $0x70] sm:$0xff]
      %v559 = vld [vmem:[%s5 + $0xe0] sm:$0xff]
      %v560 = vld [vmem:[%s5 + $0x150] sm:$0xff]
      %561 = vrot.lane.b32.xlu0 %v413, 96
      %v562 = vpop.permute.xlu0 %561
      %vm564 = vcmask 261120
      %v566 = vsel %vm564, %v549, 0
      %v569 = vsel %vm564, %v550, 0
      %v572 = vsel %vm564, %v551, 0
      %v575 = vsel %vm564, %v552, 0
      %v578 = vsel %vm564, %v553, 0
      %v581 = vsel %vm564, %v554, 0
      %v584 = vsel %vm564, %v555, 0
      %v587 = vsel %vm564, %v556, 0
      %589 = vmatprep.subr.mxu0 0.0
      %590 = vmatpush1.msra.mxu0 %v557
      %591 = vmatprep.subr.mxu0 0.0
      %592 = vmatpush1.msra.mxu0 %v558
      %593 = vmatprep.subr.mxu0 0.0
      %594 = vmatpush1.msra.mxu0 %v559
      %595 = vmatprep.subr.mxu0 0.0
      %596 = vmatpush1.msra.mxu0 %v560
      %597 = vmatprep.subr.mxu0 0.0
      %598 = vmatpush1.msra.mxu0 0.0
      %599 = vmatprep.subr.mxu0 0.0
      %600 = vmatpush1.msra.mxu0 0.0
      %601 = vmatprep.subr.mxu0 0.0
      %602 = vmatpush1.msra.mxu0 0.0
      %603 = vmatprep.subr.mxu0 0.0
      %604 = vmatpush1.msra.mxu0 0.0
      %605 = vmatprep.subr.mxu0 0.0
      %606 = vmatpush1.msra.mxu0 0.0
      %607 = vmatprep.subr.mxu0 0.0
      %608 = vmatpush1.msra.mxu0 0.0
      %609 = vmatprep.subr.mxu0 0.0
      %610 = vmatpush1.msra.mxu0 0.0
      %611 = vmatprep.subr.mxu0 0.0
      %612 = vmatpush1.msra.mxu0 0.0
      %613 = vmatprep.subr.mxu0 0.0
      %614 = vmatpush1.msra.mxu0 0.0
      %615 = vmatprep.subr.mxu0 0.0
      %616 = vmatpush1.msra.mxu0 0.0
      %617 = vmatprep.subr.mxu0 0.0
      %618 = vmatpush1.msra.mxu0 0.0
      %619 = vmatprep.subr.mxu0 0.0
      %620 = vmatpush1.msra.mxu0 0.0
      %621 = vmatprep.subr.mxu0 0.0
      %622 = vmatpush1.msra.mxu0 0.0
      %623 = vmatprep.subr.mxu0 0.0
      %624 = vmatpush1.msra.mxu0 0.0
      %625 = vmatprep.subr.mxu0 0.0
      %626 = vmatpush1.msra.mxu0 0.0
      %627 = vmatprep.subr.mxu0 0.0
      %628 = vmatpush1.msra.mxu0 0.0
      %629 = vmatprep.subr.mxu0 0.0
      %630 = vmatpush1.msra.mxu0 0.0
      %631 = vmatprep.subr.mxu0 0.0
      %632 = vmatpush1.msra.mxu0 0.0
      %633 = vmatprep.subr.mxu0 0.0
      %634 = vmatpush1.msra.mxu0 0.0
      %635 = vmatprep.subr.mxu0 0.0
      %636 = vmatpush1.msra.mxu0 0.0
      %637 = vmatprep.subr.mxu0 0.0
      %638 = vmatpush1.msra.mxu0 0.0
      %639 = vmatprep.subr.mxu0 0.0
      %640 = vmatpush1.msra.mxu0 0.0
      %641 = vmatprep.subr.mxu0 0.0
      %642 = vmatpush1.msra.mxu0 0.0
      %643 = vmatprep.subr.mxu0 0.0
      %644 = vmatpush1.msra.mxu0 0.0
      %645 = vmatprep.subr.mxu0 0.0
      %646 = vmatpush1.msra.mxu0 0.0
      %647 = vmatprep.subr.mxu0 0.0
      %648 = vmatpush1.msra.mxu0 0.0
      %649 = vmatprep.subr.mxu0 0.0
      %650 = vmatpush1.msra.mxu0 0.0
      %651 = vmatprep.subr.mxu0 0.0
      %652 = vmatpush1.msra.mxu0 0.0
      %653 = vmatprep.mubr.f32.mxu0 0.0
      %654 = vmatmul.mubr.f32.gmra.mrb[0].mxu0 %v566
      %v655 = vpop.f32.mrb[0].mxu0
      %v656 = vadd.f32 %v562, %v655
      %v657 = vpop.f32.mrb[0].mxu0
      %658 = vmatprep.mubr.f32.mxu0 0.0
      %659 = vmatmul.mubr.f32.gmra.mrb[0].mxu0 %v569
      %v660 = vpop.f32.mrb[0].mxu0
      %v661 = vadd.f32 %v562, %v660
      %v662 = vpop.f32.mrb[0].mxu0
      %663 = vmatprep.mubr.f32.mxu0 0.0
      %664 = vmatmul.mubr.f32.gmra.mrb[0].mxu0 %v572
      %v665 = vpop.f32.mrb[0].mxu0
      %v666 = vadd.f32 %v562, %v665
      %v667 = vpop.f32.mrb[0].mxu0
      %668 = vmatprep.mubr.f32.mxu0 0.0
      %669 = vmatmul.mubr.f32.gmra.mrb[0].mxu0 %v575
      %v670 = vpop.f32.mrb[0].mxu0
      %v671 = vadd.f32 %v562, %v670
      %v672 = vpop.f32.mrb[0].mxu0
      %673 = vmatprep.mubr.f32.mxu0 0.0
      %674 = vmatmul.mubr.f32.gmra.mrb[0].mxu0 %v578
      %v675 = vpop.f32.mrb[0].mxu0
      %v676 = vadd.f32 %v562, %v675
      %v677 = vpop.f32.mrb[0].mxu0
      %678 = vmatprep.mubr.f32.mxu0 0.0
      %679 = vmatmul.mubr.f32.gmra.mrb[0].mxu0 %v581
      %v680 = vpop.f32.mrb[0].mxu0
      %v681 = vadd.f32 %v562, %v680
      %v682 = vpop.f32.mrb[0].mxu0
      %683 = vmatprep.mubr.f32.mxu0 0.0
      %684 = vmatmul.mubr.f32.gmra.mrb[0].mxu0 %v584
      %v685 = vpop.f32.mrb[0].mxu0
      %v686 = vadd.f32 %v562, %v685
      %v687 = vpop.f32.mrb[0].mxu0
      %688 = vmatprep.mubr.f32.mxu0 0.0
      %689 = vmatmul.mubr.f32.gmra.mrb[0].mxu0 %v587
      %v690 = vpop.f32.mrb[0].mxu0
      %v691 = vadd.f32 %v562, %v690
      %v692 = vpop.f32.mrb[0].mxu0
      %693 = vdwg.mxu0
      %v694 = vmax.f32 %v656, 0.0
      %v695 = vmax.f32 %v661, 0.0
      %v696 = vmax.f32 %v666, 0.0
      %v697 = vmax.f32 %v671, 0.0
      %v698 = vmax.f32 %v676, 0.0
      %v699 = vmax.f32 %v681, 0.0
      %v700 = vmax.f32 %v686, 0.0
      %v701 = vmax.f32 %v691, 0.0
      %vm702 = vcmask 64512
      %v704 = vsel %vm702, %v343, 0
      %706 = vmatprep.subr.mxu0 0.0
      %707 = vmatpush1.msra.mxu0 %v694
      %708 = vmatprep.subr.mxu0 0.0
      %709 = vmatpush1.msra.mxu0 0.0
      %710 = vmatprep.subr.mxu0 0.0
      %711 = vmatpush1.msra.mxu0 0.0
      %712 = vmatprep.subr.mxu0 0.0
      %713 = vmatpush1.msra.mxu0 0.0
      %714 = vmatprep.subr.mxu0 0.0
      %715 = vmatpush1.msra.mxu0 0.0
      %716 = vmatprep.subr.mxu0 0.0
      %717 = vmatpush1.msra.mxu0 0.0
      %718 = vmatprep.subr.mxu0 0.0
      %719 = vmatpush1.msra.mxu0 0.0
      %720 = vmatprep.subr.mxu0 0.0
      %721 = vmatpush1.msra.mxu0 0.0
      %722 = vmatprep.subr.mxu0 0.0
      %723 = vmatpush1.msra.mxu0 0.0
      %724 = vmatprep.subr.mxu0 0.0
      %725 = vmatpush1.msra.mxu0 0.0
      %726 = vmatprep.subr.mxu0 0.0
      %727 = vmatpush1.msra.mxu0 0.0
      %728 = vmatprep.subr.mxu0 0.0
      %729 = vmatpush1.msra.mxu0 0.0
      %730 = vmatprep.subr.mxu0 0.0
      %731 = vmatpush1.msra.mxu0 0.0
      %732 = vmatprep.subr.mxu0 0.0
      %733 = vmatpush1.msra.mxu0 0.0
      %734 = vmatprep.subr.mxu0 0.0
      %735 = vmatpush1.msra.mxu0 0.0
      %736 = vmatprep.subr.mxu0 0.0
      %737 = vmatpush1.msra.mxu0 0.0
      %738 = vmatprep.subr.mxu0 0.0
      %739 = vmatpush1.msra.mxu0 0.0
      %740 = vmatprep.subr.mxu0 0.0
      %741 = vmatpush1.msra.mxu0 0.0
      %742 = vmatprep.subr.mxu0 0.0
      %743 = vmatpush1.msra.mxu0 0.0
      %744 = vmatprep.subr.mxu0 0.0
      %745 = vmatpush1.msra.mxu0 0.0
      %746 = vmatprep.subr.mxu0 0.0
      %747 = vmatpush1.msra.mxu0 0.0
      %748 = vmatprep.subr.mxu0 0.0
      %749 = vmatpush1.msra.mxu0 0.0
      %750 = vmatprep.subr.mxu0 0.0
      %751 = vmatpush1.msra.mxu0 0.0
      %752 = vmatprep.subr.mxu0 0.0
      %753 = vmatpush1.msra.mxu0 0.0
      %754 = vmatprep.subr.mxu0 0.0
      %755 = vmatpush1.msra.mxu0 0.0
      %756 = vmatprep.subr.mxu0 0.0
      %757 = vmatpush1.msra.mxu0 0.0
      %758 = vmatprep.subr.mxu0 0.0
      %759 = vmatpush1.msra.mxu0 0.0
      %760 = vmatprep.subr.mxu0 0.0
      %761 = vmatpush1.msra.mxu0 0.0
      %762 = vmatprep.subr.mxu0 0.0
      %763 = vmatpush1.msra.mxu0 0.0
      %764 = vmatprep.subr.mxu0 0.0
      %765 = vmatpush1.msra.mxu0 0.0
      %766 = vmatprep.subr.mxu0 0.0
      %767 = vmatpush1.msra.mxu0 0.0
      %768 = vmatprep.subr.mxu0 0.0
      %769 = vmatpush1.msra.mxu0 0.0
      %770 = vmatprep.mubr.f32.mxu0 0.0
      %771 = vmatmul.mubr.f32.gmra.mrb[0].mxu0 %v704
      %v772 = vpop.f32.mrb[0].mxu0
      %v773 = vadd.f32 0.0, %v772
      %v774 = vpop.f32.mrb[0].mxu0
      %775 = vdwg.mxu0
      %v777 = vsel %vm702, %v344, 0
      %779 = vmatprep.subr.mxu0 0.0
      %780 = vmatpush1.msra.mxu0 %v695
      %781 = vmatprep.subr.mxu0 0.0
      %782 = vmatpush1.msra.mxu0 0.0
      %783 = vmatprep.subr.mxu0 0.0
      %784 = vmatpush1.msra.mxu0 0.0
      %785 = vmatprep.subr.mxu0 0.0
      %786 = vmatpush1.msra.mxu0 0.0
      %787 = vmatprep.subr.mxu0 0.0
      %788 = vmatpush1.msra.mxu0 0.0
      %789 = vmatprep.subr.mxu0 0.0
      %790 = vmatpush1.msra.mxu0 0.0
      %791 = vmatprep.subr.mxu0 0.0
      %792 = vmatpush1.msra.mxu0 0.0
      %793 = vmatprep.subr.mxu0 0.0
      %794 = vmatpush1.msra.mxu0 0.0
      %795 = vmatprep.subr.mxu0 0.0
      %796 = vmatpush1.msra.mxu0 0.0
      %797 = vmatprep.subr.mxu0 0.0
      %798 = vmatpush1.msra.mxu0 0.0
      %799 = vmatprep.subr.mxu0 0.0
      %800 = vmatpush1.msra.mxu0 0.0
      %801 = vmatprep.subr.mxu0 0.0
      %802 = vmatpush1.msra.mxu0 0.0
      %803 = vmatprep.subr.mxu0 0.0
      %804 = vmatpush1.msra.mxu0 0.0
      %805 = vmatprep.subr.mxu0 0.0
      %806 = vmatpush1.msra.mxu0 0.0
      %807 = vmatprep.subr.mxu0 0.0
      %808 = vmatpush1.msra.mxu0 0.0
      %809 = vmatprep.subr.mxu0 0.0
      %810 = vmatpush1.msra.mxu0 0.0
      %811 = vmatprep.subr.mxu0 0.0
      %812 = vmatpush1.msra.mxu0 0.0
      %813 = vmatprep.subr.mxu0 0.0
      %814 = vmatpush1.msra.mxu0 0.0
      %815 = vmatprep.subr.mxu0 0.0
      %816 = vmatpush1.msra.mxu0 0.0
      %817 = vmatprep.subr.mxu0 0.0
      %818 = vmatpush1.msra.mxu0 0.0
      %819 = vmatprep.subr.mxu0 0.0
      %820 = vmatpush1.msra.mxu0 0.0
      %821 = vmatprep.subr.mxu0 0.0
      %822 = vmatpush1.msra.mxu0 0.0
      %823 = vmatprep.subr.mxu0 0.0
      %824 = vmatpush1.msra.mxu0 0.0
      %825 = vmatprep.subr.mxu0 0.0
      %826 = vmatpush1.msra.mxu0 0.0
      %827 = vmatprep.subr.mxu0 0.0
      %828 = vmatpush1.msra.mxu0 0.0
      %829 = vmatprep.subr.mxu0 0.0
      %830 = vmatpush1.msra.mxu0 0.0
      %831 = vmatprep.subr.mxu0 0.0
      %832 = vmatpush1.msra.mxu0 0.0
      %833 = vmatprep.subr.mxu0 0.0
      %834 = vmatpush1.msra.mxu0 0.0
      %835 = vmatprep.subr.mxu0 0.0
      %836 = vmatpush1.msra.mxu0 0.0
      %837 = vmatprep.subr.mxu0 0.0
      %838 = vmatpush1.msra.mxu0 0.0
      %839 = vmatprep.subr.mxu0 0.0
      %840 = vmatpush1.msra.mxu0 0.0
      %841 = vmatprep.subr.mxu0 0.0
      %842 = vmatpush1.msra.mxu0 0.0
      %843 = vmatprep.mubr.f32.mxu0 0.0
      %844 = vmatmul.mubr.f32.gmra.mrb[0].mxu0 %v777
      %v845 = vpop.f32.mrb[0].mxu0
      %v846 = vadd.f32 0.0, %v845
      %v847 = vpop.f32.mrb[0].mxu0
      %848 = vdwg.mxu0
      %v850 = vsel %vm702, %v345, 0
      %852 = vmatprep.subr.mxu0 0.0
      %853 = vmatpush1.msra.mxu0 %v696
      %854 = vmatprep.subr.mxu0 0.0
      %855 = vmatpush1.msra.mxu0 0.0
      %856 = vmatprep.subr.mxu0 0.0
      %857 = vmatpush1.msra.mxu0 0.0
      %858 = vmatprep.subr.mxu0 0.0
      %859 = vmatpush1.msra.mxu0 0.0
      %860 = vmatprep.subr.mxu0 0.0
      %861 = vmatpush1.msra.mxu0 0.0
      %862 = vmatprep.subr.mxu0 0.0
      %863 = vmatpush1.msra.mxu0 0.0
      %864 = vmatprep.subr.mxu0 0.0
      %865 = vmatpush1.msra.mxu0 0.0
      %866 = vmatprep.subr.mxu0 0.0
      %867 = vmatpush1.msra.mxu0 0.0
      %868 = vmatprep.subr.mxu0 0.0
      %869 = vmatpush1.msra.mxu0 0.0
      %870 = vmatprep.subr.mxu0 0.0
      %871 = vmatpush1.msra.mxu0 0.0
      %872 = vmatprep.subr.mxu0 0.0
      %873 = vmatpush1.msra.mxu0 0.0
      %874 = vmatprep.subr.mxu0 0.0
      %875 = vmatpush1.msra.mxu0 0.0
      %876 = vmatprep.subr.mxu0 0.0
      %877 = vmatpush1.msra.mxu0 0.0
      %878 = vmatprep.subr.mxu0 0.0
      %879 = vmatpush1.msra.mxu0 0.0
      %880 = vmatprep.subr.mxu0 0.0
      %881 = vmatpush1.msra.mxu0 0.0
      %882 = vmatprep.subr.mxu0 0.0
      %883 = vmatpush1.msra.mxu0 0.0
      %884 = vmatprep.subr.mxu0 0.0
      %885 = vmatpush1.msra.mxu0 0.0
      %886 = vmatprep.subr.mxu0 0.0
      %887 = vmatpush1.msra.mxu0 0.0
      %888 = vmatprep.subr.mxu0 0.0
      %889 = vmatpush1.msra.mxu0 0.0
      %890 = vmatprep.subr.mxu0 0.0
      %891 = vmatpush1.msra.mxu0 0.0
      %892 = vmatprep.subr.mxu0 0.0
      %893 = vmatpush1.msra.mxu0 0.0
      %894 = vmatprep.subr.mxu0 0.0
      %895 = vmatpush1.msra.mxu0 0.0
      %896 = vmatprep.subr.mxu0 0.0
      %897 = vmatpush1.msra.mxu0 0.0
      %898 = vmatprep.subr.mxu0 0.0
      %899 = vmatpush1.msra.mxu0 0.0
      %900 = vmatprep.subr.mxu0 0.0
      %901 = vmatpush1.msra.mxu0 0.0
      %902 = vmatprep.subr.mxu0 0.0
      %903 = vmatpush1.msra.mxu0 0.0
      %904 = vmatprep.subr.mxu0 0.0
      %905 = vmatpush1.msra.mxu0 0.0
      %906 = vmatprep.subr.mxu0 0.0
      %907 = vmatpush1.msra.mxu0 0.0
      %908 = vmatprep.subr.mxu0 0.0
      %909 = vmatpush1.msra.mxu0 0.0
      %910 = vmatprep.subr.mxu0 0.0
      %911 = vmatpush1.msra.mxu0 0.0
      %912 = vmatprep.subr.mxu0 0.0
      %913 = vmatpush1.msra.mxu0 0.0
      %914 = vmatprep.subr.mxu0 0.0
      %915 = vmatpush1.msra.mxu0 0.0
      %916 = vmatprep.mubr.f32.mxu0 0.0
      %917 = vmatmul.mubr.f32.gmra.mrb[0].mxu0 %v850
      %v918 = vpop.f32.mrb[0].mxu0
      %v919 = vadd.f32 0.0, %v918
      %v920 = vpop.f32.mrb[0].mxu0
      %921 = vdwg.mxu0
      %v923 = vsel %vm702, %v346, 0
      %925 = vmatprep.subr.mxu0 0.0
      %926 = vmatpush1.msra.mxu0 %v697
      %927 = vmatprep.subr.mxu0 0.0
      %928 = vmatpush1.msra.mxu0 0.0
      %929 = vmatprep.subr.mxu0 0.0
      %930 = vmatpush1.msra.mxu0 0.0
      %931 = vmatprep.subr.mxu0 0.0
      %932 = vmatpush1.msra.mxu0 0.0
      %933 = vmatprep.subr.mxu0 0.0
      %934 = vmatpush1.msra.mxu0 0.0
      %935 = vmatprep.subr.mxu0 0.0
      %936 = vmatpush1.msra.mxu0 0.0
      %937 = vmatprep.subr.mxu0 0.0
      %938 = vmatpush1.msra.mxu0 0.0
      %939 = vmatprep.subr.mxu0 0.0
      %940 = vmatpush1.msra.mxu0 0.0
      %941 = vmatprep.subr.mxu0 0.0
      %942 = vmatpush1.msra.mxu0 0.0
      %943 = vmatprep.subr.mxu0 0.0
      %944 = vmatpush1.msra.mxu0 0.0
      %945 = vmatprep.subr.mxu0 0.0
      %946 = vmatpush1.msra.mxu0 0.0
      %947 = vmatprep.subr.mxu0 0.0
      %948 = vmatpush1.msra.mxu0 0.0
      %949 = vmatprep.subr.mxu0 0.0
      %950 = vmatpush1.msra.mxu0 0.0
      %951 = vmatprep.subr.mxu0 0.0
      %952 = vmatpush1.msra.mxu0 0.0
      %953 = vmatprep.subr.mxu0 0.0
      %954 = vmatpush1.msra.mxu0 0.0
      %955 = vmatprep.subr.mxu0 0.0
      %956 = vmatpush1.msra.mxu0 0.0
      %957 = vmatprep.subr.mxu0 0.0
      %958 = vmatpush1.msra.mxu0 0.0
      %959 = vmatprep.subr.mxu0 0.0
      %960 = vmatpush1.msra.mxu0 0.0
      %961 = vmatprep.subr.mxu0 0.0
      %962 = vmatpush1.msra.mxu0 0.0
      %963 = vmatprep.subr.mxu0 0.0
      %964 = vmatpush1.msra.mxu0 0.0
      %965 = vmatprep.subr.mxu0 0.0
      %966 = vmatpush1.msra.mxu0 0.0
      %967 = vmatprep.subr.mxu0 0.0
      %968 = vmatpush1.msra.mxu0 0.0
      %969 = vmatprep.subr.mxu0 0.0
      %970 = vmatpush1.msra.mxu0 0.0
      %971 = vmatprep.subr.mxu0 0.0
      %972 = vmatpush1.msra.mxu0 0.0
      %973 = vmatprep.subr.mxu0 0.0
      %974 = vmatpush1.msra.mxu0 0.0
      %975 = vmatprep.subr.mxu0 0.0
      %976 = vmatpush1.msra.mxu0 0.0
      %977 = vmatprep.subr.mxu0 0.0
      %978 = vmatpush1.msra.mxu0 0.0
      %979 = vmatprep.subr.mxu0 0.0
      %980 = vmatpush1.msra.mxu0 0.0
      %981 = vmatprep.subr.mxu0 0.0
      %982 = vmatpush1.msra.mxu0 0.0
      %983 = vmatprep.subr.mxu0 0.0
      %984 = vmatpush1.msra.mxu0 0.0
      %985 = vmatprep.subr.mxu0 0.0
      %986 = vmatpush1.msra.mxu0 0.0
      %987 = vmatprep.subr.mxu0 0.0
      %988 = vmatpush1.msra.mxu0 0.0
      %989 = vmatprep.mubr.f32.mxu0 0.0
      %990 = vmatmul.mubr.f32.gmra.mrb[0].mxu0 %v923
      %v991 = vpop.f32.mrb[0].mxu0
      %v992 = vadd.f32 0.0, %v991
      %v993 = vpop.f32.mrb[0].mxu0
      %994 = vdwg.mxu0
      %v996 = vsel %vm702, %v347, 0
      %998 = vmatprep.subr.mxu0 0.0
      %999 = vmatpush1.msra.mxu0 %v698
      %1000 = vmatprep.subr.mxu0 0.0
      %1001 = vmatpush1.msra.mxu0 0.0
      %1002 = vmatprep.subr.mxu0 0.0
      %1003 = vmatpush1.msra.mxu0 0.0
      %1004 = vmatprep.subr.mxu0 0.0
      %1005 = vmatpush1.msra.mxu0 0.0
      %1006 = vmatprep.subr.mxu0 0.0
      %1007 = vmatpush1.msra.mxu0 0.0
      %1008 = vmatprep.subr.mxu0 0.0
      %1009 = vmatpush1.msra.mxu0 0.0
      %1010 = vmatprep.subr.mxu0 0.0
      %1011 = vmatpush1.msra.mxu0 0.0
      %1012 = vmatprep.subr.mxu0 0.0
      %1013 = vmatpush1.msra.mxu0 0.0
      %1014 = vmatprep.subr.mxu0 0.0
      %1015 = vmatpush1.msra.mxu0 0.0
      %1016 = vmatprep.subr.mxu0 0.0
      %1017 = vmatpush1.msra.mxu0 0.0
      %1018 = vmatprep.subr.mxu0 0.0
      %1019 = vmatpush1.msra.mxu0 0.0
      %1020 = vmatprep.subr.mxu0 0.0
      %1021 = vmatpush1.msra.mxu0 0.0
      %1022 = vmatprep.subr.mxu0 0.0
      %1023 = vmatpush1.msra.mxu0 0.0
      %1024 = vmatprep.subr.mxu0 0.0
      %1025 = vmatpush1.msra.mxu0 0.0
      %1026 = vmatprep.subr.mxu0 0.0
      %1027 = vmatpush1.msra.mxu0 0.0
      %1028 = vmatprep.subr.mxu0 0.0
      %1029 = vmatpush1.msra.mxu0 0.0
      %1030 = vmatprep.subr.mxu0 0.0
      %1031 = vmatpush1.msra.mxu0 0.0
      %1032 = vmatprep.subr.mxu0 0.0
      %1033 = vmatpush1.msra.mxu0 0.0
      %1034 = vmatprep.subr.mxu0 0.0
      %1035 = vmatpush1.msra.mxu0 0.0
      %1036 = vmatprep.subr.mxu0 0.0
      %1037 = vmatpush1.msra.mxu0 0.0
      %1038 = vmatprep.subr.mxu0 0.0
      %1039 = vmatpush1.msra.mxu0 0.0
      %1040 = vmatprep.subr.mxu0 0.0
      %1041 = vmatpush1.msra.mxu0 0.0
      %1042 = vmatprep.subr.mxu0 0.0
      %1043 = vmatpush1.msra.mxu0 0.0
      %1044 = vmatprep.subr.mxu0 0.0
      %1045 = vmatpush1.msra.mxu0 0.0
      %1046 = vmatprep.subr.mxu0 0.0
      %1047 = vmatpush1.msra.mxu0 0.0
      %1048 = vmatprep.subr.mxu0 0.0
      %1049 = vmatpush1.msra.mxu0 0.0
      %1050 = vmatprep.subr.mxu0 0.0
      %1051 = vmatpush1.msra.mxu0 0.0
      %1052 = vmatprep.subr.mxu0 0.0
      %1053 = vmatpush1.msra.mxu0 0.0
      %1054 = vmatprep.subr.mxu0 0.0
      %1055 = vmatpush1.msra.mxu0 0.0
      %1056 = vmatprep.subr.mxu0 0.0
      %1057 = vmatpush1.msra.mxu0 0.0
      %1058 = vmatprep.subr.mxu0 0.0
      %1059 = vmatpush1.msra.mxu0 0.0
      %1060 = vmatprep.subr.mxu0 0.0
      %1061 = vmatpush1.msra.mxu0 0.0
      %1062 = vmatprep.mubr.f32.mxu0 0.0
      %1063 = vmatmul.mubr.f32.gmra.mrb[0].mxu0 %v996
      %v1064 = vpop.f32.mrb[0].mxu0
      %v1065 = vadd.f32 0.0, %v1064
      %v1066 = vpop.f32.mrb[0].mxu0
      %1067 = vdwg.mxu0
      %v1069 = vsel %vm702, %v348, 0
      %1071 = vmatprep.subr.mxu0 0.0
      %1072 = vmatpush1.msra.mxu0 %v699
      %1073 = vmatprep.subr.mxu0 0.0
      %1074 = vmatpush1.msra.mxu0 0.0
      %1075 = vmatprep.subr.mxu0 0.0
      %1076 = vmatpush1.msra.mxu0 0.0
      %1077 = vmatprep.subr.mxu0 0.0
      %1078 = vmatpush1.msra.mxu0 0.0
      %1079 = vmatprep.subr.mxu0 0.0
      %1080 = vmatpush1.msra.mxu0 0.0
      %1081 = vmatprep.subr.mxu0 0.0
      %1082 = vmatpush1.msra.mxu0 0.0
      %1083 = vmatprep.subr.mxu0 0.0
      %1084 = vmatpush1.msra.mxu0 0.0
      %1085 = vmatprep.subr.mxu0 0.0
      %1086 = vmatpush1.msra.mxu0 0.0
      %1087 = vmatprep.subr.mxu0 0.0
      %1088 = vmatpush1.msra.mxu0 0.0
      %1089 = vmatprep.subr.mxu0 0.0
      %1090 = vmatpush1.msra.mxu0 0.0
      %1091 = vmatprep.subr.mxu0 0.0
      %1092 = vmatpush1.msra.mxu0 0.0
      %1093 = vmatprep.subr.mxu0 0.0
      %1094 = vmatpush1.msra.mxu0 0.0
      %1095 = vmatprep.subr.mxu0 0.0
      %1096 = vmatpush1.msra.mxu0 0.0
      %1097 = vmatprep.subr.mxu0 0.0
      %1098 = vmatpush1.msra.mxu0 0.0
      %1099 = vmatprep.subr.mxu0 0.0
      %1100 = vmatpush1.msra.mxu0 0.0
      %1101 = vmatprep.subr.mxu0 0.0
      %1102 = vmatpush1.msra.mxu0 0.0
      %1103 = vmatprep.subr.mxu0 0.0
      %1104 = vmatpush1.msra.mxu0 0.0
      %1105 = vmatprep.subr.mxu0 0.0
      %1106 = vmatpush1.msra.mxu0 0.0
      %1107 = vmatprep.subr.mxu0 0.0
      %1108 = vmatpush1.msra.mxu0 0.0
      %1109 = vmatprep.subr.mxu0 0.0
      %1110 = vmatpush1.msra.mxu0 0.0
      %1111 = vmatprep.subr.mxu0 0.0
      %1112 = vmatpush1.msra.mxu0 0.0
      %1113 = vmatprep.subr.mxu0 0.0
      %1114 = vmatpush1.msra.mxu0 0.0
      %1115 = vmatprep.subr.mxu0 0.0
      %1116 = vmatpush1.msra.mxu0 0.0
      %1117 = vmatprep.subr.mxu0 0.0
      %1118 = vmatpush1.msra.mxu0 0.0
      %1119 = vmatprep.subr.mxu0 0.0
      %1120 = vmatpush1.msra.mxu0 0.0
      %1121 = vmatprep.subr.mxu0 0.0
      %1122 = vmatpush1.msra.mxu0 0.0
      %1123 = vmatprep.subr.mxu0 0.0
      %1124 = vmatpush1.msra.mxu0 0.0
      %1125 = vmatprep.subr.mxu0 0.0
      %1126 = vmatpush1.msra.mxu0 0.0
      %1127 = vmatprep.subr.mxu0 0.0
      %1128 = vmatpush1.msra.mxu0 0.0
      %1129 = vmatprep.subr.mxu0 0.0
      %1130 = vmatpush1.msra.mxu0 0.0
      %1131 = vmatprep.subr.mxu0 0.0
      %1132 = vmatpush1.msra.mxu0 0.0
      %1133 = vmatprep.subr.mxu0 0.0
      %1134 = vmatpush1.msra.mxu0 0.0
      %1135 = vmatprep.mubr.f32.mxu0 0.0
      %1136 = vmatmul.mubr.f32.gmra.mrb[0].mxu0 %v1069
      %v1137 = vpop.f32.mrb[0].mxu0
      %v1138 = vadd.f32 0.0, %v1137
      %v1139 = vpop.f32.mrb[0].mxu0
      %1140 = vdwg.mxu0
      %v1142 = vsel %vm702, %v349, 0
      %1144 = vmatprep.subr.mxu0 0.0
      %1145 = vmatpush1.msra.mxu0 %v700
      %1146 = vmatprep.subr.mxu0 0.0
      %1147 = vmatpush1.msra.mxu0 0.0
      %1148 = vmatprep.subr.mxu0 0.0
      %1149 = vmatpush1.msra.mxu0 0.0
      %1150 = vmatprep.subr.mxu0 0.0
      %1151 = vmatpush1.msra.mxu0 0.0
      %1152 = vmatprep.subr.mxu0 0.0
      %1153 = vmatpush1.msra.mxu0 0.0
      %1154 = vmatprep.subr.mxu0 0.0
      %1155 = vmatpush1.msra.mxu0 0.0
      %1156 = vmatprep.subr.mxu0 0.0
      %1157 = vmatpush1.msra.mxu0 0.0
      %1158 = vmatprep.subr.mxu0 0.0
      %1159 = vmatpush1.msra.mxu0 0.0
      %1160 = vmatprep.subr.mxu0 0.0
      %1161 = vmatpush1.msra.mxu0 0.0
      %1162 = vmatprep.subr.mxu0 0.0
      %1163 = vmatpush1.msra.mxu0 0.0
      %1164 = vmatprep.subr.mxu0 0.0
      %1165 = vmatpush1.msra.mxu0 0.0
      %1166 = vmatprep.subr.mxu0 0.0
      %1167 = vmatpush1.msra.mxu0 0.0
      %1168 = vmatprep.subr.mxu0 0.0
      %1169 = vmatpush1.msra.mxu0 0.0
      %1170 = vmatprep.subr.mxu0 0.0
      %1171 = vmatpush1.msra.mxu0 0.0
      %1172 = vmatprep.subr.mxu0 0.0
      %1173 = vmatpush1.msra.mxu0 0.0
      %1174 = vmatprep.subr.mxu0 0.0
      %1175 = vmatpush1.msra.mxu0 0.0
      %1176 = vmatprep.subr.mxu0 0.0
      %1177 = vmatpush1.msra.mxu0 0.0
      %1178 = vmatprep.subr.mxu0 0.0
      %1179 = vmatpush1.msra.mxu0 0.0
      %1180 = vmatprep.subr.mxu0 0.0
      %1181 = vmatpush1.msra.mxu0 0.0
      %1182 = vmatprep.subr.mxu0 0.0
      %1183 = vmatpush1.msra.mxu0 0.0
      %1184 = vmatprep.subr.mxu0 0.0
      %1185 = vmatpush1.msra.mxu0 0.0
      %1186 = vmatprep.subr.mxu0 0.0
      %1187 = vmatpush1.msra.mxu0 0.0
      %1188 = vmatprep.subr.mxu0 0.0
      %1189 = vmatpush1.msra.mxu0 0.0
      %1190 = vmatprep.subr.mxu0 0.0
      %1191 = vmatpush1.msra.mxu0 0.0
      %1192 = vmatprep.subr.mxu0 0.0
      %1193 = vmatpush1.msra.mxu0 0.0
      %1194 = vmatprep.subr.mxu0 0.0
      %1195 = vmatpush1.msra.mxu0 0.0
      %1196 = vmatprep.subr.mxu0 0.0
      %1197 = vmatpush1.msra.mxu0 0.0
      %1198 = vmatprep.subr.mxu0 0.0
      %1199 = vmatpush1.msra.mxu0 0.0
      %1200 = vmatprep.subr.mxu0 0.0
      %1201 = vmatpush1.msra.mxu0 0.0
      %1202 = vmatprep.subr.mxu0 0.0
      %1203 = vmatpush1.msra.mxu0 0.0
      %1204 = vmatprep.subr.mxu0 0.0
      %1205 = vmatpush1.msra.mxu0 0.0
      %1206 = vmatprep.subr.mxu0 0.0
      %1207 = vmatpush1.msra.mxu0 0.0
      %1208 = vmatprep.mubr.f32.mxu0 0.0
      %1209 = vmatmul.mubr.f32.gmra.mrb[0].mxu0 %v1142
      %v1210 = vpop.f32.mrb[0].mxu0
      %v1211 = vadd.f32 0.0, %v1210
      %v1212 = vpop.f32.mrb[0].mxu0
      %1213 = vdwg.mxu0
      %v1215 = vsel %vm702, %v350, 0
      %1217 = vmatprep.subr.mxu0 0.0
      %1218 = vmatpush1.msra.mxu0 %v701
      %1219 = vmatprep.subr.mxu0 0.0
      %1220 = vmatpush1.msra.mxu0 0.0
      %1221 = vmatprep.subr.mxu0 0.0
      %1222 = vmatpush1.msra.mxu0 0.0
      %1223 = vmatprep.subr.mxu0 0.0
      %1224 = vmatpush1.msra.mxu0 0.0
      %1225 = vmatprep.subr.mxu0 0.0
      %1226 = vmatpush1.msra.mxu0 0.0
      %1227 = vmatprep.subr.mxu0 0.0
      %1228 = vmatpush1.msra.mxu0 0.0
      %1229 = vmatprep.subr.mxu0 0.0
      %1230 = vmatpush1.msra.mxu0 0.0
      %1231 = vmatprep.subr.mxu0 0.0
      %1232 = vmatpush1.msra.mxu0 0.0
      %1233 = vmatprep.subr.mxu0 0.0
      %1234 = vmatpush1.msra.mxu0 0.0
      %1235 = vmatprep.subr.mxu0 0.0
      %1236 = vmatpush1.msra.mxu0 0.0
      %1237 = vmatprep.subr.mxu0 0.0
      %1238 = vmatpush1.msra.mxu0 0.0
      %1239 = vmatprep.subr.mxu0 0.0
      %1240 = vmatpush1.msra.mxu0 0.0
      %1241 = vmatprep.subr.mxu0 0.0
      %1242 = vmatpush1.msra.mxu0 0.0
      %1243 = vmatprep.subr.mxu0 0.0
      %1244 = vmatpush1.msra.mxu0 0.0
      %1245 = vmatprep.subr.mxu0 0.0
      %1246 = vmatpush1.msra.mxu0 0.0
      %1247 = vmatprep.subr.mxu0 0.0
      %1248 = vmatpush1.msra.mxu0 0.0
      %1249 = vmatprep.subr.mxu0 0.0
      %1250 = vmatpush1.msra.mxu0 0.0
      %1251 = vmatprep.subr.mxu0 0.0
      %1252 = vmatpush1.msra.mxu0 0.0
      %1253 = vmatprep.subr.mxu0 0.0
      %1254 = vmatpush1.msra.mxu0 0.0
      %1255 = vmatprep.subr.mxu0 0.0
      %1256 = vmatpush1.msra.mxu0 0.0
      %1257 = vmatprep.subr.mxu0 0.0
      %1258 = vmatpush1.msra.mxu0 0.0
      %1259 = vmatprep.subr.mxu0 0.0
      %1260 = vmatpush1.msra.mxu0 0.0
      %1261 = vmatprep.subr.mxu0 0.0
      %1262 = vmatpush1.msra.mxu0 0.0
      %1263 = vmatprep.subr.mxu0 0.0
      %1264 = vmatpush1.msra.mxu0 0.0
      %1265 = vmatprep.subr.mxu0 0.0
      %1266 = vmatpush1.msra.mxu0 0.0
      %1267 = vmatprep.subr.mxu0 0.0
      %1268 = vmatpush1.msra.mxu0 0.0
      %1269 = vmatprep.subr.mxu0 0.0
      %1270 = vmatpush1.msra.mxu0 0.0
      %1271 = vmatprep.subr.mxu0 0.0
      %1272 = vmatpush1.msra.mxu0 0.0
      %1273 = vmatprep.subr.mxu0 0.0
      %1274 = vmatpush1.msra.mxu0 0.0
      %1275 = vmatprep.subr.mxu0 0.0
      %1276 = vmatpush1.msra.mxu0 0.0
      %1277 = vmatprep.subr.mxu0 0.0
      %1278 = vmatpush1.msra.mxu0 0.0
      %1279 = vmatprep.subr.mxu0 0.0
      %1280 = vmatpush1.msra.mxu0 0.0
      %1281 = vmatprep.mubr.f32.mxu0 0.0
      %1282 = vmatmul.mubr.f32.gmra.mrb[0].mxu0 %v1215
      %v1283 = vpop.f32.mrb[0].mxu0
      %v1284 = vadd.f32 0.0, %v1283
      %v1285 = vpop.f32.mrb[0].mxu0
      %1286 = vdwg.mxu0
      %vm1287 = vcmask 57344
      %v1288 = vsel %vm1287, %v343, 0.0
      %1289 = vadd.xlane.f32.xlu0 %v1288
      %v1290 = vpop.xlane.xlu0 %1289
      %v1291 = vsel %vm1287, %v344, 0.0
      %1292 = vadd.xlane.f32.xlu0 %v1291
      %v1293 = vpop.xlane.xlu0 %1292
      %v1294 = vsel %vm1287, %v345, 0.0
      %1295 = vadd.xlane.f32.xlu0 %v1294
      %v1296 = vpop.xlane.xlu0 %1295
      %v1297 = vsel %vm1287, %v346, 0.0
      %1298 = vadd.xlane.f32.xlu0 %v1297
      %v1299 = vpop.xlane.xlu0 %1298
      %v1300 = vsel %vm1287, %v347, 0.0
      %1301 = vadd.xlane.f32.xlu0 %v1300
      %v1302 = vpop.xlane.xlu0 %1301
      %v1303 = vsel %vm1287, %v348, 0.0
      %1304 = vadd.xlane.f32.xlu0 %v1303
      %v1305 = vpop.xlane.xlu0 %1304
      %v1306 = vsel %vm1287, %v349, 0.0
      %1307 = vadd.xlane.f32.xlu0 %v1306
      %v1308 = vpop.xlane.xlu0 %1307
      %v1309 = vsel %vm1287, %v350, 0.0
      %1310 = vadd.xlane.f32.xlu0 %v1309
      %v1311 = vpop.xlane.xlu0 %1310
      %v1312 = vadd.f32 %v1290, 0.0
      %v1313 = vadd.f32 %v1293, 0.0
      %v1314 = vadd.f32 %v1296, 0.0
      %v1315 = vadd.f32 %v1299, 0.0
      %v1316 = vadd.f32 %v1302, 0.0
      %v1317 = vadd.f32 %v1305, 0.0
      %v1318 = vadd.f32 %v1308, 0.0
      %v1319 = vadd.f32 %v1311, 0.0
      %v1320 = vrcp.pop %v1312
      %v1321 = vmul.f32 %v773, %v1320
      %v1322 = vrcp.pop %v1313
      %v1323 = vmul.f32 %v846, %v1322
      %v1324 = vrcp.pop %v1314
      %v1325 = vmul.f32 %v919, %v1324
      %v1326 = vrcp.pop %v1315
      %v1327 = vmul.f32 %v992, %v1326
      %v1328 = vrcp.pop %v1316
      %v1329 = vmul.f32 %v1065, %v1328
      %v1330 = vrcp.pop %v1317
      %v1331 = vmul.f32 %v1138, %v1330
      %v1332 = vrcp.pop %v1318
      %v1333 = vmul.f32 %v1211, %v1332
      %v1334 = vrcp.pop %v1319
      %v1335 = vmul.f32 %v1284, %v1334
      %v1336 = vld [vmem:[%s326] sm:$0xff]
      %v1337 = vld [vmem:[%s326 + $0x8] sm:$0xff]
      %v1338 = vld [vmem:[%s326 + $0x10] sm:$0xff]
      %v1339 = vld [vmem:[%s326 + $0x18] sm:$0xff]
      %v1340 = vld [vmem:[%s326 + $0x20] sm:$0xff]
      %v1341 = vld [vmem:[%s326 + $0x28] sm:$0xff]
      %v1342 = vld [vmem:[%s326 + $0x30] sm:$0xff]
      %v1343 = vld [vmem:[%s326 + $0x38] sm:$0xff]
      %v1344 = vld [vmem:[%s4 + $0x8] sm:$0xff]
      %v1345 = vld [vmem:[%s4 + $0x10] sm:$0x1]
      %1346 = vrot.lane.b32.xlu0 %v413, 64
      %v1347 = vpop.permute.xlu0 %1346
      %vm1349 = vcmask 72704
      %v1351 = vsel %vm1349, %v1336, 0
      %v1354 = vsel %vm1349, %v1337, 0
      %v1357 = vsel %vm1349, %v1338, 0
      %v1360 = vsel %vm1349, %v1339, 0
      %v1363 = vsel %vm1349, %v1340, 0
      %v1366 = vsel %vm1349, %v1341, 0
      %v1369 = vsel %vm1349, %v1342, 0
      %v1372 = vsel %vm1349, %v1343, 0
      %vm1374 = vcmask 1040384
      %v1376 = vsel %vm1374, %v1345, 0
      %1378 = vmatprep.subr.mxu0 0.0
      %1379 = vmatpush1.msra.mxu0 %v1344
      %1380 = vmatprep.subr.mxu0 0.0
      %1381 = vmatpush1.msra.mxu0 %v1376
      %1382 = vmatprep.subr.mxu0 0.0
      %1383 = vmatpush1.msra.mxu0 0.0
      %1384 = vmatprep.subr.mxu0 0.0
      %1385 = vmatpush1.msra.mxu0 0.0
      %1386 = vmatprep.subr.mxu0 0.0
      %1387 = vmatpush1.msra.mxu0 0.0
      %1388 = vmatprep.subr.mxu0 0.0
      %1389 = vmatpush1.msra.mxu0 0.0
      %1390 = vmatprep.subr.mxu0 0.0
      %1391 = vmatpush1.msra.mxu0 0.0
      %1392 = vmatprep.subr.mxu0 0.0
      %1393 = vmatpush1.msra.mxu0 0.0
      %1394 = vmatprep.subr.mxu0 0.0
      %1395 = vmatpush1.msra.mxu0 0.0
      %1396 = vmatprep.subr.mxu0 0.0
      %1397 = vmatpush1.msra.mxu0 0.0
      %1398 = vmatprep.subr.mxu0 0.0
      %1399 = vmatpush1.msra.mxu0 0.0
      %1400 = vmatprep.subr.mxu0 0.0
      %1401 = vmatpush1.msra.mxu0 0.0
      %1402 = vmatprep.subr.mxu0 0.0
      %1403 = vmatpush1.msra.mxu0 0.0
      %1404 = vmatprep.subr.mxu0 0.0
      %1405 = vmatpush1.msra.mxu0 0.0
      %1406 = vmatprep.subr.mxu0 0.0
      %1407 = vmatpush1.msra.mxu0 0.0
      %1408 = vmatprep.subr.mxu0 0.0
      %1409 = vmatpush1.msra.mxu0 0.0
      %1410 = vmatprep.subr.mxu0 0.0
      %1411 = vmatpush1.msra.mxu0 0.0
      %1412 = vmatprep.subr.mxu0 0.0
      %1413 = vmatpush1.msra.mxu0 0.0
      %1414 = vmatprep.subr.mxu0 0.0
      %1415 = vmatpush1.msra.mxu0 0.0
      %1416 = vmatprep.subr.mxu0 0.0
      %1417 = vmatpush1.msra.mxu0 0.0
      %1418 = vmatprep.subr.mxu0 0.0
      %1419 = vmatpush1.msra.mxu0 0.0
      %1420 = vmatprep.subr.mxu0 0.0
      %1421 = vmatpush1.msra.mxu0 0.0
      %1422 = vmatprep.subr.mxu0 0.0
      %1423 = vmatpush1.msra.mxu0 0.0
      %1424 = vmatprep.subr.mxu0 0.0
      %1425 = vmatpush1.msra.mxu0 0.0
      %1426 = vmatprep.subr.mxu0 0.0
      %1427 = vmatpush1.msra.mxu0 0.0
      %1428 = vmatprep.subr.mxu0 0.0
      %1429 = vmatpush1.msra.mxu0 0.0
      %1430 = vmatprep.subr.mxu0 0.0
      %1431 = vmatpush1.msra.mxu0 0.0
      %1432 = vmatprep.subr.mxu0 0.0
      %1433 = vmatpush1.msra.mxu0 0.0
      %1434 = vmatprep.subr.mxu0 0.0
      %1435 = vmatpush1.msra.mxu0 0.0
      %1436 = vmatprep.subr.mxu0 0.0
      %1437 = vmatpush1.msra.mxu0 0.0
      %1438 = vmatprep.subr.mxu0 0.0
      %1439 = vmatpush1.msra.mxu0 0.0
      %1440 = vmatprep.subr.mxu0 0.0
      %1441 = vmatpush1.msra.mxu0 0.0
      %1442 = vmatprep.mubr.f32.mxu0 0.0
      %1443 = vmatmul.mubr.f32.gmra.mrb[0].mxu0 %v1351
      %v1444 = vpop.f32.mrb[0].mxu0
      %v1445 = vadd.f32 %v1347, %v1444
      %v1446 = vpop.f32.mrb[0].mxu0
      %1447 = vmatprep.mubr.f32.mxu0 0.0
      %1448 = vmatmul.mubr.f32.gmra.mrb[0].mxu0 %v1354
      %v1449 = vpop.f32.mrb[0].mxu0
      %v1450 = vadd.f32 %v1347, %v1449
      %v1451 = vpop.f32.mrb[0].mxu0
      %1452 = vmatprep.mubr.f32.mxu0 0.0
      %1453 = vmatmul.mubr.f32.gmra.mrb[0].mxu0 %v1357
      %v1454 = vpop.f32.mrb[0].mxu0
      %v1455 = vadd.f32 %v1347, %v1454
      %v1456 = vpop.f32.mrb[0].mxu0
      %1457 = vmatprep.mubr.f32.mxu0 0.0
      %1458 = vmatmul.mubr.f32.gmra.mrb[0].mxu0 %v1360
      %v1459 = vpop.f32.mrb[0].mxu0
      %v1460 = vadd.f32 %v1347, %v1459
      %v1461 = vpop.f32.mrb[0].mxu0
      %1462 = vmatprep.mubr.f32.mxu0 0.0
      %1463 = vmatmul.mubr.f32.gmra.mrb[0].mxu0 %v1363
      %v1464 = vpop.f32.mrb[0].mxu0
      %v1465 = vadd.f32 %v1347, %v1464
      %v1466 = vpop.f32.mrb[0].mxu0
      %1467 = vmatprep.mubr.f32.mxu0 0.0
      %1468 = vmatmul.mubr.f32.gmra.mrb[0].mxu0 %v1366
      %v1469 = vpop.f32.mrb[0].mxu0
      %v1470 = vadd.f32 %v1347, %v1469
      %v1471 = vpop.f32.mrb[0].mxu0
      %1472 = vmatprep.mubr.f32.mxu0 0.0
      %1473 = vmatmul.mubr.f32.gmra.mrb[0].mxu0 %v1369
      %v1474 = vpop.f32.mrb[0].mxu0
      %v1475 = vadd.f32 %v1347, %v1474
      %v1476 = vpop.f32.mrb[0].mxu0
      %1477 = vmatprep.mubr.f32.mxu0 0.0
      %1478 = vmatmul.mubr.f32.gmra.mrb[0].mxu0 %v1372
      %v1479 = vpop.f32.mrb[0].mxu0
      %v1480 = vadd.f32 %v1347, %v1479
      %v1481 = vpop.f32.mrb[0].mxu0
      %1482 = vdwg.mxu0
      %v1483 = vmax.f32 %v1445, 0.0
      %v1484 = vmax.f32 %v1450, 0.0
      %v1485 = vmax.f32 %v1455, 0.0
      %v1486 = vmax.f32 %v1460, 0.0
      %v1487 = vmax.f32 %v1465, 0.0
      %v1488 = vmax.f32 %v1470, 0.0
      %v1489 = vmax.f32 %v1475, 0.0
      %v1490 = vmax.f32 %v1480, 0.0
      %v1491 = vld [vmem:[%s5 + $0x8] sm:$0xff]
      %v1492 = vld [vmem:[%s5 + $0x78] sm:$0xff]
      %v1493 = vld [vmem:[%s5 + $0xe8] sm:$0xff]
      %v1494 = vld [vmem:[%s5 + $0x158] sm:$0xff]
      %1495 = vrot.lane.b32.xlu0 %v413, 32
      %v1496 = vpop.permute.xlu0 %1495
      %v1499 = vsel %vm564, %v1483, 0
      %v1502 = vsel %vm564, %v1484, 0
      %v1505 = vsel %vm564, %v1485, 0
      %v1508 = vsel %vm564, %v1486, 0
      %v1511 = vsel %vm564, %v1487, 0
      %v1514 = vsel %vm564, %v1488, 0
      %v1517 = vsel %vm564, %v1489, 0
      %v1520 = vsel %vm564, %v1490, 0
      %1522 = vmatprep.subr.mxu0 0.0
      %1523 = vmatpush1.msra.mxu0 %v1491
      %1524 = vmatprep.subr.mxu0 0.0
      %1525 = vmatpush1.msra.mxu0 %v1492
      %1526 = vmatprep.subr.mxu0 0.0
      %1527 = vmatpush1.msra.mxu0 %v1493
      %1528 = vmatprep.subr.mxu0 0.0
      %1529 = vmatpush1.msra.mxu0 %v1494
      %1530 = vmatprep.subr.mxu0 0.0
      %1531 = vmatpush1.msra.mxu0 0.0
      %1532 = vmatprep.subr.mxu0 0.0
      %1533 = vmatpush1.msra.mxu0 0.0
      %1534 = vmatprep.subr.mxu0 0.0
      %1535 = vmatpush1.msra.mxu0 0.0
      %1536 = vmatprep.subr.mxu0 0.0
      %1537 = vmatpush1.msra.mxu0 0.0
      %1538 = vmatprep.subr.mxu0 0.0
      %1539 = vmatpush1.msra.mxu0 0.0
      %1540 = vmatprep.subr.mxu0 0.0
      %1541 = vmatpush1.msra.mxu0 0.0
      %1542 = vmatprep.subr.mxu0 0.0
      %1543 = vmatpush1.msra.mxu0 0.0
      %1544 = vmatprep.subr.mxu0 0.0
      %1545 = vmatpush1.msra.mxu0 0.0
      %1546 = vmatprep.subr.mxu0 0.0
      %1547 = vmatpush1.msra.mxu0 0.0
      %1548 = vmatprep.subr.mxu0 0.0
      %1549 = vmatpush1.msra.mxu0 0.0
      %1550 = vmatprep.subr.mxu0 0.0
      %1551 = vmatpush1.msra.mxu0 0.0
      %1552 = vmatprep.subr.mxu0 0.0
      %1553 = vmatpush1.msra.mxu0 0.0
      %1554 = vmatprep.subr.mxu0 0.0
      %1555 = vmatpush1.msra.mxu0 0.0
      %1556 = vmatprep.subr.mxu0 0.0
      %1557 = vmatpush1.msra.mxu0 0.0
      %1558 = vmatprep.subr.mxu0 0.0
      %1559 = vmatpush1.msra.mxu0 0.0
      %1560 = vmatprep.subr.mxu0 0.0
      %1561 = vmatpush1.msra.mxu0 0.0
      %1562 = vmatprep.subr.mxu0 0.0
      %1563 = vmatpush1.msra.mxu0 0.0
      %1564 = vmatprep.subr.mxu0 0.0
      %1565 = vmatpush1.msra.mxu0 0.0
      %1566 = vmatprep.subr.mxu0 0.0
      %1567 = vmatpush1.msra.mxu0 0.0
      %1568 = vmatprep.subr.mxu0 0.0
      %1569 = vmatpush1.msra.mxu0 0.0
      %1570 = vmatprep.subr.mxu0 0.0
      %1571 = vmatpush1.msra.mxu0 0.0
      %1572 = vmatprep.subr.mxu0 0.0
      %1573 = vmatpush1.msra.mxu0 0.0
      %1574 = vmatprep.subr.mxu0 0.0
      %1575 = vmatpush1.msra.mxu0 0.0
      %1576 = vmatprep.subr.mxu0 0.0
      %1577 = vmatpush1.msra.mxu0 0.0
      %1578 = vmatprep.subr.mxu0 0.0
      %1579 = vmatpush1.msra.mxu0 0.0
      %1580 = vmatprep.subr.mxu0 0.0
      %1581 = vmatpush1.msra.mxu0 0.0
      %1582 = vmatprep.subr.mxu0 0.0
      %1583 = vmatpush1.msra.mxu0 0.0
      %1584 = vmatprep.subr.mxu0 0.0
      %1585 = vmatpush1.msra.mxu0 0.0
      %1586 = vmatprep.mubr.f32.mxu0 0.0
      %1587 = vmatmul.mubr.f32.gmra.mrb[0].mxu0 %v1499
      %v1588 = vpop.f32.mrb[0].mxu0
      %v1589 = vadd.f32 %v1496, %v1588
      %v1590 = vpop.f32.mrb[0].mxu0
      %1591 = vmatprep.mubr.f32.mxu0 0.0
      %1592 = vmatmul.mubr.f32.gmra.mrb[0].mxu0 %v1502
      %v1593 = vpop.f32.mrb[0].mxu0
      %v1594 = vadd.f32 %v1496, %v1593
      %v1595 = vpop.f32.mrb[0].mxu0
      %1596 = vmatprep.mubr.f32.mxu0 0.0
      %1597 = vmatmul.mubr.f32.gmra.mrb[0].mxu0 %v1505
      %v1598 = vpop.f32.mrb[0].mxu0
      %v1599 = vadd.f32 %v1496, %v1598
      %v1600 = vpop.f32.mrb[0].mxu0
      %1601 = vmatprep.mubr.f32.mxu0 0.0
      %1602 = vmatmul.mubr.f32.gmra.mrb[0].mxu0 %v1508
      %v1603 = vpop.f32.mrb[0].mxu0
      %v1604 = vadd.f32 %v1496, %v1603
      %v1605 = vpop.f32.mrb[0].mxu0
      %1606 = vmatprep.mubr.f32.mxu0 0.0
      %1607 = vmatmul.mubr.f32.gmra.mrb[0].mxu0 %v1511
      %v1608 = vpop.f32.mrb[0].mxu0
      %v1609 = vadd.f32 %v1496, %v1608
      %v1610 = vpop.f32.mrb[0].mxu0
      %1611 = vmatprep.mubr.f32.mxu0 0.0
      %1612 = vmatmul.mubr.f32.gmra.mrb[0].mxu0 %v1514
      %v1613 = vpop.f32.mrb[0].mxu0
      %v1614 = vadd.f32 %v1496, %v1613
      %v1615 = vpop.f32.mrb[0].mxu0
      %1616 = vmatprep.mubr.f32.mxu0 0.0
      %1617 = vmatmul.mubr.f32.gmra.mrb[0].mxu0 %v1517
      %v1618 = vpop.f32.mrb[0].mxu0
      %v1619 = vadd.f32 %v1496, %v1618
      %v1620 = vpop.f32.mrb[0].mxu0
      %1621 = vmatprep.mubr.f32.mxu0 0.0
      %1622 = vmatmul.mubr.f32.gmra.mrb[0].mxu0 %v1520
      %v1623 = vpop.f32.mrb[0].mxu0
      %v1624 = vadd.f32 %v1496, %v1623
      %v1625 = vpop.f32.mrb[0].mxu0
      %1626 = vdwg.mxu0
      %v1627 = vmax.f32 %v1589, 0.0
      %v1628 = vmax.f32 %v1594, 0.0
      %v1629 = vmax.f32 %v1599, 0.0
      %v1630 = vmax.f32 %v1604, 0.0
      %v1631 = vmax.f32 %v1609, 0.0
      %v1632 = vmax.f32 %v1614, 0.0
      %v1633 = vmax.f32 %v1619, 0.0
      %v1634 = vmax.f32 %v1624, 0.0
      %v1635 = vld [vmem:[%s5 + $0x18] sm:$0xff]
      %v1636 = vld [vmem:[%s5 + $0x88] sm:$0xff]
      %v1637 = vld [vmem:[%s5 + $0xf8] sm:$0xff]
      %v1638 = vld [vmem:[%s5 + $0x168] sm:$0xff]
      %v1639 = vld [vmem:[%s6 + $0x1] sm:$0x3]
      %v1641 = vlaneseq
      %v1642 = vshrl.u32 %v1641, 7
      %v1643 = vsub.s32 0, %v1642
      %v1644 = vrot.slane %v1639, %v1643
      %v1645 = vlaneseq
      %v1646 = vshrl.u32 %v1645, 7
      %v1647 = vsub.s32 1, %v1646
      %v1648 = vrot.slane %v1639, %v1647
      %1649 = vrot.lane.b32.xlu0 %v1644, 64
      %v1650 = vpop.permute.xlu0 %1649
      %1651 = vrot.lane.b32.xlu0 %v1648, 64
      %v1652 = vpop.permute.xlu0 %1651
      %vm1653 = vcmask 523264
      %v1654 = vsel %vm1653, %v1650, %v1652
      %v1657 = vsel %vm564, %v1627, 0
      %v1660 = vsel %vm564, %v1628, 0
      %v1663 = vsel %vm564, %v1629, 0
      %v1666 = vsel %vm564, %v1630, 0
      %v1669 = vsel %vm564, %v1631, 0
      %v1672 = vsel %vm564, %v1632, 0
      %v1675 = vsel %vm564, %v1633, 0
      %v1678 = vsel %vm564, %v1634, 0
      %1680 = vmatprep.subr.mxu0 0.0
      %1681 = vmatpush1.msra.mxu0 %v1635
      %1682 = vmatprep.subr.mxu0 0.0
      %1683 = vmatpush1.msra.mxu0 %v1636
      %1684 = vmatprep.subr.mxu0 0.0
      %1685 = vmatpush1.msra.mxu0 %v1637
      %1686 = vmatprep.subr.mxu0 0.0
      %1687 = vmatpush1.msra.mxu0 %v1638
      %1688 = vmatprep.subr.mxu0 0.0
      %1689 = vmatpush1.msra.mxu0 0.0
      %1690 = vmatprep.subr.mxu0 0.0
      %1691 = vmatpush1.msra.mxu0 0.0
      %1692 = vmatprep.subr.mxu0 0.0
      %1693 = vmatpush1.msra.mxu0 0.0
      %1694 = vmatprep.subr.mxu0 0.0
      %1695 = vmatpush1.msra.mxu0 0.0
      %1696 = vmatprep.subr.mxu0 0.0
      %1697 = vmatpush1.msra.mxu0 0.0
      %1698 = vmatprep.subr.mxu0 0.0
      %1699 = vmatpush1.msra.mxu0 0.0
      %1700 = vmatprep.subr.mxu0 0.0
      %1701 = vmatpush1.msra.mxu0 0.0
      %1702 = vmatprep.subr.mxu0 0.0
      %1703 = vmatpush1.msra.mxu0 0.0
      %1704 = vmatprep.subr.mxu0 0.0
      %1705 = vmatpush1.msra.mxu0 0.0
      %1706 = vmatprep.subr.mxu0 0.0
      %1707 = vmatpush1.msra.mxu0 0.0
      %1708 = vmatprep.subr.mxu0 0.0
      %1709 = vmatpush1.msra.mxu0 0.0
      %1710 = vmatprep.subr.mxu0 0.0
      %1711 = vmatpush1.msra.mxu0 0.0
      %1712 = vmatprep.subr.mxu0 0.0
      %1713 = vmatpush1.msra.mxu0 0.0
      %1714 = vmatprep.subr.mxu0 0.0
      %1715 = vmatpush1.msra.mxu0 0.0
      %1716 = vmatprep.subr.mxu0 0.0
      %1717 = vmatpush1.msra.mxu0 0.0
      %1718 = vmatprep.subr.mxu0 0.0
      %1719 = vmatpush1.msra.mxu0 0.0
      %1720 = vmatprep.subr.mxu0 0.0
      %1721 = vmatpush1.msra.mxu0 0.0
      %1722 = vmatprep.subr.mxu0 0.0
      %1723 = vmatpush1.msra.mxu0 0.0
      %1724 = vmatprep.subr.mxu0 0.0
      %1725 = vmatpush1.msra.mxu0 0.0
      %1726 = vmatprep.subr.mxu0 0.0
      %1727 = vmatpush1.msra.mxu0 0.0
      %1728 = vmatprep.subr.mxu0 0.0
      %1729 = vmatpush1.msra.mxu0 0.0
      %1730 = vmatprep.subr.mxu0 0.0
      %1731 = vmatpush1.msra.mxu0 0.0
      %1732 = vmatprep.subr.mxu0 0.0
      %1733 = vmatpush1.msra.mxu0 0.0
      %1734 = vmatprep.subr.mxu0 0.0
      %1735 = vmatpush1.msra.mxu0 0.0
      %1736 = vmatprep.subr.mxu0 0.0
      %1737 = vmatpush1.msra.mxu0 0.0
      %1738 = vmatprep.subr.mxu0 0.0
      %1739 = vmatpush1.msra.mxu0 0.0
      %1740 = vmatprep.subr.mxu0 0.0
      %1741 = vmatpush1.msra.mxu0 0.0
      %1742 = vmatprep.subr.mxu0 0.0
      %1743 = vmatpush1.msra.mxu0 0.0
      %1744 = vmatprep.mubr.f32.mxu0 0.0
      %1745 = vmatmul.mubr.f32.gmra.mrb[0].mxu0 %v1657
      %v1746 = vpop.f32.mrb[0].mxu0
      %v1747 = vadd.f32 %v1654, %v1746
      %v1748 = vpop.f32.mrb[0].mxu0
      %1749 = vmatprep.mubr.f32.mxu0 0.0
      %1750 = vmatmul.mubr.f32.gmra.mrb[0].mxu0 %v1660
      %v1751 = vpop.f32.mrb[0].mxu0
      %v1752 = vadd.f32 %v1654, %v1751
      %v1753 = vpop.f32.mrb[0].mxu0
      %1754 = vmatprep.mubr.f32.mxu0 0.0
      %1755 = vmatmul.mubr.f32.gmra.mrb[0].mxu0 %v1663
      %v1756 = vpop.f32.mrb[0].mxu0
      %v1757 = vadd.f32 %v1654, %v1756
      %v1758 = vpop.f32.mrb[0].mxu0
      %1759 = vmatprep.mubr.f32.mxu0 0.0
      %1760 = vmatmul.mubr.f32.gmra.mrb[0].mxu0 %v1666
      %v1761 = vpop.f32.mrb[0].mxu0
      %v1762 = vadd.f32 %v1654, %v1761
      %v1763 = vpop.f32.mrb[0].mxu0
      %1764 = vmatprep.mubr.f32.mxu0 0.0
      %1765 = vmatmul.mubr.f32.gmra.mrb[0].mxu0 %v1669
      %v1766 = vpop.f32.mrb[0].mxu0
      %v1767 = vadd.f32 %v1654, %v1766
      %v1768 = vpop.f32.mrb[0].mxu0
      %1769 = vmatprep.mubr.f32.mxu0 0.0
      %1770 = vmatmul.mubr.f32.gmra.mrb[0].mxu0 %v1672
      %v1771 = vpop.f32.mrb[0].mxu0
      %v1772 = vadd.f32 %v1654, %v1771
      %v1773 = vpop.f32.mrb[0].mxu0
      %1774 = vmatprep.mubr.f32.mxu0 0.0
      %1775 = vmatmul.mubr.f32.gmra.mrb[0].mxu0 %v1675
      %v1776 = vpop.f32.mrb[0].mxu0
      %v1777 = vadd.f32 %v1654, %v1776
      %v1778 = vpop.f32.mrb[0].mxu0
      %1779 = vmatprep.mubr.f32.mxu0 0.0
      %1780 = vmatmul.mubr.f32.gmra.mrb[0].mxu0 %v1678
      %v1781 = vpop.f32.mrb[0].mxu0
      %v1782 = vadd.f32 %v1654, %v1781
      %v1783 = vpop.f32.mrb[0].mxu0
      %1784 = vdwg.mxu0
      %1786 = vrot.lane.b32.xlu0 %v1747, 96
      %v1787 = vpop.permute.xlu0 %1786
      %v1788 = vsel %vm564, %v1747, 0
      %v1790 = vsel %vm564, %v1787, 0
      %1792 = vmatprep.subr.mxu0 0.0
      %1793 = vmatpush1.xpose.msra.mxu0 %v1790
      %1794 = vmatprep.subr.mxu0 0.0
      %1795 = vmatpush1.xpose.msra.mxu0 0.0
      %1796 = vmatprep.subr.mxu0 0.0
      %1797 = vmatpush1.xpose.msra.mxu0 0.0
      %1798 = vmatprep.subr.mxu0 0.0
      %1799 = vmatpush1.xpose.msra.mxu0 0.0
      %1800 = vmatprep.subr.mxu0 0.0
      %1801 = vmatpush1.xpose.msra.mxu0 0.0
      %1802 = vmatprep.subr.mxu0 0.0
      %1803 = vmatpush1.xpose.msra.mxu0 0.0
      %1804 = vmatprep.subr.mxu0 0.0
      %1805 = vmatpush1.xpose.msra.mxu0 0.0
      %1806 = vmatprep.subr.mxu0 0.0
      %1807 = vmatpush1.xpose.msra.mxu0 0.0
      %1808 = vmatprep.subr.mxu0 0.0
      %1809 = vmatpush1.xpose.msra.mxu0 0.0
      %1810 = vmatprep.subr.mxu0 0.0
      %1811 = vmatpush1.xpose.msra.mxu0 0.0
      %1812 = vmatprep.subr.mxu0 0.0
      %1813 = vmatpush1.xpose.msra.mxu0 0.0
      %1814 = vmatprep.subr.mxu0 0.0
      %1815 = vmatpush1.xpose.msra.mxu0 0.0
      %1816 = vmatprep.subr.mxu0 0.0
      %1817 = vmatpush1.xpose.msra.mxu0 0.0
      %1818 = vmatprep.subr.mxu0 0.0
      %1819 = vmatpush1.xpose.msra.mxu0 0.0
      %1820 = vmatprep.subr.mxu0 0.0
      %1821 = vmatpush1.xpose.msra.mxu0 0.0
      %1822 = vmatprep.subr.mxu0 0.0
      %1823 = vmatpush1.xpose.msra.mxu0 0.0
      %1824 = vmatprep.subr.mxu0 0.0
      %1825 = vmatpush1.xpose.msra.mxu0 0.0
      %1826 = vmatprep.subr.mxu0 0.0
      %1827 = vmatpush1.xpose.msra.mxu0 0.0
      %1828 = vmatprep.subr.mxu0 0.0
      %1829 = vmatpush1.xpose.msra.mxu0 0.0
      %1830 = vmatprep.subr.mxu0 0.0
      %1831 = vmatpush1.xpose.msra.mxu0 0.0
      %1832 = vmatprep.subr.mxu0 0.0
      %1833 = vmatpush1.xpose.msra.mxu0 0.0
      %1834 = vmatprep.subr.mxu0 0.0
      %1835 = vmatpush1.xpose.msra.mxu0 0.0
      %1836 = vmatprep.subr.mxu0 0.0
      %1837 = vmatpush1.xpose.msra.mxu0 0.0
      %1838 = vmatprep.subr.mxu0 0.0
      %1839 = vmatpush1.xpose.msra.mxu0 0.0
      %1840 = vmatprep.subr.mxu0 0.0
      %1841 = vmatpush1.xpose.msra.mxu0 0.0
      %1842 = vmatprep.subr.mxu0 0.0
      %1843 = vmatpush1.xpose.msra.mxu0 0.0
      %1844 = vmatprep.subr.mxu0 0.0
      %1845 = vmatpush1.xpose.msra.mxu0 0.0
      %1846 = vmatprep.subr.mxu0 0.0
      %1847 = vmatpush1.xpose.msra.mxu0 0.0
      %1848 = vmatprep.subr.mxu0 0.0
      %1849 = vmatpush1.xpose.msra.mxu0 0.0
      %1850 = vmatprep.subr.mxu0 0.0
      %1851 = vmatpush1.xpose.msra.mxu0 0.0
      %1852 = vmatprep.subr.mxu0 0.0
      %1853 = vmatpush1.xpose.msra.mxu0 0.0
      %1854 = vmatprep.subr.mxu0 0.0
      %1855 = vmatpush1.xpose.msra.mxu0 0.0
      %1856 = vmatprep.mubr.f32.mxu0 0.0
      %1857 = vmatmul.mubr.f32.gmra.mrb[0].mxu0 %v1788
      %v1858 = vpop.f32.mrb[0].mxu0
      %v1859 = vadd.f32 0.0, %v1858
      %v1860 = vpop.f32.mrb[0].mxu0
      %1861 = vdwg.mxu0
      %1863 = vrot.lane.b32.xlu0 %v1752, 96
      %v1864 = vpop.permute.xlu0 %1863
      %v1865 = vsel %vm564, %v1752, 0
      %v1867 = vsel %vm564, %v1864, 0
      %1869 = vmatprep.subr.mxu0 0.0
      %1870 = vmatpush1.xpose.msra.mxu0 %v1867
      %1871 = vmatprep.subr.mxu0 0.0
      %1872 = vmatpush1.xpose.msra.mxu0 0.0
      %1873 = vmatprep.subr.mxu0 0.0
      %1874 = vmatpush1.xpose.msra.mxu0 0.0
      %1875 = vmatprep.subr.mxu0 0.0
      %1876 = vmatpush1.xpose.msra.mxu0 0.0
      %1877 = vmatprep.subr.mxu0 0.0
      %1878 = vmatpush1.xpose.msra.mxu0 0.0
      %1879 = vmatprep.subr.mxu0 0.0
      %1880 = vmatpush1.xpose.msra.mxu0 0.0
      %1881 = vmatprep.subr.mxu0 0.0
      %1882 = vmatpush1.xpose.msra.mxu0 0.0
      %1883 = vmatprep.subr.mxu0 0.0
      %1884 = vmatpush1.xpose.msra.mxu0 0.0
      %1885 = vmatprep.subr.mxu0 0.0
      %1886 = vmatpush1.xpose.msra.mxu0 0.0
      %1887 = vmatprep.subr.mxu0 0.0
      %1888 = vmatpush1.xpose.msra.mxu0 0.0
      %1889 = vmatprep.subr.mxu0 0.0
      %1890 = vmatpush1.xpose.msra.mxu0 0.0
      %1891 = vmatprep.subr.mxu0 0.0
      %1892 = vmatpush1.xpose.msra.mxu0 0.0
      %1893 = vmatprep.subr.mxu0 0.0
      %1894 = vmatpush1.xpose.msra.mxu0 0.0
      %1895 = vmatprep.subr.mxu0 0.0
      %1896 = vmatpush1.xpose.msra.mxu0 0.0
      %1897 = vmatprep.subr.mxu0 0.0
      %1898 = vmatpush1.xpose.msra.mxu0 0.0
      %1899 = vmatprep.subr.mxu0 0.0
      %1900 = vmatpush1.xpose.msra.mxu0 0.0
      %1901 = vmatprep.subr.mxu0 0.0
      %1902 = vmatpush1.xpose.msra.mxu0 0.0
      %1903 = vmatprep.subr.mxu0 0.0
      %1904 = vmatpush1.xpose.msra.mxu0 0.0
      %1905 = vmatprep.subr.mxu0 0.0
      %1906 = vmatpush1.xpose.msra.mxu0 0.0
      %1907 = vmatprep.subr.mxu0 0.0
      %1908 = vmatpush1.xpose.msra.mxu0 0.0
      %1909 = vmatprep.subr.mxu0 0.0
      %1910 = vmatpush1.xpose.msra.mxu0 0.0
      %1911 = vmatprep.subr.mxu0 0.0
      %1912 = vmatpush1.xpose.msra.mxu0 0.0
      %1913 = vmatprep.subr.mxu0 0.0
      %1914 = vmatpush1.xpose.msra.mxu0 0.0
      %1915 = vmatprep.subr.mxu0 0.0
      %1916 = vmatpush1.xpose.msra.mxu0 0.0
      %1917 = vmatprep.subr.mxu0 0.0
      %1918 = vmatpush1.xpose.msra.mxu0 0.0
      %1919 = vmatprep.subr.mxu0 0.0
      %1920 = vmatpush1.xpose.msra.mxu0 0.0
      %1921 = vmatprep.subr.mxu0 0.0
      %1922 = vmatpush1.xpose.msra.mxu0 0.0
      %1923 = vmatprep.subr.mxu0 0.0
      %1924 = vmatpush1.xpose.msra.mxu0 0.0
      %1925 = vmatprep.subr.mxu0 0.0
      %1926 = vmatpush1.xpose.msra.mxu0 0.0
      %1927 = vmatprep.subr.mxu0 0.0
      %1928 = vmatpush1.xpose.msra.mxu0 0.0
      %1929 = vmatprep.subr.mxu0 0.0
      %1930 = vmatpush1.xpose.msra.mxu0 0.0
      %1931 = vmatprep.subr.mxu0 0.0
      %1932 = vmatpush1.xpose.msra.mxu0 0.0
      %1933 = vmatprep.mubr.f32.mxu0 0.0
      %1934 = vmatmul.mubr.f32.gmra.mrb[0].mxu0 %v1865
      %v1935 = vpop.f32.mrb[0].mxu0
      %v1936 = vadd.f32 0.0, %v1935
      %v1937 = vpop.f32.mrb[0].mxu0
      %1938 = vdwg.mxu0
      %1940 = vrot.lane.b32.xlu0 %v1757, 96
      %v1941 = vpop.permute.xlu0 %1940
      %v1942 = vsel %vm564, %v1757, 0
      %v1944 = vsel %vm564, %v1941, 0
      %1946 = vmatprep.subr.mxu0 0.0
      %1947 = vmatpush1.xpose.msra.mxu0 %v1944
      %1948 = vmatprep.subr.mxu0 0.0
      %1949 = vmatpush1.xpose.msra.mxu0 0.0
      %1950 = vmatprep.subr.mxu0 0.0
      %1951 = vmatpush1.xpose.msra.mxu0 0.0
      %1952 = vmatprep.subr.mxu0 0.0
      %1953 = vmatpush1.xpose.msra.mxu0 0.0
      %1954 = vmatprep.subr.mxu0 0.0
      %1955 = vmatpush1.xpose.msra.mxu0 0.0
      %1956 = vmatprep.subr.mxu0 0.0
      %1957 = vmatpush1.xpose.msra.mxu0 0.0
      %1958 = vmatprep.subr.mxu0 0.0
      %1959 = vmatpush1.xpose.msra.mxu0 0.0
      %1960 = vmatprep.subr.mxu0 0.0
      %1961 = vmatpush1.xpose.msra.mxu0 0.0
      %1962 = vmatprep.subr.mxu0 0.0
      %1963 = vmatpush1.xpose.msra.mxu0 0.0
      %1964 = vmatprep.subr.mxu0 0.0
      %1965 = vmatpush1.xpose.msra.mxu0 0.0
      %1966 = vmatprep.subr.mxu0 0.0
      %1967 = vmatpush1.xpose.msra.mxu0 0.0
      %1968 = vmatprep.subr.mxu0 0.0
      %1969 = vmatpush1.xpose.msra.mxu0 0.0
      %1970 = vmatprep.subr.mxu0 0.0
      %1971 = vmatpush1.xpose.msra.mxu0 0.0
      %1972 = vmatprep.subr.mxu0 0.0
      %1973 = vmatpush1.xpose.msra.mxu0 0.0
      %1974 = vmatprep.subr.mxu0 0.0
      %1975 = vmatpush1.xpose.msra.mxu0 0.0
      %1976 = vmatprep.subr.mxu0 0.0
      %1977 = vmatpush1.xpose.msra.mxu0 0.0
      %1978 = vmatprep.subr.mxu0 0.0
      %1979 = vmatpush1.xpose.msra.mxu0 0.0
      %1980 = vmatprep.subr.mxu0 0.0
      %1981 = vmatpush1.xpose.msra.mxu0 0.0
      %1982 = vmatprep.subr.mxu0 0.0
      %1983 = vmatpush1.xpose.msra.mxu0 0.0
      %1984 = vmatprep.subr.mxu0 0.0
      %1985 = vmatpush1.xpose.msra.mxu0 0.0
      %1986 = vmatprep.subr.mxu0 0.0
      %1987 = vmatpush1.xpose.msra.mxu0 0.0
      %1988 = vmatprep.subr.mxu0 0.0
      %1989 = vmatpush1.xpose.msra.mxu0 0.0
      %1990 = vmatprep.subr.mxu0 0.0
      %1991 = vmatpush1.xpose.msra.mxu0 0.0
      %1992 = vmatprep.subr.mxu0 0.0
      %1993 = vmatpush1.xpose.msra.mxu0 0.0
      %1994 = vmatprep.subr.mxu0 0.0
      %1995 = vmatpush1.xpose.msra.mxu0 0.0
      %1996 = vmatprep.subr.mxu0 0.0
      %1997 = vmatpush1.xpose.msra.mxu0 0.0
      %1998 = vmatprep.subr.mxu0 0.0
      %1999 = vmatpush1.xpose.msra.mxu0 0.0
      %2000 = vmatprep.subr.mxu0 0.0
      %2001 = vmatpush1.xpose.msra.mxu0 0.0
      %2002 = vmatprep.subr.mxu0 0.0
      %2003 = vmatpush1.xpose.msra.mxu0 0.0
      %2004 = vmatprep.subr.mxu0 0.0
      %2005 = vmatpush1.xpose.msra.mxu0 0.0
      %2006 = vmatprep.subr.mxu0 0.0
      %2007 = vmatpush1.xpose.msra.mxu0 0.0
      %2008 = vmatprep.subr.mxu0 0.0
      %2009 = vmatpush1.xpose.msra.mxu0 0.0
      %2010 = vmatprep.mubr.f32.mxu0 0.0
      %2011 = vmatmul.mubr.f32.gmra.mrb[0].mxu0 %v1942
      %v2012 = vpop.f32.mrb[0].mxu0
      %v2013 = vadd.f32 0.0, %v2012
      %v2014 = vpop.f32.mrb[0].mxu0
      %2015 = vdwg.mxu0
      %2017 = vrot.lane.b32.xlu0 %v1762, 96
      %v2018 = vpop.permute.xlu0 %2017
      %v2019 = vsel %vm564, %v1762, 0
      %v2021 = vsel %vm564, %v2018, 0
      %2023 = vmatprep.subr.mxu0 0.0
      %2024 = vmatpush1.xpose.msra.mxu0 %v2021
      %2025 = vmatprep.subr.mxu0 0.0
      %2026 = vmatpush1.xpose.msra.mxu0 0.0
      %2027 = vmatprep.subr.mxu0 0.0
      %2028 = vmatpush1.xpose.msra.mxu0 0.0
      %2029 = vmatprep.subr.mxu0 0.0
      %2030 = vmatpush1.xpose.msra.mxu0 0.0
      %2031 = vmatprep.subr.mxu0 0.0
      %2032 = vmatpush1.xpose.msra.mxu0 0.0
      %2033 = vmatprep.subr.mxu0 0.0
      %2034 = vmatpush1.xpose.msra.mxu0 0.0
      %2035 = vmatprep.subr.mxu0 0.0
      %2036 = vmatpush1.xpose.msra.mxu0 0.0
      %2037 = vmatprep.subr.mxu0 0.0
      %2038 = vmatpush1.xpose.msra.mxu0 0.0
      %2039 = vmatprep.subr.mxu0 0.0
      %2040 = vmatpush1.xpose.msra.mxu0 0.0
      %2041 = vmatprep.subr.mxu0 0.0
      %2042 = vmatpush1.xpose.msra.mxu0 0.0
      %2043 = vmatprep.subr.mxu0 0.0
      %2044 = vmatpush1.xpose.msra.mxu0 0.0
      %2045 = vmatprep.subr.mxu0 0.0
      %2046 = vmatpush1.xpose.msra.mxu0 0.0
      %2047 = vmatprep.subr.mxu0 0.0
      %2048 = vmatpush1.xpose.msra.mxu0 0.0
      %2049 = vmatprep.subr.mxu0 0.0
      %2050 = vmatpush1.xpose.msra.mxu0 0.0
      %2051 = vmatprep.subr.mxu0 0.0
      %2052 = vmatpush1.xpose.msra.mxu0 0.0
      %2053 = vmatprep.subr.mxu0 0.0
      %2054 = vmatpush1.xpose.msra.mxu0 0.0
      %2055 = vmatprep.subr.mxu0 0.0
      %2056 = vmatpush1.xpose.msra.mxu0 0.0
      %2057 = vmatprep.subr.mxu0 0.0
      %2058 = vmatpush1.xpose.msra.mxu0 0.0
      %2059 = vmatprep.subr.mxu0 0.0
      %2060 = vmatpush1.xpose.msra.mxu0 0.0
      %2061 = vmatprep.subr.mxu0 0.0
      %2062 = vmatpush1.xpose.msra.mxu0 0.0
      %2063 = vmatprep.subr.mxu0 0.0
      %2064 = vmatpush1.xpose.msra.mxu0 0.0
      %2065 = vmatprep.subr.mxu0 0.0
      %2066 = vmatpush1.xpose.msra.mxu0 0.0
      %2067 = vmatprep.subr.mxu0 0.0
      %2068 = vmatpush1.xpose.msra.mxu0 0.0
      %2069 = vmatprep.subr.mxu0 0.0
      %2070 = vmatpush1.xpose.msra.mxu0 0.0
      %2071 = vmatprep.subr.mxu0 0.0
      %2072 = vmatpush1.xpose.msra.mxu0 0.0
      %2073 = vmatprep.subr.mxu0 0.0
      %2074 = vmatpush1.xpose.msra.mxu0 0.0
      %2075 = vmatprep.subr.mxu0 0.0
      %2076 = vmatpush1.xpose.msra.mxu0 0.0
      %2077 = vmatprep.subr.mxu0 0.0
      %2078 = vmatpush1.xpose.msra.mxu0 0.0
      %2079 = vmatprep.subr.mxu0 0.0
      %2080 = vmatpush1.xpose.msra.mxu0 0.0
      %2081 = vmatprep.subr.mxu0 0.0
      %2082 = vmatpush1.xpose.msra.mxu0 0.0
      %2083 = vmatprep.subr.mxu0 0.0
      %2084 = vmatpush1.xpose.msra.mxu0 0.0
      %2085 = vmatprep.subr.mxu0 0.0
      %2086 = vmatpush1.xpose.msra.mxu0 0.0
      %2087 = vmatprep.mubr.f32.mxu0 0.0
      %2088 = vmatmul.mubr.f32.gmra.mrb[0].mxu0 %v2019
      %v2089 = vpop.f32.mrb[0].mxu0
      %v2090 = vadd.f32 0.0, %v2089
      %v2091 = vpop.f32.mrb[0].mxu0
      %2092 = vdwg.mxu0
      %2094 = vrot.lane.b32.xlu0 %v1767, 96
      %v2095 = vpop.permute.xlu0 %2094
      %v2096 = vsel %vm564, %v1767, 0
      %v2098 = vsel %vm564, %v2095, 0
      %2100 = vmatprep.subr.mxu0 0.0
      %2101 = vmatpush1.xpose.msra.mxu0 %v2098
      %2102 = vmatprep.subr.mxu0 0.0
      %2103 = vmatpush1.xpose.msra.mxu0 0.0
      %2104 = vmatprep.subr.mxu0 0.0
      %2105 = vmatpush1.xpose.msra.mxu0 0.0
      %2106 = vmatprep.subr.mxu0 0.0
      %2107 = vmatpush1.xpose.msra.mxu0 0.0
      %2108 = vmatprep.subr.mxu0 0.0
      %2109 = vmatpush1.xpose.msra.mxu0 0.0
      %2110 = vmatprep.subr.mxu0 0.0
      %2111 = vmatpush1.xpose.msra.mxu0 0.0
      %2112 = vmatprep.subr.mxu0 0.0
      %2113 = vmatpush1.xpose.msra.mxu0 0.0
      %2114 = vmatprep.subr.mxu0 0.0
      %2115 = vmatpush1.xpose.msra.mxu0 0.0
      %2116 = vmatprep.subr.mxu0 0.0
      %2117 = vmatpush1.xpose.msra.mxu0 0.0
      %2118 = vmatprep.subr.mxu0 0.0
      %2119 = vmatpush1.xpose.msra.mxu0 0.0
      %2120 = vmatprep.subr.mxu0 0.0
      %2121 = vmatpush1.xpose.msra.mxu0 0.0
      %2122 = vmatprep.subr.mxu0 0.0
      %2123 = vmatpush1.xpose.msra.mxu0 0.0
      %2124 = vmatprep.subr.mxu0 0.0
      %2125 = vmatpush1.xpose.msra.mxu0 0.0
      %2126 = vmatprep.subr.mxu0 0.0
      %2127 = vmatpush1.xpose.msra.mxu0 0.0
      %2128 = vmatprep.subr.mxu0 0.0
      %2129 = vmatpush1.xpose.msra.mxu0 0.0
      %2130 = vmatprep.subr.mxu0 0.0
      %2131 = vmatpush1.xpose.msra.mxu0 0.0
      %2132 = vmatprep.subr.mxu0 0.0
      %2133 = vmatpush1.xpose.msra.mxu0 0.0
      %2134 = vmatprep.subr.mxu0 0.0
      %2135 = vmatpush1.xpose.msra.mxu0 0.0
      %2136 = vmatprep.subr.mxu0 0.0
      %2137 = vmatpush1.xpose.msra.mxu0 0.0
      %2138 = vmatprep.subr.mxu0 0.0
      %2139 = vmatpush1.xpose.msra.mxu0 0.0
      %2140 = vmatprep.subr.mxu0 0.0
      %2141 = vmatpush1.xpose.msra.mxu0 0.0
      %2142 = vmatprep.subr.mxu0 0.0
      %2143 = vmatpush1.xpose.msra.mxu0 0.0
      %2144 = vmatprep.subr.mxu0 0.0
      %2145 = vmatpush1.xpose.msra.mxu0 0.0
      %2146 = vmatprep.subr.mxu0 0.0
      %2147 = vmatpush1.xpose.msra.mxu0 0.0
      %2148 = vmatprep.subr.mxu0 0.0
      %2149 = vmatpush1.xpose.msra.mxu0 0.0
      %2150 = vmatprep.subr.mxu0 0.0
      %2151 = vmatpush1.xpose.msra.mxu0 0.0
      %2152 = vmatprep.subr.mxu0 0.0
      %2153 = vmatpush1.xpose.msra.mxu0 0.0
      %2154 = vmatprep.subr.mxu0 0.0
      %2155 = vmatpush1.xpose.msra.mxu0 0.0
      %2156 = vmatprep.subr.mxu0 0.0
      %2157 = vmatpush1.xpose.msra.mxu0 0.0
      %2158 = vmatprep.subr.mxu0 0.0
      %2159 = vmatpush1.xpose.msra.mxu0 0.0
      %2160 = vmatprep.subr.mxu0 0.0
      %2161 = vmatpush1.xpose.msra.mxu0 0.0
      %2162 = vmatprep.subr.mxu0 0.0
      %2163 = vmatpush1.xpose.msra.mxu0 0.0
      %2164 = vmatprep.mubr.f32.mxu0 0.0
      %2165 = vmatmul.mubr.f32.gmra.mrb[0].mxu0 %v2096
      %v2166 = vpop.f32.mrb[0].mxu0
      %v2167 = vadd.f32 0.0, %v2166
      %v2168 = vpop.f32.mrb[0].mxu0
      %2169 = vdwg.mxu0
      %2171 = vrot.lane.b32.xlu0 %v1772, 96
      %v2172 = vpop.permute.xlu0 %2171
      %v2173 = vsel %vm564, %v1772, 0
      %v2175 = vsel %vm564, %v2172, 0
      %2177 = vmatprep.subr.mxu0 0.0
      %2178 = vmatpush1.xpose.msra.mxu0 %v2175
      %2179 = vmatprep.subr.mxu0 0.0
      %2180 = vmatpush1.xpose.msra.mxu0 0.0
      %2181 = vmatprep.subr.mxu0 0.0
      %2182 = vmatpush1.xpose.msra.mxu0 0.0
      %2183 = vmatprep.subr.mxu0 0.0
      %2184 = vmatpush1.xpose.msra.mxu0 0.0
      %2185 = vmatprep.subr.mxu0 0.0
      %2186 = vmatpush1.xpose.msra.mxu0 0.0
      %2187 = vmatprep.subr.mxu0 0.0
      %2188 = vmatpush1.xpose.msra.mxu0 0.0
      %2189 = vmatprep.subr.mxu0 0.0
      %2190 = vmatpush1.xpose.msra.mxu0 0.0
      %2191 = vmatprep.subr.mxu0 0.0
      %2192 = vmatpush1.xpose.msra.mxu0 0.0
      %2193 = vmatprep.subr.mxu0 0.0
      %2194 = vmatpush1.xpose.msra.mxu0 0.0
      %2195 = vmatprep.subr.mxu0 0.0
      %2196 = vmatpush1.xpose.msra.mxu0 0.0
      %2197 = vmatprep.subr.mxu0 0.0
      %2198 = vmatpush1.xpose.msra.mxu0 0.0
      %2199 = vmatprep.subr.mxu0 0.0
      %2200 = vmatpush1.xpose.msra.mxu0 0.0
      %2201 = vmatprep.subr.mxu0 0.0
      %2202 = vmatpush1.xpose.msra.mxu0 0.0
      %2203 = vmatprep.subr.mxu0 0.0
      %2204 = vmatpush1.xpose.msra.mxu0 0.0
      %2205 = vmatprep.subr.mxu0 0.0
      %2206 = vmatpush1.xpose.msra.mxu0 0.0
      %2207 = vmatprep.subr.mxu0 0.0
      %2208 = vmatpush1.xpose.msra.mxu0 0.0
      %2209 = vmatprep.subr.mxu0 0.0
      %2210 = vmatpush1.xpose.msra.mxu0 0.0
      %2211 = vmatprep.subr.mxu0 0.0
      %2212 = vmatpush1.xpose.msra.mxu0 0.0
      %2213 = vmatprep.subr.mxu0 0.0
      %2214 = vmatpush1.xpose.msra.mxu0 0.0
      %2215 = vmatprep.subr.mxu0 0.0
      %2216 = vmatpush1.xpose.msra.mxu0 0.0
      %2217 = vmatprep.subr.mxu0 0.0
      %2218 = vmatpush1.xpose.msra.mxu0 0.0
      %2219 = vmatprep.subr.mxu0 0.0
      %2220 = vmatpush1.xpose.msra.mxu0 0.0
      %2221 = vmatprep.subr.mxu0 0.0
      %2222 = vmatpush1.xpose.msra.mxu0 0.0
      %2223 = vmatprep.subr.mxu0 0.0
      %2224 = vmatpush1.xpose.msra.mxu0 0.0
      %2225 = vmatprep.subr.mxu0 0.0
      %2226 = vmatpush1.xpose.msra.mxu0 0.0
      %2227 = vmatprep.subr.mxu0 0.0
      %2228 = vmatpush1.xpose.msra.mxu0 0.0
      %2229 = vmatprep.subr.mxu0 0.0
      %2230 = vmatpush1.xpose.msra.mxu0 0.0
      %2231 = vmatprep.subr.mxu0 0.0
      %2232 = vmatpush1.xpose.msra.mxu0 0.0
      %2233 = vmatprep.subr.mxu0 0.0
      %2234 = vmatpush1.xpose.msra.mxu0 0.0
      %2235 = vmatprep.subr.mxu0 0.0
      %2236 = vmatpush1.xpose.msra.mxu0 0.0
      %2237 = vmatprep.subr.mxu0 0.0
      %2238 = vmatpush1.xpose.msra.mxu0 0.0
      %2239 = vmatprep.subr.mxu0 0.0
      %2240 = vmatpush1.xpose.msra.mxu0 0.0
      %2241 = vmatprep.mubr.f32.mxu0 0.0
      %2242 = vmatmul.mubr.f32.gmra.mrb[0].mxu0 %v2173
      %v2243 = vpop.f32.mrb[0].mxu0
      %v2244 = vadd.f32 0.0, %v2243
      %v2245 = vpop.f32.mrb[0].mxu0
      %2246 = vdwg.mxu0
      %2248 = vrot.lane.b32.xlu0 %v1777, 96
      %v2249 = vpop.permute.xlu0 %2248
      %v2250 = vsel %vm564, %v1777, 0
      %v2252 = vsel %vm564, %v2249, 0
      %2254 = vmatprep.subr.mxu0 0.0
      %2255 = vmatpush1.xpose.msra.mxu0 %v2252
      %2256 = vmatprep.subr.mxu0 0.0
      %2257 = vmatpush1.xpose.msra.mxu0 0.0
      %2258 = vmatprep.subr.mxu0 0.0
      %2259 = vmatpush1.xpose.msra.mxu0 0.0
      %2260 = vmatprep.subr.mxu0 0.0
      %2261 = vmatpush1.xpose.msra.mxu0 0.0
      %2262 = vmatprep.subr.mxu0 0.0
      %2263 = vmatpush1.xpose.msra.mxu0 0.0
      %2264 = vmatprep.subr.mxu0 0.0
      %2265 = vmatpush1.xpose.msra.mxu0 0.0
      %2266 = vmatprep.subr.mxu0 0.0
      %2267 = vmatpush1.xpose.msra.mxu0 0.0
      %2268 = vmatprep.subr.mxu0 0.0
      %2269 = vmatpush1.xpose.msra.mxu0 0.0
      %2270 = vmatprep.subr.mxu0 0.0
      %2271 = vmatpush1.xpose.msra.mxu0 0.0
      %2272 = vmatprep.subr.mxu0 0.0
      %2273 = vmatpush1.xpose.msra.mxu0 0.0
      %2274 = vmatprep.subr.mxu0 0.0
      %2275 = vmatpush1.xpose.msra.mxu0 0.0
      %2276 = vmatprep.subr.mxu0 0.0
      %2277 = vmatpush1.xpose.msra.mxu0 0.0
      %2278 = vmatprep.subr.mxu0 0.0
      %2279 = vmatpush1.xpose.msra.mxu0 0.0
      %2280 = vmatprep.subr.mxu0 0.0
      %2281 = vmatpush1.xpose.msra.mxu0 0.0
      %2282 = vmatprep.subr.mxu0 0.0
      %2283 = vmatpush1.xpose.msra.mxu0 0.0
      %2284 = vmatprep.subr.mxu0 0.0
      %2285 = vmatpush1.xpose.msra.mxu0 0.0
      %2286 = vmatprep.subr.mxu0 0.0
      %2287 = vmatpush1.xpose.msra.mxu0 0.0
      %2288 = vmatprep.subr.mxu0 0.0
      %2289 = vmatpush1.xpose.msra.mxu0 0.0
      %2290 = vmatprep.subr.mxu0 0.0
      %2291 = vmatpush1.xpose.msra.mxu0 0.0
      %2292 = vmatprep.subr.mxu0 0.0
      %2293 = vmatpush1.xpose.msra.mxu0 0.0
      %2294 = vmatprep.subr.mxu0 0.0
      %2295 = vmatpush1.xpose.msra.mxu0 0.0
      %2296 = vmatprep.subr.mxu0 0.0
      %2297 = vmatpush1.xpose.msra.mxu0 0.0
      %2298 = vmatprep.subr.mxu0 0.0
      %2299 = vmatpush1.xpose.msra.mxu0 0.0
      %2300 = vmatprep.subr.mxu0 0.0
      %2301 = vmatpush1.xpose.msra.mxu0 0.0
      %2302 = vmatprep.subr.mxu0 0.0
      %2303 = vmatpush1.xpose.msra.mxu0 0.0
      %2304 = vmatprep.subr.mxu0 0.0
      %2305 = vmatpush1.xpose.msra.mxu0 0.0
      %2306 = vmatprep.subr.mxu0 0.0
      %2307 = vmatpush1.xpose.msra.mxu0 0.0
      %2308 = vmatprep.subr.mxu0 0.0
      %2309 = vmatpush1.xpose.msra.mxu0 0.0
      %2310 = vmatprep.subr.mxu0 0.0
      %2311 = vmatpush1.xpose.msra.mxu0 0.0
      %2312 = vmatprep.subr.mxu0 0.0
      %2313 = vmatpush1.xpose.msra.mxu0 0.0
      %2314 = vmatprep.subr.mxu0 0.0
      %2315 = vmatpush1.xpose.msra.mxu0 0.0
      %2316 = vmatprep.subr.mxu0 0.0
      %2317 = vmatpush1.xpose.msra.mxu0 0.0
      %2318 = vmatprep.mubr.f32.mxu0 0.0
      %2319 = vmatmul.mubr.f32.gmra.mrb[0].mxu0 %v2250
      %v2320 = vpop.f32.mrb[0].mxu0
      %v2321 = vadd.f32 0.0, %v2320
      %v2322 = vpop.f32.mrb[0].mxu0
      %2323 = vdwg.mxu0
      %2325 = vrot.lane.b32.xlu0 %v1782, 96
      %v2326 = vpop.permute.xlu0 %2325
      %v2327 = vsel %vm564, %v1782, 0
      %v2329 = vsel %vm564, %v2326, 0
      %2331 = vmatprep.subr.mxu0 0.0
      %2332 = vmatpush1.xpose.msra.mxu0 %v2329
      %2333 = vmatprep.subr.mxu0 0.0
      %2334 = vmatpush1.xpose.msra.mxu0 0.0
      %2335 = vmatprep.subr.mxu0 0.0
      %2336 = vmatpush1.xpose.msra.mxu0 0.0
      %2337 = vmatprep.subr.mxu0 0.0
      %2338 = vmatpush1.xpose.msra.mxu0 0.0
      %2339 = vmatprep.subr.mxu0 0.0
      %2340 = vmatpush1.xpose.msra.mxu0 0.0
      %2341 = vmatprep.subr.mxu0 0.0
      %2342 = vmatpush1.xpose.msra.mxu0 0.0
      %2343 = vmatprep.subr.mxu0 0.0
      %2344 = vmatpush1.xpose.msra.mxu0 0.0
      %2345 = vmatprep.subr.mxu0 0.0
      %2346 = vmatpush1.xpose.msra.mxu0 0.0
      %2347 = vmatprep.subr.mxu0 0.0
      %2348 = vmatpush1.xpose.msra.mxu0 0.0
      %2349 = vmatprep.subr.mxu0 0.0
      %2350 = vmatpush1.xpose.msra.mxu0 0.0
      %2351 = vmatprep.subr.mxu0 0.0
      %2352 = vmatpush1.xpose.msra.mxu0 0.0
      %2353 = vmatprep.subr.mxu0 0.0
      %2354 = vmatpush1.xpose.msra.mxu0 0.0
      %2355 = vmatprep.subr.mxu0 0.0
      %2356 = vmatpush1.xpose.msra.mxu0 0.0
      %2357 = vmatprep.subr.mxu0 0.0
      %2358 = vmatpush1.xpose.msra.mxu0 0.0
      %2359 = vmatprep.subr.mxu0 0.0
      %2360 = vmatpush1.xpose.msra.mxu0 0.0
      %2361 = vmatprep.subr.mxu0 0.0
      %2362 = vmatpush1.xpose.msra.mxu0 0.0
      %2363 = vmatprep.subr.mxu0 0.0
      %2364 = vmatpush1.xpose.msra.mxu0 0.0
      %2365 = vmatprep.subr.mxu0 0.0
      %2366 = vmatpush1.xpose.msra.mxu0 0.0
      %2367 = vmatprep.subr.mxu0 0.0
      %2368 = vmatpush1.xpose.msra.mxu0 0.0
      %2369 = vmatprep.subr.mxu0 0.0
      %2370 = vmatpush1.xpose.msra.mxu0 0.0
      %2371 = vmatprep.subr.mxu0 0.0
      %2372 = vmatpush1.xpose.msra.mxu0 0.0
      %2373 = vmatprep.subr.mxu0 0.0
      %2374 = vmatpush1.xpose.msra.mxu0 0.0
      %2375 = vmatprep.subr.mxu0 0.0
      %2376 = vmatpush1.xpose.msra.mxu0 0.0
      %2377 = vmatprep.subr.mxu0 0.0
      %2378 = vmatpush1.xpose.msra.mxu0 0.0
      %2379 = vmatprep.subr.mxu0 0.0
      %2380 = vmatpush1.xpose.msra.mxu0 0.0
      %2381 = vmatprep.subr.mxu0 0.0
      %2382 = vmatpush1.xpose.msra.mxu0 0.0
      %2383 = vmatprep.subr.mxu0 0.0
      %2384 = vmatpush1.xpose.msra.mxu0 0.0
      %2385 = vmatprep.subr.mxu0 0.0
      %2386 = vmatpush1.xpose.msra.mxu0 0.0
      %2387 = vmatprep.subr.mxu0 0.0
      %2388 = vmatpush1.xpose.msra.mxu0 0.0
      %2389 = vmatprep.subr.mxu0 0.0
      %2390 = vmatpush1.xpose.msra.mxu0 0.0
      %2391 = vmatprep.subr.mxu0 0.0
      %2392 = vmatpush1.xpose.msra.mxu0 0.0
      %2393 = vmatprep.subr.mxu0 0.0
      %2394 = vmatpush1.xpose.msra.mxu0 0.0
      %2395 = vmatprep.mubr.f32.mxu0 0.0
      %2396 = vmatmul.mubr.f32.gmra.mrb[0].mxu0 %v2327
      %v2397 = vpop.f32.mrb[0].mxu0
      %v2398 = vadd.f32 0.0, %v2397
      %v2399 = vpop.f32.mrb[0].mxu0
      %2400 = vdwg.mxu0
      %v2401 = vmul.f32 %v1859, 0.17677669
      %v2402 = vmul.f32 %v1936, 0.17677669
      %v2403 = vmul.f32 %v2013, 0.17677669
      %v2404 = vmul.f32 %v2090, 0.17677669
      %v2405 = vmul.f32 %v2167, 0.17677669
      %v2406 = vmul.f32 %v2244, 0.17677669
      %v2407 = vmul.f32 %v2321, 0.17677669
      %v2408 = vmul.f32 %v2398, 0.17677669
      %v2409 = vlaneseq
      %v2410 = vshrl.u32 %v2409, 7
      %v2411 = vsub.s32 0, %v2410
      %v2412 = vrot.slane %v375, %v2411
      %v2413 = vlaneseq
      %v2414 = vshrl.u32 %v2413, 7
      %v2415 = vsub.s32 0, %v2414
      %v2416 = vrot.slane %v376, %v2415
      %v2417 = vlaneseq
      %v2418 = vshrl.u32 %v2417, 7
      %v2419 = vsub.s32 0, %v2418
      %v2420 = vrot.slane %v377, %v2419
      %v2421 = vlaneseq
      %v2422 = vshrl.u32 %v2421, 7
      %v2423 = vsub.s32 0, %v2422
      %v2424 = vrot.slane %v378, %v2423
      %v2425 = vlaneseq
      %v2426 = vshrl.u32 %v2425, 7
      %v2427 = vsub.s32 0, %v2426
      %v2428 = vrot.slane %v379, %v2427
      %v2429 = vlaneseq
      %v2430 = vshrl.u32 %v2429, 7
      %v2431 = vsub.s32 0, %v2430
      %v2432 = vrot.slane %v380, %v2431
      %v2433 = vlaneseq
      %v2434 = vshrl.u32 %v2433, 7
      %v2435 = vsub.s32 0, %v2434
      %v2436 = vrot.slane %v381, %v2435
      %v2437 = vlaneseq
      %v2438 = vshrl.u32 %v2437, 7
      %v2439 = vsub.s32 0, %v2438
      %v2440 = vrot.slane %v382, %v2439
      %v2441 = vadd.f32 %v2401, %v2412
      %v2442 = vadd.f32 %v2402, %v2416
      %v2443 = vadd.f32 %v2403, %v2420
      %v2444 = vadd.f32 %v2404, %v2424
      %v2445 = vadd.f32 %v2405, %v2428
      %v2446 = vadd.f32 %v2406, %v2432
      %v2447 = vadd.f32 %v2407, %v2436
      %v2448 = vadd.f32 %v2408, %v2440
      %v2449 = vsel %vm702, %v2441, -inf
      %2450 = vmax.xlane.f32.xlu0 %v2449
      %v2451 = vpop.xlane.xlu0 %2450
      %v2452 = vsel %vm702, %v2442, -inf
      %2453 = vmax.xlane.f32.xlu0 %v2452
      %v2454 = vpop.xlane.xlu0 %2453
      %v2455 = vsel %vm702, %v2443, -inf
      %2456 = vmax.xlane.f32.xlu0 %v2455
      %v2457 = vpop.xlane.xlu0 %2456
      %v2458 = vsel %vm702, %v2444, -inf
      %2459 = vmax.xlane.f32.xlu0 %v2458
      %v2460 = vpop.xlane.xlu0 %2459
      %v2461 = vsel %vm702, %v2445, -inf
      %2462 = vmax.xlane.f32.xlu0 %v2461
      %v2463 = vpop.xlane.xlu0 %2462
      %v2464 = vsel %vm702, %v2446, -inf
      %2465 = vmax.xlane.f32.xlu0 %v2464
      %v2466 = vpop.xlane.xlu0 %2465
      %v2467 = vsel %vm702, %v2447, -inf
      %2468 = vmax.xlane.f32.xlu0 %v2467
      %v2469 = vpop.xlane.xlu0 %2468
      %v2470 = vsel %vm702, %v2448, -inf
      %2471 = vmax.xlane.f32.xlu0 %v2470
      %v2472 = vpop.xlane.xlu0 %2471
      %v2473 = vsub.f32 %v2441, %v2451
      %v2474 = vsub.f32 %v2442, %v2454
      %v2475 = vsub.f32 %v2443, %v2457
      %v2476 = vsub.f32 %v2444, %v2460
      %v2477 = vsub.f32 %v2445, %v2463
      %v2478 = vsub.f32 %v2446, %v2466
      %v2479 = vsub.f32 %v2447, %v2469
      %v2480 = vsub.f32 %v2448, %v2472
      %v2481 = vmul.f32 %v2473, 1.442695
      %v2482 = vpow.pop %v2481
      %v2483 = vmul.f32 %v2474, 1.442695
      %v2484 = vpow.pop %v2483
      %v2485 = vmul.f32 %v2475, 1.442695
      %v2486 = vpow.pop %v2485
      %v2487 = vmul.f32 %v2476, 1.442695
      %v2488 = vpow.pop %v2487
      %v2489 = vmul.f32 %v2477, 1.442695
      %v2490 = vpow.pop %v2489
      %v2491 = vmul.f32 %v2478, 1.442695
      %v2492 = vpow.pop %v2491
      %v2493 = vmul.f32 %v2479, 1.442695
      %v2494 = vpow.pop %v2493
      %v2495 = vmul.f32 %v2480, 1.442695
      %v2496 = vpow.pop %v2495
      %v2497 = vsel %vm702, %v2482, 0.0
      %2498 = vadd.xlane.f32.xlu0 %v2497
      %v2499 = vpop.xlane.xlu0 %2498
      %v2500 = vsel %vm702, %v2484, 0.0
      %2501 = vadd.xlane.f32.xlu0 %v2500
      %v2502 = vpop.xlane.xlu0 %2501
      %v2503 = vsel %vm702, %v2486, 0.0
      %2504 = vadd.xlane.f32.xlu0 %v2503
      %v2505 = vpop.xlane.xlu0 %2504
      %v2506 = vsel %vm702, %v2488, 0.0
      %2507 = vadd.xlane.f32.xlu0 %v2506
      %v2508 = vpop.xlane.xlu0 %2507
      %v2509 = vsel %vm702, %v2490, 0.0
      %2510 = vadd.xlane.f32.xlu0 %v2509
      %v2511 = vpop.xlane.xlu0 %2510
      %v2512 = vsel %vm702, %v2492, 0.0
      %2513 = vadd.xlane.f32.xlu0 %v2512
      %v2514 = vpop.xlane.xlu0 %2513
      %v2515 = vsel %vm702, %v2494, 0.0
      %2516 = vadd.xlane.f32.xlu0 %v2515
      %v2517 = vpop.xlane.xlu0 %2516
      %v2518 = vsel %vm702, %v2496, 0.0
      %2519 = vadd.xlane.f32.xlu0 %v2518
      %v2520 = vpop.xlane.xlu0 %2519
      %v2521 = vrcp.pop %v2499
      %v2522 = vrcp.pop %v2502
      %v2523 = vrcp.pop %v2505
      %v2524 = vrcp.pop %v2508
      %v2525 = vrcp.pop %v2511
      %v2526 = vrcp.pop %v2514
      %v2527 = vrcp.pop %v2517
      %v2528 = vrcp.pop %v2520
      %v2529 = vmul.f32 %v2482, %v2521
      %v2530 = vmul.f32 %v2484, %v2522
      %v2531 = vmul.f32 %v2486, %v2523
      %v2532 = vmul.f32 %v2488, %v2524
      %v2533 = vmul.f32 %v2490, %v2525
      %v2534 = vmul.f32 %v2492, %v2526
      %v2535 = vmul.f32 %v2494, %v2527
      %v2536 = vmul.f32 %v2496, %v2528
      %2537 = vrot.lane.b32.xlu0 %v1747, 64
      %v2538 = vpop.permute.xlu0 %2537
      %v2541 = vsel %vm702, %v2529, 0
      %2543 = vmatprep.subr.mxu0 0.0
      %2544 = vmatpush1.msra.mxu0 %v2538
      %2545 = vmatprep.subr.mxu0 0.0
      %2546 = vmatpush1.msra.mxu0 0.0
      %2547 = vmatprep.subr.mxu0 0.0
      %2548 = vmatpush1.msra.mxu0 0.0
      %2549 = vmatprep.subr.mxu0 0.0
      %2550 = vmatpush1.msra.mxu0 0.0
      %2551 = vmatprep.subr.mxu0 0.0
      %2552 = vmatpush1.msra.mxu0 0.0
      %2553 = vmatprep.subr.mxu0 0.0
      %2554 = vmatpush1.msra.mxu0 0.0
      %2555 = vmatprep.subr.mxu0 0.0
      %2556 = vmatpush1.msra.mxu0 0.0
      %2557 = vmatprep.subr.mxu0 0.0
      %2558 = vmatpush1.msra.mxu0 0.0
      %2559 = vmatprep.subr.mxu0 0.0
      %2560 = vmatpush1.msra.mxu0 0.0
      %2561 = vmatprep.subr.mxu0 0.0
      %2562 = vmatpush1.msra.mxu0 0.0
      %2563 = vmatprep.subr.mxu0 0.0
      %2564 = vmatpush1.msra.mxu0 0.0
      %2565 = vmatprep.subr.mxu0 0.0
      %2566 = vmatpush1.msra.mxu0 0.0
      %2567 = vmatprep.subr.mxu0 0.0
      %2568 = vmatpush1.msra.mxu0 0.0
      %2569 = vmatprep.subr.mxu0 0.0
      %2570 = vmatpush1.msra.mxu0 0.0
      %2571 = vmatprep.subr.mxu0 0.0
      %2572 = vmatpush1.msra.mxu0 0.0
      %2573 = vmatprep.subr.mxu0 0.0
      %2574 = vmatpush1.msra.mxu0 0.0
      %2575 = vmatprep.subr.mxu0 0.0
      %2576 = vmatpush1.msra.mxu0 0.0
      %2577 = vmatprep.subr.mxu0 0.0
      %2578 = vmatpush1.msra.mxu0 0.0
      %2579 = vmatprep.subr.mxu0 0.0
      %2580 = vmatpush1.msra.mxu0 0.0
      %2581 = vmatprep.subr.mxu0 0.0
      %2582 = vmatpush1.msra.mxu0 0.0
      %2583 = vmatprep.subr.mxu0 0.0
      %2584 = vmatpush1.msra.mxu0 0.0
      %2585 = vmatprep.subr.mxu0 0.0
      %2586 = vmatpush1.msra.mxu0 0.0
      %2587 = vmatprep.subr.mxu0 0.0
      %2588 = vmatpush1.msra.mxu0 0.0
      %2589 = vmatprep.subr.mxu0 0.0
      %2590 = vmatpush1.msra.mxu0 0.0
      %2591 = vmatprep.subr.mxu0 0.0
      %2592 = vmatpush1.msra.mxu0 0.0
      %2593 = vmatprep.subr.mxu0 0.0
      %2594 = vmatpush1.msra.mxu0 0.0
      %2595 = vmatprep.subr.mxu0 0.0
      %2596 = vmatpush1.msra.mxu0 0.0
      %2597 = vmatprep.subr.mxu0 0.0
      %2598 = vmatpush1.msra.mxu0 0.0
      %2599 = vmatprep.subr.mxu0 0.0
      %2600 = vmatpush1.msra.mxu0 0.0
      %2601 = vmatprep.subr.mxu0 0.0
      %2602 = vmatpush1.msra.mxu0 0.0
      %2603 = vmatprep.subr.mxu0 0.0
      %2604 = vmatpush1.msra.mxu0 0.0
      %2605 = vmatprep.subr.mxu0 0.0
      %2606 = vmatpush1.msra.mxu0 0.0
      %2607 = vmatprep.mubr.f32.mxu0 0.0
      %2608 = vmatmul.mubr.f32.gmra.mrb[0].mxu0 %v2541
      %v2609 = vpop.f32.mrb[0].mxu0
      %v2610 = vadd.f32 0.0, %v2609
      %v2611 = vpop.f32.mrb[0].mxu0
      %2612 = vdwg.mxu0
      %2613 = vrot.lane.b32.xlu0 %v1752, 64
      %v2614 = vpop.permute.xlu0 %2613
      %v2617 = vsel %vm702, %v2530, 0
      %2619 = vmatprep.subr.mxu0 0.0
      %2620 = vmatpush1.msra.mxu0 %v2614
      %2621 = vmatprep.subr.mxu0 0.0
      %2622 = vmatpush1.msra.mxu0 0.0
      %2623 = vmatprep.subr.mxu0 0.0
      %2624 = vmatpush1.msra.mxu0 0.0
      %2625 = vmatprep.subr.mxu0 0.0
      %2626 = vmatpush1.msra.mxu0 0.0
      %2627 = vmatprep.subr.mxu0 0.0
      %2628 = vmatpush1.msra.mxu0 0.0
      %2629 = vmatprep.subr.mxu0 0.0
      %2630 = vmatpush1.msra.mxu0 0.0
      %2631 = vmatprep.subr.mxu0 0.0
      %2632 = vmatpush1.msra.mxu0 0.0
      %2633 = vmatprep.subr.mxu0 0.0
      %2634 = vmatpush1.msra.mxu0 0.0
      %2635 = vmatprep.subr.mxu0 0.0
      %2636 = vmatpush1.msra.mxu0 0.0
      %2637 = vmatprep.subr.mxu0 0.0
      %2638 = vmatpush1.msra.mxu0 0.0
      %2639 = vmatprep.subr.mxu0 0.0
      %2640 = vmatpush1.msra.mxu0 0.0
      %2641 = vmatprep.subr.mxu0 0.0
      %2642 = vmatpush1.msra.mxu0 0.0
      %2643 = vmatprep.subr.mxu0 0.0
      %2644 = vmatpush1.msra.mxu0 0.0
      %2645 = vmatprep.subr.mxu0 0.0
      %2646 = vmatpush1.msra.mxu0 0.0
      %2647 = vmatprep.subr.mxu0 0.0
      %2648 = vmatpush1.msra.mxu0 0.0
      %2649 = vmatprep.subr.mxu0 0.0
      %2650 = vmatpush1.msra.mxu0 0.0
      %2651 = vmatprep.subr.mxu0 0.0
      %2652 = vmatpush1.msra.mxu0 0.0
      %2653 = vmatprep.subr.mxu0 0.0
      %2654 = vmatpush1.msra.mxu0 0.0
      %2655 = vmatprep.subr.mxu0 0.0
      %2656 = vmatpush1.msra.mxu0 0.0
      %2657 = vmatprep.subr.mxu0 0.0
      %2658 = vmatpush1.msra.mxu0 0.0
      %2659 = vmatprep.subr.mxu0 0.0
      %2660 = vmatpush1.msra.mxu0 0.0
      %2661 = vmatprep.subr.mxu0 0.0
      %2662 = vmatpush1.msra.mxu0 0.0
      %2663 = vmatprep.subr.mxu0 0.0
      %2664 = vmatpush1.msra.mxu0 0.0
      %2665 = vmatprep.subr.mxu0 0.0
      %2666 = vmatpush1.msra.mxu0 0.0
      %2667 = vmatprep.subr.mxu0 0.0
      %2668 = vmatpush1.msra.mxu0 0.0
      %2669 = vmatprep.subr.mxu0 0.0
      %2670 = vmatpush1.msra.mxu0 0.0
      %2671 = vmatprep.subr.mxu0 0.0
      %2672 = vmatpush1.msra.mxu0 0.0
      %2673 = vmatprep.subr.mxu0 0.0
      %2674 = vmatpush1.msra.mxu0 0.0
      %2675 = vmatprep.subr.mxu0 0.0
      %2676 = vmatpush1.msra.mxu0 0.0
      %2677 = vmatprep.subr.mxu0 0.0
      %2678 = vmatpush1.msra.mxu0 0.0
      %2679 = vmatprep.subr.mxu0 0.0
      %2680 = vmatpush1.msra.mxu0 0.0
      %2681 = vmatprep.subr.mxu0 0.0
      %2682 = vmatpush1.msra.mxu0 0.0
      %2683 = vmatprep.mubr.f32.mxu0 0.0
      %2684 = vmatmul.mubr.f32.gmra.mrb[0].mxu0 %v2617
      %v2685 = vpop.f32.mrb[0].mxu0
      %v2686 = vadd.f32 0.0, %v2685
      %v2687 = vpop.f32.mrb[0].mxu0
      %2688 = vdwg.mxu0
      %2689 = vrot.lane.b32.xlu0 %v1757, 64
      %v2690 = vpop.permute.xlu0 %2689
      %v2693 = vsel %vm702, %v2531, 0
      %2695 = vmatprep.subr.mxu0 0.0
      %2696 = vmatpush1.msra.mxu0 %v2690
      %2697 = vmatprep.subr.mxu0 0.0
      %2698 = vmatpush1.msra.mxu0 0.0
      %2699 = vmatprep.subr.mxu0 0.0
      %2700 = vmatpush1.msra.mxu0 0.0
      %2701 = vmatprep.subr.mxu0 0.0
      %2702 = vmatpush1.msra.mxu0 0.0
      %2703 = vmatprep.subr.mxu0 0.0
      %2704 = vmatpush1.msra.mxu0 0.0
      %2705 = vmatprep.subr.mxu0 0.0
      %2706 = vmatpush1.msra.mxu0 0.0
      %2707 = vmatprep.subr.mxu0 0.0
      %2708 = vmatpush1.msra.mxu0 0.0
      %2709 = vmatprep.subr.mxu0 0.0
      %2710 = vmatpush1.msra.mxu0 0.0
      %2711 = vmatprep.subr.mxu0 0.0
      %2712 = vmatpush1.msra.mxu0 0.0
      %2713 = vmatprep.subr.mxu0 0.0
      %2714 = vmatpush1.msra.mxu0 0.0
      %2715 = vmatprep.subr.mxu0 0.0
      %2716 = vmatpush1.msra.mxu0 0.0
      %2717 = vmatprep.subr.mxu0 0.0
      %2718 = vmatpush1.msra.mxu0 0.0
      %2719 = vmatprep.subr.mxu0 0.0
      %2720 = vmatpush1.msra.mxu0 0.0
      %2721 = vmatprep.subr.mxu0 0.0
      %2722 = vmatpush1.msra.mxu0 0.0
      %2723 = vmatprep.subr.mxu0 0.0
      %2724 = vmatpush1.msra.mxu0 0.0
      %2725 = vmatprep.subr.mxu0 0.0
      %2726 = vmatpush1.msra.mxu0 0.0
      %2727 = vmatprep.subr.mxu0 0.0
      %2728 = vmatpush1.msra.mxu0 0.0
      %2729 = vmatprep.subr.mxu0 0.0
      %2730 = vmatpush1.msra.mxu0 0.0
      %2731 = vmatprep.subr.mxu0 0.0
      %2732 = vmatpush1.msra.mxu0 0.0
      %2733 = vmatprep.subr.mxu0 0.0
      %2734 = vmatpush1.msra.mxu0 0.0
      %2735 = vmatprep.subr.mxu0 0.0
      %2736 = vmatpush1.msra.mxu0 0.0
      %2737 = vmatprep.subr.mxu0 0.0
      %2738 = vmatpush1.msra.mxu0 0.0
      %2739 = vmatprep.subr.mxu0 0.0
      %2740 = vmatpush1.msra.mxu0 0.0
      %2741 = vmatprep.subr.mxu0 0.0
      %2742 = vmatpush1.msra.mxu0 0.0
      %2743 = vmatprep.subr.mxu0 0.0
      %2744 = vmatpush1.msra.mxu0 0.0
      %2745 = vmatprep.subr.mxu0 0.0
      %2746 = vmatpush1.msra.mxu0 0.0
      %2747 = vmatprep.subr.mxu0 0.0
      %2748 = vmatpush1.msra.mxu0 0.0
      %2749 = vmatprep.subr.mxu0 0.0
      %2750 = vmatpush1.msra.mxu0 0.0
      %2751 = vmatprep.subr.mxu0 0.0
      %2752 = vmatpush1.msra.mxu0 0.0
      %2753 = vmatprep.subr.mxu0 0.0
      %2754 = vmatpush1.msra.mxu0 0.0
      %2755 = vmatprep.subr.mxu0 0.0
      %2756 = vmatpush1.msra.mxu0 0.0
      %2757 = vmatprep.subr.mxu0 0.0
      %2758 = vmatpush1.msra.mxu0 0.0
      %2759 = vmatprep.mubr.f32.mxu0 0.0
      %2760 = vmatmul.mubr.f32.gmra.mrb[0].mxu0 %v2693
      %v2761 = vpop.f32.mrb[0].mxu0
      %v2762 = vadd.f32 0.0, %v2761
      %v2763 = vpop.f32.mrb[0].mxu0
      %2764 = vdwg.mxu0
      %2765 = vrot.lane.b32.xlu0 %v1762, 64
      %v2766 = vpop.permute.xlu0 %2765
      %v2769 = vsel %vm702, %v2532, 0
      %2771 = vmatprep.subr.mxu0 0.0
      %2772 = vmatpush1.msra.mxu0 %v2766
      %2773 = vmatprep.subr.mxu0 0.0
      %2774 = vmatpush1.msra.mxu0 0.0
      %2775 = vmatprep.subr.mxu0 0.0
      %2776 = vmatpush1.msra.mxu0 0.0
      %2777 = vmatprep.subr.mxu0 0.0
      %2778 = vmatpush1.msra.mxu0 0.0
      %2779 = vmatprep.subr.mxu0 0.0
      %2780 = vmatpush1.msra.mxu0 0.0
      %2781 = vmatprep.subr.mxu0 0.0
      %2782 = vmatpush1.msra.mxu0 0.0
      %2783 = vmatprep.subr.mxu0 0.0
      %2784 = vmatpush1.msra.mxu0 0.0
      %2785 = vmatprep.subr.mxu0 0.0
      %2786 = vmatpush1.msra.mxu0 0.0
      %2787 = vmatprep.subr.mxu0 0.0
      %2788 = vmatpush1.msra.mxu0 0.0
      %2789 = vmatprep.subr.mxu0 0.0
      %2790 = vmatpush1.msra.mxu0 0.0
      %2791 = vmatprep.subr.mxu0 0.0
      %2792 = vmatpush1.msra.mxu0 0.0
      %2793 = vmatprep.subr.mxu0 0.0
      %2794 = vmatpush1.msra.mxu0 0.0
      %2795 = vmatprep.subr.mxu0 0.0
      %2796 = vmatpush1.msra.mxu0 0.0
      %2797 = vmatprep.subr.mxu0 0.0
      %2798 = vmatpush1.msra.mxu0 0.0
      %2799 = vmatprep.subr.mxu0 0.0
      %2800 = vmatpush1.msra.mxu0 0.0
      %2801 = vmatprep.subr.mxu0 0.0
      %2802 = vmatpush1.msra.mxu0 0.0
      %2803 = vmatprep.subr.mxu0 0.0
      %2804 = vmatpush1.msra.mxu0 0.0
      %2805 = vmatprep.subr.mxu0 0.0
      %2806 = vmatpush1.msra.mxu0 0.0
      %2807 = vmatprep.subr.mxu0 0.0
      %2808 = vmatpush1.msra.mxu0 0.0
      %2809 = vmatprep.subr.mxu0 0.0
      %2810 = vmatpush1.msra.mxu0 0.0
      %2811 = vmatprep.subr.mxu0 0.0
      %2812 = vmatpush1.msra.mxu0 0.0
      %2813 = vmatprep.subr.mxu0 0.0
      %2814 = vmatpush1.msra.mxu0 0.0
      %2815 = vmatprep.subr.mxu0 0.0
      %2816 = vmatpush1.msra.mxu0 0.0
      %2817 = vmatprep.subr.mxu0 0.0
      %2818 = vmatpush1.msra.mxu0 0.0
      %2819 = vmatprep.subr.mxu0 0.0
      %2820 = vmatpush1.msra.mxu0 0.0
      %2821 = vmatprep.subr.mxu0 0.0
      %2822 = vmatpush1.msra.mxu0 0.0
      %2823 = vmatprep.subr.mxu0 0.0
      %2824 = vmatpush1.msra.mxu0 0.0
      %2825 = vmatprep.subr.mxu0 0.0
      %2826 = vmatpush1.msra.mxu0 0.0
      %2827 = vmatprep.subr.mxu0 0.0
      %2828 = vmatpush1.msra.mxu0 0.0
      %2829 = vmatprep.subr.mxu0 0.0
      %2830 = vmatpush1.msra.mxu0 0.0
      %2831 = vmatprep.subr.mxu0 0.0
      %2832 = vmatpush1.msra.mxu0 0.0
      %2833 = vmatprep.subr.mxu0 0.0
      %2834 = vmatpush1.msra.mxu0 0.0
      %2835 = vmatprep.mubr.f32.mxu0 0.0
      %2836 = vmatmul.mubr.f32.gmra.mrb[0].mxu0 %v2769
      %v2837 = vpop.f32.mrb[0].mxu0
      %v2838 = vadd.f32 0.0, %v2837
      %v2839 = vpop.f32.mrb[0].mxu0
      %2840 = vdwg.mxu0
      %2841 = vrot.lane.b32.xlu0 %v1767, 64
      %v2842 = vpop.permute.xlu0 %2841
      %v2845 = vsel %vm702, %v2533, 0
      %2847 = vmatprep.subr.mxu0 0.0
      %2848 = vmatpush1.msra.mxu0 %v2842
      %2849 = vmatprep.subr.mxu0 0.0
      %2850 = vmatpush1.msra.mxu0 0.0
      %2851 = vmatprep.subr.mxu0 0.0
      %2852 = vmatpush1.msra.mxu0 0.0
      %2853 = vmatprep.subr.mxu0 0.0
      %2854 = vmatpush1.msra.mxu0 0.0
      %2855 = vmatprep.subr.mxu0 0.0
      %2856 = vmatpush1.msra.mxu0 0.0
      %2857 = vmatprep.subr.mxu0 0.0
      %2858 = vmatpush1.msra.mxu0 0.0
      %2859 = vmatprep.subr.mxu0 0.0
      %2860 = vmatpush1.msra.mxu0 0.0
      %2861 = vmatprep.subr.mxu0 0.0
      %2862 = vmatpush1.msra.mxu0 0.0
      %2863 = vmatprep.subr.mxu0 0.0
      %2864 = vmatpush1.msra.mxu0 0.0
      %2865 = vmatprep.subr.mxu0 0.0
      %2866 = vmatpush1.msra.mxu0 0.0
      %2867 = vmatprep.subr.mxu0 0.0
      %2868 = vmatpush1.msra.mxu0 0.0
      %2869 = vmatprep.subr.mxu0 0.0
      %2870 = vmatpush1.msra.mxu0 0.0
      %2871 = vmatprep.subr.mxu0 0.0
      %2872 = vmatpush1.msra.mxu0 0.0
      %2873 = vmatprep.subr.mxu0 0.0
      %2874 = vmatpush1.msra.mxu0 0.0
      %2875 = vmatprep.subr.mxu0 0.0
      %2876 = vmatpush1.msra.mxu0 0.0
      %2877 = vmatprep.subr.mxu0 0.0
      %2878 = vmatpush1.msra.mxu0 0.0
      %2879 = vmatprep.subr.mxu0 0.0
      %2880 = vmatpush1.msra.mxu0 0.0
      %2881 = vmatprep.subr.mxu0 0.0
      %2882 = vmatpush1.msra.mxu0 0.0
      %2883 = vmatprep.subr.mxu0 0.0
      %2884 = vmatpush1.msra.mxu0 0.0
      %2885 = vmatprep.subr.mxu0 0.0
      %2886 = vmatpush1.msra.mxu0 0.0
      %2887 = vmatprep.subr.mxu0 0.0
      %2888 = vmatpush1.msra.mxu0 0.0
      %2889 = vmatprep.subr.mxu0 0.0
      %2890 = vmatpush1.msra.mxu0 0.0
      %2891 = vmatprep.subr.mxu0 0.0
      %2892 = vmatpush1.msra.mxu0 0.0
      %2893 = vmatprep.subr.mxu0 0.0
      %2894 = vmatpush1.msra.mxu0 0.0
      %2895 = vmatprep.subr.mxu0 0.0
      %2896 = vmatpush1.msra.mxu0 0.0
      %2897 = vmatprep.subr.mxu0 0.0
      %2898 = vmatpush1.msra.mxu0 0.0
      %2899 = vmatprep.subr.mxu0 0.0
      %2900 = vmatpush1.msra.mxu0 0.0
      %2901 = vmatprep.subr.mxu0 0.0
      %2902 = vmatpush1.msra.mxu0 0.0
      %2903 = vmatprep.subr.mxu0 0.0
      %2904 = vmatpush1.msra.mxu0 0.0
      %2905 = vmatprep.subr.mxu0 0.0
      %2906 = vmatpush1.msra.mxu0 0.0
      %2907 = vmatprep.subr.mxu0 0.0
      %2908 = vmatpush1.msra.mxu0 0.0
      %2909 = vmatprep.subr.mxu0 0.0
      %2910 = vmatpush1.msra.mxu0 0.0
      %2911 = vmatprep.mubr.f32.mxu0 0.0
      %2912 = vmatmul.mubr.f32.gmra.mrb[0].mxu0 %v2845
      %v2913 = vpop.f32.mrb[0].mxu0
      %v2914 = vadd.f32 0.0, %v2913
      %v2915 = vpop.f32.mrb[0].mxu0
      %2916 = vdwg.mxu0
      %2917 = vrot.lane.b32.xlu0 %v1772, 64
      %v2918 = vpop.permute.xlu0 %2917
      %v2921 = vsel %vm702, %v2534, 0
      %2923 = vmatprep.subr.mxu0 0.0
      %2924 = vmatpush1.msra.mxu0 %v2918
      %2925 = vmatprep.subr.mxu0 0.0
      %2926 = vmatpush1.msra.mxu0 0.0
      %2927 = vmatprep.subr.mxu0 0.0
      %2928 = vmatpush1.msra.mxu0 0.0
      %2929 = vmatprep.subr.mxu0 0.0
      %2930 = vmatpush1.msra.mxu0 0.0
      %2931 = vmatprep.subr.mxu0 0.0
      %2932 = vmatpush1.msra.mxu0 0.0
      %2933 = vmatprep.subr.mxu0 0.0
      %2934 = vmatpush1.msra.mxu0 0.0
      %2935 = vmatprep.subr.mxu0 0.0
      %2936 = vmatpush1.msra.mxu0 0.0
      %2937 = vmatprep.subr.mxu0 0.0
      %2938 = vmatpush1.msra.mxu0 0.0
      %2939 = vmatprep.subr.mxu0 0.0
      %2940 = vmatpush1.msra.mxu0 0.0
      %2941 = vmatprep.subr.mxu0 0.0
      %2942 = vmatpush1.msra.mxu0 0.0
      %2943 = vmatprep.subr.mxu0 0.0
      %2944 = vmatpush1.msra.mxu0 0.0
      %2945 = vmatprep.subr.mxu0 0.0
      %2946 = vmatpush1.msra.mxu0 0.0
      %2947 = vmatprep.subr.mxu0 0.0
      %2948 = vmatpush1.msra.mxu0 0.0
      %2949 = vmatprep.subr.mxu0 0.0
      %2950 = vmatpush1.msra.mxu0 0.0
      %2951 = vmatprep.subr.mxu0 0.0
      %2952 = vmatpush1.msra.mxu0 0.0
      %2953 = vmatprep.subr.mxu0 0.0
      %2954 = vmatpush1.msra.mxu0 0.0
      %2955 = vmatprep.subr.mxu0 0.0
      %2956 = vmatpush1.msra.mxu0 0.0
      %2957 = vmatprep.subr.mxu0 0.0
      %2958 = vmatpush1.msra.mxu0 0.0
      %2959 = vmatprep.subr.mxu0 0.0
      %2960 = vmatpush1.msra.mxu0 0.0
      %2961 = vmatprep.subr.mxu0 0.0
      %2962 = vmatpush1.msra.mxu0 0.0
      %2963 = vmatprep.subr.mxu0 0.0
      %2964 = vmatpush1.msra.mxu0 0.0
      %2965 = vmatprep.subr.mxu0 0.0
      %2966 = vmatpush1.msra.mxu0 0.0
      %2967 = vmatprep.subr.mxu0 0.0
      %2968 = vmatpush1.msra.mxu0 0.0
      %2969 = vmatprep.subr.mxu0 0.0
      %2970 = vmatpush1.msra.mxu0 0.0
      %2971 = vmatprep.subr.mxu0 0.0
      %2972 = vmatpush1.msra.mxu0 0.0
      %2973 = vmatprep.subr.mxu0 0.0
      %2974 = vmatpush1.msra.mxu0 0.0
      %2975 = vmatprep.subr.mxu0 0.0
      %2976 = vmatpush1.msra.mxu0 0.0
      %2977 = vmatprep.subr.mxu0 0.0
      %2978 = vmatpush1.msra.mxu0 0.0
      %2979 = vmatprep.subr.mxu0 0.0
      %2980 = vmatpush1.msra.mxu0 0.0
      %2981 = vmatprep.subr.mxu0 0.0
      %2982 = vmatpush1.msra.mxu0 0.0
      %2983 = vmatprep.subr.mxu0 0.0
      %2984 = vmatpush1.msra.mxu0 0.0
      %2985 = vmatprep.subr.mxu0 0.0
      %2986 = vmatpush1.msra.mxu0 0.0
      %2987 = vmatprep.mubr.f32.mxu0 0.0
      %2988 = vmatmul.mubr.f32.gmra.mrb[0].mxu0 %v2921
      %v2989 = vpop.f32.mrb[0].mxu0
      %v2990 = vadd.f32 0.0, %v2989
      %v2991 = vpop.f32.mrb[0].mxu0
      %2992 = vdwg.mxu0
      %2993 = vrot.lane.b32.xlu0 %v1777, 64
      %v2994 = vpop.permute.xlu0 %2993
      %v2997 = vsel %vm702, %v2535, 0
      %2999 = vmatprep.subr.mxu0 0.0
      %3000 = vmatpush1.msra.mxu0 %v2994
      %3001 = vmatprep.subr.mxu0 0.0
      %3002 = vmatpush1.msra.mxu0 0.0
      %3003 = vmatprep.subr.mxu0 0.0
      %3004 = vmatpush1.msra.mxu0 0.0
      %3005 = vmatprep.subr.mxu0 0.0
      %3006 = vmatpush1.msra.mxu0 0.0
      %3007 = vmatprep.subr.mxu0 0.0
      %3008 = vmatpush1.msra.mxu0 0.0
      %3009 = vmatprep.subr.mxu0 0.0
      %3010 = vmatpush1.msra.mxu0 0.0
      %3011 = vmatprep.subr.mxu0 0.0
      %3012 = vmatpush1.msra.mxu0 0.0
      %3013 = vmatprep.subr.mxu0 0.0
      %3014 = vmatpush1.msra.mxu0 0.0
      %3015 = vmatprep.subr.mxu0 0.0
      %3016 = vmatpush1.msra.mxu0 0.0
      %3017 = vmatprep.subr.mxu0 0.0
      %3018 = vmatpush1.msra.mxu0 0.0
      %3019 = vmatprep.subr.mxu0 0.0
      %3020 = vmatpush1.msra.mxu0 0.0
      %3021 = vmatprep.subr.mxu0 0.0
      %3022 = vmatpush1.msra.mxu0 0.0
      %3023 = vmatprep.subr.mxu0 0.0
      %3024 = vmatpush1.msra.mxu0 0.0
      %3025 = vmatprep.subr.mxu0 0.0
      %3026 = vmatpush1.msra.mxu0 0.0
      %3027 = vmatprep.subr.mxu0 0.0
      %3028 = vmatpush1.msra.mxu0 0.0
      %3029 = vmatprep.subr.mxu0 0.0
      %3030 = vmatpush1.msra.mxu0 0.0
      %3031 = vmatprep.subr.mxu0 0.0
      %3032 = vmatpush1.msra.mxu0 0.0
      %3033 = vmatprep.subr.mxu0 0.0
      %3034 = vmatpush1.msra.mxu0 0.0
      %3035 = vmatprep.subr.mxu0 0.0
      %3036 = vmatpush1.msra.mxu0 0.0
      %3037 = vmatprep.subr.mxu0 0.0
      %3038 = vmatpush1.msra.mxu0 0.0
      %3039 = vmatprep.subr.mxu0 0.0
      %3040 = vmatpush1.msra.mxu0 0.0
      %3041 = vmatprep.subr.mxu0 0.0
      %3042 = vmatpush1.msra.mxu0 0.0
      %3043 = vmatprep.subr.mxu0 0.0
      %3044 = vmatpush1.msra.mxu0 0.0
      %3045 = vmatprep.subr.mxu0 0.0
      %3046 = vmatpush1.msra.mxu0 0.0
      %3047 = vmatprep.subr.mxu0 0.0
      %3048 = vmatpush1.msra.mxu0 0.0
      %3049 = vmatprep.subr.mxu0 0.0
      %3050 = vmatpush1.msra.mxu0 0.0
      %3051 = vmatprep.subr.mxu0 0.0
      %3052 = vmatpush1.msra.mxu0 0.0
      %3053 = vmatprep.subr.mxu0 0.0
      %3054 = vmatpush1.msra.mxu0 0.0
      %3055 = vmatprep.subr.mxu0 0.0
      %3056 = vmatpush1.msra.mxu0 0.0
      %3057 = vmatprep.subr.mxu0 0.0
      %3058 = vmatpush1.msra.mxu0 0.0
      %3059 = vmatprep.subr.mxu0 0.0
      %3060 = vmatpush1.msra.mxu0 0.0
      %3061 = vmatprep.subr.mxu0 0.0
      %3062 = vmatpush1.msra.mxu0 0.0
      %3063 = vmatprep.mubr.f32.mxu0 0.0
      %3064 = vmatmul.mubr.f32.gmra.mrb[0].mxu0 %v2997
      %v3065 = vpop.f32.mrb[0].mxu0
      %v3066 = vadd.f32 0.0, %v3065
      %v3067 = vpop.f32.mrb[0].mxu0
      %3068 = vdwg.mxu0
      %3069 = vrot.lane.b32.xlu0 %v1782, 64
      %v3070 = vpop.permute.xlu0 %3069
      %v3073 = vsel %vm702, %v2536, 0
      %3075 = vmatprep.subr.mxu0 0.0
      %3076 = vmatpush1.msra.mxu0 %v3070
      %3077 = vmatprep.subr.mxu0 0.0
      %3078 = vmatpush1.msra.mxu0 0.0
      %3079 = vmatprep.subr.mxu0 0.0
      %3080 = vmatpush1.msra.mxu0 0.0
      %3081 = vmatprep.subr.mxu0 0.0
      %3082 = vmatpush1.msra.mxu0 0.0
      %3083 = vmatprep.subr.mxu0 0.0
      %3084 = vmatpush1.msra.mxu0 0.0
      %3085 = vmatprep.subr.mxu0 0.0
      %3086 = vmatpush1.msra.mxu0 0.0
      %3087 = vmatprep.subr.mxu0 0.0
      %3088 = vmatpush1.msra.mxu0 0.0
      %3089 = vmatprep.subr.mxu0 0.0
      %3090 = vmatpush1.msra.mxu0 0.0
      %3091 = vmatprep.subr.mxu0 0.0
      %3092 = vmatpush1.msra.mxu0 0.0
      %3093 = vmatprep.subr.mxu0 0.0
      %3094 = vmatpush1.msra.mxu0 0.0
      %3095 = vmatprep.subr.mxu0 0.0
      %3096 = vmatpush1.msra.mxu0 0.0
      %3097 = vmatprep.subr.mxu0 0.0
      %3098 = vmatpush1.msra.mxu0 0.0
      %3099 = vmatprep.subr.mxu0 0.0
      %3100 = vmatpush1.msra.mxu0 0.0
      %3101 = vmatprep.subr.mxu0 0.0
      %3102 = vmatpush1.msra.mxu0 0.0
      %3103 = vmatprep.subr.mxu0 0.0
      %3104 = vmatpush1.msra.mxu0 0.0
      %3105 = vmatprep.subr.mxu0 0.0
      %3106 = vmatpush1.msra.mxu0 0.0
      %3107 = vmatprep.subr.mxu0 0.0
      %3108 = vmatpush1.msra.mxu0 0.0
      %3109 = vmatprep.subr.mxu0 0.0
      %3110 = vmatpush1.msra.mxu0 0.0
      %3111 = vmatprep.subr.mxu0 0.0
      %3112 = vmatpush1.msra.mxu0 0.0
      %3113 = vmatprep.subr.mxu0 0.0
      %3114 = vmatpush1.msra.mxu0 0.0
      %3115 = vmatprep.subr.mxu0 0.0
      %3116 = vmatpush1.msra.mxu0 0.0
      %3117 = vmatprep.subr.mxu0 0.0
      %3118 = vmatpush1.msra.mxu0 0.0
      %3119 = vmatprep.subr.mxu0 0.0
      %3120 = vmatpush1.msra.mxu0 0.0
      %3121 = vmatprep.subr.mxu0 0.0
      %3122 = vmatpush1.msra.mxu0 0.0
      %3123 = vmatprep.subr.mxu0 0.0
      %3124 = vmatpush1.msra.mxu0 0.0
      %3125 = vmatprep.subr.mxu0 0.0
      %3126 = vmatpush1.msra.mxu0 0.0
      %3127 = vmatprep.subr.mxu0 0.0
      %3128 = vmatpush1.msra.mxu0 0.0
      %3129 = vmatprep.subr.mxu0 0.0
      %3130 = vmatpush1.msra.mxu0 0.0
      %3131 = vmatprep.subr.mxu0 0.0
      %3132 = vmatpush1.msra.mxu0 0.0
      %3133 = vmatprep.subr.mxu0 0.0
      %3134 = vmatpush1.msra.mxu0 0.0
      %3135 = vmatprep.subr.mxu0 0.0
      %3136 = vmatpush1.msra.mxu0 0.0
      %3137 = vmatprep.subr.mxu0 0.0
      %3138 = vmatpush1.msra.mxu0 0.0
      %3139 = vmatprep.mubr.f32.mxu0 0.0
      %3140 = vmatmul.mubr.f32.gmra.mrb[0].mxu0 %v3073
      %v3141 = vpop.f32.mrb[0].mxu0
      %v3142 = vadd.f32 0.0, %v3141
      %v3143 = vpop.f32.mrb[0].mxu0
      %3144 = vdwg.mxu0
      %v3145 = vld [vmem:[%s5 + $0x20] sm:$0xff]
      %v3146 = vld [vmem:[%s5 + $0x90] sm:$0xff]
      %v3147 = vld [vmem:[%s5 + $0x100] sm:$0xff]
      %v3148 = vld [vmem:[%s5 + $0x170] sm:$0xff]
      %v3149 = vld [vmem:[%s6 + $0x2] sm:$0x1]
      %v3151 = vlaneseq
      %v3152 = vshrl.u32 %v3151, 7
      %v3153 = vsub.s32 0, %v3152
      %v3154 = vrot.slane %v3149, %v3153
      %3155 = vrot.lane.b32.xlu0 %v3154, 96
      %v3156 = vpop.permute.xlu0 %3155
      %v3159 = vsel %vm564, %v2610, 0
      %v3162 = vsel %vm564, %v2686, 0
      %v3165 = vsel %vm564, %v2762, 0
      %v3168 = vsel %vm564, %v2838, 0
      %v3171 = vsel %vm564, %v2914, 0
      %v3174 = vsel %vm564, %v2990, 0
      %v3177 = vsel %vm564, %v3066, 0
      %v3180 = vsel %vm564, %v3142, 0
      %3182 = vmatprep.subr.mxu0 0.0
      %3183 = vmatpush1.msra.mxu0 %v3145
      %3184 = vmatprep.subr.mxu0 0.0
      %3185 = vmatpush1.msra.mxu0 %v3146
      %3186 = vmatprep.subr.mxu0 0.0
      %3187 = vmatpush1.msra.mxu0 %v3147
      %3188 = vmatprep.subr.mxu0 0.0
      %3189 = vmatpush1.msra.mxu0 %v3148
      %3190 = vmatprep.subr.mxu0 0.0
      %3191 = vmatpush1.msra.mxu0 0.0
      %3192 = vmatprep.subr.mxu0 0.0
      %3193 = vmatpush1.msra.mxu0 0.0
      %3194 = vmatprep.subr.mxu0 0.0
      %3195 = vmatpush1.msra.mxu0 0.0
      %3196 = vmatprep.subr.mxu0 0.0
      %3197 = vmatpush1.msra.mxu0 0.0
      %3198 = vmatprep.subr.mxu0 0.0
      %3199 = vmatpush1.msra.mxu0 0.0
      %3200 = vmatprep.subr.mxu0 0.0
      %3201 = vmatpush1.msra.mxu0 0.0
      %3202 = vmatprep.subr.mxu0 0.0
      %3203 = vmatpush1.msra.mxu0 0.0
      %3204 = vmatprep.subr.mxu0 0.0
      %3205 = vmatpush1.msra.mxu0 0.0
      %3206 = vmatprep.subr.mxu0 0.0
      %3207 = vmatpush1.msra.mxu0 0.0
      %3208 = vmatprep.subr.mxu0 0.0
      %3209 = vmatpush1.msra.mxu0 0.0
      %3210 = vmatprep.subr.mxu0 0.0
      %3211 = vmatpush1.msra.mxu0 0.0
      %3212 = vmatprep.subr.mxu0 0.0
      %3213 = vmatpush1.msra.mxu0 0.0
      %3214 = vmatprep.subr.mxu0 0.0
      %3215 = vmatpush1.msra.mxu0 0.0
      %3216 = vmatprep.subr.mxu0 0.0
      %3217 = vmatpush1.msra.mxu0 0.0
      %3218 = vmatprep.subr.mxu0 0.0
      %3219 = vmatpush1.msra.mxu0 0.0
      %3220 = vmatprep.subr.mxu0 0.0
      %3221 = vmatpush1.msra.mxu0 0.0
      %3222 = vmatprep.subr.mxu0 0.0
      %3223 = vmatpush1.msra.mxu0 0.0
      %3224 = vmatprep.subr.mxu0 0.0
      %3225 = vmatpush1.msra.mxu0 0.0
      %3226 = vmatprep.subr.mxu0 0.0
      %3227 = vmatpush1.msra.mxu0 0.0
      %3228 = vmatprep.subr.mxu0 0.0
      %3229 = vmatpush1.msra.mxu0 0.0
      %3230 = vmatprep.subr.mxu0 0.0
      %3231 = vmatpush1.msra.mxu0 0.0
      %3232 = vmatprep.subr.mxu0 0.0
      %3233 = vmatpush1.msra.mxu0 0.0
      %3234 = vmatprep.subr.mxu0 0.0
      %3235 = vmatpush1.msra.mxu0 0.0
      %3236 = vmatprep.subr.mxu0 0.0
      %3237 = vmatpush1.msra.mxu0 0.0
      %3238 = vmatprep.subr.mxu0 0.0
      %3239 = vmatpush1.msra.mxu0 0.0
      %3240 = vmatprep.subr.mxu0 0.0
      %3241 = vmatpush1.msra.mxu0 0.0
      %3242 = vmatprep.subr.mxu0 0.0
      %3243 = vmatpush1.msra.mxu0 0.0
      %3244 = vmatprep.subr.mxu0 0.0
      %3245 = vmatpush1.msra.mxu0 0.0
      %3246 = vmatprep.mubr.f32.mxu0 0.0
      %3247 = vmatmul.mubr.f32.gmra.mrb[0].mxu0 %v3159
      %v3248 = vpop.f32.mrb[0].mxu0
      %v3249 = vadd.f32 %v3156, %v3248
      %v3250 = vpop.f32.mrb[0].mxu0
      %3251 = vmatprep.mubr.f32.mxu0 0.0
      %3252 = vmatmul.mubr.f32.gmra.mrb[0].mxu0 %v3162
      %v3253 = vpop.f32.mrb[0].mxu0
      %v3254 = vadd.f32 %v3156, %v3253
      %v3255 = vpop.f32.mrb[0].mxu0
      %3256 = vmatprep.mubr.f32.mxu0 0.0
      %3257 = vmatmul.mubr.f32.gmra.mrb[0].mxu0 %v3165
      %v3258 = vpop.f32.mrb[0].mxu0
      %v3259 = vadd.f32 %v3156, %v3258
      %v3260 = vpop.f32.mrb[0].mxu0
      %3261 = vmatprep.mubr.f32.mxu0 0.0
      %3262 = vmatmul.mubr.f32.gmra.mrb[0].mxu0 %v3168
      %v3263 = vpop.f32.mrb[0].mxu0
      %v3264 = vadd.f32 %v3156, %v3263
      %v3265 = vpop.f32.mrb[0].mxu0
      %3266 = vmatprep.mubr.f32.mxu0 0.0
      %3267 = vmatmul.mubr.f32.gmra.mrb[0].mxu0 %v3171
      %v3268 = vpop.f32.mrb[0].mxu0
      %v3269 = vadd.f32 %v3156, %v3268
      %v3270 = vpop.f32.mrb[0].mxu0
      %3271 = vmatprep.mubr.f32.mxu0 0.0
      %3272 = vmatmul.mubr.f32.gmra.mrb[0].mxu0 %v3174
      %v3273 = vpop.f32.mrb[0].mxu0
      %v3274 = vadd.f32 %v3156, %v3273
      %v3275 = vpop.f32.mrb[0].mxu0
      %3276 = vmatprep.mubr.f32.mxu0 0.0
      %3277 = vmatmul.mubr.f32.gmra.mrb[0].mxu0 %v3177
      %v3278 = vpop.f32.mrb[0].mxu0
      %v3279 = vadd.f32 %v3156, %v3278
      %v3280 = vpop.f32.mrb[0].mxu0
      %3281 = vmatprep.mubr.f32.mxu0 0.0
      %3282 = vmatmul.mubr.f32.gmra.mrb[0].mxu0 %v3180
      %v3283 = vpop.f32.mrb[0].mxu0
      %v3284 = vadd.f32 %v3156, %v3283
      %v3285 = vpop.f32.mrb[0].mxu0
      %3286 = vdwg.mxu0
      %v3288 = vsel %vm702, %v351, 0
      %3290 = vmatprep.subr.mxu0 0.0
      %3291 = vmatpush1.msra.mxu0 %v3249
      %3292 = vmatprep.subr.mxu0 0.0
      %3293 = vmatpush1.msra.mxu0 0.0
      %3294 = vmatprep.subr.mxu0 0.0
      %3295 = vmatpush1.msra.mxu0 0.0
      %3296 = vmatprep.subr.mxu0 0.0
      %3297 = vmatpush1.msra.mxu0 0.0
      %3298 = vmatprep.subr.mxu0 0.0
      %3299 = vmatpush1.msra.mxu0 0.0
      %3300 = vmatprep.subr.mxu0 0.0
      %3301 = vmatpush1.msra.mxu0 0.0
      %3302 = vmatprep.subr.mxu0 0.0
      %3303 = vmatpush1.msra.mxu0 0.0
      %3304 = vmatprep.subr.mxu0 0.0
      %3305 = vmatpush1.msra.mxu0 0.0
      %3306 = vmatprep.subr.mxu0 0.0
      %3307 = vmatpush1.msra.mxu0 0.0
      %3308 = vmatprep.subr.mxu0 0.0
      %3309 = vmatpush1.msra.mxu0 0.0
      %3310 = vmatprep.subr.mxu0 0.0
      %3311 = vmatpush1.msra.mxu0 0.0
      %3312 = vmatprep.subr.mxu0 0.0
      %3313 = vmatpush1.msra.mxu0 0.0
      %3314 = vmatprep.subr.mxu0 0.0
      %3315 = vmatpush1.msra.mxu0 0.0
      %3316 = vmatprep.subr.mxu0 0.0
      %3317 = vmatpush1.msra.mxu0 0.0
      %3318 = vmatprep.subr.mxu0 0.0
      %3319 = vmatpush1.msra.mxu0 0.0
      %3320 = vmatprep.subr.mxu0 0.0
      %3321 = vmatpush1.msra.mxu0 0.0
      %3322 = vmatprep.subr.mxu0 0.0
      %3323 = vmatpush1.msra.mxu0 0.0
      %3324 = vmatprep.subr.mxu0 0.0
      %3325 = vmatpush1.msra.mxu0 0.0
      %3326 = vmatprep.subr.mxu0 0.0
      %3327 = vmatpush1.msra.mxu0 0.0
      %3328 = vmatprep.subr.mxu0 0.0
      %3329 = vmatpush1.msra.mxu0 0.0
      %3330 = vmatprep.subr.mxu0 0.0
      %3331 = vmatpush1.msra.mxu0 0.0
      %3332 = vmatprep.subr.mxu0 0.0
      %3333 = vmatpush1.msra.mxu0 0.0
      %3334 = vmatprep.subr.mxu0 0.0
      %3335 = vmatpush1.msra.mxu0 0.0
      %3336 = vmatprep.subr.mxu0 0.0
      %3337 = vmatpush1.msra.mxu0 0.0
      %3338 = vmatprep.subr.mxu0 0.0
      %3339 = vmatpush1.msra.mxu0 0.0
      %3340 = vmatprep.subr.mxu0 0.0
      %3341 = vmatpush1.msra.mxu0 0.0
      %3342 = vmatprep.subr.mxu0 0.0
      %3343 = vmatpush1.msra.mxu0 0.0
      %3344 = vmatprep.subr.mxu0 0.0
      %3345 = vmatpush1.msra.mxu0 0.0
      %3346 = vmatprep.subr.mxu0 0.0
      %3347 = vmatpush1.msra.mxu0 0.0
      %3348 = vmatprep.subr.mxu0 0.0
      %3349 = vmatpush1.msra.mxu0 0.0
      %3350 = vmatprep.subr.mxu0 0.0
      %3351 = vmatpush1.msra.mxu0 0.0
      %3352 = vmatprep.subr.mxu0 0.0
      %3353 = vmatpush1.msra.mxu0 0.0
      %3354 = vmatprep.mubr.f32.mxu0 0.0
      %3355 = vmatmul.mubr.f32.gmra.mrb[0].mxu0 %v3288
      %v3356 = vpop.f32.mrb[0].mxu0
      %v3357 = vadd.f32 0.0, %v3356
      %v3358 = vpop.f32.mrb[0].mxu0
      %3359 = vdwg.mxu0
      %v3361 = vsel %vm702, %v352, 0
      %3363 = vmatprep.subr.mxu0 0.0
      %3364 = vmatpush1.msra.mxu0 %v3254
      %3365 = vmatprep.subr.mxu0 0.0
      %3366 = vmatpush1.msra.mxu0 0.0
      %3367 = vmatprep.subr.mxu0 0.0
      %3368 = vmatpush1.msra.mxu0 0.0
      %3369 = vmatprep.subr.mxu0 0.0
      %3370 = vmatpush1.msra.mxu0 0.0
      %3371 = vmatprep.subr.mxu0 0.0
      %3372 = vmatpush1.msra.mxu0 0.0
      %3373 = vmatprep.subr.mxu0 0.0
      %3374 = vmatpush1.msra.mxu0 0.0
      %3375 = vmatprep.subr.mxu0 0.0
      %3376 = vmatpush1.msra.mxu0 0.0
      %3377 = vmatprep.subr.mxu0 0.0
      %3378 = vmatpush1.msra.mxu0 0.0
      %3379 = vmatprep.subr.mxu0 0.0
      %3380 = vmatpush1.msra.mxu0 0.0
      %3381 = vmatprep.subr.mxu0 0.0
      %3382 = vmatpush1.msra.mxu0 0.0
      %3383 = vmatprep.subr.mxu0 0.0
      %3384 = vmatpush1.msra.mxu0 0.0
      %3385 = vmatprep.subr.mxu0 0.0
      %3386 = vmatpush1.msra.mxu0 0.0
      %3387 = vmatprep.subr.mxu0 0.0
      %3388 = vmatpush1.msra.mxu0 0.0
      %3389 = vmatprep.subr.mxu0 0.0
      %3390 = vmatpush1.msra.mxu0 0.0
      %3391 = vmatprep.subr.mxu0 0.0
      %3392 = vmatpush1.msra.mxu0 0.0
      %3393 = vmatprep.subr.mxu0 0.0
      %3394 = vmatpush1.msra.mxu0 0.0
      %3395 = vmatprep.subr.mxu0 0.0
      %3396 = vmatpush1.msra.mxu0 0.0
      %3397 = vmatprep.subr.mxu0 0.0
      %3398 = vmatpush1.msra.mxu0 0.0
      %3399 = vmatprep.subr.mxu0 0.0
      %3400 = vmatpush1.msra.mxu0 0.0
      %3401 = vmatprep.subr.mxu0 0.0
      %3402 = vmatpush1.msra.mxu0 0.0
      %3403 = vmatprep.subr.mxu0 0.0
      %3404 = vmatpush1.msra.mxu0 0.0
      %3405 = vmatprep.subr.mxu0 0.0
      %3406 = vmatpush1.msra.mxu0 0.0
      %3407 = vmatprep.subr.mxu0 0.0
      %3408 = vmatpush1.msra.mxu0 0.0
      %3409 = vmatprep.subr.mxu0 0.0
      %3410 = vmatpush1.msra.mxu0 0.0
      %3411 = vmatprep.subr.mxu0 0.0
      %3412 = vmatpush1.msra.mxu0 0.0
      %3413 = vmatprep.subr.mxu0 0.0
      %3414 = vmatpush1.msra.mxu0 0.0
      %3415 = vmatprep.subr.mxu0 0.0
      %3416 = vmatpush1.msra.mxu0 0.0
      %3417 = vmatprep.subr.mxu0 0.0
      %3418 = vmatpush1.msra.mxu0 0.0
      %3419 = vmatprep.subr.mxu0 0.0
      %3420 = vmatpush1.msra.mxu0 0.0
      %3421 = vmatprep.subr.mxu0 0.0
      %3422 = vmatpush1.msra.mxu0 0.0
      %3423 = vmatprep.subr.mxu0 0.0
      %3424 = vmatpush1.msra.mxu0 0.0
      %3425 = vmatprep.subr.mxu0 0.0
      %3426 = vmatpush1.msra.mxu0 0.0
      %3427 = vmatprep.mubr.f32.mxu0 0.0
      %3428 = vmatmul.mubr.f32.gmra.mrb[0].mxu0 %v3361
      %v3429 = vpop.f32.mrb[0].mxu0
      %v3430 = vadd.f32 0.0, %v3429
      %v3431 = vpop.f32.mrb[0].mxu0
      %3432 = vdwg.mxu0
      %v3434 = vsel %vm702, %v353, 0
      %3436 = vmatprep.subr.mxu0 0.0
      %3437 = vmatpush1.msra.mxu0 %v3259
      %3438 = vmatprep.subr.mxu0 0.0
      %3439 = vmatpush1.msra.mxu0 0.0
      %3440 = vmatprep.subr.mxu0 0.0
      %3441 = vmatpush1.msra.mxu0 0.0
      %3442 = vmatprep.subr.mxu0 0.0
      %3443 = vmatpush1.msra.mxu0 0.0
      %3444 = vmatprep.subr.mxu0 0.0
      %3445 = vmatpush1.msra.mxu0 0.0
      %3446 = vmatprep.subr.mxu0 0.0
      %3447 = vmatpush1.msra.mxu0 0.0
      %3448 = vmatprep.subr.mxu0 0.0
      %3449 = vmatpush1.msra.mxu0 0.0
      %3450 = vmatprep.subr.mxu0 0.0
      %3451 = vmatpush1.msra.mxu0 0.0
      %3452 = vmatprep.subr.mxu0 0.0
      %3453 = vmatpush1.msra.mxu0 0.0
      %3454 = vmatprep.subr.mxu0 0.0
      %3455 = vmatpush1.msra.mxu0 0.0
      %3456 = vmatprep.subr.mxu0 0.0
      %3457 = vmatpush1.msra.mxu0 0.0
      %3458 = vmatprep.subr.mxu0 0.0
      %3459 = vmatpush1.msra.mxu0 0.0
      %3460 = vmatprep.subr.mxu0 0.0
      %3461 = vmatpush1.msra.mxu0 0.0
      %3462 = vmatprep.subr.mxu0 0.0
      %3463 = vmatpush1.msra.mxu0 0.0
      %3464 = vmatprep.subr.mxu0 0.0
      %3465 = vmatpush1.msra.mxu0 0.0
      %3466 = vmatprep.subr.mxu0 0.0
      %3467 = vmatpush1.msra.mxu0 0.0
      %3468 = vmatprep.subr.mxu0 0.0
      %3469 = vmatpush1.msra.mxu0 0.0
      %3470 = vmatprep.subr.mxu0 0.0
      %3471 = vmatpush1.msra.mxu0 0.0
      %3472 = vmatprep.subr.mxu0 0.0
      %3473 = vmatpush1.msra.mxu0 0.0
      %3474 = vmatprep.subr.mxu0 0.0
      %3475 = vmatpush1.msra.mxu0 0.0
      %3476 = vmatprep.subr.mxu0 0.0
      %3477 = vmatpush1.msra.mxu0 0.0
      %3478 = vmatprep.subr.mxu0 0.0
      %3479 = vmatpush1.msra.mxu0 0.0
      %3480 = vmatprep.subr.mxu0 0.0
      %3481 = vmatpush1.msra.mxu0 0.0
      %3482 = vmatprep.subr.mxu0 0.0
      %3483 = vmatpush1.msra.mxu0 0.0
      %3484 = vmatprep.subr.mxu0 0.0
      %3485 = vmatpush1.msra.mxu0 0.0
      %3486 = vmatprep.subr.mxu0 0.0
      %3487 = vmatpush1.msra.mxu0 0.0
      %3488 = vmatprep.subr.mxu0 0.0
      %3489 = vmatpush1.msra.mxu0 0.0
      %3490 = vmatprep.subr.mxu0 0.0
      %3491 = vmatpush1.msra.mxu0 0.0
      %3492 = vmatprep.subr.mxu0 0.0
      %3493 = vmatpush1.msra.mxu0 0.0
      %3494 = vmatprep.subr.mxu0 0.0
      %3495 = vmatpush1.msra.mxu0 0.0
      %3496 = vmatprep.subr.mxu0 0.0
      %3497 = vmatpush1.msra.mxu0 0.0
      %3498 = vmatprep.subr.mxu0 0.0
      %3499 = vmatpush1.msra.mxu0 0.0
      %3500 = vmatprep.mubr.f32.mxu0 0.0
      %3501 = vmatmul.mubr.f32.gmra.mrb[0].mxu0 %v3434
      %v3502 = vpop.f32.mrb[0].mxu0
      %v3503 = vadd.f32 0.0, %v3502
      %v3504 = vpop.f32.mrb[0].mxu0
      %3505 = vdwg.mxu0
      %v3507 = vsel %vm702, %v354, 0
      %3509 = vmatprep.subr.mxu0 0.0
      %3510 = vmatpush1.msra.mxu0 %v3264
      %3511 = vmatprep.subr.mxu0 0.0
      %3512 = vmatpush1.msra.mxu0 0.0
      %3513 = vmatprep.subr.mxu0 0.0
      %3514 = vmatpush1.msra.mxu0 0.0
      %3515 = vmatprep.subr.mxu0 0.0
      %3516 = vmatpush1.msra.mxu0 0.0
      %3517 = vmatprep.subr.mxu0 0.0
      %3518 = vmatpush1.msra.mxu0 0.0
      %3519 = vmatprep.subr.mxu0 0.0
      %3520 = vmatpush1.msra.mxu0 0.0
      %3521 = vmatprep.subr.mxu0 0.0
      %3522 = vmatpush1.msra.mxu0 0.0
      %3523 = vmatprep.subr.mxu0 0.0
      %3524 = vmatpush1.msra.mxu0 0.0
      %3525 = vmatprep.subr.mxu0 0.0
      %3526 = vmatpush1.msra.mxu0 0.0
      %3527 = vmatprep.subr.mxu0 0.0
      %3528 = vmatpush1.msra.mxu0 0.0
      %3529 = vmatprep.subr.mxu0 0.0
      %3530 = vmatpush1.msra.mxu0 0.0
      %3531 = vmatprep.subr.mxu0 0.0
      %3532 = vmatpush1.msra.mxu0 0.0
      %3533 = vmatprep.subr.mxu0 0.0
      %3534 = vmatpush1.msra.mxu0 0.0
      %3535 = vmatprep.subr.mxu0 0.0
      %3536 = vmatpush1.msra.mxu0 0.0
      %3537 = vmatprep.subr.mxu0 0.0
      %3538 = vmatpush1.msra.mxu0 0.0
      %3539 = vmatprep.subr.mxu0 0.0
      %3540 = vmatpush1.msra.mxu0 0.0
      %3541 = vmatprep.subr.mxu0 0.0
      %3542 = vmatpush1.msra.mxu0 0.0
      %3543 = vmatprep.subr.mxu0 0.0
      %3544 = vmatpush1.msra.mxu0 0.0
      %3545 = vmatprep.subr.mxu0 0.0
      %3546 = vmatpush1.msra.mxu0 0.0
      %3547 = vmatprep.subr.mxu0 0.0
      %3548 = vmatpush1.msra.mxu0 0.0
      %3549 = vmatprep.subr.mxu0 0.0
      %3550 = vmatpush1.msra.mxu0 0.0
      %3551 = vmatprep.subr.mxu0 0.0
      %3552 = vmatpush1.msra.mxu0 0.0
      %3553 = vmatprep.subr.mxu0 0.0
      %3554 = vmatpush1.msra.mxu0 0.0
      %3555 = vmatprep.subr.mxu0 0.0
      %3556 = vmatpush1.msra.mxu0 0.0
      %3557 = vmatprep.subr.mxu0 0.0
      %3558 = vmatpush1.msra.mxu0 0.0
      %3559 = vmatprep.subr.mxu0 0.0
      %3560 = vmatpush1.msra.mxu0 0.0
      %3561 = vmatprep.subr.mxu0 0.0
      %3562 = vmatpush1.msra.mxu0 0.0
      %3563 = vmatprep.subr.mxu0 0.0
      %3564 = vmatpush1.msra.mxu0 0.0
      %3565 = vmatprep.subr.mxu0 0.0
      %3566 = vmatpush1.msra.mxu0 0.0
      %3567 = vmatprep.subr.mxu0 0.0
      %3568 = vmatpush1.msra.mxu0 0.0
      %3569 = vmatprep.subr.mxu0 0.0
      %3570 = vmatpush1.msra.mxu0 0.0
      %3571 = vmatprep.subr.mxu0 0.0
      %3572 = vmatpush1.msra.mxu0 0.0
      %3573 = vmatprep.mubr.f32.mxu0 0.0
      %3574 = vmatmul.mubr.f32.gmra.mrb[0].mxu0 %v3507
      %v3575 = vpop.f32.mrb[0].mxu0
      %v3576 = vadd.f32 0.0, %v3575
      %v3577 = vpop.f32.mrb[0].mxu0
      %3578 = vdwg.mxu0
      %v3580 = vsel %vm702, %v355, 0
      %3582 = vmatprep.subr.mxu0 0.0
      %3583 = vmatpush1.msra.mxu0 %v3269
      %3584 = vmatprep.subr.mxu0 0.0
      %3585 = vmatpush1.msra.mxu0 0.0
      %3586 = vmatprep.subr.mxu0 0.0
      %3587 = vmatpush1.msra.mxu0 0.0
      %3588 = vmatprep.subr.mxu0 0.0
      %3589 = vmatpush1.msra.mxu0 0.0
      %3590 = vmatprep.subr.mxu0 0.0
      %3591 = vmatpush1.msra.mxu0 0.0
      %3592 = vmatprep.subr.mxu0 0.0
      %3593 = vmatpush1.msra.mxu0 0.0
      %3594 = vmatprep.subr.mxu0 0.0
      %3595 = vmatpush1.msra.mxu0 0.0
      %3596 = vmatprep.subr.mxu0 0.0
      %3597 = vmatpush1.msra.mxu0 0.0
      %3598 = vmatprep.subr.mxu0 0.0
      %3599 = vmatpush1.msra.mxu0 0.0
      %3600 = vmatprep.subr.mxu0 0.0
      %3601 = vmatpush1.msra.mxu0 0.0
      %3602 = vmatprep.subr.mxu0 0.0
      %3603 = vmatpush1.msra.mxu0 0.0
      %3604 = vmatprep.subr.mxu0 0.0
      %3605 = vmatpush1.msra.mxu0 0.0
      %3606 = vmatprep.subr.mxu0 0.0
      %3607 = vmatpush1.msra.mxu0 0.0
      %3608 = vmatprep.subr.mxu0 0.0
      %3609 = vmatpush1.msra.mxu0 0.0
      %3610 = vmatprep.subr.mxu0 0.0
      %3611 = vmatpush1.msra.mxu0 0.0
      %3612 = vmatprep.subr.mxu0 0.0
      %3613 = vmatpush1.msra.mxu0 0.0
      %3614 = vmatprep.subr.mxu0 0.0
      %3615 = vmatpush1.msra.mxu0 0.0
      %3616 = vmatprep.subr.mxu0 0.0
      %3617 = vmatpush1.msra.mxu0 0.0
      %3618 = vmatprep.subr.mxu0 0.0
      %3619 = vmatpush1.msra.mxu0 0.0
      %3620 = vmatprep.subr.mxu0 0.0
      %3621 = vmatpush1.msra.mxu0 0.0
      %3622 = vmatprep.subr.mxu0 0.0
      %3623 = vmatpush1.msra.mxu0 0.0
      %3624 = vmatprep.subr.mxu0 0.0
      %3625 = vmatpush1.msra.mxu0 0.0
      %3626 = vmatprep.subr.mxu0 0.0
      %3627 = vmatpush1.msra.mxu0 0.0
      %3628 = vmatprep.subr.mxu0 0.0
      %3629 = vmatpush1.msra.mxu0 0.0
      %3630 = vmatprep.subr.mxu0 0.0
      %3631 = vmatpush1.msra.mxu0 0.0
      %3632 = vmatprep.subr.mxu0 0.0
      %3633 = vmatpush1.msra.mxu0 0.0
      %3634 = vmatprep.subr.mxu0 0.0
      %3635 = vmatpush1.msra.mxu0 0.0
      %3636 = vmatprep.subr.mxu0 0.0
      %3637 = vmatpush1.msra.mxu0 0.0
      %3638 = vmatprep.subr.mxu0 0.0
      %3639 = vmatpush1.msra.mxu0 0.0
      %3640 = vmatprep.subr.mxu0 0.0
      %3641 = vmatpush1.msra.mxu0 0.0
      %3642 = vmatprep.subr.mxu0 0.0
      %3643 = vmatpush1.msra.mxu0 0.0
      %3644 = vmatprep.subr.mxu0 0.0
      %3645 = vmatpush1.msra.mxu0 0.0
      %3646 = vmatprep.mubr.f32.mxu0 0.0
      %3647 = vmatmul.mubr.f32.gmra.mrb[0].mxu0 %v3580
      %v3648 = vpop.f32.mrb[0].mxu0
      %v3649 = vadd.f32 0.0, %v3648
      %v3650 = vpop.f32.mrb[0].mxu0
      %3651 = vdwg.mxu0
      %v3653 = vsel %vm702, %v356, 0
      %3655 = vmatprep.subr.mxu0 0.0
      %3656 = vmatpush1.msra.mxu0 %v3274
      %3657 = vmatprep.subr.mxu0 0.0
      %3658 = vmatpush1.msra.mxu0 0.0
      %3659 = vmatprep.subr.mxu0 0.0
      %3660 = vmatpush1.msra.mxu0 0.0
      %3661 = vmatprep.subr.mxu0 0.0
      %3662 = vmatpush1.msra.mxu0 0.0
      %3663 = vmatprep.subr.mxu0 0.0
      %3664 = vmatpush1.msra.mxu0 0.0
      %3665 = vmatprep.subr.mxu0 0.0
      %3666 = vmatpush1.msra.mxu0 0.0
      %3667 = vmatprep.subr.mxu0 0.0
      %3668 = vmatpush1.msra.mxu0 0.0
      %3669 = vmatprep.subr.mxu0 0.0
      %3670 = vmatpush1.msra.mxu0 0.0
      %3671 = vmatprep.subr.mxu0 0.0
      %3672 = vmatpush1.msra.mxu0 0.0
      %3673 = vmatprep.subr.mxu0 0.0
      %3674 = vmatpush1.msra.mxu0 0.0
      %3675 = vmatprep.subr.mxu0 0.0
      %3676 = vmatpush1.msra.mxu0 0.0
      %3677 = vmatprep.subr.mxu0 0.0
      %3678 = vmatpush1.msra.mxu0 0.0
      %3679 = vmatprep.subr.mxu0 0.0
      %3680 = vmatpush1.msra.mxu0 0.0
      %3681 = vmatprep.subr.mxu0 0.0
      %3682 = vmatpush1.msra.mxu0 0.0
      %3683 = vmatprep.subr.mxu0 0.0
      %3684 = vmatpush1.msra.mxu0 0.0
      %3685 = vmatprep.subr.mxu0 0.0
      %3686 = vmatpush1.msra.mxu0 0.0
      %3687 = vmatprep.subr.mxu0 0.0
      %3688 = vmatpush1.msra.mxu0 0.0
      %3689 = vmatprep.subr.mxu0 0.0
      %3690 = vmatpush1.msra.mxu0 0.0
      %3691 = vmatprep.subr.mxu0 0.0
      %3692 = vmatpush1.msra.mxu0 0.0
      %3693 = vmatprep.subr.mxu0 0.0
      %3694 = vmatpush1.msra.mxu0 0.0
      %3695 = vmatprep.subr.mxu0 0.0
      %3696 = vmatpush1.msra.mxu0 0.0
      %3697 = vmatprep.subr.mxu0 0.0
      %3698 = vmatpush1.msra.mxu0 0.0
      %3699 = vmatprep.subr.mxu0 0.0
      %3700 = vmatpush1.msra.mxu0 0.0
      %3701 = vmatprep.subr.mxu0 0.0
      %3702 = vmatpush1.msra.mxu0 0.0
      %3703 = vmatprep.subr.mxu0 0.0
      %3704 = vmatpush1.msra.mxu0 0.0
      %3705 = vmatprep.subr.mxu0 0.0
      %3706 = vmatpush1.msra.mxu0 0.0
      %3707 = vmatprep.subr.mxu0 0.0
      %3708 = vmatpush1.msra.mxu0 0.0
      %3709 = vmatprep.subr.mxu0 0.0
      %3710 = vmatpush1.msra.mxu0 0.0
      %3711 = vmatprep.subr.mxu0 0.0
      %3712 = vmatpush1.msra.mxu0 0.0
      %3713 = vmatprep.subr.mxu0 0.0
      %3714 = vmatpush1.msra.mxu0 0.0
      %3715 = vmatprep.subr.mxu0 0.0
      %3716 = vmatpush1.msra.mxu0 0.0
      %3717 = vmatprep.subr.mxu0 0.0
      %3718 = vmatpush1.msra.mxu0 0.0
      %3719 = vmatprep.mubr.f32.mxu0 0.0
      %3720 = vmatmul.mubr.f32.gmra.mrb[0].mxu0 %v3653
      %v3721 = vpop.f32.mrb[0].mxu0
      %v3722 = vadd.f32 0.0, %v3721
      %v3723 = vpop.f32.mrb[0].mxu0
      %3724 = vdwg.mxu0
      %v3726 = vsel %vm702, %v357, 0
      %3728 = vmatprep.subr.mxu0 0.0
      %3729 = vmatpush1.msra.mxu0 %v3279
      %3730 = vmatprep.subr.mxu0 0.0
      %3731 = vmatpush1.msra.mxu0 0.0
      %3732 = vmatprep.subr.mxu0 0.0
      %3733 = vmatpush1.msra.mxu0 0.0
      %3734 = vmatprep.subr.mxu0 0.0
      %3735 = vmatpush1.msra.mxu0 0.0
      %3736 = vmatprep.subr.mxu0 0.0
      %3737 = vmatpush1.msra.mxu0 0.0
      %3738 = vmatprep.subr.mxu0 0.0
      %3739 = vmatpush1.msra.mxu0 0.0
      %3740 = vmatprep.subr.mxu0 0.0
      %3741 = vmatpush1.msra.mxu0 0.0
      %3742 = vmatprep.subr.mxu0 0.0
      %3743 = vmatpush1.msra.mxu0 0.0
      %3744 = vmatprep.subr.mxu0 0.0
      %3745 = vmatpush1.msra.mxu0 0.0
      %3746 = vmatprep.subr.mxu0 0.0
      %3747 = vmatpush1.msra.mxu0 0.0
      %3748 = vmatprep.subr.mxu0 0.0
      %3749 = vmatpush1.msra.mxu0 0.0
      %3750 = vmatprep.subr.mxu0 0.0
      %3751 = vmatpush1.msra.mxu0 0.0
      %3752 = vmatprep.subr.mxu0 0.0
      %3753 = vmatpush1.msra.mxu0 0.0
      %3754 = vmatprep.subr.mxu0 0.0
      %3755 = vmatpush1.msra.mxu0 0.0
      %3756 = vmatprep.subr.mxu0 0.0
      %3757 = vmatpush1.msra.mxu0 0.0
      %3758 = vmatprep.subr.mxu0 0.0
      %3759 = vmatpush1.msra.mxu0 0.0
      %3760 = vmatprep.subr.mxu0 0.0
      %3761 = vmatpush1.msra.mxu0 0.0
      %3762 = vmatprep.subr.mxu0 0.0
      %3763 = vmatpush1.msra.mxu0 0.0
      %3764 = vmatprep.subr.mxu0 0.0
      %3765 = vmatpush1.msra.mxu0 0.0
      %3766 = vmatprep.subr.mxu0 0.0
      %3767 = vmatpush1.msra.mxu0 0.0
      %3768 = vmatprep.subr.mxu0 0.0
      %3769 = vmatpush1.msra.mxu0 0.0
      %3770 = vmatprep.subr.mxu0 0.0
      %3771 = vmatpush1.msra.mxu0 0.0
      %3772 = vmatprep.subr.mxu0 0.0
      %3773 = vmatpush1.msra.mxu0 0.0
      %3774 = vmatprep.subr.mxu0 0.0
      %3775 = vmatpush1.msra.mxu0 0.0
      %3776 = vmatprep.subr.mxu0 0.0
      %3777 = vmatpush1.msra.mxu0 0.0
      %3778 = vmatprep.subr.mxu0 0.0
      %3779 = vmatpush1.msra.mxu0 0.0
      %3780 = vmatprep.subr.mxu0 0.0
      %3781 = vmatpush1.msra.mxu0 0.0
      %3782 = vmatprep.subr.mxu0 0.0
      %3783 = vmatpush1.msra.mxu0 0.0
      %3784 = vmatprep.subr.mxu0 0.0
      %3785 = vmatpush1.msra.mxu0 0.0
      %3786 = vmatprep.subr.mxu0 0.0
      %3787 = vmatpush1.msra.mxu0 0.0
      %3788 = vmatprep.subr.mxu0 0.0
      %3789 = vmatpush1.msra.mxu0 0.0
      %3790 = vmatprep.subr.mxu0 0.0
      %3791 = vmatpush1.msra.mxu0 0.0
      %3792 = vmatprep.mubr.f32.mxu0 0.0
      %3793 = vmatmul.mubr.f32.gmra.mrb[0].mxu0 %v3726
      %v3794 = vpop.f32.mrb[0].mxu0
      %v3795 = vadd.f32 0.0, %v3794
      %v3796 = vpop.f32.mrb[0].mxu0
      %3797 = vdwg.mxu0
      %v3799 = vsel %vm702, %v358, 0
      %3801 = vmatprep.subr.mxu0 0.0
      %3802 = vmatpush1.msra.mxu0 %v3284
      %3803 = vmatprep.subr.mxu0 0.0
      %3804 = vmatpush1.msra.mxu0 0.0
      %3805 = vmatprep.subr.mxu0 0.0
      %3806 = vmatpush1.msra.mxu0 0.0
      %3807 = vmatprep.subr.mxu0 0.0
      %3808 = vmatpush1.msra.mxu0 0.0
      %3809 = vmatprep.subr.mxu0 0.0
      %3810 = vmatpush1.msra.mxu0 0.0
      %3811 = vmatprep.subr.mxu0 0.0
      %3812 = vmatpush1.msra.mxu0 0.0
      %3813 = vmatprep.subr.mxu0 0.0
      %3814 = vmatpush1.msra.mxu0 0.0
      %3815 = vmatprep.subr.mxu0 0.0
      %3816 = vmatpush1.msra.mxu0 0.0
      %3817 = vmatprep.subr.mxu0 0.0
      %3818 = vmatpush1.msra.mxu0 0.0
      %3819 = vmatprep.subr.mxu0 0.0
      %3820 = vmatpush1.msra.mxu0 0.0
      %3821 = vmatprep.subr.mxu0 0.0
      %3822 = vmatpush1.msra.mxu0 0.0
      %3823 = vmatprep.subr.mxu0 0.0
      %3824 = vmatpush1.msra.mxu0 0.0
      %3825 = vmatprep.subr.mxu0 0.0
      %3826 = vmatpush1.msra.mxu0 0.0
      %3827 = vmatprep.subr.mxu0 0.0
      %3828 = vmatpush1.msra.mxu0 0.0
      %3829 = vmatprep.subr.mxu0 0.0
      %3830 = vmatpush1.msra.mxu0 0.0
      %3831 = vmatprep.subr.mxu0 0.0
      %3832 = vmatpush1.msra.mxu0 0.0
      %3833 = vmatprep.subr.mxu0 0.0
      %3834 = vmatpush1.msra.mxu0 0.0
      %3835 = vmatprep.subr.mxu0 0.0
      %3836 = vmatpush1.msra.mxu0 0.0
      %3837 = vmatprep.subr.mxu0 0.0
      %3838 = vmatpush1.msra.mxu0 0.0
      %3839 = vmatprep.subr.mxu0 0.0
      %3840 = vmatpush1.msra.mxu0 0.0
      %3841 = vmatprep.subr.mxu0 0.0
      %3842 = vmatpush1.msra.mxu0 0.0
      %3843 = vmatprep.subr.mxu0 0.0
      %3844 = vmatpush1.msra.mxu0 0.0
      %3845 = vmatprep.subr.mxu0 0.0
      %3846 = vmatpush1.msra.mxu0 0.0
      %3847 = vmatprep.subr.mxu0 0.0
      %3848 = vmatpush1.msra.mxu0 0.0
      %3849 = vmatprep.subr.mxu0 0.0
      %3850 = vmatpush1.msra.mxu0 0.0
      %3851 = vmatprep.subr.mxu0 0.0
      %3852 = vmatpush1.msra.mxu0 0.0
      %3853 = vmatprep.subr.mxu0 0.0
      %3854 = vmatpush1.msra.mxu0 0.0
      %3855 = vmatprep.subr.mxu0 0.0
      %3856 = vmatpush1.msra.mxu0 0.0
      %3857 = vmatprep.subr.mxu0 0.0
      %3858 = vmatpush1.msra.mxu0 0.0
      %3859 = vmatprep.subr.mxu0 0.0
      %3860 = vmatpush1.msra.mxu0 0.0
      %3861 = vmatprep.subr.mxu0 0.0
      %3862 = vmatpush1.msra.mxu0 0.0
      %3863 = vmatprep.subr.mxu0 0.0
      %3864 = vmatpush1.msra.mxu0 0.0
      %3865 = vmatprep.mubr.f32.mxu0 0.0
      %3866 = vmatmul.mubr.f32.gmra.mrb[0].mxu0 %v3799
      %v3867 = vpop.f32.mrb[0].mxu0
      %v3868 = vadd.f32 0.0, %v3867
      %v3869 = vpop.f32.mrb[0].mxu0
      %3870 = vdwg.mxu0
      %v3871 = vsel %vm1287, %v351, 0.0
      %3872 = vadd.xlane.f32.xlu0 %v3871
      %v3873 = vpop.xlane.xlu0 %3872
      %v3874 = vsel %vm1287, %v352, 0.0
      %3875 = vadd.xlane.f32.xlu0 %v3874
      %v3876 = vpop.xlane.xlu0 %3875
      %v3877 = vsel %vm1287, %v353, 0.0
      %3878 = vadd.xlane.f32.xlu0 %v3877
      %v3879 = vpop.xlane.xlu0 %3878
      %v3880 = vsel %vm1287, %v354, 0.0
      %3881 = vadd.xlane.f32.xlu0 %v3880
      %v3882 = vpop.xlane.xlu0 %3881
      %v3883 = vsel %vm1287, %v355, 0.0
      %3884 = vadd.xlane.f32.xlu0 %v3883
      %v3885 = vpop.xlane.xlu0 %3884
      %v3886 = vsel %vm1287, %v356, 0.0
      %3887 = vadd.xlane.f32.xlu0 %v3886
      %v3888 = vpop.xlane.xlu0 %3887
      %v3889 = vsel %vm1287, %v357, 0.0
      %3890 = vadd.xlane.f32.xlu0 %v3889
      %v3891 = vpop.xlane.xlu0 %3890
      %v3892 = vsel %vm1287, %v358, 0.0
      %3893 = vadd.xlane.f32.xlu0 %v3892
      %v3894 = vpop.xlane.xlu0 %3893
      %v3895 = vadd.f32 %v3873, 1e-08
      %v3896 = vadd.f32 %v3876, 1e-08
      %v3897 = vadd.f32 %v3879, 1e-08
      %v3898 = vadd.f32 %v3882, 1e-08
      %v3899 = vadd.f32 %v3885, 1e-08
      %v3900 = vadd.f32 %v3888, 1e-08
      %v3901 = vadd.f32 %v3891, 1e-08
      %v3902 = vadd.f32 %v3894, 1e-08
      %v3903 = vrcp.pop %v3895
      %v3904 = vmul.f32 %v3357, %v3903
      %v3905 = vrcp.pop %v3896
      %v3906 = vmul.f32 %v3430, %v3905
      %v3907 = vrcp.pop %v3897
      %v3908 = vmul.f32 %v3503, %v3907
      %v3909 = vrcp.pop %v3898
      %v3910 = vmul.f32 %v3576, %v3909
      %v3911 = vrcp.pop %v3899
      %v3912 = vmul.f32 %v3649, %v3911
      %v3913 = vrcp.pop %v3900
      %v3914 = vmul.f32 %v3722, %v3913
      %v3915 = vrcp.pop %v3901
      %v3916 = vmul.f32 %v3795, %v3915
      %v3917 = vrcp.pop %v3902
      %v3918 = vmul.f32 %v3868, %v3917
      %v3919 = vld [vmem:[%s332] sm:$0xff]
      %v3920 = vld [vmem:[%s332 + $0x8] sm:$0xff]
      %v3921 = vld [vmem:[%s332 + $0x10] sm:$0xff]
      %v3922 = vld [vmem:[%s332 + $0x18] sm:$0xff]
      %v3923 = vld [vmem:[%s332 + $0x20] sm:$0xff]
      %v3924 = vld [vmem:[%s332 + $0x28] sm:$0xff]
      %v3925 = vld [vmem:[%s332 + $0x30] sm:$0xff]
      %v3926 = vld [vmem:[%s332 + $0x38] sm:$0xff]
      %v3927 = vld [vmem:[%s4 + $0x18] sm:$0x1f]
      %v3928 = vld [vmem:[%s6 + $0x1] sm:$0x1]
      %v3930 = vlaneseq
      %v3931 = vshrl.u32 %v3930, 7
      %v3932 = vsub.s32 0, %v3931
      %v3933 = vrot.slane %v3928, %v3932
      %vm3935 = vcmask 39936
      %v3937 = vsel %vm3935, %v3919, 0
      %v3940 = vsel %vm3935, %v3920, 0
      %v3943 = vsel %vm3935, %v3921, 0
      %v3946 = vsel %vm3935, %v3922, 0
      %v3949 = vsel %vm3935, %v3923, 0
      %v3952 = vsel %vm3935, %v3924, 0
      %v3955 = vsel %vm3935, %v3925, 0
      %v3958 = vsel %vm3935, %v3926, 0
      %vm3960 = vcmask 1044480
      %v3962 = vsel %vm3960, %v3927, 0
      %3964 = vmatprep.subr.mxu0 0.0
      %3965 = vmatpush1.msra.mxu0 %v3962
      %3966 = vmatprep.subr.mxu0 0.0
      %3967 = vmatpush1.msra.mxu0 0.0
      %3968 = vmatprep.subr.mxu0 0.0
      %3969 = vmatpush1.msra.mxu0 0.0
      %3970 = vmatprep.subr.mxu0 0.0
      %3971 = vmatpush1.msra.mxu0 0.0
      %3972 = vmatprep.subr.mxu0 0.0
      %3973 = vmatpush1.msra.mxu0 0.0
      %3974 = vmatprep.subr.mxu0 0.0
      %3975 = vmatpush1.msra.mxu0 0.0
      %3976 = vmatprep.subr.mxu0 0.0
      %3977 = vmatpush1.msra.mxu0 0.0
      %3978 = vmatprep.subr.mxu0 0.0
      %3979 = vmatpush1.msra.mxu0 0.0
      %3980 = vmatprep.subr.mxu0 0.0
      %3981 = vmatpush1.msra.mxu0 0.0
      %3982 = vmatprep.subr.mxu0 0.0
      %3983 = vmatpush1.msra.mxu0 0.0
      %3984 = vmatprep.subr.mxu0 0.0
      %3985 = vmatpush1.msra.mxu0 0.0
      %3986 = vmatprep.subr.mxu0 0.0
      %3987 = vmatpush1.msra.mxu0 0.0
      %3988 = vmatprep.subr.mxu0 0.0
      %3989 = vmatpush1.msra.mxu0 0.0
      %3990 = vmatprep.subr.mxu0 0.0
      %3991 = vmatpush1.msra.mxu0 0.0
      %3992 = vmatprep.subr.mxu0 0.0
      %3993 = vmatpush1.msra.mxu0 0.0
      %3994 = vmatprep.subr.mxu0 0.0
      %3995 = vmatpush1.msra.mxu0 0.0
      %3996 = vmatprep.subr.mxu0 0.0
      %3997 = vmatpush1.msra.mxu0 0.0
      %3998 = vmatprep.subr.mxu0 0.0
      %3999 = vmatpush1.msra.mxu0 0.0
      %4000 = vmatprep.subr.mxu0 0.0
      %4001 = vmatpush1.msra.mxu0 0.0
      %4002 = vmatprep.subr.mxu0 0.0
      %4003 = vmatpush1.msra.mxu0 0.0
      %4004 = vmatprep.subr.mxu0 0.0
      %4005 = vmatpush1.msra.mxu0 0.0
      %4006 = vmatprep.subr.mxu0 0.0
      %4007 = vmatpush1.msra.mxu0 0.0
      %4008 = vmatprep.subr.mxu0 0.0
      %4009 = vmatpush1.msra.mxu0 0.0
      %4010 = vmatprep.subr.mxu0 0.0
      %4011 = vmatpush1.msra.mxu0 0.0
      %4012 = vmatprep.subr.mxu0 0.0
      %4013 = vmatpush1.msra.mxu0 0.0
      %4014 = vmatprep.subr.mxu0 0.0
      %4015 = vmatpush1.msra.mxu0 0.0
      %4016 = vmatprep.subr.mxu0 0.0
      %4017 = vmatpush1.msra.mxu0 0.0
      %4018 = vmatprep.subr.mxu0 0.0
      %4019 = vmatpush1.msra.mxu0 0.0
      %4020 = vmatprep.subr.mxu0 0.0
      %4021 = vmatpush1.msra.mxu0 0.0
      %4022 = vmatprep.subr.mxu0 0.0
      %4023 = vmatpush1.msra.mxu0 0.0
      %4024 = vmatprep.subr.mxu0 0.0
      %4025 = vmatpush1.msra.mxu0 0.0
      %4026 = vmatprep.subr.mxu0 0.0
      %4027 = vmatpush1.msra.mxu0 0.0
      %4028 = vmatprep.mubr.f32.mxu0 0.0
      %4029 = vmatmul.mubr.f32.gmra.mrb[0].mxu0 %v3937
      %v4030 = vpop.f32.mrb[0].mxu0
      %v4031 = vadd.f32 %v3933, %v4030
      %v4032 = vpop.f32.mrb[0].mxu0
      %4033 = vmatprep.mubr.f32.mxu0 0.0
      %4034 = vmatmul.mubr.f32.gmra.mrb[0].mxu0 %v3940
      %v4035 = vpop.f32.mrb[0].mxu0
      %v4036 = vadd.f32 %v3933, %v4035
      %v4037 = vpop.f32.mrb[0].mxu0
      %4038 = vmatprep.mubr.f32.mxu0 0.0
      %4039 = vmatmul.mubr.f32.gmra.mrb[0].mxu0 %v3943
      %v4040 = vpop.f32.mrb[0].mxu0
      %v4041 = vadd.f32 %v3933, %v4040
      %v4042 = vpop.f32.mrb[0].mxu0
      %4043 = vmatprep.mubr.f32.mxu0 0.0
      %4044 = vmatmul.mubr.f32.gmra.mrb[0].mxu0 %v3946
      %v4045 = vpop.f32.mrb[0].mxu0
      %v4046 = vadd.f32 %v3933, %v4045
      %v4047 = vpop.f32.mrb[0].mxu0
      %4048 = vmatprep.mubr.f32.mxu0 0.0
      %4049 = vmatmul.mubr.f32.gmra.mrb[0].mxu0 %v3949
      %v4050 = vpop.f32.mrb[0].mxu0
      %v4051 = vadd.f32 %v3933, %v4050
      %v4052 = vpop.f32.mrb[0].mxu0
      %4053 = vmatprep.mubr.f32.mxu0 0.0
      %4054 = vmatmul.mubr.f32.gmra.mrb[0].mxu0 %v3952
      %v4055 = vpop.f32.mrb[0].mxu0
      %v4056 = vadd.f32 %v3933, %v4055
      %v4057 = vpop.f32.mrb[0].mxu0
      %4058 = vmatprep.mubr.f32.mxu0 0.0
      %4059 = vmatmul.mubr.f32.gmra.mrb[0].mxu0 %v3955
      %v4060 = vpop.f32.mrb[0].mxu0
      %v4061 = vadd.f32 %v3933, %v4060
      %v4062 = vpop.f32.mrb[0].mxu0
      %4063 = vmatprep.mubr.f32.mxu0 0.0
      %4064 = vmatmul.mubr.f32.gmra.mrb[0].mxu0 %v3958
      %v4065 = vpop.f32.mrb[0].mxu0
      %v4066 = vadd.f32 %v3933, %v4065
      %v4067 = vpop.f32.mrb[0].mxu0
      %4068 = vdwg.mxu0
      %v4069 = vmax.f32 %v4031, 0.0
      %v4070 = vmax.f32 %v4036, 0.0
      %v4071 = vmax.f32 %v4041, 0.0
      %v4072 = vmax.f32 %v4046, 0.0
      %v4073 = vmax.f32 %v4051, 0.0
      %v4074 = vmax.f32 %v4056, 0.0
      %v4075 = vmax.f32 %v4061, 0.0
      %v4076 = vmax.f32 %v4066, 0.0
      %v4077 = vld [vmem:[%s5 + $0x10] sm:$0xff]
      %v4078 = vld [vmem:[%s5 + $0x80] sm:$0xff]
      %v4079 = vld [vmem:[%s5 + $0xf0] sm:$0xff]
      %v4080 = vld [vmem:[%s5 + $0x160] sm:$0xff]
      %4081 = vrot.lane.b32.xlu0 %v3933, 96
      %v4082 = vpop.permute.xlu0 %4081
      %v4085 = vsel %vm564, %v4069, 0
      %v4088 = vsel %vm564, %v4070, 0
      %v4091 = vsel %vm564, %v4071, 0
      %v4094 = vsel %vm564, %v4072, 0
      %v4097 = vsel %vm564, %v4073, 0
      %v4100 = vsel %vm564, %v4074, 0
      %v4103 = vsel %vm564, %v4075, 0
      %v4106 = vsel %vm564, %v4076, 0
      %4108 = vmatprep.subr.mxu0 0.0
      %4109 = vmatpush1.msra.mxu0 %v4077
      %4110 = vmatprep.subr.mxu0 0.0
      %4111 = vmatpush1.msra.mxu0 %v4078
      %4112 = vmatprep.subr.mxu0 0.0
      %4113 = vmatpush1.msra.mxu0 %v4079
      %4114 = vmatprep.subr.mxu0 0.0
      %4115 = vmatpush1.msra.mxu0 %v4080
      %4116 = vmatprep.subr.mxu0 0.0
      %4117 = vmatpush1.msra.mxu0 0.0
      %4118 = vmatprep.subr.mxu0 0.0
      %4119 = vmatpush1.msra.mxu0 0.0
      %4120 = vmatprep.subr.mxu0 0.0
      %4121 = vmatpush1.msra.mxu0 0.0
      %4122 = vmatprep.subr.mxu0 0.0
      %4123 = vmatpush1.msra.mxu0 0.0
      %4124 = vmatprep.subr.mxu0 0.0
      %4125 = vmatpush1.msra.mxu0 0.0
      %4126 = vmatprep.subr.mxu0 0.0
      %4127 = vmatpush1.msra.mxu0 0.0
      %4128 = vmatprep.subr.mxu0 0.0
      %4129 = vmatpush1.msra.mxu0 0.0
      %4130 = vmatprep.subr.mxu0 0.0
      %4131 = vmatpush1.msra.mxu0 0.0
      %4132 = vmatprep.subr.mxu0 0.0
      %4133 = vmatpush1.msra.mxu0 0.0
      %4134 = vmatprep.subr.mxu0 0.0
      %4135 = vmatpush1.msra.mxu0 0.0
      %4136 = vmatprep.subr.mxu0 0.0
      %4137 = vmatpush1.msra.mxu0 0.0
      %4138 = vmatprep.subr.mxu0 0.0
      %4139 = vmatpush1.msra.mxu0 0.0
      %4140 = vmatprep.subr.mxu0 0.0
      %4141 = vmatpush1.msra.mxu0 0.0
      %4142 = vmatprep.subr.mxu0 0.0
      %4143 = vmatpush1.msra.mxu0 0.0
      %4144 = vmatprep.subr.mxu0 0.0
      %4145 = vmatpush1.msra.mxu0 0.0
      %4146 = vmatprep.subr.mxu0 0.0
      %4147 = vmatpush1.msra.mxu0 0.0
      %4148 = vmatprep.subr.mxu0 0.0
      %4149 = vmatpush1.msra.mxu0 0.0
      %4150 = vmatprep.subr.mxu0 0.0
      %4151 = vmatpush1.msra.mxu0 0.0
      %4152 = vmatprep.subr.mxu0 0.0
      %4153 = vmatpush1.msra.mxu0 0.0
      %4154 = vmatprep.subr.mxu0 0.0
      %4155 = vmatpush1.msra.mxu0 0.0
      %4156 = vmatprep.subr.mxu0 0.0
      %4157 = vmatpush1.msra.mxu0 0.0
      %4158 = vmatprep.subr.mxu0 0.0
      %4159 = vmatpush1.msra.mxu0 0.0
      %4160 = vmatprep.subr.mxu0 0.0
      %4161 = vmatpush1.msra.mxu0 0.0
      %4162 = vmatprep.subr.mxu0 0.0
      %4163 = vmatpush1.msra.mxu0 0.0
      %4164 = vmatprep.subr.mxu0 0.0
      %4165 = vmatpush1.msra.mxu0 0.0
      %4166 = vmatprep.subr.mxu0 0.0
      %4167 = vmatpush1.msra.mxu0 0.0
      %4168 = vmatprep.subr.mxu0 0.0
      %4169 = vmatpush1.msra.mxu0 0.0
      %4170 = vmatprep.subr.mxu0 0.0
      %4171 = vmatpush1.msra.mxu0 0.0
      %4172 = vmatprep.mubr.f32.mxu0 0.0
      %4173 = vmatmul.mubr.f32.gmra.mrb[0].mxu0 %v4085
      %v4174 = vpop.f32.mrb[0].mxu0
      %v4175 = vadd.f32 %v4082, %v4174
      %v4176 = vpop.f32.mrb[0].mxu0
      %4177 = vmatprep.mubr.f32.mxu0 0.0
      %4178 = vmatmul.mubr.f32.gmra.mrb[0].mxu0 %v4088
      %v4179 = vpop.f32.mrb[0].mxu0
      %v4180 = vadd.f32 %v4082, %v4179
      %v4181 = vpop.f32.mrb[0].mxu0
      %4182 = vmatprep.mubr.f32.mxu0 0.0
      %4183 = vmatmul.mubr.f32.gmra.mrb[0].mxu0 %v4091
      %v4184 = vpop.f32.mrb[0].mxu0
      %v4185 = vadd.f32 %v4082, %v4184
      %v4186 = vpop.f32.mrb[0].mxu0
      %4187 = vmatprep.mubr.f32.mxu0 0.0
      %4188 = vmatmul.mubr.f32.gmra.mrb[0].mxu0 %v4094
      %v4189 = vpop.f32.mrb[0].mxu0
      %v4190 = vadd.f32 %v4082, %v4189
      %v4191 = vpop.f32.mrb[0].mxu0
      %4192 = vmatprep.mubr.f32.mxu0 0.0
      %4193 = vmatmul.mubr.f32.gmra.mrb[0].mxu0 %v4097
      %v4194 = vpop.f32.mrb[0].mxu0
      %v4195 = vadd.f32 %v4082, %v4194
      %v4196 = vpop.f32.mrb[0].mxu0
      %4197 = vmatprep.mubr.f32.mxu0 0.0
      %4198 = vmatmul.mubr.f32.gmra.mrb[0].mxu0 %v4100
      %v4199 = vpop.f32.mrb[0].mxu0
      %v4200 = vadd.f32 %v4082, %v4199
      %v4201 = vpop.f32.mrb[0].mxu0
      %4202 = vmatprep.mubr.f32.mxu0 0.0
      %4203 = vmatmul.mubr.f32.gmra.mrb[0].mxu0 %v4103
      %v4204 = vpop.f32.mrb[0].mxu0
      %v4205 = vadd.f32 %v4082, %v4204
      %v4206 = vpop.f32.mrb[0].mxu0
      %4207 = vmatprep.mubr.f32.mxu0 0.0
      %4208 = vmatmul.mubr.f32.gmra.mrb[0].mxu0 %v4106
      %v4209 = vpop.f32.mrb[0].mxu0
      %v4210 = vadd.f32 %v4082, %v4209
      %v4211 = vpop.f32.mrb[0].mxu0
      %4212 = vdwg.mxu0
      %v4213 = vmax.f32 %v4175, 0.0
      %v4214 = vmax.f32 %v4180, 0.0
      %v4215 = vmax.f32 %v4185, 0.0
      %v4216 = vmax.f32 %v4190, 0.0
      %v4217 = vmax.f32 %v4195, 0.0
      %v4218 = vmax.f32 %v4200, 0.0
      %v4219 = vmax.f32 %v4205, 0.0
      %v4220 = vmax.f32 %v4210, 0.0
      %v4221 = vld [vmem:[%s5 + $0x28] sm:$0xff]
      %v4222 = vld [vmem:[%s5 + $0x98] sm:$0xff]
      %v4223 = vld [vmem:[%s5 + $0x108] sm:$0xff]
      %v4224 = vld [vmem:[%s5 + $0x178] sm:$0xff]
      %v4225 = vld [vmem:[%s6 + $0x2] sm:$0x3]
      %v4227 = vlaneseq
      %v4228 = vshrl.u32 %v4227, 7
      %v4229 = vsub.s32 0, %v4228
      %v4230 = vrot.slane %v4225, %v4229
      %v4231 = vlaneseq
      %v4232 = vshrl.u32 %v4231, 7
      %v4233 = vsub.s32 1, %v4232
      %v4234 = vrot.slane %v4225, %v4233
      %4235 = vrot.lane.b32.xlu0 %v4230, 64
      %v4236 = vpop.permute.xlu0 %4235
      %4237 = vrot.lane.b32.xlu0 %v4234, 64
      %v4238 = vpop.permute.xlu0 %4237
      %v4239 = vsel %vm1653, %v4236, %v4238
      %v4242 = vsel %vm564, %v4213, 0
      %v4245 = vsel %vm564, %v4214, 0
      %v4248 = vsel %vm564, %v4215, 0
      %v4251 = vsel %vm564, %v4216, 0
      %v4254 = vsel %vm564, %v4217, 0
      %v4257 = vsel %vm564, %v4218, 0
      %v4260 = vsel %vm564, %v4219, 0
      %v4263 = vsel %vm564, %v4220, 0
      %4265 = vmatprep.subr.mxu0 0.0
      %4266 = vmatpush1.msra.mxu0 %v4221
      %4267 = vmatprep.subr.mxu0 0.0
      %4268 = vmatpush1.msra.mxu0 %v4222
      %4269 = vmatprep.subr.mxu0 0.0
      %4270 = vmatpush1.msra.mxu0 %v4223
      %4271 = vmatprep.subr.mxu0 0.0
      %4272 = vmatpush1.msra.mxu0 %v4224
      %4273 = vmatprep.subr.mxu0 0.0
      %4274 = vmatpush1.msra.mxu0 0.0
      %4275 = vmatprep.subr.mxu0 0.0
      %4276 = vmatpush1.msra.mxu0 0.0
      %4277 = vmatprep.subr.mxu0 0.0
      %4278 = vmatpush1.msra.mxu0 0.0
      %4279 = vmatprep.subr.mxu0 0.0
      %4280 = vmatpush1.msra.mxu0 0.0
      %4281 = vmatprep.subr.mxu0 0.0
      %4282 = vmatpush1.msra.mxu0 0.0
      %4283 = vmatprep.subr.mxu0 0.0
      %4284 = vmatpush1.msra.mxu0 0.0
      %4285 = vmatprep.subr.mxu0 0.0
      %4286 = vmatpush1.msra.mxu0 0.0
      %4287 = vmatprep.subr.mxu0 0.0
      %4288 = vmatpush1.msra.mxu0 0.0
      %4289 = vmatprep.subr.mxu0 0.0
      %4290 = vmatpush1.msra.mxu0 0.0
      %4291 = vmatprep.subr.mxu0 0.0
      %4292 = vmatpush1.msra.mxu0 0.0
      %4293 = vmatprep.subr.mxu0 0.0
      %4294 = vmatpush1.msra.mxu0 0.0
      %4295 = vmatprep.subr.mxu0 0.0
      %4296 = vmatpush1.msra.mxu0 0.0
      %4297 = vmatprep.subr.mxu0 0.0
      %4298 = vmatpush1.msra.mxu0 0.0
      %4299 = vmatprep.subr.mxu0 0.0
      %4300 = vmatpush1.msra.mxu0 0.0
      %4301 = vmatprep.subr.mxu0 0.0
      %4302 = vmatpush1.msra.mxu0 0.0
      %4303 = vmatprep.subr.mxu0 0.0
      %4304 = vmatpush1.msra.mxu0 0.0
      %4305 = vmatprep.subr.mxu0 0.0
      %4306 = vmatpush1.msra.mxu0 0.0
      %4307 = vmatprep.subr.mxu0 0.0
      %4308 = vmatpush1.msra.mxu0 0.0
      %4309 = vmatprep.subr.mxu0 0.0
      %4310 = vmatpush1.msra.mxu0 0.0
      %4311 = vmatprep.subr.mxu0 0.0
      %4312 = vmatpush1.msra.mxu0 0.0
      %4313 = vmatprep.subr.mxu0 0.0
      %4314 = vmatpush1.msra.mxu0 0.0
      %4315 = vmatprep.subr.mxu0 0.0
      %4316 = vmatpush1.msra.mxu0 0.0
      %4317 = vmatprep.subr.mxu0 0.0
      %4318 = vmatpush1.msra.mxu0 0.0
      %4319 = vmatprep.subr.mxu0 0.0
      %4320 = vmatpush1.msra.mxu0 0.0
      %4321 = vmatprep.subr.mxu0 0.0
      %4322 = vmatpush1.msra.mxu0 0.0
      %4323 = vmatprep.subr.mxu0 0.0
      %4324 = vmatpush1.msra.mxu0 0.0
      %4325 = vmatprep.subr.mxu0 0.0
      %4326 = vmatpush1.msra.mxu0 0.0
      %4327 = vmatprep.subr.mxu0 0.0
      %4328 = vmatpush1.msra.mxu0 0.0
      %4329 = vmatprep.mubr.f32.mxu0 0.0
      %4330 = vmatmul.mubr.f32.gmra.mrb[0].mxu0 %v4242
      %v4331 = vpop.f32.mrb[0].mxu0
      %v4332 = vadd.f32 %v4239, %v4331
      %v4333 = vpop.f32.mrb[0].mxu0
      %4334 = vmatprep.mubr.f32.mxu0 0.0
      %4335 = vmatmul.mubr.f32.gmra.mrb[0].mxu0 %v4245
      %v4336 = vpop.f32.mrb[0].mxu0
      %v4337 = vadd.f32 %v4239, %v4336
      %v4338 = vpop.f32.mrb[0].mxu0
      %4339 = vmatprep.mubr.f32.mxu0 0.0
      %4340 = vmatmul.mubr.f32.gmra.mrb[0].mxu0 %v4248
      %v4341 = vpop.f32.mrb[0].mxu0
      %v4342 = vadd.f32 %v4239, %v4341
      %v4343 = vpop.f32.mrb[0].mxu0
      %4344 = vmatprep.mubr.f32.mxu0 0.0
      %4345 = vmatmul.mubr.f32.gmra.mrb[0].mxu0 %v4251
      %v4346 = vpop.f32.mrb[0].mxu0
      %v4347 = vadd.f32 %v4239, %v4346
      %v4348 = vpop.f32.mrb[0].mxu0
      %4349 = vmatprep.mubr.f32.mxu0 0.0
      %4350 = vmatmul.mubr.f32.gmra.mrb[0].mxu0 %v4254
      %v4351 = vpop.f32.mrb[0].mxu0
      %v4352 = vadd.f32 %v4239, %v4351
      %v4353 = vpop.f32.mrb[0].mxu0
      %4354 = vmatprep.mubr.f32.mxu0 0.0
      %4355 = vmatmul.mubr.f32.gmra.mrb[0].mxu0 %v4257
      %v4356 = vpop.f32.mrb[0].mxu0
      %v4357 = vadd.f32 %v4239, %v4356
      %v4358 = vpop.f32.mrb[0].mxu0
      %4359 = vmatprep.mubr.f32.mxu0 0.0
      %4360 = vmatmul.mubr.f32.gmra.mrb[0].mxu0 %v4260
      %v4361 = vpop.f32.mrb[0].mxu0
      %v4362 = vadd.f32 %v4239, %v4361
      %v4363 = vpop.f32.mrb[0].mxu0
      %4364 = vmatprep.mubr.f32.mxu0 0.0
      %4365 = vmatmul.mubr.f32.gmra.mrb[0].mxu0 %v4263
      %v4366 = vpop.f32.mrb[0].mxu0
      %v4367 = vadd.f32 %v4239, %v4366
      %v4368 = vpop.f32.mrb[0].mxu0
      %4369 = vdwg.mxu0
      %4371 = vrot.lane.b32.xlu0 %v4332, 96
      %v4372 = vpop.permute.xlu0 %4371
      %v4373 = vsel %vm564, %v4332, 0
      %v4375 = vsel %vm564, %v4372, 0
      %4377 = vmatprep.subr.mxu0 0.0
      %4378 = vmatpush1.xpose.msra.mxu0 %v4375
      %4379 = vmatprep.subr.mxu0 0.0
      %4380 = vmatpush1.xpose.msra.mxu0 0.0
      %4381 = vmatprep.subr.mxu0 0.0
      %4382 = vmatpush1.xpose.msra.mxu0 0.0
      %4383 = vmatprep.subr.mxu0 0.0
      %4384 = vmatpush1.xpose.msra.mxu0 0.0
      %4385 = vmatprep.subr.mxu0 0.0
      %4386 = vmatpush1.xpose.msra.mxu0 0.0
      %4387 = vmatprep.subr.mxu0 0.0
      %4388 = vmatpush1.xpose.msra.mxu0 0.0
      %4389 = vmatprep.subr.mxu0 0.0
      %4390 = vmatpush1.xpose.msra.mxu0 0.0
      %4391 = vmatprep.subr.mxu0 0.0
      %4392 = vmatpush1.xpose.msra.mxu0 0.0
      %4393 = vmatprep.subr.mxu0 0.0
      %4394 = vmatpush1.xpose.msra.mxu0 0.0
      %4395 = vmatprep.subr.mxu0 0.0
      %4396 = vmatpush1.xpose.msra.mxu0 0.0
      %4397 = vmatprep.subr.mxu0 0.0
      %4398 = vmatpush1.xpose.msra.mxu0 0.0
      %4399 = vmatprep.subr.mxu0 0.0
      %4400 = vmatpush1.xpose.msra.mxu0 0.0
      %4401 = vmatprep.subr.mxu0 0.0
      %4402 = vmatpush1.xpose.msra.mxu0 0.0
      %4403 = vmatprep.subr.mxu0 0.0
      %4404 = vmatpush1.xpose.msra.mxu0 0.0
      %4405 = vmatprep.subr.mxu0 0.0
      %4406 = vmatpush1.xpose.msra.mxu0 0.0
      %4407 = vmatprep.subr.mxu0 0.0
      %4408 = vmatpush1.xpose.msra.mxu0 0.0
      %4409 = vmatprep.subr.mxu0 0.0
      %4410 = vmatpush1.xpose.msra.mxu0 0.0
      %4411 = vmatprep.subr.mxu0 0.0
      %4412 = vmatpush1.xpose.msra.mxu0 0.0
      %4413 = vmatprep.subr.mxu0 0.0
      %4414 = vmatpush1.xpose.msra.mxu0 0.0
      %4415 = vmatprep.subr.mxu0 0.0
      %4416 = vmatpush1.xpose.msra.mxu0 0.0
      %4417 = vmatprep.subr.mxu0 0.0
      %4418 = vmatpush1.xpose.msra.mxu0 0.0
      %4419 = vmatprep.subr.mxu0 0.0
      %4420 = vmatpush1.xpose.msra.mxu0 0.0
      %4421 = vmatprep.subr.mxu0 0.0
      %4422 = vmatpush1.xpose.msra.mxu0 0.0
      %4423 = vmatprep.subr.mxu0 0.0
      %4424 = vmatpush1.xpose.msra.mxu0 0.0
      %4425 = vmatprep.subr.mxu0 0.0
      %4426 = vmatpush1.xpose.msra.mxu0 0.0
      %4427 = vmatprep.subr.mxu0 0.0
      %4428 = vmatpush1.xpose.msra.mxu0 0.0
      %4429 = vmatprep.subr.mxu0 0.0
      %4430 = vmatpush1.xpose.msra.mxu0 0.0
      %4431 = vmatprep.subr.mxu0 0.0
      %4432 = vmatpush1.xpose.msra.mxu0 0.0
      %4433 = vmatprep.subr.mxu0 0.0
      %4434 = vmatpush1.xpose.msra.mxu0 0.0
      %4435 = vmatprep.subr.mxu0 0.0
      %4436 = vmatpush1.xpose.msra.mxu0 0.0
      %4437 = vmatprep.subr.mxu0 0.0
      %4438 = vmatpush1.xpose.msra.mxu0 0.0
      %4439 = vmatprep.subr.mxu0 0.0
      %4440 = vmatpush1.xpose.msra.mxu0 0.0
      %4441 = vmatprep.mubr.f32.mxu0 0.0
      %4442 = vmatmul.mubr.f32.gmra.mrb[0].mxu0 %v4373
      %v4443 = vpop.f32.mrb[0].mxu0
      %v4444 = vadd.f32 0.0, %v4443
      %v4445 = vpop.f32.mrb[0].mxu0
      %4446 = vdwg.mxu0
      %4448 = vrot.lane.b32.xlu0 %v4337, 96
      %v4449 = vpop.permute.xlu0 %4448
      %v4450 = vsel %vm564, %v4337, 0
      %v4452 = vsel %vm564, %v4449, 0
      %4454 = vmatprep.subr.mxu0 0.0
      %4455 = vmatpush1.xpose.msra.mxu0 %v4452
      %4456 = vmatprep.subr.mxu0 0.0
      %4457 = vmatpush1.xpose.msra.mxu0 0.0
      %4458 = vmatprep.subr.mxu0 0.0
      %4459 = vmatpush1.xpose.msra.mxu0 0.0
      %4460 = vmatprep.subr.mxu0 0.0
      %4461 = vmatpush1.xpose.msra.mxu0 0.0
      %4462 = vmatprep.subr.mxu0 0.0
      %4463 = vmatpush1.xpose.msra.mxu0 0.0
      %4464 = vmatprep.subr.mxu0 0.0
      %4465 = vmatpush1.xpose.msra.mxu0 0.0
      %4466 = vmatprep.subr.mxu0 0.0
      %4467 = vmatpush1.xpose.msra.mxu0 0.0
      %4468 = vmatprep.subr.mxu0 0.0
      %4469 = vmatpush1.xpose.msra.mxu0 0.0
      %4470 = vmatprep.subr.mxu0 0.0
      %4471 = vmatpush1.xpose.msra.mxu0 0.0
      %4472 = vmatprep.subr.mxu0 0.0
      %4473 = vmatpush1.xpose.msra.mxu0 0.0
      %4474 = vmatprep.subr.mxu0 0.0
      %4475 = vmatpush1.xpose.msra.mxu0 0.0
      %4476 = vmatprep.subr.mxu0 0.0
      %4477 = vmatpush1.xpose.msra.mxu0 0.0
      %4478 = vmatprep.subr.mxu0 0.0
      %4479 = vmatpush1.xpose.msra.mxu0 0.0
      %4480 = vmatprep.subr.mxu0 0.0
      %4481 = vmatpush1.xpose.msra.mxu0 0.0
      %4482 = vmatprep.subr.mxu0 0.0
      %4483 = vmatpush1.xpose.msra.mxu0 0.0
      %4484 = vmatprep.subr.mxu0 0.0
      %4485 = vmatpush1.xpose.msra.mxu0 0.0
      %4486 = vmatprep.subr.mxu0 0.0
      %4487 = vmatpush1.xpose.msra.mxu0 0.0
      %4488 = vmatprep.subr.mxu0 0.0
      %4489 = vmatpush1.xpose.msra.mxu0 0.0
      %4490 = vmatprep.subr.mxu0 0.0
      %4491 = vmatpush1.xpose.msra.mxu0 0.0
      %4492 = vmatprep.subr.mxu0 0.0
      %4493 = vmatpush1.xpose.msra.mxu0 0.0
      %4494 = vmatprep.subr.mxu0 0.0
      %4495 = vmatpush1.xpose.msra.mxu0 0.0
      %4496 = vmatprep.subr.mxu0 0.0
      %4497 = vmatpush1.xpose.msra.mxu0 0.0
      %4498 = vmatprep.subr.mxu0 0.0
      %4499 = vmatpush1.xpose.msra.mxu0 0.0
      %4500 = vmatprep.subr.mxu0 0.0
      %4501 = vmatpush1.xpose.msra.mxu0 0.0
      %4502 = vmatprep.subr.mxu0 0.0
      %4503 = vmatpush1.xpose.msra.mxu0 0.0
      %4504 = vmatprep.subr.mxu0 0.0
      %4505 = vmatpush1.xpose.msra.mxu0 0.0
      %4506 = vmatprep.subr.mxu0 0.0
      %4507 = vmatpush1.xpose.msra.mxu0 0.0
      %4508 = vmatprep.subr.mxu0 0.0
      %4509 = vmatpush1.xpose.msra.mxu0 0.0
      %4510 = vmatprep.subr.mxu0 0.0
      %4511 = vmatpush1.xpose.msra.mxu0 0.0
      %4512 = vmatprep.subr.mxu0 0.0
      %4513 = vmatpush1.xpose.msra.mxu0 0.0
      %4514 = vmatprep.subr.mxu0 0.0
      %4515 = vmatpush1.xpose.msra.mxu0 0.0
      %4516 = vmatprep.subr.mxu0 0.0
      %4517 = vmatpush1.xpose.msra.mxu0 0.0
      %4518 = vmatprep.mubr.f32.mxu0 0.0
      %4519 = vmatmul.mubr.f32.gmra.mrb[0].mxu0 %v4450
      %v4520 = vpop.f32.mrb[0].mxu0
      %v4521 = vadd.f32 0.0, %v4520
      %v4522 = vpop.f32.mrb[0].mxu0
      %4523 = vdwg.mxu0
      %4525 = vrot.lane.b32.xlu0 %v4342, 96
      %v4526 = vpop.permute.xlu0 %4525
      %v4527 = vsel %vm564, %v4342, 0
      %v4529 = vsel %vm564, %v4526, 0
      %4531 = vmatprep.subr.mxu0 0.0
      %4532 = vmatpush1.xpose.msra.mxu0 %v4529
      %4533 = vmatprep.subr.mxu0 0.0
      %4534 = vmatpush1.xpose.msra.mxu0 0.0
      %4535 = vmatprep.subr.mxu0 0.0
      %4536 = vmatpush1.xpose.msra.mxu0 0.0
      %4537 = vmatprep.subr.mxu0 0.0
      %4538 = vmatpush1.xpose.msra.mxu0 0.0
      %4539 = vmatprep.subr.mxu0 0.0
      %4540 = vmatpush1.xpose.msra.mxu0 0.0
      %4541 = vmatprep.subr.mxu0 0.0
      %4542 = vmatpush1.xpose.msra.mxu0 0.0
      %4543 = vmatprep.subr.mxu0 0.0
      %4544 = vmatpush1.xpose.msra.mxu0 0.0
      %4545 = vmatprep.subr.mxu0 0.0
      %4546 = vmatpush1.xpose.msra.mxu0 0.0
      %4547 = vmatprep.subr.mxu0 0.0
      %4548 = vmatpush1.xpose.msra.mxu0 0.0
      %4549 = vmatprep.subr.mxu0 0.0
      %4550 = vmatpush1.xpose.msra.mxu0 0.0
      %4551 = vmatprep.subr.mxu0 0.0
      %4552 = vmatpush1.xpose.msra.mxu0 0.0
      %4553 = vmatprep.subr.mxu0 0.0
      %4554 = vmatpush1.xpose.msra.mxu0 0.0
      %4555 = vmatprep.subr.mxu0 0.0
      %4556 = vmatpush1.xpose.msra.mxu0 0.0
      %4557 = vmatprep.subr.mxu0 0.0
      %4558 = vmatpush1.xpose.msra.mxu0 0.0
      %4559 = vmatprep.subr.mxu0 0.0
      %4560 = vmatpush1.xpose.msra.mxu0 0.0
      %4561 = vmatprep.subr.mxu0 0.0
      %4562 = vmatpush1.xpose.msra.mxu0 0.0
      %4563 = vmatprep.subr.mxu0 0.0
      %4564 = vmatpush1.xpose.msra.mxu0 0.0
      %4565 = vmatprep.subr.mxu0 0.0
      %4566 = vmatpush1.xpose.msra.mxu0 0.0
      %4567 = vmatprep.subr.mxu0 0.0
      %4568 = vmatpush1.xpose.msra.mxu0 0.0
      %4569 = vmatprep.subr.mxu0 0.0
      %4570 = vmatpush1.xpose.msra.mxu0 0.0
      %4571 = vmatprep.subr.mxu0 0.0
      %4572 = vmatpush1.xpose.msra.mxu0 0.0
      %4573 = vmatprep.subr.mxu0 0.0
      %4574 = vmatpush1.xpose.msra.mxu0 0.0
      %4575 = vmatprep.subr.mxu0 0.0
      %4576 = vmatpush1.xpose.msra.mxu0 0.0
      %4577 = vmatprep.subr.mxu0 0.0
      %4578 = vmatpush1.xpose.msra.mxu0 0.0
      %4579 = vmatprep.subr.mxu0 0.0
      %4580 = vmatpush1.xpose.msra.mxu0 0.0
      %4581 = vmatprep.subr.mxu0 0.0
      %4582 = vmatpush1.xpose.msra.mxu0 0.0
      %4583 = vmatprep.subr.mxu0 0.0
      %4584 = vmatpush1.xpose.msra.mxu0 0.0
      %4585 = vmatprep.subr.mxu0 0.0
      %4586 = vmatpush1.xpose.msra.mxu0 0.0
      %4587 = vmatprep.subr.mxu0 0.0
      %4588 = vmatpush1.xpose.msra.mxu0 0.0
      %4589 = vmatprep.subr.mxu0 0.0
      %4590 = vmatpush1.xpose.msra.mxu0 0.0
      %4591 = vmatprep.subr.mxu0 0.0
      %4592 = vmatpush1.xpose.msra.mxu0 0.0
      %4593 = vmatprep.subr.mxu0 0.0
      %4594 = vmatpush1.xpose.msra.mxu0 0.0
      %4595 = vmatprep.mubr.f32.mxu0 0.0
      %4596 = vmatmul.mubr.f32.gmra.mrb[0].mxu0 %v4527
      %v4597 = vpop.f32.mrb[0].mxu0
      %v4598 = vadd.f32 0.0, %v4597
      %v4599 = vpop.f32.mrb[0].mxu0
      %4600 = vdwg.mxu0
      %4602 = vrot.lane.b32.xlu0 %v4347, 96
      %v4603 = vpop.permute.xlu0 %4602
      %v4604 = vsel %vm564, %v4347, 0
      %v4606 = vsel %vm564, %v4603, 0
      %4608 = vmatprep.subr.mxu0 0.0
      %4609 = vmatpush1.xpose.msra.mxu0 %v4606
      %4610 = vmatprep.subr.mxu0 0.0
      %4611 = vmatpush1.xpose.msra.mxu0 0.0
      %4612 = vmatprep.subr.mxu0 0.0
      %4613 = vmatpush1.xpose.msra.mxu0 0.0
      %4614 = vmatprep.subr.mxu0 0.0
      %4615 = vmatpush1.xpose.msra.mxu0 0.0
      %4616 = vmatprep.subr.mxu0 0.0
      %4617 = vmatpush1.xpose.msra.mxu0 0.0
      %4618 = vmatprep.subr.mxu0 0.0
      %4619 = vmatpush1.xpose.msra.mxu0 0.0
      %4620 = vmatprep.subr.mxu0 0.0
      %4621 = vmatpush1.xpose.msra.mxu0 0.0
      %4622 = vmatprep.subr.mxu0 0.0
      %4623 = vmatpush1.xpose.msra.mxu0 0.0
      %4624 = vmatprep.subr.mxu0 0.0
      %4625 = vmatpush1.xpose.msra.mxu0 0.0
      %4626 = vmatprep.subr.mxu0 0.0
      %4627 = vmatpush1.xpose.msra.mxu0 0.0
      %4628 = vmatprep.subr.mxu0 0.0
      %4629 = vmatpush1.xpose.msra.mxu0 0.0
      %4630 = vmatprep.subr.mxu0 0.0
      %4631 = vmatpush1.xpose.msra.mxu0 0.0
      %4632 = vmatprep.subr.mxu0 0.0
      %4633 = vmatpush1.xpose.msra.mxu0 0.0
      %4634 = vmatprep.subr.mxu0 0.0
      %4635 = vmatpush1.xpose.msra.mxu0 0.0
      %4636 = vmatprep.subr.mxu0 0.0
      %4637 = vmatpush1.xpose.msra.mxu0 0.0
      %4638 = vmatprep.subr.mxu0 0.0
      %4639 = vmatpush1.xpose.msra.mxu0 0.0
      %4640 = vmatprep.subr.mxu0 0.0
      %4641 = vmatpush1.xpose.msra.mxu0 0.0
      %4642 = vmatprep.subr.mxu0 0.0
      %4643 = vmatpush1.xpose.msra.mxu0 0.0
      %4644 = vmatprep.subr.mxu0 0.0
      %4645 = vmatpush1.xpose.msra.mxu0 0.0
      %4646 = vmatprep.subr.mxu0 0.0
      %4647 = vmatpush1.xpose.msra.mxu0 0.0
      %4648 = vmatprep.subr.mxu0 0.0
      %4649 = vmatpush1.xpose.msra.mxu0 0.0
      %4650 = vmatprep.subr.mxu0 0.0
      %4651 = vmatpush1.xpose.msra.mxu0 0.0
      %4652 = vmatprep.subr.mxu0 0.0
      %4653 = vmatpush1.xpose.msra.mxu0 0.0
      %4654 = vmatprep.subr.mxu0 0.0
      %4655 = vmatpush1.xpose.msra.mxu0 0.0
      %4656 = vmatprep.subr.mxu0 0.0
      %4657 = vmatpush1.xpose.msra.mxu0 0.0
      %4658 = vmatprep.subr.mxu0 0.0
      %4659 = vmatpush1.xpose.msra.mxu0 0.0
      %4660 = vmatprep.subr.mxu0 0.0
      %4661 = vmatpush1.xpose.msra.mxu0 0.0
      %4662 = vmatprep.subr.mxu0 0.0
      %4663 = vmatpush1.xpose.msra.mxu0 0.0
      %4664 = vmatprep.subr.mxu0 0.0
      %4665 = vmatpush1.xpose.msra.mxu0 0.0
      %4666 = vmatprep.subr.mxu0 0.0
      %4667 = vmatpush1.xpose.msra.mxu0 0.0
      %4668 = vmatprep.subr.mxu0 0.0
      %4669 = vmatpush1.xpose.msra.mxu0 0.0
      %4670 = vmatprep.subr.mxu0 0.0
      %4671 = vmatpush1.xpose.msra.mxu0 0.0
      %4672 = vmatprep.mubr.f32.mxu0 0.0
      %4673 = vmatmul.mubr.f32.gmra.mrb[0].mxu0 %v4604
      %v4674 = vpop.f32.mrb[0].mxu0
      %v4675 = vadd.f32 0.0, %v4674
      %v4676 = vpop.f32.mrb[0].mxu0
      %4677 = vdwg.mxu0
      %4679 = vrot.lane.b32.xlu0 %v4352, 96
      %v4680 = vpop.permute.xlu0 %4679
      %v4681 = vsel %vm564, %v4352, 0
      %v4683 = vsel %vm564, %v4680, 0
      %4685 = vmatprep.subr.mxu0 0.0
      %4686 = vmatpush1.xpose.msra.mxu0 %v4683
      %4687 = vmatprep.subr.mxu0 0.0
      %4688 = vmatpush1.xpose.msra.mxu0 0.0
      %4689 = vmatprep.subr.mxu0 0.0
      %4690 = vmatpush1.xpose.msra.mxu0 0.0
      %4691 = vmatprep.subr.mxu0 0.0
      %4692 = vmatpush1.xpose.msra.mxu0 0.0
      %4693 = vmatprep.subr.mxu0 0.0
      %4694 = vmatpush1.xpose.msra.mxu0 0.0
      %4695 = vmatprep.subr.mxu0 0.0
      %4696 = vmatpush1.xpose.msra.mxu0 0.0
      %4697 = vmatprep.subr.mxu0 0.0
      %4698 = vmatpush1.xpose.msra.mxu0 0.0
      %4699 = vmatprep.subr.mxu0 0.0
      %4700 = vmatpush1.xpose.msra.mxu0 0.0
      %4701 = vmatprep.subr.mxu0 0.0
      %4702 = vmatpush1.xpose.msra.mxu0 0.0
      %4703 = vmatprep.subr.mxu0 0.0
      %4704 = vmatpush1.xpose.msra.mxu0 0.0
      %4705 = vmatprep.subr.mxu0 0.0
      %4706 = vmatpush1.xpose.msra.mxu0 0.0
      %4707 = vmatprep.subr.mxu0 0.0
      %4708 = vmatpush1.xpose.msra.mxu0 0.0
      %4709 = vmatprep.subr.mxu0 0.0
      %4710 = vmatpush1.xpose.msra.mxu0 0.0
      %4711 = vmatprep.subr.mxu0 0.0
      %4712 = vmatpush1.xpose.msra.mxu0 0.0
      %4713 = vmatprep.subr.mxu0 0.0
      %4714 = vmatpush1.xpose.msra.mxu0 0.0
      %4715 = vmatprep.subr.mxu0 0.0
      %4716 = vmatpush1.xpose.msra.mxu0 0.0
      %4717 = vmatprep.subr.mxu0 0.0
      %4718 = vmatpush1.xpose.msra.mxu0 0.0
      %4719 = vmatprep.subr.mxu0 0.0
      %4720 = vmatpush1.xpose.msra.mxu0 0.0
      %4721 = vmatprep.subr.mxu0 0.0
      %4722 = vmatpush1.xpose.msra.mxu0 0.0
      %4723 = vmatprep.subr.mxu0 0.0
      %4724 = vmatpush1.xpose.msra.mxu0 0.0
      %4725 = vmatprep.subr.mxu0 0.0
      %4726 = vmatpush1.xpose.msra.mxu0 0.0
      %4727 = vmatprep.subr.mxu0 0.0
      %4728 = vmatpush1.xpose.msra.mxu0 0.0
      %4729 = vmatprep.subr.mxu0 0.0
      %4730 = vmatpush1.xpose.msra.mxu0 0.0
      %4731 = vmatprep.subr.mxu0 0.0
      %4732 = vmatpush1.xpose.msra.mxu0 0.0
      %4733 = vmatprep.subr.mxu0 0.0
      %4734 = vmatpush1.xpose.msra.mxu0 0.0
      %4735 = vmatprep.subr.mxu0 0.0
      %4736 = vmatpush1.xpose.msra.mxu0 0.0
      %4737 = vmatprep.subr.mxu0 0.0
      %4738 = vmatpush1.xpose.msra.mxu0 0.0
      %4739 = vmatprep.subr.mxu0 0.0
      %4740 = vmatpush1.xpose.msra.mxu0 0.0
      %4741 = vmatprep.subr.mxu0 0.0
      %4742 = vmatpush1.xpose.msra.mxu0 0.0
      %4743 = vmatprep.subr.mxu0 0.0
      %4744 = vmatpush1.xpose.msra.mxu0 0.0
      %4745 = vmatprep.subr.mxu0 0.0
      %4746 = vmatpush1.xpose.msra.mxu0 0.0
      %4747 = vmatprep.subr.mxu0 0.0
      %4748 = vmatpush1.xpose.msra.mxu0 0.0
      %4749 = vmatprep.mubr.f32.mxu0 0.0
      %4750 = vmatmul.mubr.f32.gmra.mrb[0].mxu0 %v4681
      %v4751 = vpop.f32.mrb[0].mxu0
      %v4752 = vadd.f32 0.0, %v4751
      %v4753 = vpop.f32.mrb[0].mxu0
      %4754 = vdwg.mxu0
      %4756 = vrot.lane.b32.xlu0 %v4357, 96
      %v4757 = vpop.permute.xlu0 %4756
      %v4758 = vsel %vm564, %v4357, 0
      %v4760 = vsel %vm564, %v4757, 0
      %4762 = vmatprep.subr.mxu0 0.0
      %4763 = vmatpush1.xpose.msra.mxu0 %v4760
      %4764 = vmatprep.subr.mxu0 0.0
      %4765 = vmatpush1.xpose.msra.mxu0 0.0
      %4766 = vmatprep.subr.mxu0 0.0
      %4767 = vmatpush1.xpose.msra.mxu0 0.0
      %4768 = vmatprep.subr.mxu0 0.0
      %4769 = vmatpush1.xpose.msra.mxu0 0.0
      %4770 = vmatprep.subr.mxu0 0.0
      %4771 = vmatpush1.xpose.msra.mxu0 0.0
      %4772 = vmatprep.subr.mxu0 0.0
      %4773 = vmatpush1.xpose.msra.mxu0 0.0
      %4774 = vmatprep.subr.mxu0 0.0
      %4775 = vmatpush1.xpose.msra.mxu0 0.0
      %4776 = vmatprep.subr.mxu0 0.0
      %4777 = vmatpush1.xpose.msra.mxu0 0.0
      %4778 = vmatprep.subr.mxu0 0.0
      %4779 = vmatpush1.xpose.msra.mxu0 0.0
      %4780 = vmatprep.subr.mxu0 0.0
      %4781 = vmatpush1.xpose.msra.mxu0 0.0
      %4782 = vmatprep.subr.mxu0 0.0
      %4783 = vmatpush1.xpose.msra.mxu0 0.0
      %4784 = vmatprep.subr.mxu0 0.0
      %4785 = vmatpush1.xpose.msra.mxu0 0.0
      %4786 = vmatprep.subr.mxu0 0.0
      %4787 = vmatpush1.xpose.msra.mxu0 0.0
      %4788 = vmatprep.subr.mxu0 0.0
      %4789 = vmatpush1.xpose.msra.mxu0 0.0
      %4790 = vmatprep.subr.mxu0 0.0
      %4791 = vmatpush1.xpose.msra.mxu0 0.0
      %4792 = vmatprep.subr.mxu0 0.0
      %4793 = vmatpush1.xpose.msra.mxu0 0.0
      %4794 = vmatprep.subr.mxu0 0.0
      %4795 = vmatpush1.xpose.msra.mxu0 0.0
      %4796 = vmatprep.subr.mxu0 0.0
      %4797 = vmatpush1.xpose.msra.mxu0 0.0
      %4798 = vmatprep.subr.mxu0 0.0
      %4799 = vmatpush1.xpose.msra.mxu0 0.0
      %4800 = vmatprep.subr.mxu0 0.0
      %4801 = vmatpush1.xpose.msra.mxu0 0.0
      %4802 = vmatprep.subr.mxu0 0.0
      %4803 = vmatpush1.xpose.msra.mxu0 0.0
      %4804 = vmatprep.subr.mxu0 0.0
      %4805 = vmatpush1.xpose.msra.mxu0 0.0
      %4806 = vmatprep.subr.mxu0 0.0
      %4807 = vmatpush1.xpose.msra.mxu0 0.0
      %4808 = vmatprep.subr.mxu0 0.0
      %4809 = vmatpush1.xpose.msra.mxu0 0.0
      %4810 = vmatprep.subr.mxu0 0.0
      %4811 = vmatpush1.xpose.msra.mxu0 0.0
      %4812 = vmatprep.subr.mxu0 0.0
      %4813 = vmatpush1.xpose.msra.mxu0 0.0
      %4814 = vmatprep.subr.mxu0 0.0
      %4815 = vmatpush1.xpose.msra.mxu0 0.0
      %4816 = vmatprep.subr.mxu0 0.0
      %4817 = vmatpush1.xpose.msra.mxu0 0.0
      %4818 = vmatprep.subr.mxu0 0.0
      %4819 = vmatpush1.xpose.msra.mxu0 0.0
      %4820 = vmatprep.subr.mxu0 0.0
      %4821 = vmatpush1.xpose.msra.mxu0 0.0
      %4822 = vmatprep.subr.mxu0 0.0
      %4823 = vmatpush1.xpose.msra.mxu0 0.0
      %4824 = vmatprep.subr.mxu0 0.0
      %4825 = vmatpush1.xpose.msra.mxu0 0.0
      %4826 = vmatprep.mubr.f32.mxu0 0.0
      %4827 = vmatmul.mubr.f32.gmra.mrb[0].mxu0 %v4758
      %v4828 = vpop.f32.mrb[0].mxu0
      %v4829 = vadd.f32 0.0, %v4828
      %v4830 = vpop.f32.mrb[0].mxu0
      %4831 = vdwg.mxu0
      %4833 = vrot.lane.b32.xlu0 %v4362, 96
      %v4834 = vpop.permute.xlu0 %4833
      %v4835 = vsel %vm564, %v4362, 0
      %v4837 = vsel %vm564, %v4834, 0
      %4839 = vmatprep.subr.mxu0 0.0
      %4840 = vmatpush1.xpose.msra.mxu0 %v4837
      %4841 = vmatprep.subr.mxu0 0.0
      %4842 = vmatpush1.xpose.msra.mxu0 0.0
      %4843 = vmatprep.subr.mxu0 0.0
      %4844 = vmatpush1.xpose.msra.mxu0 0.0
      %4845 = vmatprep.subr.mxu0 0.0
      %4846 = vmatpush1.xpose.msra.mxu0 0.0
      %4847 = vmatprep.subr.mxu0 0.0
      %4848 = vmatpush1.xpose.msra.mxu0 0.0
      %4849 = vmatprep.subr.mxu0 0.0
      %4850 = vmatpush1.xpose.msra.mxu0 0.0
      %4851 = vmatprep.subr.mxu0 0.0
      %4852 = vmatpush1.xpose.msra.mxu0 0.0
      %4853 = vmatprep.subr.mxu0 0.0
      %4854 = vmatpush1.xpose.msra.mxu0 0.0
      %4855 = vmatprep.subr.mxu0 0.0
      %4856 = vmatpush1.xpose.msra.mxu0 0.0
      %4857 = vmatprep.subr.mxu0 0.0
      %4858 = vmatpush1.xpose.msra.mxu0 0.0
      %4859 = vmatprep.subr.mxu0 0.0
      %4860 = vmatpush1.xpose.msra.mxu0 0.0
      %4861 = vmatprep.subr.mxu0 0.0
      %4862 = vmatpush1.xpose.msra.mxu0 0.0
      %4863 = vmatprep.subr.mxu0 0.0
      %4864 = vmatpush1.xpose.msra.mxu0 0.0
      %4865 = vmatprep.subr.mxu0 0.0
      %4866 = vmatpush1.xpose.msra.mxu0 0.0
      %4867 = vmatprep.subr.mxu0 0.0
      %4868 = vmatpush1.xpose.msra.mxu0 0.0
      %4869 = vmatprep.subr.mxu0 0.0
      %4870 = vmatpush1.xpose.msra.mxu0 0.0
      %4871 = vmatprep.subr.mxu0 0.0
      %4872 = vmatpush1.xpose.msra.mxu0 0.0
      %4873 = vmatprep.subr.mxu0 0.0
      %4874 = vmatpush1.xpose.msra.mxu0 0.0
      %4875 = vmatprep.subr.mxu0 0.0
      %4876 = vmatpush1.xpose.msra.mxu0 0.0
      %4877 = vmatprep.subr.mxu0 0.0
      %4878 = vmatpush1.xpose.msra.mxu0 0.0
      %4879 = vmatprep.subr.mxu0 0.0
      %4880 = vmatpush1.xpose.msra.mxu0 0.0
      %4881 = vmatprep.subr.mxu0 0.0
      %4882 = vmatpush1.xpose.msra.mxu0 0.0
      %4883 = vmatprep.subr.mxu0 0.0
      %4884 = vmatpush1.xpose.msra.mxu0 0.0
      %4885 = vmatprep.subr.mxu0 0.0
      %4886 = vmatpush1.xpose.msra.mxu0 0.0
      %4887 = vmatprep.subr.mxu0 0.0
      %4888 = vmatpush1.xpose.msra.mxu0 0.0
      %4889 = vmatprep.subr.mxu0 0.0
      %4890 = vmatpush1.xpose.msra.mxu0 0.0
      %4891 = vmatprep.subr.mxu0 0.0
      %4892 = vmatpush1.xpose.msra.mxu0 0.0
      %4893 = vmatprep.subr.mxu0 0.0
      %4894 = vmatpush1.xpose.msra.mxu0 0.0
      %4895 = vmatprep.subr.mxu0 0.0
      %4896 = vmatpush1.xpose.msra.mxu0 0.0
      %4897 = vmatprep.subr.mxu0 0.0
      %4898 = vmatpush1.xpose.msra.mxu0 0.0
      %4899 = vmatprep.subr.mxu0 0.0
      %4900 = vmatpush1.xpose.msra.mxu0 0.0
      %4901 = vmatprep.subr.mxu0 0.0
      %4902 = vmatpush1.xpose.msra.mxu0 0.0
      %4903 = vmatprep.mubr.f32.mxu0 0.0
      %4904 = vmatmul.mubr.f32.gmra.mrb[0].mxu0 %v4835
      %v4905 = vpop.f32.mrb[0].mxu0
      %v4906 = vadd.f32 0.0, %v4905
      %v4907 = vpop.f32.mrb[0].mxu0
      %4908 = vdwg.mxu0
      %4910 = vrot.lane.b32.xlu0 %v4367, 96
      %v4911 = vpop.permute.xlu0 %4910
      %v4912 = vsel %vm564, %v4367, 0
      %v4914 = vsel %vm564, %v4911, 0
      %4916 = vmatprep.subr.mxu0 0.0
      %4917 = vmatpush1.xpose.msra.mxu0 %v4914
      %4918 = vmatprep.subr.mxu0 0.0
      %4919 = vmatpush1.xpose.msra.mxu0 0.0
      %4920 = vmatprep.subr.mxu0 0.0
      %4921 = vmatpush1.xpose.msra.mxu0 0.0
      %4922 = vmatprep.subr.mxu0 0.0
      %4923 = vmatpush1.xpose.msra.mxu0 0.0
      %4924 = vmatprep.subr.mxu0 0.0
      %4925 = vmatpush1.xpose.msra.mxu0 0.0
      %4926 = vmatprep.subr.mxu0 0.0
      %4927 = vmatpush1.xpose.msra.mxu0 0.0
      %4928 = vmatprep.subr.mxu0 0.0
      %4929 = vmatpush1.xpose.msra.mxu0 0.0
      %4930 = vmatprep.subr.mxu0 0.0
      %4931 = vmatpush1.xpose.msra.mxu0 0.0
      %4932 = vmatprep.subr.mxu0 0.0
      %4933 = vmatpush1.xpose.msra.mxu0 0.0
      %4934 = vmatprep.subr.mxu0 0.0
      %4935 = vmatpush1.xpose.msra.mxu0 0.0
      %4936 = vmatprep.subr.mxu0 0.0
      %4937 = vmatpush1.xpose.msra.mxu0 0.0
      %4938 = vmatprep.subr.mxu0 0.0
      %4939 = vmatpush1.xpose.msra.mxu0 0.0
      %4940 = vmatprep.subr.mxu0 0.0
      %4941 = vmatpush1.xpose.msra.mxu0 0.0
      %4942 = vmatprep.subr.mxu0 0.0
      %4943 = vmatpush1.xpose.msra.mxu0 0.0
      %4944 = vmatprep.subr.mxu0 0.0
      %4945 = vmatpush1.xpose.msra.mxu0 0.0
      %4946 = vmatprep.subr.mxu0 0.0
      %4947 = vmatpush1.xpose.msra.mxu0 0.0
      %4948 = vmatprep.subr.mxu0 0.0
      %4949 = vmatpush1.xpose.msra.mxu0 0.0
      %4950 = vmatprep.subr.mxu0 0.0
      %4951 = vmatpush1.xpose.msra.mxu0 0.0
      %4952 = vmatprep.subr.mxu0 0.0
      %4953 = vmatpush1.xpose.msra.mxu0 0.0
      %4954 = vmatprep.subr.mxu0 0.0
      %4955 = vmatpush1.xpose.msra.mxu0 0.0
      %4956 = vmatprep.subr.mxu0 0.0
      %4957 = vmatpush1.xpose.msra.mxu0 0.0
      %4958 = vmatprep.subr.mxu0 0.0
      %4959 = vmatpush1.xpose.msra.mxu0 0.0
      %4960 = vmatprep.subr.mxu0 0.0
      %4961 = vmatpush1.xpose.msra.mxu0 0.0
      %4962 = vmatprep.subr.mxu0 0.0
      %4963 = vmatpush1.xpose.msra.mxu0 0.0
      %4964 = vmatprep.subr.mxu0 0.0
      %4965 = vmatpush1.xpose.msra.mxu0 0.0
      %4966 = vmatprep.subr.mxu0 0.0
      %4967 = vmatpush1.xpose.msra.mxu0 0.0
      %4968 = vmatprep.subr.mxu0 0.0
      %4969 = vmatpush1.xpose.msra.mxu0 0.0
      %4970 = vmatprep.subr.mxu0 0.0
      %4971 = vmatpush1.xpose.msra.mxu0 0.0
      %4972 = vmatprep.subr.mxu0 0.0
      %4973 = vmatpush1.xpose.msra.mxu0 0.0
      %4974 = vmatprep.subr.mxu0 0.0
      %4975 = vmatpush1.xpose.msra.mxu0 0.0
      %4976 = vmatprep.subr.mxu0 0.0
      %4977 = vmatpush1.xpose.msra.mxu0 0.0
      %4978 = vmatprep.subr.mxu0 0.0
      %4979 = vmatpush1.xpose.msra.mxu0 0.0
      %4980 = vmatprep.mubr.f32.mxu0 0.0
      %4981 = vmatmul.mubr.f32.gmra.mrb[0].mxu0 %v4912
      %v4982 = vpop.f32.mrb[0].mxu0
      %v4983 = vadd.f32 0.0, %v4982
      %v4984 = vpop.f32.mrb[0].mxu0
      %4985 = vdwg.mxu0
      %v4986 = vmul.f32 %v4444, 0.17677669
      %v4987 = vmul.f32 %v4521, 0.17677669
      %v4988 = vmul.f32 %v4598, 0.17677669
      %v4989 = vmul.f32 %v4675, 0.17677669
      %v4990 = vmul.f32 %v4752, 0.17677669
      %v4991 = vmul.f32 %v4829, 0.17677669
      %v4992 = vmul.f32 %v4906, 0.17677669
      %v4993 = vmul.f32 %v4983, 0.17677669
      %v4994 = vlaneseq
      %v4995 = vshrl.u32 %v4994, 7
      %v4996 = vsub.s32 0, %v4995
      %v4997 = vrot.slane %v391, %v4996
      %v4998 = vlaneseq
      %v4999 = vshrl.u32 %v4998, 7
      %v5000 = vsub.s32 0, %v4999
      %v5001 = vrot.slane %v392, %v5000
      %v5002 = vlaneseq
      %v5003 = vshrl.u32 %v5002, 7
      %v5004 = vsub.s32 0, %v5003
      %v5005 = vrot.slane %v393, %v5004
      %v5006 = vlaneseq
      %v5007 = vshrl.u32 %v5006, 7
      %v5008 = vsub.s32 0, %v5007
      %v5009 = vrot.slane %v394, %v5008
      %v5010 = vlaneseq
      %v5011 = vshrl.u32 %v5010, 7
      %v5012 = vsub.s32 0, %v5011
      %v5013 = vrot.slane %v395, %v5012
      %v5014 = vlaneseq
      %v5015 = vshrl.u32 %v5014, 7
      %v5016 = vsub.s32 0, %v5015
      %v5017 = vrot.slane %v396, %v5016
      %v5018 = vlaneseq
      %v5019 = vshrl.u32 %v5018, 7
      %v5020 = vsub.s32 0, %v5019
      %v5021 = vrot.slane %v397, %v5020
      %v5022 = vlaneseq
      %v5023 = vshrl.u32 %v5022, 7
      %v5024 = vsub.s32 0, %v5023
      %v5025 = vrot.slane %v398, %v5024
      %v5026 = vadd.f32 %v4986, %v4997
      %v5027 = vadd.f32 %v4987, %v5001
      %v5028 = vadd.f32 %v4988, %v5005
      %v5029 = vadd.f32 %v4989, %v5009
      %v5030 = vadd.f32 %v4990, %v5013
      %v5031 = vadd.f32 %v4991, %v5017
      %v5032 = vadd.f32 %v4992, %v5021
      %v5033 = vadd.f32 %v4993, %v5025
      %v5034 = vsel %vm702, %v5026, -inf
      %5035 = vmax.xlane.f32.xlu0 %v5034
      %v5036 = vpop.xlane.xlu0 %5035
      %v5037 = vsel %vm702, %v5027, -inf
      %5038 = vmax.xlane.f32.xlu0 %v5037
      %v5039 = vpop.xlane.xlu0 %5038
      %v5040 = vsel %vm702, %v5028, -inf
      %5041 = vmax.xlane.f32.xlu0 %v5040
      %v5042 = vpop.xlane.xlu0 %5041
      %v5043 = vsel %vm702, %v5029, -inf
      %5044 = vmax.xlane.f32.xlu0 %v5043
      %v5045 = vpop.xlane.xlu0 %5044
      %v5046 = vsel %vm702, %v5030, -inf
      %5047 = vmax.xlane.f32.xlu0 %v5046
      %v5048 = vpop.xlane.xlu0 %5047
      %v5049 = vsel %vm702, %v5031, -inf
      %5050 = vmax.xlane.f32.xlu0 %v5049
      %v5051 = vpop.xlane.xlu0 %5050
      %v5052 = vsel %vm702, %v5032, -inf
      %5053 = vmax.xlane.f32.xlu0 %v5052
      %v5054 = vpop.xlane.xlu0 %5053
      %v5055 = vsel %vm702, %v5033, -inf
      %5056 = vmax.xlane.f32.xlu0 %v5055
      %v5057 = vpop.xlane.xlu0 %5056
      %v5058 = vsub.f32 %v5026, %v5036
      %v5059 = vsub.f32 %v5027, %v5039
      %v5060 = vsub.f32 %v5028, %v5042
      %v5061 = vsub.f32 %v5029, %v5045
      %v5062 = vsub.f32 %v5030, %v5048
      %v5063 = vsub.f32 %v5031, %v5051
      %v5064 = vsub.f32 %v5032, %v5054
      %v5065 = vsub.f32 %v5033, %v5057
      %v5066 = vmul.f32 %v5058, 1.442695
      %v5067 = vpow.pop %v5066
      %v5068 = vmul.f32 %v5059, 1.442695
      %v5069 = vpow.pop %v5068
      %v5070 = vmul.f32 %v5060, 1.442695
      %v5071 = vpow.pop %v5070
      %v5072 = vmul.f32 %v5061, 1.442695
      %v5073 = vpow.pop %v5072
      %v5074 = vmul.f32 %v5062, 1.442695
      %v5075 = vpow.pop %v5074
      %v5076 = vmul.f32 %v5063, 1.442695
      %v5077 = vpow.pop %v5076
      %v5078 = vmul.f32 %v5064, 1.442695
      %v5079 = vpow.pop %v5078
      %v5080 = vmul.f32 %v5065, 1.442695
      %v5081 = vpow.pop %v5080
      %v5082 = vsel %vm702, %v5067, 0.0
      %5083 = vadd.xlane.f32.xlu0 %v5082
      %v5084 = vpop.xlane.xlu0 %5083
      %v5085 = vsel %vm702, %v5069, 0.0
      %5086 = vadd.xlane.f32.xlu0 %v5085
      %v5087 = vpop.xlane.xlu0 %5086
      %v5088 = vsel %vm702, %v5071, 0.0
      %5089 = vadd.xlane.f32.xlu0 %v5088
      %v5090 = vpop.xlane.xlu0 %5089
      %v5091 = vsel %vm702, %v5073, 0.0
      %5092 = vadd.xlane.f32.xlu0 %v5091
      %v5093 = vpop.xlane.xlu0 %5092
      %v5094 = vsel %vm702, %v5075, 0.0
      %5095 = vadd.xlane.f32.xlu0 %v5094
      %v5096 = vpop.xlane.xlu0 %5095
      %v5097 = vsel %vm702, %v5077, 0.0
      %5098 = vadd.xlane.f32.xlu0 %v5097
      %v5099 = vpop.xlane.xlu0 %5098
      %v5100 = vsel %vm702, %v5079, 0.0
      %5101 = vadd.xlane.f32.xlu0 %v5100
      %v5102 = vpop.xlane.xlu0 %5101
      %v5103 = vsel %vm702, %v5081, 0.0
      %5104 = vadd.xlane.f32.xlu0 %v5103
      %v5105 = vpop.xlane.xlu0 %5104
      %v5106 = vrcp.pop %v5084
      %v5107 = vrcp.pop %v5087
      %v5108 = vrcp.pop %v5090
      %v5109 = vrcp.pop %v5093
      %v5110 = vrcp.pop %v5096
      %v5111 = vrcp.pop %v5099
      %v5112 = vrcp.pop %v5102
      %v5113 = vrcp.pop %v5105
      %v5114 = vmul.f32 %v5067, %v5106
      %v5115 = vmul.f32 %v5069, %v5107
      %v5116 = vmul.f32 %v5071, %v5108
      %v5117 = vmul.f32 %v5073, %v5109
      %v5118 = vmul.f32 %v5075, %v5110
      %v5119 = vmul.f32 %v5077, %v5111
      %v5120 = vmul.f32 %v5079, %v5112
      %v5121 = vmul.f32 %v5081, %v5113
      %5122 = vrot.lane.b32.xlu0 %v4332, 64
      %v5123 = vpop.permute.xlu0 %5122
      %v5126 = vsel %vm702, %v5114, 0
      %5128 = vmatprep.subr.mxu0 0.0
      %5129 = vmatpush1.msra.mxu0 %v5123
      %5130 = vmatprep.subr.mxu0 0.0
      %5131 = vmatpush1.msra.mxu0 0.0
      %5132 = vmatprep.subr.mxu0 0.0
      %5133 = vmatpush1.msra.mxu0 0.0
      %5134 = vmatprep.subr.mxu0 0.0
      %5135 = vmatpush1.msra.mxu0 0.0
      %5136 = vmatprep.subr.mxu0 0.0
      %5137 = vmatpush1.msra.mxu0 0.0
      %5138 = vmatprep.subr.mxu0 0.0
      %5139 = vmatpush1.msra.mxu0 0.0
      %5140 = vmatprep.subr.mxu0 0.0
      %5141 = vmatpush1.msra.mxu0 0.0
      %5142 = vmatprep.subr.mxu0 0.0
      %5143 = vmatpush1.msra.mxu0 0.0
      %5144 = vmatprep.subr.mxu0 0.0
      %5145 = vmatpush1.msra.mxu0 0.0
      %5146 = vmatprep.subr.mxu0 0.0
      %5147 = vmatpush1.msra.mxu0 0.0
      %5148 = vmatprep.subr.mxu0 0.0
      %5149 = vmatpush1.msra.mxu0 0.0
      %5150 = vmatprep.subr.mxu0 0.0
      %5151 = vmatpush1.msra.mxu0 0.0
      %5152 = vmatprep.subr.mxu0 0.0
      %5153 = vmatpush1.msra.mxu0 0.0
      %5154 = vmatprep.subr.mxu0 0.0
      %5155 = vmatpush1.msra.mxu0 0.0
      %5156 = vmatprep.subr.mxu0 0.0
      %5157 = vmatpush1.msra.mxu0 0.0
      %5158 = vmatprep.subr.mxu0 0.0
      %5159 = vmatpush1.msra.mxu0 0.0
      %5160 = vmatprep.subr.mxu0 0.0
      %5161 = vmatpush1.msra.mxu0 0.0
      %5162 = vmatprep.subr.mxu0 0.0
      %5163 = vmatpush1.msra.mxu0 0.0
      %5164 = vmatprep.subr.mxu0 0.0
      %5165 = vmatpush1.msra.mxu0 0.0
      %5166 = vmatprep.subr.mxu0 0.0
      %5167 = vmatpush1.msra.mxu0 0.0
      %5168 = vmatprep.subr.mxu0 0.0
      %5169 = vmatpush1.msra.mxu0 0.0
      %5170 = vmatprep.subr.mxu0 0.0
      %5171 = vmatpush1.msra.mxu0 0.0
      %5172 = vmatprep.subr.mxu0 0.0
      %5173 = vmatpush1.msra.mxu0 0.0
      %5174 = vmatprep.subr.mxu0 0.0
      %5175 = vmatpush1.msra.mxu0 0.0
      %5176 = vmatprep.subr.mxu0 0.0
      %5177 = vmatpush1.msra.mxu0 0.0
      %5178 = vmatprep.subr.mxu0 0.0
      %5179 = vmatpush1.msra.mxu0 0.0
      %5180 = vmatprep.subr.mxu0 0.0
      %5181 = vmatpush1.msra.mxu0 0.0
      %5182 = vmatprep.subr.mxu0 0.0
      %5183 = vmatpush1.msra.mxu0 0.0
      %5184 = vmatprep.subr.mxu0 0.0
      %5185 = vmatpush1.msra.mxu0 0.0
      %5186 = vmatprep.subr.mxu0 0.0
      %5187 = vmatpush1.msra.mxu0 0.0
      %5188 = vmatprep.subr.mxu0 0.0
      %5189 = vmatpush1.msra.mxu0 0.0
      %5190 = vmatprep.subr.mxu0 0.0
      %5191 = vmatpush1.msra.mxu0 0.0
      %5192 = vmatprep.mubr.f32.mxu0 0.0
      %5193 = vmatmul.mubr.f32.gmra.mrb[0].mxu0 %v5126
      %v5194 = vpop.f32.mrb[0].mxu0
      %v5195 = vadd.f32 0.0, %v5194
      %v5196 = vpop.f32.mrb[0].mxu0
      %5197 = vdwg.mxu0
      %5198 = vrot.lane.b32.xlu0 %v4337, 64
      %v5199 = vpop.permute.xlu0 %5198
      %v5202 = vsel %vm702, %v5115, 0
      %5204 = vmatprep.subr.mxu0 0.0
      %5205 = vmatpush1.msra.mxu0 %v5199
      %5206 = vmatprep.subr.mxu0 0.0
      %5207 = vmatpush1.msra.mxu0 0.0
      %5208 = vmatprep.subr.mxu0 0.0
      %5209 = vmatpush1.msra.mxu0 0.0
      %5210 = vmatprep.subr.mxu0 0.0
      %5211 = vmatpush1.msra.mxu0 0.0
      %5212 = vmatprep.subr.mxu0 0.0
      %5213 = vmatpush1.msra.mxu0 0.0
      %5214 = vmatprep.subr.mxu0 0.0
      %5215 = vmatpush1.msra.mxu0 0.0
      %5216 = vmatprep.subr.mxu0 0.0
      %5217 = vmatpush1.msra.mxu0 0.0
      %5218 = vmatprep.subr.mxu0 0.0
      %5219 = vmatpush1.msra.mxu0 0.0
      %5220 = vmatprep.subr.mxu0 0.0
      %5221 = vmatpush1.msra.mxu0 0.0
      %5222 = vmatprep.subr.mxu0 0.0
      %5223 = vmatpush1.msra.mxu0 0.0
      %5224 = vmatprep.subr.mxu0 0.0
      %5225 = vmatpush1.msra.mxu0 0.0
      %5226 = vmatprep.subr.mxu0 0.0
      %5227 = vmatpush1.msra.mxu0 0.0
      %5228 = vmatprep.subr.mxu0 0.0
      %5229 = vmatpush1.msra.mxu0 0.0
      %5230 = vmatprep.subr.mxu0 0.0
      %5231 = vmatpush1.msra.mxu0 0.0
      %5232 = vmatprep.subr.mxu0 0.0
      %5233 = vmatpush1.msra.mxu0 0.0
      %5234 = vmatprep.subr.mxu0 0.0
      %5235 = vmatpush1.msra.mxu0 0.0
      %5236 = vmatprep.subr.mxu0 0.0
      %5237 = vmatpush1.msra.mxu0 0.0
      %5238 = vmatprep.subr.mxu0 0.0
      %5239 = vmatpush1.msra.mxu0 0.0
      %5240 = vmatprep.subr.mxu0 0.0
      %5241 = vmatpush1.msra.mxu0 0.0
      %5242 = vmatprep.subr.mxu0 0.0
      %5243 = vmatpush1.msra.mxu0 0.0
      %5244 = vmatprep.subr.mxu0 0.0
      %5245 = vmatpush1.msra.mxu0 0.0
      %5246 = vmatprep.subr.mxu0 0.0
      %5247 = vmatpush1.msra.mxu0 0.0
      %5248 = vmatprep.subr.mxu0 0.0
      %5249 = vmatpush1.msra.mxu0 0.0
      %5250 = vmatprep.subr.mxu0 0.0
      %5251 = vmatpush1.msra.mxu0 0.0
      %5252 = vmatprep.subr.mxu0 0.0
      %5253 = vmatpush1.msra.mxu0 0.0
      %5254 = vmatprep.subr.mxu0 0.0
      %5255 = vmatpush1.msra.mxu0 0.0
      %5256 = vmatprep.subr.mxu0 0.0
      %5257 = vmatpush1.msra.mxu0 0.0
      %5258 = vmatprep.subr.mxu0 0.0
      %5259 = vmatpush1.msra.mxu0 0.0
      %5260 = vmatprep.subr.mxu0 0.0
      %5261 = vmatpush1.msra.mxu0 0.0
      %5262 = vmatprep.subr.mxu0 0.0
      %5263 = vmatpush1.msra.mxu0 0.0
      %5264 = vmatprep.subr.mxu0 0.0
      %5265 = vmatpush1.msra.mxu0 0.0
      %5266 = vmatprep.subr.mxu0 0.0
      %5267 = vmatpush1.msra.mxu0 0.0
      %5268 = vmatprep.mubr.f32.mxu0 0.0
      %5269 = vmatmul.mubr.f32.gmra.mrb[0].mxu0 %v5202
      %v5270 = vpop.f32.mrb[0].mxu0
      %v5271 = vadd.f32 0.0, %v5270
      %v5272 = vpop.f32.mrb[0].mxu0
      %5273 = vdwg.mxu0
      %5274 = vrot.lane.b32.xlu0 %v4342, 64
      %v5275 = vpop.permute.xlu0 %5274
      %v5278 = vsel %vm702, %v5116, 0
      %5280 = vmatprep.subr.mxu0 0.0
      %5281 = vmatpush1.msra.mxu0 %v5275
      %5282 = vmatprep.subr.mxu0 0.0
      %5283 = vmatpush1.msra.mxu0 0.0
      %5284 = vmatprep.subr.mxu0 0.0
      %5285 = vmatpush1.msra.mxu0 0.0
      %5286 = vmatprep.subr.mxu0 0.0
      %5287 = vmatpush1.msra.mxu0 0.0
      %5288 = vmatprep.subr.mxu0 0.0
      %5289 = vmatpush1.msra.mxu0 0.0
      %5290 = vmatprep.subr.mxu0 0.0
      %5291 = vmatpush1.msra.mxu0 0.0
      %5292 = vmatprep.subr.mxu0 0.0
      %5293 = vmatpush1.msra.mxu0 0.0
      %5294 = vmatprep.subr.mxu0 0.0
      %5295 = vmatpush1.msra.mxu0 0.0
      %5296 = vmatprep.subr.mxu0 0.0
      %5297 = vmatpush1.msra.mxu0 0.0
      %5298 = vmatprep.subr.mxu0 0.0
      %5299 = vmatpush1.msra.mxu0 0.0
      %5300 = vmatprep.subr.mxu0 0.0
      %5301 = vmatpush1.msra.mxu0 0.0
      %5302 = vmatprep.subr.mxu0 0.0
      %5303 = vmatpush1.msra.mxu0 0.0
      %5304 = vmatprep.subr.mxu0 0.0
      %5305 = vmatpush1.msra.mxu0 0.0
      %5306 = vmatprep.subr.mxu0 0.0
      %5307 = vmatpush1.msra.mxu0 0.0
      %5308 = vmatprep.subr.mxu0 0.0
      %5309 = vmatpush1.msra.mxu0 0.0
      %5310 = vmatprep.subr.mxu0 0.0
      %5311 = vmatpush1.msra.mxu0 0.0
      %5312 = vmatprep.subr.mxu0 0.0
      %5313 = vmatpush1.msra.mxu0 0.0
      %5314 = vmatprep.subr.mxu0 0.0
      %5315 = vmatpush1.msra.mxu0 0.0
      %5316 = vmatprep.subr.mxu0 0.0
      %5317 = vmatpush1.msra.mxu0 0.0
      %5318 = vmatprep.subr.mxu0 0.0
      %5319 = vmatpush1.msra.mxu0 0.0
      %5320 = vmatprep.subr.mxu0 0.0
      %5321 = vmatpush1.msra.mxu0 0.0
      %5322 = vmatprep.subr.mxu0 0.0
      %5323 = vmatpush1.msra.mxu0 0.0
      %5324 = vmatprep.subr.mxu0 0.0
      %5325 = vmatpush1.msra.mxu0 0.0
      %5326 = vmatprep.subr.mxu0 0.0
      %5327 = vmatpush1.msra.mxu0 0.0
      %5328 = vmatprep.subr.mxu0 0.0
      %5329 = vmatpush1.msra.mxu0 0.0
      %5330 = vmatprep.subr.mxu0 0.0
      %5331 = vmatpush1.msra.mxu0 0.0
      %5332 = vmatprep.subr.mxu0 0.0
      %5333 = vmatpush1.msra.mxu0 0.0
      %5334 = vmatprep.subr.mxu0 0.0
      %5335 = vmatpush1.msra.mxu0 0.0
      %5336 = vmatprep.subr.mxu0 0.0
      %5337 = vmatpush1.msra.mxu0 0.0
      %5338 = vmatprep.subr.mxu0 0.0
      %5339 = vmatpush1.msra.mxu0 0.0
      %5340 = vmatprep.subr.mxu0 0.0
      %5341 = vmatpush1.msra.mxu0 0.0
      %5342 = vmatprep.subr.mxu0 0.0
      %5343 = vmatpush1.msra.mxu0 0.0
      %5344 = vmatprep.mubr.f32.mxu0 0.0
      %5345 = vmatmul.mubr.f32.gmra.mrb[0].mxu0 %v5278
      %v5346 = vpop.f32.mrb[0].mxu0
      %v5347 = vadd.f32 0.0, %v5346
      %v5348 = vpop.f32.mrb[0].mxu0
      %5349 = vdwg.mxu0
      %5350 = vrot.lane.b32.xlu0 %v4347, 64
      %v5351 = vpop.permute.xlu0 %5350
      %v5354 = vsel %vm702, %v5117, 0
      %5356 = vmatprep.subr.mxu0 0.0
      %5357 = vmatpush1.msra.mxu0 %v5351
      %5358 = vmatprep.subr.mxu0 0.0
      %5359 = vmatpush1.msra.mxu0 0.0
      %5360 = vmatprep.subr.mxu0 0.0
      %5361 = vmatpush1.msra.mxu0 0.0
      %5362 = vmatprep.subr.mxu0 0.0
      %5363 = vmatpush1.msra.mxu0 0.0
      %5364 = vmatprep.subr.mxu0 0.0
      %5365 = vmatpush1.msra.mxu0 0.0
      %5366 = vmatprep.subr.mxu0 0.0
      %5367 = vmatpush1.msra.mxu0 0.0
      %5368 = vmatprep.subr.mxu0 0.0
      %5369 = vmatpush1.msra.mxu0 0.0
      %5370 = vmatprep.subr.mxu0 0.0
      %5371 = vmatpush1.msra.mxu0 0.0
      %5372 = vmatprep.subr.mxu0 0.0
      %5373 = vmatpush1.msra.mxu0 0.0
      %5374 = vmatprep.subr.mxu0 0.0
      %5375 = vmatpush1.msra.mxu0 0.0
      %5376 = vmatprep.subr.mxu0 0.0
      %5377 = vmatpush1.msra.mxu0 0.0
      %5378 = vmatprep.subr.mxu0 0.0
      %5379 = vmatpush1.msra.mxu0 0.0
      %5380 = vmatprep.subr.mxu0 0.0
      %5381 = vmatpush1.msra.mxu0 0.0
      %5382 = vmatprep.subr.mxu0 0.0
      %5383 = vmatpush1.msra.mxu0 0.0
      %5384 = vmatprep.subr.mxu0 0.0
      %5385 = vmatpush1.msra.mxu0 0.0
      %5386 = vmatprep.subr.mxu0 0.0
      %5387 = vmatpush1.msra.mxu0 0.0
      %5388 = vmatprep.subr.mxu0 0.0
      %5389 = vmatpush1.msra.mxu0 0.0
      %5390 = vmatprep.subr.mxu0 0.0
      %5391 = vmatpush1.msra.mxu0 0.0
      %5392 = vmatprep.subr.mxu0 0.0
      %5393 = vmatpush1.msra.mxu0 0.0
      %5394 = vmatprep.subr.mxu0 0.0
      %5395 = vmatpush1.msra.mxu0 0.0
      %5396 = vmatprep.subr.mxu0 0.0
      %5397 = vmatpush1.msra.mxu0 0.0
      %5398 = vmatprep.subr.mxu0 0.0
      %5399 = vmatpush1.msra.mxu0 0.0
      %5400 = vmatprep.subr.mxu0 0.0
      %5401 = vmatpush1.msra.mxu0 0.0
      %5402 = vmatprep.subr.mxu0 0.0
      %5403 = vmatpush1.msra.mxu0 0.0
      %5404 = vmatprep.subr.mxu0 0.0
      %5405 = vmatpush1.msra.mxu0 0.0
      %5406 = vmatprep.subr.mxu0 0.0
      %5407 = vmatpush1.msra.mxu0 0.0
      %5408 = vmatprep.subr.mxu0 0.0
      %5409 = vmatpush1.msra.mxu0 0.0
      %5410 = vmatprep.subr.mxu0 0.0
      %5411 = vmatpush1.msra.mxu0 0.0
      %5412 = vmatprep.subr.mxu0 0.0
      %5413 = vmatpush1.msra.mxu0 0.0
      %5414 = vmatprep.subr.mxu0 0.0
      %5415 = vmatpush1.msra.mxu0 0.0
      %5416 = vmatprep.subr.mxu0 0.0
      %5417 = vmatpush1.msra.mxu0 0.0
      %5418 = vmatprep.subr.mxu0 0.0
      %5419 = vmatpush1.msra.mxu0 0.0
      %5420 = vmatprep.mubr.f32.mxu0 0.0
      %5421 = vmatmul.mubr.f32.gmra.mrb[0].mxu0 %v5354
      %v5422 = vpop.f32.mrb[0].mxu0
      %v5423 = vadd.f32 0.0, %v5422
      %v5424 = vpop.f32.mrb[0].mxu0
      %5425 = vdwg.mxu0
      %5426 = vrot.lane.b32.xlu0 %v4352, 64
      %v5427 = vpop.permute.xlu0 %5426
      %v5430 = vsel %vm702, %v5118, 0
      %5432 = vmatprep.subr.mxu0 0.0
      %5433 = vmatpush1.msra.mxu0 %v5427
      %5434 = vmatprep.subr.mxu0 0.0
      %5435 = vmatpush1.msra.mxu0 0.0
      %5436 = vmatprep.subr.mxu0 0.0
      %5437 = vmatpush1.msra.mxu0 0.0
      %5438 = vmatprep.subr.mxu0 0.0
      %5439 = vmatpush1.msra.mxu0 0.0
      %5440 = vmatprep.subr.mxu0 0.0
      %5441 = vmatpush1.msra.mxu0 0.0
      %5442 = vmatprep.subr.mxu0 0.0
      %5443 = vmatpush1.msra.mxu0 0.0
      %5444 = vmatprep.subr.mxu0 0.0
      %5445 = vmatpush1.msra.mxu0 0.0
      %5446 = vmatprep.subr.mxu0 0.0
      %5447 = vmatpush1.msra.mxu0 0.0
      %5448 = vmatprep.subr.mxu0 0.0
      %5449 = vmatpush1.msra.mxu0 0.0
      %5450 = vmatprep.subr.mxu0 0.0
      %5451 = vmatpush1.msra.mxu0 0.0
      %5452 = vmatprep.subr.mxu0 0.0
      %5453 = vmatpush1.msra.mxu0 0.0
      %5454 = vmatprep.subr.mxu0 0.0
      %5455 = vmatpush1.msra.mxu0 0.0
      %5456 = vmatprep.subr.mxu0 0.0
      %5457 = vmatpush1.msra.mxu0 0.0
      %5458 = vmatprep.subr.mxu0 0.0
      %5459 = vmatpush1.msra.mxu0 0.0
      %5460 = vmatprep.subr.mxu0 0.0
      %5461 = vmatpush1.msra.mxu0 0.0
      %5462 = vmatprep.subr.mxu0 0.0
      %5463 = vmatpush1.msra.mxu0 0.0
      %5464 = vmatprep.subr.mxu0 0.0
      %5465 = vmatpush1.msra.mxu0 0.0
      %5466 = vmatprep.subr.mxu0 0.0
      %5467 = vmatpush1.msra.mxu0 0.0
      %5468 = vmatprep.subr.mxu0 0.0
      %5469 = vmatpush1.msra.mxu0 0.0
      %5470 = vmatprep.subr.mxu0 0.0
      %5471 = vmatpush1.msra.mxu0 0.0
      %5472 = vmatprep.subr.mxu0 0.0
      %5473 = vmatpush1.msra.mxu0 0.0
      %5474 = vmatprep.subr.mxu0 0.0
      %5475 = vmatpush1.msra.mxu0 0.0
      %5476 = vmatprep.subr.mxu0 0.0
      %5477 = vmatpush1.msra.mxu0 0.0
      %5478 = vmatprep.subr.mxu0 0.0
      %5479 = vmatpush1.msra.mxu0 0.0
      %5480 = vmatprep.subr.mxu0 0.0
      %5481 = vmatpush1.msra.mxu0 0.0
      %5482 = vmatprep.subr.mxu0 0.0
      %5483 = vmatpush1.msra.mxu0 0.0
      %5484 = vmatprep.subr.mxu0 0.0
      %5485 = vmatpush1.msra.mxu0 0.0
      %5486 = vmatprep.subr.mxu0 0.0
      %5487 = vmatpush1.msra.mxu0 0.0
      %5488 = vmatprep.subr.mxu0 0.0
      %5489 = vmatpush1.msra.mxu0 0.0
      %5490 = vmatprep.subr.mxu0 0.0
      %5491 = vmatpush1.msra.mxu0 0.0
      %5492 = vmatprep.subr.mxu0 0.0
      %5493 = vmatpush1.msra.mxu0 0.0
      %5494 = vmatprep.subr.mxu0 0.0
      %5495 = vmatpush1.msra.mxu0 0.0
      %5496 = vmatprep.mubr.f32.mxu0 0.0
      %5497 = vmatmul.mubr.f32.gmra.mrb[0].mxu0 %v5430
      %v5498 = vpop.f32.mrb[0].mxu0
      %v5499 = vadd.f32 0.0, %v5498
      %v5500 = vpop.f32.mrb[0].mxu0
      %5501 = vdwg.mxu0
      %5502 = vrot.lane.b32.xlu0 %v4357, 64
      %v5503 = vpop.permute.xlu0 %5502
      %v5506 = vsel %vm702, %v5119, 0
      %5508 = vmatprep.subr.mxu0 0.0
      %5509 = vmatpush1.msra.mxu0 %v5503
      %5510 = vmatprep.subr.mxu0 0.0
      %5511 = vmatpush1.msra.mxu0 0.0
      %5512 = vmatprep.subr.mxu0 0.0
      %5513 = vmatpush1.msra.mxu0 0.0
      %5514 = vmatprep.subr.mxu0 0.0
      %5515 = vmatpush1.msra.mxu0 0.0
      %5516 = vmatprep.subr.mxu0 0.0
      %5517 = vmatpush1.msra.mxu0 0.0
      %5518 = vmatprep.subr.mxu0 0.0
      %5519 = vmatpush1.msra.mxu0 0.0
      %5520 = vmatprep.subr.mxu0 0.0
      %5521 = vmatpush1.msra.mxu0 0.0
      %5522 = vmatprep.subr.mxu0 0.0
      %5523 = vmatpush1.msra.mxu0 0.0
      %5524 = vmatprep.subr.mxu0 0.0
      %5525 = vmatpush1.msra.mxu0 0.0
      %5526 = vmatprep.subr.mxu0 0.0
      %5527 = vmatpush1.msra.mxu0 0.0
      %5528 = vmatprep.subr.mxu0 0.0
      %5529 = vmatpush1.msra.mxu0 0.0
      %5530 = vmatprep.subr.mxu0 0.0
      %5531 = vmatpush1.msra.mxu0 0.0
      %5532 = vmatprep.subr.mxu0 0.0
      %5533 = vmatpush1.msra.mxu0 0.0
      %5534 = vmatprep.subr.mxu0 0.0
      %5535 = vmatpush1.msra.mxu0 0.0
      %5536 = vmatprep.subr.mxu0 0.0
      %5537 = vmatpush1.msra.mxu0 0.0
      %5538 = vmatprep.subr.mxu0 0.0
      %5539 = vmatpush1.msra.mxu0 0.0
      %5540 = vmatprep.subr.mxu0 0.0
      %5541 = vmatpush1.msra.mxu0 0.0
      %5542 = vmatprep.subr.mxu0 0.0
      %5543 = vmatpush1.msra.mxu0 0.0
      %5544 = vmatprep.subr.mxu0 0.0
      %5545 = vmatpush1.msra.mxu0 0.0
      %5546 = vmatprep.subr.mxu0 0.0
      %5547 = vmatpush1.msra.mxu0 0.0
      %5548 = vmatprep.subr.mxu0 0.0
      %5549 = vmatpush1.msra.mxu0 0.0
      %5550 = vmatprep.subr.mxu0 0.0
      %5551 = vmatpush1.msra.mxu0 0.0
      %5552 = vmatprep.subr.mxu0 0.0
      %5553 = vmatpush1.msra.mxu0 0.0
      %5554 = vmatprep.subr.mxu0 0.0
      %5555 = vmatpush1.msra.mxu0 0.0
      %5556 = vmatprep.subr.mxu0 0.0
      %5557 = vmatpush1.msra.mxu0 0.0
      %5558 = vmatprep.subr.mxu0 0.0
      %5559 = vmatpush1.msra.mxu0 0.0
      %5560 = vmatprep.subr.mxu0 0.0
      %5561 = vmatpush1.msra.mxu0 0.0
      %5562 = vmatprep.subr.mxu0 0.0
      %5563 = vmatpush1.msra.mxu0 0.0
      %5564 = vmatprep.subr.mxu0 0.0
      %5565 = vmatpush1.msra.mxu0 0.0
      %5566 = vmatprep.subr.mxu0 0.0
      %5567 = vmatpush1.msra.mxu0 0.0
      %5568 = vmatprep.subr.mxu0 0.0
      %5569 = vmatpush1.msra.mxu0 0.0
      %5570 = vmatprep.subr.mxu0 0.0
      %5571 = vmatpush1.msra.mxu0 0.0
      %5572 = vmatprep.mubr.f32.mxu0 0.0
      %5573 = vmatmul.mubr.f32.gmra.mrb[0].mxu0 %v5506
      %v5574 = vpop.f32.mrb[0].mxu0
      %v5575 = vadd.f32 0.0, %v5574
      %v5576 = vpop.f32.mrb[0].mxu0
      %5577 = vdwg.mxu0
      %5578 = vrot.lane.b32.xlu0 %v4362, 64
      %v5579 = vpop.permute.xlu0 %5578
      %v5582 = vsel %vm702, %v5120, 0
      %5584 = vmatprep.subr.mxu0 0.0
      %5585 = vmatpush1.msra.mxu0 %v5579
      %5586 = vmatprep.subr.mxu0 0.0
      %5587 = vmatpush1.msra.mxu0 0.0
      %5588 = vmatprep.subr.mxu0 0.0
      %5589 = vmatpush1.msra.mxu0 0.0
      %5590 = vmatprep.subr.mxu0 0.0
      %5591 = vmatpush1.msra.mxu0 0.0
      %5592 = vmatprep.subr.mxu0 0.0
      %5593 = vmatpush1.msra.mxu0 0.0
      %5594 = vmatprep.subr.mxu0 0.0
      %5595 = vmatpush1.msra.mxu0 0.0
      %5596 = vmatprep.subr.mxu0 0.0
      %5597 = vmatpush1.msra.mxu0 0.0
      %5598 = vmatprep.subr.mxu0 0.0
      %5599 = vmatpush1.msra.mxu0 0.0
      %5600 = vmatprep.subr.mxu0 0.0
      %5601 = vmatpush1.msra.mxu0 0.0
      %5602 = vmatprep.subr.mxu0 0.0
      %5603 = vmatpush1.msra.mxu0 0.0
      %5604 = vmatprep.subr.mxu0 0.0
      %5605 = vmatpush1.msra.mxu0 0.0
      %5606 = vmatprep.subr.mxu0 0.0
      %5607 = vmatpush1.msra.mxu0 0.0
      %5608 = vmatprep.subr.mxu0 0.0
      %5609 = vmatpush1.msra.mxu0 0.0
      %5610 = vmatprep.subr.mxu0 0.0
      %5611 = vmatpush1.msra.mxu0 0.0
      %5612 = vmatprep.subr.mxu0 0.0
      %5613 = vmatpush1.msra.mxu0 0.0
      %5614 = vmatprep.subr.mxu0 0.0
      %5615 = vmatpush1.msra.mxu0 0.0
      %5616 = vmatprep.subr.mxu0 0.0
      %5617 = vmatpush1.msra.mxu0 0.0
      %5618 = vmatprep.subr.mxu0 0.0
      %5619 = vmatpush1.msra.mxu0 0.0
      %5620 = vmatprep.subr.mxu0 0.0
      %5621 = vmatpush1.msra.mxu0 0.0
      %5622 = vmatprep.subr.mxu0 0.0
      %5623 = vmatpush1.msra.mxu0 0.0
      %5624 = vmatprep.subr.mxu0 0.0
      %5625 = vmatpush1.msra.mxu0 0.0
      %5626 = vmatprep.subr.mxu0 0.0
      %5627 = vmatpush1.msra.mxu0 0.0
      %5628 = vmatprep.subr.mxu0 0.0
      %5629 = vmatpush1.msra.mxu0 0.0
      %5630 = vmatprep.subr.mxu0 0.0
      %5631 = vmatpush1.msra.mxu0 0.0
      %5632 = vmatprep.subr.mxu0 0.0
      %5633 = vmatpush1.msra.mxu0 0.0
      %5634 = vmatprep.subr.mxu0 0.0
      %5635 = vmatpush1.msra.mxu0 0.0
      %5636 = vmatprep.subr.mxu0 0.0
      %5637 = vmatpush1.msra.mxu0 0.0
      %5638 = vmatprep.subr.mxu0 0.0
      %5639 = vmatpush1.msra.mxu0 0.0
      %5640 = vmatprep.subr.mxu0 0.0
      %5641 = vmatpush1.msra.mxu0 0.0
      %5642 = vmatprep.subr.mxu0 0.0
      %5643 = vmatpush1.msra.mxu0 0.0
      %5644 = vmatprep.subr.mxu0 0.0
      %5645 = vmatpush1.msra.mxu0 0.0
      %5646 = vmatprep.subr.mxu0 0.0
      %5647 = vmatpush1.msra.mxu0 0.0
      %5648 = vmatprep.mubr.f32.mxu0 0.0
      %5649 = vmatmul.mubr.f32.gmra.mrb[0].mxu0 %v5582
      %v5650 = vpop.f32.mrb[0].mxu0
      %v5651 = vadd.f32 0.0, %v5650
      %v5652 = vpop.f32.mrb[0].mxu0
      %5653 = vdwg.mxu0
      %5654 = vrot.lane.b32.xlu0 %v4367, 64
      %v5655 = vpop.permute.xlu0 %5654
      %v5658 = vsel %vm702, %v5121, 0
      %5660 = vmatprep.subr.mxu0 0.0
      %5661 = vmatpush1.msra.mxu0 %v5655
      %5662 = vmatprep.subr.mxu0 0.0
      %5663 = vmatpush1.msra.mxu0 0.0
      %5664 = vmatprep.subr.mxu0 0.0
      %5665 = vmatpush1.msra.mxu0 0.0
      %5666 = vmatprep.subr.mxu0 0.0
      %5667 = vmatpush1.msra.mxu0 0.0
      %5668 = vmatprep.subr.mxu0 0.0
      %5669 = vmatpush1.msra.mxu0 0.0
      %5670 = vmatprep.subr.mxu0 0.0
      %5671 = vmatpush1.msra.mxu0 0.0
      %5672 = vmatprep.subr.mxu0 0.0
      %5673 = vmatpush1.msra.mxu0 0.0
      %5674 = vmatprep.subr.mxu0 0.0
      %5675 = vmatpush1.msra.mxu0 0.0
      %5676 = vmatprep.subr.mxu0 0.0
      %5677 = vmatpush1.msra.mxu0 0.0
      %5678 = vmatprep.subr.mxu0 0.0
      %5679 = vmatpush1.msra.mxu0 0.0
      %5680 = vmatprep.subr.mxu0 0.0
      %5681 = vmatpush1.msra.mxu0 0.0
      %5682 = vmatprep.subr.mxu0 0.0
      %5683 = vmatpush1.msra.mxu0 0.0
      %5684 = vmatprep.subr.mxu0 0.0
      %5685 = vmatpush1.msra.mxu0 0.0
      %5686 = vmatprep.subr.mxu0 0.0
      %5687 = vmatpush1.msra.mxu0 0.0
      %5688 = vmatprep.subr.mxu0 0.0
      %5689 = vmatpush1.msra.mxu0 0.0
      %5690 = vmatprep.subr.mxu0 0.0
      %5691 = vmatpush1.msra.mxu0 0.0
      %5692 = vmatprep.subr.mxu0 0.0
      %5693 = vmatpush1.msra.mxu0 0.0
      %5694 = vmatprep.subr.mxu0 0.0
      %5695 = vmatpush1.msra.mxu0 0.0
      %5696 = vmatprep.subr.mxu0 0.0
      %5697 = vmatpush1.msra.mxu0 0.0
      %5698 = vmatprep.subr.mxu0 0.0
      %5699 = vmatpush1.msra.mxu0 0.0
      %5700 = vmatprep.subr.mxu0 0.0
      %5701 = vmatpush1.msra.mxu0 0.0
      %5702 = vmatprep.subr.mxu0 0.0
      %5703 = vmatpush1.msra.mxu0 0.0
      %5704 = vmatprep.subr.mxu0 0.0
      %5705 = vmatpush1.msra.mxu0 0.0
      %5706 = vmatprep.subr.mxu0 0.0
      %5707 = vmatpush1.msra.mxu0 0.0
      %5708 = vmatprep.subr.mxu0 0.0
      %5709 = vmatpush1.msra.mxu0 0.0
      %5710 = vmatprep.subr.mxu0 0.0
      %5711 = vmatpush1.msra.mxu0 0.0
      %5712 = vmatprep.subr.mxu0 0.0
      %5713 = vmatpush1.msra.mxu0 0.0
      %5714 = vmatprep.subr.mxu0 0.0
      %5715 = vmatpush1.msra.mxu0 0.0
      %5716 = vmatprep.subr.mxu0 0.0
      %5717 = vmatpush1.msra.mxu0 0.0
      %5718 = vmatprep.subr.mxu0 0.0
      %5719 = vmatpush1.msra.mxu0 0.0
      %5720 = vmatprep.subr.mxu0 0.0
      %5721 = vmatpush1.msra.mxu0 0.0
      %5722 = vmatprep.subr.mxu0 0.0
      %5723 = vmatpush1.msra.mxu0 0.0
      %5724 = vmatprep.mubr.f32.mxu0 0.0
      %5725 = vmatmul.mubr.f32.gmra.mrb[0].mxu0 %v5658
      %v5726 = vpop.f32.mrb[0].mxu0
      %v5727 = vadd.f32 0.0, %v5726
      %v5728 = vpop.f32.mrb[0].mxu0
      %5729 = vdwg.mxu0
      %v5730 = vld [vmem:[%s5 + $0x30] sm:$0xff]
      %v5731 = vld [vmem:[%s5 + $0xa0] sm:$0xff]
      %v5732 = vld [vmem:[%s5 + $0x110] sm:$0xff]
      %v5733 = vld [vmem:[%s5 + $0x180] sm:$0xff]
      %v5734 = vld [vmem:[%s6 + $0x3] sm:$0x1]
      %v5736 = vlaneseq
      %v5737 = vshrl.u32 %v5736, 7
      %v5738 = vsub.s32 0, %v5737
      %v5739 = vrot.slane %v5734, %v5738
      %5740 = vrot.lane.b32.xlu0 %v5739, 96
      %v5741 = vpop.permute.xlu0 %5740
      %v5744 = vsel %vm564, %v5195, 0
      %v5747 = vsel %vm564, %v5271, 0
      %v5750 = vsel %vm564, %v5347, 0
      %v5753 = vsel %vm564, %v5423, 0
      %v5756 = vsel %vm564, %v5499, 0
      %v5759 = vsel %vm564, %v5575, 0
      %v5762 = vsel %vm564, %v5651, 0
      %v5765 = vsel %vm564, %v5727, 0
      %5767 = vmatprep.subr.mxu0 0.0
      %5768 = vmatpush1.msra.mxu0 %v5730
      %5769 = vmatprep.subr.mxu0 0.0
      %5770 = vmatpush1.msra.mxu0 %v5731
      %5771 = vmatprep.subr.mxu0 0.0
      %5772 = vmatpush1.msra.mxu0 %v5732
      %5773 = vmatprep.subr.mxu0 0.0
      %5774 = vmatpush1.msra.mxu0 %v5733
      %5775 = vmatprep.subr.mxu0 0.0
      %5776 = vmatpush1.msra.mxu0 0.0
      %5777 = vmatprep.subr.mxu0 0.0
      %5778 = vmatpush1.msra.mxu0 0.0
      %5779 = vmatprep.subr.mxu0 0.0
      %5780 = vmatpush1.msra.mxu0 0.0
      %5781 = vmatprep.subr.mxu0 0.0
      %5782 = vmatpush1.msra.mxu0 0.0
      %5783 = vmatprep.subr.mxu0 0.0
      %5784 = vmatpush1.msra.mxu0 0.0
      %5785 = vmatprep.subr.mxu0 0.0
      %5786 = vmatpush1.msra.mxu0 0.0
      %5787 = vmatprep.subr.mxu0 0.0
      %5788 = vmatpush1.msra.mxu0 0.0
      %5789 = vmatprep.subr.mxu0 0.0
      %5790 = vmatpush1.msra.mxu0 0.0
      %5791 = vmatprep.subr.mxu0 0.0
      %5792 = vmatpush1.msra.mxu0 0.0
      %5793 = vmatprep.subr.mxu0 0.0
      %5794 = vmatpush1.msra.mxu0 0.0
      %5795 = vmatprep.subr.mxu0 0.0
      %5796 = vmatpush1.msra.mxu0 0.0
      %5797 = vmatprep.subr.mxu0 0.0
      %5798 = vmatpush1.msra.mxu0 0.0
      %5799 = vmatprep.subr.mxu0 0.0
      %5800 = vmatpush1.msra.mxu0 0.0
      %5801 = vmatprep.subr.mxu0 0.0
      %5802 = vmatpush1.msra.mxu0 0.0
      %5803 = vmatprep.subr.mxu0 0.0
      %5804 = vmatpush1.msra.mxu0 0.0
      %5805 = vmatprep.subr.mxu0 0.0
      %5806 = vmatpush1.msra.mxu0 0.0
      %5807 = vmatprep.subr.mxu0 0.0
      %5808 = vmatpush1.msra.mxu0 0.0
      %5809 = vmatprep.subr.mxu0 0.0
      %5810 = vmatpush1.msra.mxu0 0.0
      %5811 = vmatprep.subr.mxu0 0.0
      %5812 = vmatpush1.msra.mxu0 0.0
      %5813 = vmatprep.subr.mxu0 0.0
      %5814 = vmatpush1.msra.mxu0 0.0
      %5815 = vmatprep.subr.mxu0 0.0
      %5816 = vmatpush1.msra.mxu0 0.0
      %5817 = vmatprep.subr.mxu0 0.0
      %5818 = vmatpush1.msra.mxu0 0.0
      %5819 = vmatprep.subr.mxu0 0.0
      %5820 = vmatpush1.msra.mxu0 0.0
      %5821 = vmatprep.subr.mxu0 0.0
      %5822 = vmatpush1.msra.mxu0 0.0
      %5823 = vmatprep.subr.mxu0 0.0
      %5824 = vmatpush1.msra.mxu0 0.0
      %5825 = vmatprep.subr.mxu0 0.0
      %5826 = vmatpush1.msra.mxu0 0.0
      %5827 = vmatprep.subr.mxu0 0.0
      %5828 = vmatpush1.msra.mxu0 0.0
      %5829 = vmatprep.subr.mxu0 0.0
      %5830 = vmatpush1.msra.mxu0 0.0
      %5831 = vmatprep.mubr.f32.mxu0 0.0
      %5832 = vmatmul.mubr.f32.gmra.mrb[0].mxu0 %v5744
      %v5833 = vpop.f32.mrb[0].mxu0
      %v5834 = vadd.f32 %v5741, %v5833
      %v5835 = vpop.f32.mrb[0].mxu0
      %5836 = vmatprep.mubr.f32.mxu0 0.0
      %5837 = vmatmul.mubr.f32.gmra.mrb[0].mxu0 %v5747
      %v5838 = vpop.f32.mrb[0].mxu0
      %v5839 = vadd.f32 %v5741, %v5838
      %v5840 = vpop.f32.mrb[0].mxu0
      %5841 = vmatprep.mubr.f32.mxu0 0.0
      %5842 = vmatmul.mubr.f32.gmra.mrb[0].mxu0 %v5750
      %v5843 = vpop.f32.mrb[0].mxu0
      %v5844 = vadd.f32 %v5741, %v5843
      %v5845 = vpop.f32.mrb[0].mxu0
      %5846 = vmatprep.mubr.f32.mxu0 0.0
      %5847 = vmatmul.mubr.f32.gmra.mrb[0].mxu0 %v5753
      %v5848 = vpop.f32.mrb[0].mxu0
      %v5849 = vadd.f32 %v5741, %v5848
      %v5850 = vpop.f32.mrb[0].mxu0
      %5851 = vmatprep.mubr.f32.mxu0 0.0
      %5852 = vmatmul.mubr.f32.gmra.mrb[0].mxu0 %v5756
      %v5853 = vpop.f32.mrb[0].mxu0
      %v5854 = vadd.f32 %v5741, %v5853
      %v5855 = vpop.f32.mrb[0].mxu0
      %5856 = vmatprep.mubr.f32.mxu0 0.0
      %5857 = vmatmul.mubr.f32.gmra.mrb[0].mxu0 %v5759
      %v5858 = vpop.f32.mrb[0].mxu0
      %v5859 = vadd.f32 %v5741, %v5858
      %v5860 = vpop.f32.mrb[0].mxu0
      %5861 = vmatprep.mubr.f32.mxu0 0.0
      %5862 = vmatmul.mubr.f32.gmra.mrb[0].mxu0 %v5762
      %v5863 = vpop.f32.mrb[0].mxu0
      %v5864 = vadd.f32 %v5741, %v5863
      %v5865 = vpop.f32.mrb[0].mxu0
      %5866 = vmatprep.mubr.f32.mxu0 0.0
      %5867 = vmatmul.mubr.f32.gmra.mrb[0].mxu0 %v5765
      %v5868 = vpop.f32.mrb[0].mxu0
      %v5869 = vadd.f32 %v5741, %v5868
      %v5870 = vpop.f32.mrb[0].mxu0
      %5871 = vdwg.mxu0
      %v5873 = vsel %vm702, %v359, 0
      %5875 = vmatprep.subr.mxu0 0.0
      %5876 = vmatpush1.msra.mxu0 %v5834
      %5877 = vmatprep.subr.mxu0 0.0
      %5878 = vmatpush1.msra.mxu0 0.0
      %5879 = vmatprep.subr.mxu0 0.0
      %5880 = vmatpush1.msra.mxu0 0.0
      %5881 = vmatprep.subr.mxu0 0.0
      %5882 = vmatpush1.msra.mxu0 0.0
      %5883 = vmatprep.subr.mxu0 0.0
      %5884 = vmatpush1.msra.mxu0 0.0
      %5885 = vmatprep.subr.mxu0 0.0
      %5886 = vmatpush1.msra.mxu0 0.0
      %5887 = vmatprep.subr.mxu0 0.0
      %5888 = vmatpush1.msra.mxu0 0.0
      %5889 = vmatprep.subr.mxu0 0.0
      %5890 = vmatpush1.msra.mxu0 0.0
      %5891 = vmatprep.subr.mxu0 0.0
      %5892 = vmatpush1.msra.mxu0 0.0
      %5893 = vmatprep.subr.mxu0 0.0
      %5894 = vmatpush1.msra.mxu0 0.0
      %5895 = vmatprep.subr.mxu0 0.0
      %5896 = vmatpush1.msra.mxu0 0.0
      %5897 = vmatprep.subr.mxu0 0.0
      %5898 = vmatpush1.msra.mxu0 0.0
      %5899 = vmatprep.subr.mxu0 0.0
      %5900 = vmatpush1.msra.mxu0 0.0
      %5901 = vmatprep.subr.mxu0 0.0
      %5902 = vmatpush1.msra.mxu0 0.0
      %5903 = vmatprep.subr.mxu0 0.0
      %5904 = vmatpush1.msra.mxu0 0.0
      %5905 = vmatprep.subr.mxu0 0.0
      %5906 = vmatpush1.msra.mxu0 0.0
      %5907 = vmatprep.subr.mxu0 0.0
      %5908 = vmatpush1.msra.mxu0 0.0
      %5909 = vmatprep.subr.mxu0 0.0
      %5910 = vmatpush1.msra.mxu0 0.0
      %5911 = vmatprep.subr.mxu0 0.0
      %5912 = vmatpush1.msra.mxu0 0.0
      %5913 = vmatprep.subr.mxu0 0.0
      %5914 = vmatpush1.msra.mxu0 0.0
      %5915 = vmatprep.subr.mxu0 0.0
      %5916 = vmatpush1.msra.mxu0 0.0
      %5917 = vmatprep.subr.mxu0 0.0
      %5918 = vmatpush1.msra.mxu0 0.0
      %5919 = vmatprep.subr.mxu0 0.0
      %5920 = vmatpush1.msra.mxu0 0.0
      %5921 = vmatprep.subr.mxu0 0.0
      %5922 = vmatpush1.msra.mxu0 0.0
      %5923 = vmatprep.subr.mxu0 0.0
      %5924 = vmatpush1.msra.mxu0 0.0
      %5925 = vmatprep.subr.mxu0 0.0
      %5926 = vmatpush1.msra.mxu0 0.0
      %5927 = vmatprep.subr.mxu0 0.0
      %5928 = vmatpush1.msra.mxu0 0.0
      %5929 = vmatprep.subr.mxu0 0.0
      %5930 = vmatpush1.msra.mxu0 0.0
      %5931 = vmatprep.subr.mxu0 0.0
      %5932 = vmatpush1.msra.mxu0 0.0
      %5933 = vmatprep.subr.mxu0 0.0
      %5934 = vmatpush1.msra.mxu0 0.0
      %5935 = vmatprep.subr.mxu0 0.0
      %5936 = vmatpush1.msra.mxu0 0.0
      %5937 = vmatprep.subr.mxu0 0.0
      %5938 = vmatpush1.msra.mxu0 0.0
      %5939 = vmatprep.mubr.f32.mxu0 0.0
      %5940 = vmatmul.mubr.f32.gmra.mrb[0].mxu0 %v5873
      %v5941 = vpop.f32.mrb[0].mxu0
      %v5942 = vadd.f32 0.0, %v5941
      %v5943 = vpop.f32.mrb[0].mxu0
      %5944 = vdwg.mxu0
      %v5946 = vsel %vm702, %v360, 0
      %5948 = vmatprep.subr.mxu0 0.0
      %5949 = vmatpush1.msra.mxu0 %v5839
      %5950 = vmatprep.subr.mxu0 0.0
      %5951 = vmatpush1.msra.mxu0 0.0
      %5952 = vmatprep.subr.mxu0 0.0
      %5953 = vmatpush1.msra.mxu0 0.0
      %5954 = vmatprep.subr.mxu0 0.0
      %5955 = vmatpush1.msra.mxu0 0.0
      %5956 = vmatprep.subr.mxu0 0.0
      %5957 = vmatpush1.msra.mxu0 0.0
      %5958 = vmatprep.subr.mxu0 0.0
      %5959 = vmatpush1.msra.mxu0 0.0
      %5960 = vmatprep.subr.mxu0 0.0
      %5961 = vmatpush1.msra.mxu0 0.0
      %5962 = vmatprep.subr.mxu0 0.0
      %5963 = vmatpush1.msra.mxu0 0.0
      %5964 = vmatprep.subr.mxu0 0.0
      %5965 = vmatpush1.msra.mxu0 0.0
      %5966 = vmatprep.subr.mxu0 0.0
      %5967 = vmatpush1.msra.mxu0 0.0
      %5968 = vmatprep.subr.mxu0 0.0
      %5969 = vmatpush1.msra.mxu0 0.0
      %5970 = vmatprep.subr.mxu0 0.0
      %5971 = vmatpush1.msra.mxu0 0.0
      %5972 = vmatprep.subr.mxu0 0.0
      %5973 = vmatpush1.msra.mxu0 0.0
      %5974 = vmatprep.subr.mxu0 0.0
      %5975 = vmatpush1.msra.mxu0 0.0
      %5976 = vmatprep.subr.mxu0 0.0
      %5977 = vmatpush1.msra.mxu0 0.0
      %5978 = vmatprep.subr.mxu0 0.0
      %5979 = vmatpush1.msra.mxu0 0.0
      %5980 = vmatprep.subr.mxu0 0.0
      %5981 = vmatpush1.msra.mxu0 0.0
      %5982 = vmatprep.subr.mxu0 0.0
      %5983 = vmatpush1.msra.mxu0 0.0
      %5984 = vmatprep.subr.mxu0 0.0
      %5985 = vmatpush1.msra.mxu0 0.0
      %5986 = vmatprep.subr.mxu0 0.0
      %5987 = vmatpush1.msra.mxu0 0.0
      %5988 = vmatprep.subr.mxu0 0.0
      %5989 = vmatpush1.msra.mxu0 0.0
      %5990 = vmatprep.subr.mxu0 0.0
      %5991 = vmatpush1.msra.mxu0 0.0
      %5992 = vmatprep.subr.mxu0 0.0
      %5993 = vmatpush1.msra.mxu0 0.0
      %5994 = vmatprep.subr.mxu0 0.0
      %5995 = vmatpush1.msra.mxu0 0.0
      %5996 = vmatprep.subr.mxu0 0.0
      %5997 = vmatpush1.msra.mxu0 0.0
      %5998 = vmatprep.subr.mxu0 0.0
      %5999 = vmatpush1.msra.mxu0 0.0
      %6000 = vmatprep.subr.mxu0 0.0
      %6001 = vmatpush1.msra.mxu0 0.0
      %6002 = vmatprep.subr.mxu0 0.0
      %6003 = vmatpush1.msra.mxu0 0.0
      %6004 = vmatprep.subr.mxu0 0.0
      %6005 = vmatpush1.msra.mxu0 0.0
      %6006 = vmatprep.subr.mxu0 0.0
      %6007 = vmatpush1.msra.mxu0 0.0
      %6008 = vmatprep.subr.mxu0 0.0
      %6009 = vmatpush1.msra.mxu0 0.0
      %6010 = vmatprep.subr.mxu0 0.0
      %6011 = vmatpush1.msra.mxu0 0.0
      %6012 = vmatprep.mubr.f32.mxu0 0.0
      %6013 = vmatmul.mubr.f32.gmra.mrb[0].mxu0 %v5946
      %v6014 = vpop.f32.mrb[0].mxu0
      %v6015 = vadd.f32 0.0, %v6014
      %v6016 = vpop.f32.mrb[0].mxu0
      %6017 = vdwg.mxu0
      %v6019 = vsel %vm702, %v361, 0
      %6021 = vmatprep.subr.mxu0 0.0
      %6022 = vmatpush1.msra.mxu0 %v5844
      %6023 = vmatprep.subr.mxu0 0.0
      %6024 = vmatpush1.msra.mxu0 0.0
      %6025 = vmatprep.subr.mxu0 0.0
      %6026 = vmatpush1.msra.mxu0 0.0
      %6027 = vmatprep.subr.mxu0 0.0
      %6028 = vmatpush1.msra.mxu0 0.0
      %6029 = vmatprep.subr.mxu0 0.0
      %6030 = vmatpush1.msra.mxu0 0.0
      %6031 = vmatprep.subr.mxu0 0.0
      %6032 = vmatpush1.msra.mxu0 0.0
      %6033 = vmatprep.subr.mxu0 0.0
      %6034 = vmatpush1.msra.mxu0 0.0
      %6035 = vmatprep.subr.mxu0 0.0
      %6036 = vmatpush1.msra.mxu0 0.0
      %6037 = vmatprep.subr.mxu0 0.0
      %6038 = vmatpush1.msra.mxu0 0.0
      %6039 = vmatprep.subr.mxu0 0.0
      %6040 = vmatpush1.msra.mxu0 0.0
      %6041 = vmatprep.subr.mxu0 0.0
      %6042 = vmatpush1.msra.mxu0 0.0
      %6043 = vmatprep.subr.mxu0 0.0
      %6044 = vmatpush1.msra.mxu0 0.0
      %6045 = vmatprep.subr.mxu0 0.0
      %6046 = vmatpush1.msra.mxu0 0.0
      %6047 = vmatprep.subr.mxu0 0.0
      %6048 = vmatpush1.msra.mxu0 0.0
      %6049 = vmatprep.subr.mxu0 0.0
      %6050 = vmatpush1.msra.mxu0 0.0
      %6051 = vmatprep.subr.mxu0 0.0
      %6052 = vmatpush1.msra.mxu0 0.0
      %6053 = vmatprep.subr.mxu0 0.0
      %6054 = vmatpush1.msra.mxu0 0.0
      %6055 = vmatprep.subr.mxu0 0.0
      %6056 = vmatpush1.msra.mxu0 0.0
      %6057 = vmatprep.subr.mxu0 0.0
      %6058 = vmatpush1.msra.mxu0 0.0
      %6059 = vmatprep.subr.mxu0 0.0
      %6060 = vmatpush1.msra.mxu0 0.0
      %6061 = vmatprep.subr.mxu0 0.0
      %6062 = vmatpush1.msra.mxu0 0.0
      %6063 = vmatprep.subr.mxu0 0.0
      %6064 = vmatpush1.msra.mxu0 0.0
      %6065 = vmatprep.subr.mxu0 0.0
      %6066 = vmatpush1.msra.mxu0 0.0
      %6067 = vmatprep.subr.mxu0 0.0
      %6068 = vmatpush1.msra.mxu0 0.0
      %6069 = vmatprep.subr.mxu0 0.0
      %6070 = vmatpush1.msra.mxu0 0.0
      %6071 = vmatprep.subr.mxu0 0.0
      %6072 = vmatpush1.msra.mxu0 0.0
      %6073 = vmatprep.subr.mxu0 0.0
      %6074 = vmatpush1.msra.mxu0 0.0
      %6075 = vmatprep.subr.mxu0 0.0
      %6076 = vmatpush1.msra.mxu0 0.0
      %6077 = vmatprep.subr.mxu0 0.0
      %6078 = vmatpush1.msra.mxu0 0.0
      %6079 = vmatprep.subr.mxu0 0.0
      %6080 = vmatpush1.msra.mxu0 0.0
      %6081 = vmatprep.subr.mxu0 0.0
      %6082 = vmatpush1.msra.mxu0 0.0
      %6083 = vmatprep.subr.mxu0 0.0
      %6084 = vmatpush1.msra.mxu0 0.0
      %6085 = vmatprep.mubr.f32.mxu0 0.0
      %6086 = vmatmul.mubr.f32.gmra.mrb[0].mxu0 %v6019
      %v6087 = vpop.f32.mrb[0].mxu0
      %v6088 = vadd.f32 0.0, %v6087
      %v6089 = vpop.f32.mrb[0].mxu0
      %6090 = vdwg.mxu0
      %v6092 = vsel %vm702, %v362, 0
      %6094 = vmatprep.subr.mxu0 0.0
      %6095 = vmatpush1.msra.mxu0 %v5849
      %6096 = vmatprep.subr.mxu0 0.0
      %6097 = vmatpush1.msra.mxu0 0.0
      %6098 = vmatprep.subr.mxu0 0.0
      %6099 = vmatpush1.msra.mxu0 0.0
      %6100 = vmatprep.subr.mxu0 0.0
      %6101 = vmatpush1.msra.mxu0 0.0
      %6102 = vmatprep.subr.mxu0 0.0
      %6103 = vmatpush1.msra.mxu0 0.0
      %6104 = vmatprep.subr.mxu0 0.0
      %6105 = vmatpush1.msra.mxu0 0.0
      %6106 = vmatprep.subr.mxu0 0.0
      %6107 = vmatpush1.msra.mxu0 0.0
      %6108 = vmatprep.subr.mxu0 0.0
      %6109 = vmatpush1.msra.mxu0 0.0
      %6110 = vmatprep.subr.mxu0 0.0
      %6111 = vmatpush1.msra.mxu0 0.0
      %6112 = vmatprep.subr.mxu0 0.0
      %6113 = vmatpush1.msra.mxu0 0.0
      %6114 = vmatprep.subr.mxu0 0.0
      %6115 = vmatpush1.msra.mxu0 0.0
      %6116 = vmatprep.subr.mxu0 0.0
      %6117 = vmatpush1.msra.mxu0 0.0
      %6118 = vmatprep.subr.mxu0 0.0
      %6119 = vmatpush1.msra.mxu0 0.0
      %6120 = vmatprep.subr.mxu0 0.0
      %6121 = vmatpush1.msra.mxu0 0.0
      %6122 = vmatprep.subr.mxu0 0.0
      %6123 = vmatpush1.msra.mxu0 0.0
      %6124 = vmatprep.subr.mxu0 0.0
      %6125 = vmatpush1.msra.mxu0 0.0
      %6126 = vmatprep.subr.mxu0 0.0
      %6127 = vmatpush1.msra.mxu0 0.0
      %6128 = vmatprep.subr.mxu0 0.0
      %6129 = vmatpush1.msra.mxu0 0.0
      %6130 = vmatprep.subr.mxu0 0.0
      %6131 = vmatpush1.msra.mxu0 0.0
      %6132 = vmatprep.subr.mxu0 0.0
      %6133 = vmatpush1.msra.mxu0 0.0
      %6134 = vmatprep.subr.mxu0 0.0
      %6135 = vmatpush1.msra.mxu0 0.0
      %6136 = vmatprep.subr.mxu0 0.0
      %6137 = vmatpush1.msra.mxu0 0.0
      %6138 = vmatprep.subr.mxu0 0.0
      %6139 = vmatpush1.msra.mxu0 0.0
      %6140 = vmatprep.subr.mxu0 0.0
      %6141 = vmatpush1.msra.mxu0 0.0
      %6142 = vmatprep.subr.mxu0 0.0
      %6143 = vmatpush1.msra.mxu0 0.0
      %6144 = vmatprep.subr.mxu0 0.0
      %6145 = vmatpush1.msra.mxu0 0.0
      %6146 = vmatprep.subr.mxu0 0.0
      %6147 = vmatpush1.msra.mxu0 0.0
      %6148 = vmatprep.subr.mxu0 0.0
      %6149 = vmatpush1.msra.mxu0 0.0
      %6150 = vmatprep.subr.mxu0 0.0
      %6151 = vmatpush1.msra.mxu0 0.0
      %6152 = vmatprep.subr.mxu0 0.0
      %6153 = vmatpush1.msra.mxu0 0.0
      %6154 = vmatprep.subr.mxu0 0.0
      %6155 = vmatpush1.msra.mxu0 0.0
      %6156 = vmatprep.subr.mxu0 0.0
      %6157 = vmatpush1.msra.mxu0 0.0
      %6158 = vmatprep.mubr.f32.mxu0 0.0
      %6159 = vmatmul.mubr.f32.gmra.mrb[0].mxu0 %v6092
      %v6160 = vpop.f32.mrb[0].mxu0
      %v6161 = vadd.f32 0.0, %v6160
      %v6162 = vpop.f32.mrb[0].mxu0
      %6163 = vdwg.mxu0
      %v6165 = vsel %vm702, %v363, 0
      %6167 = vmatprep.subr.mxu0 0.0
      %6168 = vmatpush1.msra.mxu0 %v5854
      %6169 = vmatprep.subr.mxu0 0.0
      %6170 = vmatpush1.msra.mxu0 0.0
      %6171 = vmatprep.subr.mxu0 0.0
      %6172 = vmatpush1.msra.mxu0 0.0
      %6173 = vmatprep.subr.mxu0 0.0
      %6174 = vmatpush1.msra.mxu0 0.0
      %6175 = vmatprep.subr.mxu0 0.0
      %6176 = vmatpush1.msra.mxu0 0.0
      %6177 = vmatprep.subr.mxu0 0.0
      %6178 = vmatpush1.msra.mxu0 0.0
      %6179 = vmatprep.subr.mxu0 0.0
      %6180 = vmatpush1.msra.mxu0 0.0
      %6181 = vmatprep.subr.mxu0 0.0
      %6182 = vmatpush1.msra.mxu0 0.0
      %6183 = vmatprep.subr.mxu0 0.0
      %6184 = vmatpush1.msra.mxu0 0.0
      %6185 = vmatprep.subr.mxu0 0.0
      %6186 = vmatpush1.msra.mxu0 0.0
      %6187 = vmatprep.subr.mxu0 0.0
      %6188 = vmatpush1.msra.mxu0 0.0
      %6189 = vmatprep.subr.mxu0 0.0
      %6190 = vmatpush1.msra.mxu0 0.0
      %6191 = vmatprep.subr.mxu0 0.0
      %6192 = vmatpush1.msra.mxu0 0.0
      %6193 = vmatprep.subr.mxu0 0.0
      %6194 = vmatpush1.msra.mxu0 0.0
      %6195 = vmatprep.subr.mxu0 0.0
      %6196 = vmatpush1.msra.mxu0 0.0
      %6197 = vmatprep.subr.mxu0 0.0
      %6198 = vmatpush1.msra.mxu0 0.0
      %6199 = vmatprep.subr.mxu0 0.0
      %6200 = vmatpush1.msra.mxu0 0.0
      %6201 = vmatprep.subr.mxu0 0.0
      %6202 = vmatpush1.msra.mxu0 0.0
      %6203 = vmatprep.subr.mxu0 0.0
      %6204 = vmatpush1.msra.mxu0 0.0
      %6205 = vmatprep.subr.mxu0 0.0
      %6206 = vmatpush1.msra.mxu0 0.0
      %6207 = vmatprep.subr.mxu0 0.0
      %6208 = vmatpush1.msra.mxu0 0.0
      %6209 = vmatprep.subr.mxu0 0.0
      %6210 = vmatpush1.msra.mxu0 0.0
      %6211 = vmatprep.subr.mxu0 0.0
      %6212 = vmatpush1.msra.mxu0 0.0
      %6213 = vmatprep.subr.mxu0 0.0
      %6214 = vmatpush1.msra.mxu0 0.0
      %6215 = vmatprep.subr.mxu0 0.0
      %6216 = vmatpush1.msra.mxu0 0.0
      %6217 = vmatprep.subr.mxu0 0.0
      %6218 = vmatpush1.msra.mxu0 0.0
      %6219 = vmatprep.subr.mxu0 0.0
      %6220 = vmatpush1.msra.mxu0 0.0
      %6221 = vmatprep.subr.mxu0 0.0
      %6222 = vmatpush1.msra.mxu0 0.0
      %6223 = vmatprep.subr.mxu0 0.0
      %6224 = vmatpush1.msra.mxu0 0.0
      %6225 = vmatprep.subr.mxu0 0.0
      %6226 = vmatpush1.msra.mxu0 0.0
      %6227 = vmatprep.subr.mxu0 0.0
      %6228 = vmatpush1.msra.mxu0 0.0
      %6229 = vmatprep.subr.mxu0 0.0
      %6230 = vmatpush1.msra.mxu0 0.0
      %6231 = vmatprep.mubr.f32.mxu0 0.0
      %6232 = vmatmul.mubr.f32.gmra.mrb[0].mxu0 %v6165
      %v6233 = vpop.f32.mrb[0].mxu0
      %v6234 = vadd.f32 0.0, %v6233
      %v6235 = vpop.f32.mrb[0].mxu0
      %6236 = vdwg.mxu0
      %v6238 = vsel %vm702, %v364, 0
      %6240 = vmatprep.subr.mxu0 0.0
      %6241 = vmatpush1.msra.mxu0 %v5859
      %6242 = vmatprep.subr.mxu0 0.0
      %6243 = vmatpush1.msra.mxu0 0.0
      %6244 = vmatprep.subr.mxu0 0.0
      %6245 = vmatpush1.msra.mxu0 0.0
      %6246 = vmatprep.subr.mxu0 0.0
      %6247 = vmatpush1.msra.mxu0 0.0
      %6248 = vmatprep.subr.mxu0 0.0
      %6249 = vmatpush1.msra.mxu0 0.0
      %6250 = vmatprep.subr.mxu0 0.0
      %6251 = vmatpush1.msra.mxu0 0.0
      %6252 = vmatprep.subr.mxu0 0.0
      %6253 = vmatpush1.msra.mxu0 0.0
      %6254 = vmatprep.subr.mxu0 0.0
      %6255 = vmatpush1.msra.mxu0 0.0
      %6256 = vmatprep.subr.mxu0 0.0
      %6257 = vmatpush1.msra.mxu0 0.0
      %6258 = vmatprep.subr.mxu0 0.0
      %6259 = vmatpush1.msra.mxu0 0.0
      %6260 = vmatprep.subr.mxu0 0.0
      %6261 = vmatpush1.msra.mxu0 0.0
      %6262 = vmatprep.subr.mxu0 0.0
      %6263 = vmatpush1.msra.mxu0 0.0
      %6264 = vmatprep.subr.mxu0 0.0
      %6265 = vmatpush1.msra.mxu0 0.0
      %6266 = vmatprep.subr.mxu0 0.0
      %6267 = vmatpush1.msra.mxu0 0.0
      %6268 = vmatprep.subr.mxu0 0.0
      %6269 = vmatpush1.msra.mxu0 0.0
      %6270 = vmatprep.subr.mxu0 0.0
      %6271 = vmatpush1.msra.mxu0 0.0
      %6272 = vmatprep.subr.mxu0 0.0
      %6273 = vmatpush1.msra.mxu0 0.0
      %6274 = vmatprep.subr.mxu0 0.0
      %6275 = vmatpush1.msra.mxu0 0.0
      %6276 = vmatprep.subr.mxu0 0.0
      %6277 = vmatpush1.msra.mxu0 0.0
      %6278 = vmatprep.subr.mxu0 0.0
      %6279 = vmatpush1.msra.mxu0 0.0
      %6280 = vmatprep.subr.mxu0 0.0
      %6281 = vmatpush1.msra.mxu0 0.0
      %6282 = vmatprep.subr.mxu0 0.0
      %6283 = vmatpush1.msra.mxu0 0.0
      %6284 = vmatprep.subr.mxu0 0.0
      %6285 = vmatpush1.msra.mxu0 0.0
      %6286 = vmatprep.subr.mxu0 0.0
      %6287 = vmatpush1.msra.mxu0 0.0
      %6288 = vmatprep.subr.mxu0 0.0
      %6289 = vmatpush1.msra.mxu0 0.0
      %6290 = vmatprep.subr.mxu0 0.0
      %6291 = vmatpush1.msra.mxu0 0.0
      %6292 = vmatprep.subr.mxu0 0.0
      %6293 = vmatpush1.msra.mxu0 0.0
      %6294 = vmatprep.subr.mxu0 0.0
      %6295 = vmatpush1.msra.mxu0 0.0
      %6296 = vmatprep.subr.mxu0 0.0
      %6297 = vmatpush1.msra.mxu0 0.0
      %6298 = vmatprep.subr.mxu0 0.0
      %6299 = vmatpush1.msra.mxu0 0.0
      %6300 = vmatprep.subr.mxu0 0.0
      %6301 = vmatpush1.msra.mxu0 0.0
      %6302 = vmatprep.subr.mxu0 0.0
      %6303 = vmatpush1.msra.mxu0 0.0
      %6304 = vmatprep.mubr.f32.mxu0 0.0
      %6305 = vmatmul.mubr.f32.gmra.mrb[0].mxu0 %v6238
      %v6306 = vpop.f32.mrb[0].mxu0
      %v6307 = vadd.f32 0.0, %v6306
      %v6308 = vpop.f32.mrb[0].mxu0
      %6309 = vdwg.mxu0
      %v6311 = vsel %vm702, %v365, 0
      %6313 = vmatprep.subr.mxu0 0.0
      %6314 = vmatpush1.msra.mxu0 %v5864
      %6315 = vmatprep.subr.mxu0 0.0
      %6316 = vmatpush1.msra.mxu0 0.0
      %6317 = vmatprep.subr.mxu0 0.0
      %6318 = vmatpush1.msra.mxu0 0.0
      %6319 = vmatprep.subr.mxu0 0.0
      %6320 = vmatpush1.msra.mxu0 0.0
      %6321 = vmatprep.subr.mxu0 0.0
      %6322 = vmatpush1.msra.mxu0 0.0
      %6323 = vmatprep.subr.mxu0 0.0
      %6324 = vmatpush1.msra.mxu0 0.0
      %6325 = vmatprep.subr.mxu0 0.0
      %6326 = vmatpush1.msra.mxu0 0.0
      %6327 = vmatprep.subr.mxu0 0.0
      %6328 = vmatpush1.msra.mxu0 0.0
      %6329 = vmatprep.subr.mxu0 0.0
      %6330 = vmatpush1.msra.mxu0 0.0
      %6331 = vmatprep.subr.mxu0 0.0
      %6332 = vmatpush1.msra.mxu0 0.0
      %6333 = vmatprep.subr.mxu0 0.0
      %6334 = vmatpush1.msra.mxu0 0.0
      %6335 = vmatprep.subr.mxu0 0.0
      %6336 = vmatpush1.msra.mxu0 0.0
      %6337 = vmatprep.subr.mxu0 0.0
      %6338 = vmatpush1.msra.mxu0 0.0
      %6339 = vmatprep.subr.mxu0 0.0
      %6340 = vmatpush1.msra.mxu0 0.0
      %6341 = vmatprep.subr.mxu0 0.0
      %6342 = vmatpush1.msra.mxu0 0.0
      %6343 = vmatprep.subr.mxu0 0.0
      %6344 = vmatpush1.msra.mxu0 0.0
      %6345 = vmatprep.subr.mxu0 0.0
      %6346 = vmatpush1.msra.mxu0 0.0
      %6347 = vmatprep.subr.mxu0 0.0
      %6348 = vmatpush1.msra.mxu0 0.0
      %6349 = vmatprep.subr.mxu0 0.0
      %6350 = vmatpush1.msra.mxu0 0.0
      %6351 = vmatprep.subr.mxu0 0.0
      %6352 = vmatpush1.msra.mxu0 0.0
      %6353 = vmatprep.subr.mxu0 0.0
      %6354 = vmatpush1.msra.mxu0 0.0
      %6355 = vmatprep.subr.mxu0 0.0
      %6356 = vmatpush1.msra.mxu0 0.0
      %6357 = vmatprep.subr.mxu0 0.0
      %6358 = vmatpush1.msra.mxu0 0.0
      %6359 = vmatprep.subr.mxu0 0.0
      %6360 = vmatpush1.msra.mxu0 0.0
      %6361 = vmatprep.subr.mxu0 0.0
      %6362 = vmatpush1.msra.mxu0 0.0
      %6363 = vmatprep.subr.mxu0 0.0
      %6364 = vmatpush1.msra.mxu0 0.0
      %6365 = vmatprep.subr.mxu0 0.0
      %6366 = vmatpush1.msra.mxu0 0.0
      %6367 = vmatprep.subr.mxu0 0.0
      %6368 = vmatpush1.msra.mxu0 0.0
      %6369 = vmatprep.subr.mxu0 0.0
      %6370 = vmatpush1.msra.mxu0 0.0
      %6371 = vmatprep.subr.mxu0 0.0
      %6372 = vmatpush1.msra.mxu0 0.0
      %6373 = vmatprep.subr.mxu0 0.0
      %6374 = vmatpush1.msra.mxu0 0.0
      %6375 = vmatprep.subr.mxu0 0.0
      %6376 = vmatpush1.msra.mxu0 0.0
      %6377 = vmatprep.mubr.f32.mxu0 0.0
      %6378 = vmatmul.mubr.f32.gmra.mrb[0].mxu0 %v6311
      %v6379 = vpop.f32.mrb[0].mxu0
      %v6380 = vadd.f32 0.0, %v6379
      %v6381 = vpop.f32.mrb[0].mxu0
      %6382 = vdwg.mxu0
      %v6384 = vsel %vm702, %v366, 0
      %6386 = vmatprep.subr.mxu0 0.0
      %6387 = vmatpush1.msra.mxu0 %v5869
      %6388 = vmatprep.subr.mxu0 0.0
      %6389 = vmatpush1.msra.mxu0 0.0
      %6390 = vmatprep.subr.mxu0 0.0
      %6391 = vmatpush1.msra.mxu0 0.0
      %6392 = vmatprep.subr.mxu0 0.0
      %6393 = vmatpush1.msra.mxu0 0.0
      %6394 = vmatprep.subr.mxu0 0.0
      %6395 = vmatpush1.msra.mxu0 0.0
      %6396 = vmatprep.subr.mxu0 0.0
      %6397 = vmatpush1.msra.mxu0 0.0
      %6398 = vmatprep.subr.mxu0 0.0
      %6399 = vmatpush1.msra.mxu0 0.0
      %6400 = vmatprep.subr.mxu0 0.0
      %6401 = vmatpush1.msra.mxu0 0.0
      %6402 = vmatprep.subr.mxu0 0.0
      %6403 = vmatpush1.msra.mxu0 0.0
      %6404 = vmatprep.subr.mxu0 0.0
      %6405 = vmatpush1.msra.mxu0 0.0
      %6406 = vmatprep.subr.mxu0 0.0
      %6407 = vmatpush1.msra.mxu0 0.0
      %6408 = vmatprep.subr.mxu0 0.0
      %6409 = vmatpush1.msra.mxu0 0.0
      %6410 = vmatprep.subr.mxu0 0.0
      %6411 = vmatpush1.msra.mxu0 0.0
      %6412 = vmatprep.subr.mxu0 0.0
      %6413 = vmatpush1.msra.mxu0 0.0
      %6414 = vmatprep.subr.mxu0 0.0
      %6415 = vmatpush1.msra.mxu0 0.0
      %6416 = vmatprep.subr.mxu0 0.0
      %6417 = vmatpush1.msra.mxu0 0.0
      %6418 = vmatprep.subr.mxu0 0.0
      %6419 = vmatpush1.msra.mxu0 0.0
      %6420 = vmatprep.subr.mxu0 0.0
      %6421 = vmatpush1.msra.mxu0 0.0
      %6422 = vmatprep.subr.mxu0 0.0
      %6423 = vmatpush1.msra.mxu0 0.0
      %6424 = vmatprep.subr.mxu0 0.0
      %6425 = vmatpush1.msra.mxu0 0.0
      %6426 = vmatprep.subr.mxu0 0.0
      %6427 = vmatpush1.msra.mxu0 0.0
      %6428 = vmatprep.subr.mxu0 0.0
      %6429 = vmatpush1.msra.mxu0 0.0
      %6430 = vmatprep.subr.mxu0 0.0
      %6431 = vmatpush1.msra.mxu0 0.0
      %6432 = vmatprep.subr.mxu0 0.0
      %6433 = vmatpush1.msra.mxu0 0.0
      %6434 = vmatprep.subr.mxu0 0.0
      %6435 = vmatpush1.msra.mxu0 0.0
      %6436 = vmatprep.subr.mxu0 0.0
      %6437 = vmatpush1.msra.mxu0 0.0
      %6438 = vmatprep.subr.mxu0 0.0
      %6439 = vmatpush1.msra.mxu0 0.0
      %6440 = vmatprep.subr.mxu0 0.0
      %6441 = vmatpush1.msra.mxu0 0.0
      %6442 = vmatprep.subr.mxu0 0.0
      %6443 = vmatpush1.msra.mxu0 0.0
      %6444 = vmatprep.subr.mxu0 0.0
      %6445 = vmatpush1.msra.mxu0 0.0
      %6446 = vmatprep.subr.mxu0 0.0
      %6447 = vmatpush1.msra.mxu0 0.0
      %6448 = vmatprep.subr.mxu0 0.0
      %6449 = vmatpush1.msra.mxu0 0.0
      %6450 = vmatprep.mubr.f32.mxu0 0.0
      %6451 = vmatmul.mubr.f32.gmra.mrb[0].mxu0 %v6384
      %v6452 = vpop.f32.mrb[0].mxu0
      %v6453 = vadd.f32 0.0, %v6452
      %v6454 = vpop.f32.mrb[0].mxu0
      %6455 = vdwg.mxu0
      %v6456 = vsel %vm1287, %v359, 0.0
      %6457 = vadd.xlane.f32.xlu0 %v6456
      %v6458 = vpop.xlane.xlu0 %6457
      %v6459 = vsel %vm1287, %v360, 0.0
      %6460 = vadd.xlane.f32.xlu0 %v6459
      %v6461 = vpop.xlane.xlu0 %6460
      %v6462 = vsel %vm1287, %v361, 0.0
      %6463 = vadd.xlane.f32.xlu0 %v6462
      %v6464 = vpop.xlane.xlu0 %6463
      %v6465 = vsel %vm1287, %v362, 0.0
      %6466 = vadd.xlane.f32.xlu0 %v6465
      %v6467 = vpop.xlane.xlu0 %6466
      %v6468 = vsel %vm1287, %v363, 0.0
      %6469 = vadd.xlane.f32.xlu0 %v6468
      %v6470 = vpop.xlane.xlu0 %6469
      %v6471 = vsel %vm1287, %v364, 0.0
      %6472 = vadd.xlane.f32.xlu0 %v6471
      %v6473 = vpop.xlane.xlu0 %6472
      %v6474 = vsel %vm1287, %v365, 0.0
      %6475 = vadd.xlane.f32.xlu0 %v6474
      %v6476 = vpop.xlane.xlu0 %6475
      %v6477 = vsel %vm1287, %v366, 0.0
      %6478 = vadd.xlane.f32.xlu0 %v6477
      %v6479 = vpop.xlane.xlu0 %6478
      %v6480 = vadd.f32 %v6458, 1e-08
      %v6481 = vadd.f32 %v6461, 1e-08
      %v6482 = vadd.f32 %v6464, 1e-08
      %v6483 = vadd.f32 %v6467, 1e-08
      %v6484 = vadd.f32 %v6470, 1e-08
      %v6485 = vadd.f32 %v6473, 1e-08
      %v6486 = vadd.f32 %v6476, 1e-08
      %v6487 = vadd.f32 %v6479, 1e-08
      %v6488 = vrcp.pop %v6480
      %v6489 = vmul.f32 %v5942, %v6488
      %v6490 = vrcp.pop %v6481
      %v6491 = vmul.f32 %v6015, %v6490
      %v6492 = vrcp.pop %v6482
      %v6493 = vmul.f32 %v6088, %v6492
      %v6494 = vrcp.pop %v6483
      %v6495 = vmul.f32 %v6161, %v6494
      %v6496 = vrcp.pop %v6484
      %v6497 = vmul.f32 %v6234, %v6496
      %v6498 = vrcp.pop %v6485
      %v6499 = vmul.f32 %v6307, %v6498
      %v6500 = vrcp.pop %v6486
      %v6501 = vmul.f32 %v6380, %v6500
      %v6502 = vrcp.pop %v6487
      %v6503 = vmul.f32 %v6453, %v6502
      %v6504 = vld [vmem:[%s4 + $0x20] sm:$0xff]
      %v6505 = vld [vmem:[%s4 + $0x28] sm:$0xff]
      %v6506 = vld [vmem:[%s4 + $0x30] sm:$0xff]
      %v6507 = vld [vmem:[%s4 + $0x38] sm:$0xff]
      %v6508 = vld [vmem:[%s4 + $0x40] sm:$0xff]
      %v6509 = vld [vmem:[%s4 + $0x48] sm:$0xff]
      %v6510 = vld [vmem:[%s4 + $0x50] sm:$0xff]
      %v6511 = vld [vmem:[%s4 + $0x58] sm:$0xff]
      %v6520 = vrot.slane %v6491, 7
      %vm6521 = vcmask 1041409
      %v6522 = vsel %vm6521, %v6520, %v6489
      %v6523 = vrot.slane %v6493, 6
      %vm6524 = vcmask 1042434
      %v6525 = vsel %vm6524, %v6523, %v6522
      %v6526 = vrot.slane %v6495, 5
      %vm6527 = vcmask 1043459
      %v6528 = vsel %vm6527, %v6526, %v6525
      %v6529 = vrot.slane %v6497, 4
      %vm6530 = vcmask 1044484
      %v6531 = vsel %vm6530, %v6529, %v6528
      %v6532 = vrot.slane %v6499, 3
      %vm6533 = vcmask 1045509
      %v6534 = vsel %vm6533, %v6532, %v6531
      %v6535 = vrot.slane %v6501, 2
      %vm6536 = vcmask 1046534
      %v6537 = vsel %vm6536, %v6535, %v6534
      %v6538 = vrot.slane %v6503, 1
      %vm6539 = vcmask 1047559
      %v6540 = vsel %vm6539, %v6538, %v6537
      %v6541 = vsel %vm564, %v6540, 0
      %6543 = vmatprep.subr.mxu0 0.0
      %6544 = vmatpush1.msra.mxu0 %v6508
      %6545 = vmatprep.subr.mxu0 0.0
      %6546 = vmatpush1.msra.mxu0 %v6509
      %6547 = vmatprep.subr.mxu0 0.0
      %6548 = vmatpush1.msra.mxu0 %v6510
      %6549 = vmatprep.subr.mxu0 0.0
      %6550 = vmatpush1.msra.mxu0 %v6511
      %6551 = vmatprep.subr.mxu0 0.0
      %6552 = vmatpush1.msra.mxu0 0.0
      %6553 = vmatprep.subr.mxu0 0.0
      %6554 = vmatpush1.msra.mxu0 0.0
      %6555 = vmatprep.subr.mxu0 0.0
      %6556 = vmatpush1.msra.mxu0 0.0
      %6557 = vmatprep.subr.mxu0 0.0
      %6558 = vmatpush1.msra.mxu0 0.0
      %6559 = vmatprep.subr.mxu0 0.0
      %6560 = vmatpush1.msra.mxu0 0.0
      %6561 = vmatprep.subr.mxu0 0.0
      %6562 = vmatpush1.msra.mxu0 0.0
      %6563 = vmatprep.subr.mxu0 0.0
      %6564 = vmatpush1.msra.mxu0 0.0
      %6565 = vmatprep.subr.mxu0 0.0
      %6566 = vmatpush1.msra.mxu0 0.0
      %6567 = vmatprep.subr.mxu0 0.0
      %6568 = vmatpush1.msra.mxu0 0.0
      %6569 = vmatprep.subr.mxu0 0.0
      %6570 = vmatpush1.msra.mxu0 0.0
      %6571 = vmatprep.subr.mxu0 0.0
      %6572 = vmatpush1.msra.mxu0 0.0
      %6573 = vmatprep.subr.mxu0 0.0
      %6574 = vmatpush1.msra.mxu0 0.0
      %6575 = vmatprep.subr.mxu0 0.0
      %6576 = vmatpush1.msra.mxu0 0.0
      %6577 = vmatprep.subr.mxu0 0.0
      %6578 = vmatpush1.msra.mxu0 0.0
      %6579 = vmatprep.subr.mxu0 0.0
      %6580 = vmatpush1.msra.mxu0 0.0
      %6581 = vmatprep.subr.mxu0 0.0
      %6582 = vmatpush1.msra.mxu0 0.0
      %6583 = vmatprep.subr.mxu0 0.0
      %6584 = vmatpush1.msra.mxu0 0.0
      %6585 = vmatprep.subr.mxu0 0.0
      %6586 = vmatpush1.msra.mxu0 0.0
      %6587 = vmatprep.subr.mxu0 0.0
      %6588 = vmatpush1.msra.mxu0 0.0
      %6589 = vmatprep.subr.mxu0 0.0
      %6590 = vmatpush1.msra.mxu0 0.0
      %6591 = vmatprep.subr.mxu0 0.0
      %6592 = vmatpush1.msra.mxu0 0.0
      %6593 = vmatprep.subr.mxu0 0.0
      %6594 = vmatpush1.msra.mxu0 0.0
      %6595 = vmatprep.subr.mxu0 0.0
      %6596 = vmatpush1.msra.mxu0 0.0
      %6597 = vmatprep.subr.mxu0 0.0
      %6598 = vmatpush1.msra.mxu0 0.0
      %6599 = vmatprep.subr.mxu0 0.0
      %6600 = vmatpush1.msra.mxu0 0.0
      %6601 = vmatprep.subr.mxu0 0.0
      %6602 = vmatpush1.msra.mxu0 0.0
      %6603 = vmatprep.subr.mxu0 0.0
      %6604 = vmatpush1.msra.mxu0 0.0
      %6605 = vmatprep.subr.mxu0 0.0
      %6606 = vmatpush1.msra.mxu0 0.0
      %6607 = vmatprep.mubr.f32.mxu0 0.0
      %6608 = vmatmul.mubr.f32.gmra.mrb[0].mxu0 %v6541
      %v6609 = vpop.f32.mrb[0].mxu0
      %v6610 = vadd.f32 0.0, %v6609
      %v6611 = vpop.f32.mrb[0].mxu0
      %6612 = vdwg.mxu0
      %v6621 = vrot.slane %v3906, 7
      %v6622 = vsel %vm6521, %v6621, %v3904
      %v6623 = vrot.slane %v3908, 6
      %v6624 = vsel %vm6524, %v6623, %v6622
      %v6625 = vrot.slane %v3910, 5
      %v6626 = vsel %vm6527, %v6625, %v6624
      %v6627 = vrot.slane %v3912, 4
      %v6628 = vsel %vm6530, %v6627, %v6626
      %v6629 = vrot.slane %v3914, 3
      %v6630 = vsel %vm6533, %v6629, %v6628
      %v6631 = vrot.slane %v3916, 2
      %v6632 = vsel %vm6536, %v6631, %v6630
      %v6633 = vrot.slane %v3918, 1
      %v6634 = vsel %vm6539, %v6633, %v6632
      %v6635 = vsel %vm564, %v6634, 0
      %6637 = vmatprep.subr.mxu0 0.0
      %6638 = vmatpush1.msra.mxu0 %v6504
      %6639 = vmatprep.subr.mxu0 0.0
      %6640 = vmatpush1.msra.mxu0 %v6505
      %6641 = vmatprep.subr.mxu0 0.0
      %6642 = vmatpush1.msra.mxu0 %v6506
      %6643 = vmatprep.subr.mxu0 0.0
      %6644 = vmatpush1.msra.mxu0 %v6507
      %6645 = vmatprep.subr.mxu0 0.0
      %6646 = vmatpush1.msra.mxu0 0.0
      %6647 = vmatprep.subr.mxu0 0.0
      %6648 = vmatpush1.msra.mxu0 0.0
      %6649 = vmatprep.subr.mxu0 0.0
      %6650 = vmatpush1.msra.mxu0 0.0
      %6651 = vmatprep.subr.mxu0 0.0
      %6652 = vmatpush1.msra.mxu0 0.0
      %6653 = vmatprep.subr.mxu0 0.0
      %6654 = vmatpush1.msra.mxu0 0.0
      %6655 = vmatprep.subr.mxu0 0.0
      %6656 = vmatpush1.msra.mxu0 0.0
      %6657 = vmatprep.subr.mxu0 0.0
      %6658 = vmatpush1.msra.mxu0 0.0
      %6659 = vmatprep.subr.mxu0 0.0
      %6660 = vmatpush1.msra.mxu0 0.0
      %6661 = vmatprep.subr.mxu0 0.0
      %6662 = vmatpush1.msra.mxu0 0.0
      %6663 = vmatprep.subr.mxu0 0.0
      %6664 = vmatpush1.msra.mxu0 0.0
      %6665 = vmatprep.subr.mxu0 0.0
      %6666 = vmatpush1.msra.mxu0 0.0
      %6667 = vmatprep.subr.mxu0 0.0
      %6668 = vmatpush1.msra.mxu0 0.0
      %6669 = vmatprep.subr.mxu0 0.0
      %6670 = vmatpush1.msra.mxu0 0.0
      %6671 = vmatprep.subr.mxu0 0.0
      %6672 = vmatpush1.msra.mxu0 0.0
      %6673 = vmatprep.subr.mxu0 0.0
      %6674 = vmatpush1.msra.mxu0 0.0
      %6675 = vmatprep.subr.mxu0 0.0
      %6676 = vmatpush1.msra.mxu0 0.0
      %6677 = vmatprep.subr.mxu0 0.0
      %6678 = vmatpush1.msra.mxu0 0.0
      %6679 = vmatprep.subr.mxu0 0.0
      %6680 = vmatpush1.msra.mxu0 0.0
      %6681 = vmatprep.subr.mxu0 0.0
      %6682 = vmatpush1.msra.mxu0 0.0
      %6683 = vmatprep.subr.mxu0 0.0
      %6684 = vmatpush1.msra.mxu0 0.0
      %6685 = vmatprep.subr.mxu0 0.0
      %6686 = vmatpush1.msra.mxu0 0.0
      %6687 = vmatprep.subr.mxu0 0.0
      %6688 = vmatpush1.msra.mxu0 0.0
      %6689 = vmatprep.subr.mxu0 0.0
      %6690 = vmatpush1.msra.mxu0 0.0
      %6691 = vmatprep.subr.mxu0 0.0
      %6692 = vmatpush1.msra.mxu0 0.0
      %6693 = vmatprep.subr.mxu0 0.0
      %6694 = vmatpush1.msra.mxu0 0.0
      %6695 = vmatprep.subr.mxu0 0.0
      %6696 = vmatpush1.msra.mxu0 0.0
      %6697 = vmatprep.subr.mxu0 0.0
      %6698 = vmatpush1.msra.mxu0 0.0
      %6699 = vmatprep.subr.mxu0 0.0
      %6700 = vmatpush1.msra.mxu0 0.0
      %6701 = vmatprep.mubr.f32.mxu0 0.0
      %6702 = vmatmul.mubr.f32.gmra.mrb[0].mxu0 %v6635
      %v6703 = vpop.f32.mrb[0].mxu0
      %v6704 = vadd.f32 %v6610, %v6703
      %v6705 = vpop.f32.mrb[0].mxu0
      %6706 = vdwg.mxu0
      %6707 = vrot.lane.b32.xlu0 %v5739, 64
      %v6708 = vpop.permute.xlu0 %6707
      %v6710 = vadd.f32 %v6704, %v6708
      %v6711 = vld [vmem:[%s5 + $0x38] sm:$0xff]
      %v6712 = vld [vmem:[%s5 + $0xa8] sm:$0xff]
      %v6713 = vld [vmem:[%s5 + $0x118] sm:$0xff]
      %v6714 = vld [vmem:[%s5 + $0x188] sm:$0xff]
      %6715 = vrot.lane.b32.xlu0 %v5739, 32
      %v6716 = vpop.permute.xlu0 %6715
      %v6719 = vsel %vm564, %v6710, 0
      %6721 = vmatprep.subr.mxu0 0.0
      %6722 = vmatpush1.msra.mxu0 %v6711
      %6723 = vmatprep.subr.mxu0 0.0
      %6724 = vmatpush1.msra.mxu0 %v6712
      %6725 = vmatprep.subr.mxu0 0.0
      %6726 = vmatpush1.msra.mxu0 %v6713
      %6727 = vmatprep.subr.mxu0 0.0
      %6728 = vmatpush1.msra.mxu0 %v6714
      %6729 = vmatprep.subr.mxu0 0.0
      %6730 = vmatpush1.msra.mxu0 0.0
      %6731 = vmatprep.subr.mxu0 0.0
      %6732 = vmatpush1.msra.mxu0 0.0
      %6733 = vmatprep.subr.mxu0 0.0
      %6734 = vmatpush1.msra.mxu0 0.0
      %6735 = vmatprep.subr.mxu0 0.0
      %6736 = vmatpush1.msra.mxu0 0.0
      %6737 = vmatprep.subr.mxu0 0.0
      %6738 = vmatpush1.msra.mxu0 0.0
      %6739 = vmatprep.subr.mxu0 0.0
      %6740 = vmatpush1.msra.mxu0 0.0
      %6741 = vmatprep.subr.mxu0 0.0
      %6742 = vmatpush1.msra.mxu0 0.0
      %6743 = vmatprep.subr.mxu0 0.0
      %6744 = vmatpush1.msra.mxu0 0.0
      %6745 = vmatprep.subr.mxu0 0.0
      %6746 = vmatpush1.msra.mxu0 0.0
      %6747 = vmatprep.subr.mxu0 0.0
      %6748 = vmatpush1.msra.mxu0 0.0
      %6749 = vmatprep.subr.mxu0 0.0
      %6750 = vmatpush1.msra.mxu0 0.0
      %6751 = vmatprep.subr.mxu0 0.0
      %6752 = vmatpush1.msra.mxu0 0.0
      %6753 = vmatprep.subr.mxu0 0.0
      %6754 = vmatpush1.msra.mxu0 0.0
      %6755 = vmatprep.subr.mxu0 0.0
      %6756 = vmatpush1.msra.mxu0 0.0
      %6757 = vmatprep.subr.mxu0 0.0
      %6758 = vmatpush1.msra.mxu0 0.0
      %6759 = vmatprep.subr.mxu0 0.0
      %6760 = vmatpush1.msra.mxu0 0.0
      %6761 = vmatprep.subr.mxu0 0.0
      %6762 = vmatpush1.msra.mxu0 0.0
      %6763 = vmatprep.subr.mxu0 0.0
      %6764 = vmatpush1.msra.mxu0 0.0
      %6765 = vmatprep.subr.mxu0 0.0
      %6766 = vmatpush1.msra.mxu0 0.0
      %6767 = vmatprep.subr.mxu0 0.0
      %6768 = vmatpush1.msra.mxu0 0.0
      %6769 = vmatprep.subr.mxu0 0.0
      %6770 = vmatpush1.msra.mxu0 0.0
      %6771 = vmatprep.subr.mxu0 0.0
      %6772 = vmatpush1.msra.mxu0 0.0
      %6773 = vmatprep.subr.mxu0 0.0
      %6774 = vmatpush1.msra.mxu0 0.0
      %6775 = vmatprep.subr.mxu0 0.0
      %6776 = vmatpush1.msra.mxu0 0.0
      %6777 = vmatprep.subr.mxu0 0.0
      %6778 = vmatpush1.msra.mxu0 0.0
      %6779 = vmatprep.subr.mxu0 0.0
      %6780 = vmatpush1.msra.mxu0 0.0
      %6781 = vmatprep.subr.mxu0 0.0
      %6782 = vmatpush1.msra.mxu0 0.0
      %6783 = vmatprep.subr.mxu0 0.0
      %6784 = vmatpush1.msra.mxu0 0.0
      %6785 = vmatprep.mubr.f32.mxu0 0.0
      %6786 = vmatmul.mubr.f32.gmra.mrb[0].mxu0 %v6719
      %v6787 = vpop.f32.mrb[0].mxu0
      %v6788 = vadd.f32 %v6716, %v6787
      %v6789 = vpop.f32.mrb[0].mxu0
      %6790 = vdwg.mxu0
      %v6792 = vcombine.high %v6788, %v6788
      %v6794 = vunpack.c.l.s4 1966171168
      %v6795 = vunpack.c.0.s8 %v6794
      %v6796 = vlaneseq
      %v6797 = vshrl.u32 %v6796, 7
      %v6798 = vsub.s32 %v6795, %v6797
      %v6799 = vrot.slane %v6788, %v6798
      %v6801 = vunpack.c.l.s4 1966171168
      %v6802 = vunpack.c.0.s8 %v6801
      %v6803 = vlaneseq
      %v6804 = vshrl.u32 %v6803, 7
      %v6805 = vsub.s32 %v6802, %v6804
      %v6806 = vrot.slane %v6792, %v6805
      %v6807 = vcombine.high %v6799, %v6799
      %v6808 = vcombine.high %v6806, %v6806
      %v6810 = vunpack.c.l.s4 1966171168
      %v6811 = vunpack.c.0.s8 %v6810
      %v6812 = vlaneseq
      %v6813 = vshrl.u32 %v6812, 7
      %v6814 = vsub.s32 %v6811, %v6813
      %v6815 = vrot.slane %v6799, %v6814
      %v6817 = vunpack.c.l.s4 1966171168
      %v6818 = vunpack.c.0.s8 %v6817
      %v6819 = vlaneseq
      %v6820 = vshrl.u32 %v6819, 7
      %v6821 = vsub.s32 %v6818, %v6820
      %v6822 = vrot.slane %v6806, %v6821
      %v6824 = vunpack.c.l.s4 1966171168
      %v6825 = vunpack.c.0.s8 %v6824
      %v6826 = vlaneseq
      %v6827 = vshrl.u32 %v6826, 7
      %v6828 = vsub.s32 %v6825, %v6827
      %v6829 = vrot.slane %v6807, %v6828
      %v6831 = vunpack.c.l.s4 1966171168
      %v6832 = vunpack.c.0.s8 %v6831
      %v6833 = vlaneseq
      %v6834 = vshrl.u32 %v6833, 7
      %v6835 = vsub.s32 %v6832, %v6834
      %v6836 = vrot.slane %v6808, %v6835
      %v6837 = vcombine.high %v6815, %v6815
      %v6838 = vcombine.high %v6822, %v6822
      %v6839 = vcombine.high %v6829, %v6829
      %v6840 = vcombine.high %v6836, %v6836
      %v6841 = vld [vmem:[%s5 + $0x40] sm:$0xff]
      %v6842 = vld [vmem:[%s5 + $0xb0] sm:$0xff]
      %v6843 = vld [vmem:[%s5 + $0x120] sm:$0xff]
      %v6844 = vld [vmem:[%s5 + $0x190] sm:$0xff]
      %v6845 = vld [vmem:[%s6 + $0x4] sm:$0x1]
      %v6847 = vlaneseq
      %v6848 = vshrl.u32 %v6847, 7
      %v6849 = vsub.s32 0, %v6848
      %v6850 = vrot.slane %v6845, %v6849
      %v6853 = vsel %vm564, %v3249, 0
      %v6856 = vsel %vm564, %v3254, 0
      %v6859 = vsel %vm564, %v3259, 0
      %v6862 = vsel %vm564, %v3264, 0
      %v6865 = vsel %vm564, %v3269, 0
      %v6868 = vsel %vm564, %v3274, 0
      %v6871 = vsel %vm564, %v3279, 0
      %v6874 = vsel %vm564, %v3284, 0
      %6876 = vmatprep.subr.mxu0 0.0
      %6877 = vmatpush1.msra.mxu0 %v6841
      %6878 = vmatprep.subr.mxu0 0.0
      %6879 = vmatpush1.msra.mxu0 %v6842
      %6880 = vmatprep.subr.mxu0 0.0
      %6881 = vmatpush1.msra.mxu0 %v6843
      %6882 = vmatprep.subr.mxu0 0.0
      %6883 = vmatpush1.msra.mxu0 %v6844
      %6884 = vmatprep.subr.mxu0 0.0
      %6885 = vmatpush1.msra.mxu0 0.0
      %6886 = vmatprep.subr.mxu0 0.0
      %6887 = vmatpush1.msra.mxu0 0.0
      %6888 = vmatprep.subr.mxu0 0.0
      %6889 = vmatpush1.msra.mxu0 0.0
      %6890 = vmatprep.subr.mxu0 0.0
      %6891 = vmatpush1.msra.mxu0 0.0
      %6892 = vmatprep.subr.mxu0 0.0
      %6893 = vmatpush1.msra.mxu0 0.0
      %6894 = vmatprep.subr.mxu0 0.0
      %6895 = vmatpush1.msra.mxu0 0.0
      %6896 = vmatprep.subr.mxu0 0.0
      %6897 = vmatpush1.msra.mxu0 0.0
      %6898 = vmatprep.subr.mxu0 0.0
      %6899 = vmatpush1.msra.mxu0 0.0
      %6900 = vmatprep.subr.mxu0 0.0
      %6901 = vmatpush1.msra.mxu0 0.0
      %6902 = vmatprep.subr.mxu0 0.0
      %6903 = vmatpush1.msra.mxu0 0.0
      %6904 = vmatprep.subr.mxu0 0.0
      %6905 = vmatpush1.msra.mxu0 0.0
      %6906 = vmatprep.subr.mxu0 0.0
      %6907 = vmatpush1.msra.mxu0 0.0
      %6908 = vmatprep.subr.mxu0 0.0
      %6909 = vmatpush1.msra.mxu0 0.0
      %6910 = vmatprep.subr.mxu0 0.0
      %6911 = vmatpush1.msra.mxu0 0.0
      %6912 = vmatprep.subr.mxu0 0.0
      %6913 = vmatpush1.msra.mxu0 0.0
      %6914 = vmatprep.subr.mxu0 0.0
      %6915 = vmatpush1.msra.mxu0 0.0
      %6916 = vmatprep.subr.mxu0 0.0
      %6917 = vmatpush1.msra.mxu0 0.0
      %6918 = vmatprep.subr.mxu0 0.0
      %6919 = vmatpush1.msra.mxu0 0.0
      %6920 = vmatprep.subr.mxu0 0.0
      %6921 = vmatpush1.msra.mxu0 0.0
      %6922 = vmatprep.subr.mxu0 0.0
      %6923 = vmatpush1.msra.mxu0 0.0
      %6924 = vmatprep.subr.mxu0 0.0
      %6925 = vmatpush1.msra.mxu0 0.0
      %6926 = vmatprep.subr.mxu0 0.0
      %6927 = vmatpush1.msra.mxu0 0.0
      %6928 = vmatprep.subr.mxu0 0.0
      %6929 = vmatpush1.msra.mxu0 0.0
      %6930 = vmatprep.subr.mxu0 0.0
      %6931 = vmatpush1.msra.mxu0 0.0
      %6932 = vmatprep.subr.mxu0 0.0
      %6933 = vmatpush1.msra.mxu0 0.0
      %6934 = vmatprep.subr.mxu0 0.0
      %6935 = vmatpush1.msra.mxu0 0.0
      %6936 = vmatprep.subr.mxu0 0.0
      %6937 = vmatpush1.msra.mxu0 0.0
      %6938 = vmatprep.subr.mxu0 0.0
      %6939 = vmatpush1.msra.mxu0 0.0
      %6940 = vmatprep.mubr.f32.mxu0 0.0
      %6941 = vmatmul.mubr.f32.gmra.mrb[0].mxu0 %v6853
      %v6942 = vpop.f32.mrb[0].mxu0
      %v6943 = vadd.f32 %v6850, %v6942
      %v6944 = vpop.f32.mrb[0].mxu0
      %6945 = vmatprep.mubr.f32.mxu0 0.0
      %6946 = vmatmul.mubr.f32.gmra.mrb[0].mxu0 %v6856
      %v6947 = vpop.f32.mrb[0].mxu0
      %v6948 = vadd.f32 %v6850, %v6947
      %v6949 = vpop.f32.mrb[0].mxu0
      %6950 = vmatprep.mubr.f32.mxu0 0.0
      %6951 = vmatmul.mubr.f32.gmra.mrb[0].mxu0 %v6859
      %v6952 = vpop.f32.mrb[0].mxu0
      %v6953 = vadd.f32 %v6850, %v6952
      %v6954 = vpop.f32.mrb[0].mxu0
      %6955 = vmatprep.mubr.f32.mxu0 0.0
      %6956 = vmatmul.mubr.f32.gmra.mrb[0].mxu0 %v6862
      %v6957 = vpop.f32.mrb[0].mxu0
      %v6958 = vadd.f32 %v6850, %v6957
      %v6959 = vpop.f32.mrb[0].mxu0
      %6960 = vmatprep.mubr.f32.mxu0 0.0
      %6961 = vmatmul.mubr.f32.gmra.mrb[0].mxu0 %v6865
      %v6962 = vpop.f32.mrb[0].mxu0
      %v6963 = vadd.f32 %v6850, %v6962
      %v6964 = vpop.f32.mrb[0].mxu0
      %6965 = vmatprep.mubr.f32.mxu0 0.0
      %6966 = vmatmul.mubr.f32.gmra.mrb[0].mxu0 %v6868
      %v6967 = vpop.f32.mrb[0].mxu0
      %v6968 = vadd.f32 %v6850, %v6967
      %v6969 = vpop.f32.mrb[0].mxu0
      %6970 = vmatprep.mubr.f32.mxu0 0.0
      %6971 = vmatmul.mubr.f32.gmra.mrb[0].mxu0 %v6871
      %v6972 = vpop.f32.mrb[0].mxu0
      %v6973 = vadd.f32 %v6850, %v6972
      %v6974 = vpop.f32.mrb[0].mxu0
      %6975 = vmatprep.mubr.f32.mxu0 0.0
      %6976 = vmatmul.mubr.f32.gmra.mrb[0].mxu0 %v6874
      %v6977 = vpop.f32.mrb[0].mxu0
      %v6978 = vadd.f32 %v6850, %v6977
      %v6979 = vpop.f32.mrb[0].mxu0
      %6980 = vdwg.mxu0
      %v6981 = vsel %vm564, %v6815, 0
      %v6984 = vsel %vm564, %v6943, 0
      %6986 = vmatprep.subr.mxu0 0.0
      %6987 = vmatpush1.xpose.msra.mxu0 %v6984
      %6988 = vmatprep.subr.mxu0 0.0
      %6989 = vmatpush1.xpose.msra.mxu0 0.0
      %6990 = vmatprep.subr.mxu0 0.0
      %6991 = vmatpush1.xpose.msra.mxu0 0.0
      %6992 = vmatprep.subr.mxu0 0.0
      %6993 = vmatpush1.xpose.msra.mxu0 0.0
      %6994 = vmatprep.subr.mxu0 0.0
      %6995 = vmatpush1.xpose.msra.mxu0 0.0
      %6996 = vmatprep.subr.mxu0 0.0
      %6997 = vmatpush1.xpose.msra.mxu0 0.0
      %6998 = vmatprep.subr.mxu0 0.0
      %6999 = vmatpush1.xpose.msra.mxu0 0.0
      %7000 = vmatprep.subr.mxu0 0.0
      %7001 = vmatpush1.xpose.msra.mxu0 0.0
      %7002 = vmatprep.subr.mxu0 0.0
      %7003 = vmatpush1.xpose.msra.mxu0 0.0
      %7004 = vmatprep.subr.mxu0 0.0
      %7005 = vmatpush1.xpose.msra.mxu0 0.0
      %7006 = vmatprep.subr.mxu0 0.0
      %7007 = vmatpush1.xpose.msra.mxu0 0.0
      %7008 = vmatprep.subr.mxu0 0.0
      %7009 = vmatpush1.xpose.msra.mxu0 0.0
      %7010 = vmatprep.subr.mxu0 0.0
      %7011 = vmatpush1.xpose.msra.mxu0 0.0
      %7012 = vmatprep.subr.mxu0 0.0
      %7013 = vmatpush1.xpose.msra.mxu0 0.0
      %7014 = vmatprep.subr.mxu0 0.0
      %7015 = vmatpush1.xpose.msra.mxu0 0.0
      %7016 = vmatprep.subr.mxu0 0.0
      %7017 = vmatpush1.xpose.msra.mxu0 0.0
      %7018 = vmatprep.subr.mxu0 0.0
      %7019 = vmatpush1.xpose.msra.mxu0 0.0
      %7020 = vmatprep.subr.mxu0 0.0
      %7021 = vmatpush1.xpose.msra.mxu0 0.0
      %7022 = vmatprep.subr.mxu0 0.0
      %7023 = vmatpush1.xpose.msra.mxu0 0.0
      %7024 = vmatprep.subr.mxu0 0.0
      %7025 = vmatpush1.xpose.msra.mxu0 0.0
      %7026 = vmatprep.subr.mxu0 0.0
      %7027 = vmatpush1.xpose.msra.mxu0 0.0
      %7028 = vmatprep.subr.mxu0 0.0
      %7029 = vmatpush1.xpose.msra.mxu0 0.0
      %7030 = vmatprep.subr.mxu0 0.0
      %7031 = vmatpush1.xpose.msra.mxu0 0.0
      %7032 = vmatprep.subr.mxu0 0.0
      %7033 = vmatpush1.xpose.msra.mxu0 0.0
      %7034 = vmatprep.subr.mxu0 0.0
      %7035 = vmatpush1.xpose.msra.mxu0 0.0
      %7036 = vmatprep.subr.mxu0 0.0
      %7037 = vmatpush1.xpose.msra.mxu0 0.0
      %7038 = vmatprep.subr.mxu0 0.0
      %7039 = vmatpush1.xpose.msra.mxu0 0.0
      %7040 = vmatprep.subr.mxu0 0.0
      %7041 = vmatpush1.xpose.msra.mxu0 0.0
      %7042 = vmatprep.subr.mxu0 0.0
      %7043 = vmatpush1.xpose.msra.mxu0 0.0
      %7044 = vmatprep.subr.mxu0 0.0
      %7045 = vmatpush1.xpose.msra.mxu0 0.0
      %7046 = vmatprep.subr.mxu0 0.0
      %7047 = vmatpush1.xpose.msra.mxu0 0.0
      %7048 = vmatprep.subr.mxu0 0.0
      %7049 = vmatpush1.xpose.msra.mxu0 0.0
      %7050 = vmatprep.mubr.f32.mxu0 0.0
      %7051 = vmatmul.mubr.f32.gmra.mrb[0].mxu0 %v6981
      %v7052 = vpop.f32.mrb[0].mxu0
      %v7053 = vadd.f32 0.0, %v7052
      %v7054 = vpop.f32.mrb[0].mxu0
      %7055 = vdwg.mxu0
      %v7056 = vsel %vm564, %v6829, 0
      %v7059 = vsel %vm564, %v6948, 0
      %7061 = vmatprep.subr.mxu0 0.0
      %7062 = vmatpush1.xpose.msra.mxu0 %v7059
      %7063 = vmatprep.subr.mxu0 0.0
      %7064 = vmatpush1.xpose.msra.mxu0 0.0
      %7065 = vmatprep.subr.mxu0 0.0
      %7066 = vmatpush1.xpose.msra.mxu0 0.0
      %7067 = vmatprep.subr.mxu0 0.0
      %7068 = vmatpush1.xpose.msra.mxu0 0.0
      %7069 = vmatprep.subr.mxu0 0.0
      %7070 = vmatpush1.xpose.msra.mxu0 0.0
      %7071 = vmatprep.subr.mxu0 0.0
      %7072 = vmatpush1.xpose.msra.mxu0 0.0
      %7073 = vmatprep.subr.mxu0 0.0
      %7074 = vmatpush1.xpose.msra.mxu0 0.0
      %7075 = vmatprep.subr.mxu0 0.0
      %7076 = vmatpush1.xpose.msra.mxu0 0.0
      %7077 = vmatprep.subr.mxu0 0.0
      %7078 = vmatpush1.xpose.msra.mxu0 0.0
      %7079 = vmatprep.subr.mxu0 0.0
      %7080 = vmatpush1.xpose.msra.mxu0 0.0
      %7081 = vmatprep.subr.mxu0 0.0
      %7082 = vmatpush1.xpose.msra.mxu0 0.0
      %7083 = vmatprep.subr.mxu0 0.0
      %7084 = vmatpush1.xpose.msra.mxu0 0.0
      %7085 = vmatprep.subr.mxu0 0.0
      %7086 = vmatpush1.xpose.msra.mxu0 0.0
      %7087 = vmatprep.subr.mxu0 0.0
      %7088 = vmatpush1.xpose.msra.mxu0 0.0
      %7089 = vmatprep.subr.mxu0 0.0
      %7090 = vmatpush1.xpose.msra.mxu0 0.0
      %7091 = vmatprep.subr.mxu0 0.0
      %7092 = vmatpush1.xpose.msra.mxu0 0.0
      %7093 = vmatprep.subr.mxu0 0.0
      %7094 = vmatpush1.xpose.msra.mxu0 0.0
      %7095 = vmatprep.subr.mxu0 0.0
      %7096 = vmatpush1.xpose.msra.mxu0 0.0
      %7097 = vmatprep.subr.mxu0 0.0
      %7098 = vmatpush1.xpose.msra.mxu0 0.0
      %7099 = vmatprep.subr.mxu0 0.0
      %7100 = vmatpush1.xpose.msra.mxu0 0.0
      %7101 = vmatprep.subr.mxu0 0.0
      %7102 = vmatpush1.xpose.msra.mxu0 0.0
      %7103 = vmatprep.subr.mxu0 0.0
      %7104 = vmatpush1.xpose.msra.mxu0 0.0
      %7105 = vmatprep.subr.mxu0 0.0
      %7106 = vmatpush1.xpose.msra.mxu0 0.0
      %7107 = vmatprep.subr.mxu0 0.0
      %7108 = vmatpush1.xpose.msra.mxu0 0.0
      %7109 = vmatprep.subr.mxu0 0.0
      %7110 = vmatpush1.xpose.msra.mxu0 0.0
      %7111 = vmatprep.subr.mxu0 0.0
      %7112 = vmatpush1.xpose.msra.mxu0 0.0
      %7113 = vmatprep.subr.mxu0 0.0
      %7114 = vmatpush1.xpose.msra.mxu0 0.0
      %7115 = vmatprep.subr.mxu0 0.0
      %7116 = vmatpush1.xpose.msra.mxu0 0.0
      %7117 = vmatprep.subr.mxu0 0.0
      %7118 = vmatpush1.xpose.msra.mxu0 0.0
      %7119 = vmatprep.subr.mxu0 0.0
      %7120 = vmatpush1.xpose.msra.mxu0 0.0
      %7121 = vmatprep.subr.mxu0 0.0
      %7122 = vmatpush1.xpose.msra.mxu0 0.0
      %7123 = vmatprep.subr.mxu0 0.0
      %7124 = vmatpush1.xpose.msra.mxu0 0.0
      %7125 = vmatprep.mubr.f32.mxu0 0.0
      %7126 = vmatmul.mubr.f32.gmra.mrb[0].mxu0 %v7056
      %v7127 = vpop.f32.mrb[0].mxu0
      %v7128 = vadd.f32 0.0, %v7127
      %v7129 = vpop.f32.mrb[0].mxu0
      %7130 = vdwg.mxu0
      %v7131 = vsel %vm564, %v6837, 0
      %v7134 = vsel %vm564, %v6953, 0
      %7136 = vmatprep.subr.mxu0 0.0
      %7137 = vmatpush1.xpose.msra.mxu0 %v7134
      %7138 = vmatprep.subr.mxu0 0.0
      %7139 = vmatpush1.xpose.msra.mxu0 0.0
      %7140 = vmatprep.subr.mxu0 0.0
      %7141 = vmatpush1.xpose.msra.mxu0 0.0
      %7142 = vmatprep.subr.mxu0 0.0
      %7143 = vmatpush1.xpose.msra.mxu0 0.0
      %7144 = vmatprep.subr.mxu0 0.0
      %7145 = vmatpush1.xpose.msra.mxu0 0.0
      %7146 = vmatprep.subr.mxu0 0.0
      %7147 = vmatpush1.xpose.msra.mxu0 0.0
      %7148 = vmatprep.subr.mxu0 0.0
      %7149 = vmatpush1.xpose.msra.mxu0 0.0
      %7150 = vmatprep.subr.mxu0 0.0
      %7151 = vmatpush1.xpose.msra.mxu0 0.0
      %7152 = vmatprep.subr.mxu0 0.0
      %7153 = vmatpush1.xpose.msra.mxu0 0.0
      %7154 = vmatprep.subr.mxu0 0.0
      %7155 = vmatpush1.xpose.msra.mxu0 0.0
      %7156 = vmatprep.subr.mxu0 0.0
      %7157 = vmatpush1.xpose.msra.mxu0 0.0
      %7158 = vmatprep.subr.mxu0 0.0
      %7159 = vmatpush1.xpose.msra.mxu0 0.0
      %7160 = vmatprep.subr.mxu0 0.0
      %7161 = vmatpush1.xpose.msra.mxu0 0.0
      %7162 = vmatprep.subr.mxu0 0.0
      %7163 = vmatpush1.xpose.msra.mxu0 0.0
      %7164 = vmatprep.subr.mxu0 0.0
      %7165 = vmatpush1.xpose.msra.mxu0 0.0
      %7166 = vmatprep.subr.mxu0 0.0
      %7167 = vmatpush1.xpose.msra.mxu0 0.0
      %7168 = vmatprep.subr.mxu0 0.0
      %7169 = vmatpush1.xpose.msra.mxu0 0.0
      %7170 = vmatprep.subr.mxu0 0.0
      %7171 = vmatpush1.xpose.msra.mxu0 0.0
      %7172 = vmatprep.subr.mxu0 0.0
      %7173 = vmatpush1.xpose.msra.mxu0 0.0
      %7174 = vmatprep.subr.mxu0 0.0
      %7175 = vmatpush1.xpose.msra.mxu0 0.0
      %7176 = vmatprep.subr.mxu0 0.0
      %7177 = vmatpush1.xpose.msra.mxu0 0.0
      %7178 = vmatprep.subr.mxu0 0.0
      %7179 = vmatpush1.xpose.msra.mxu0 0.0
      %7180 = vmatprep.subr.mxu0 0.0
      %7181 = vmatpush1.xpose.msra.mxu0 0.0
      %7182 = vmatprep.subr.mxu0 0.0
      %7183 = vmatpush1.xpose.msra.mxu0 0.0
      %7184 = vmatprep.subr.mxu0 0.0
      %7185 = vmatpush1.xpose.msra.mxu0 0.0
      %7186 = vmatprep.subr.mxu0 0.0
      %7187 = vmatpush1.xpose.msra.mxu0 0.0
      %7188 = vmatprep.subr.mxu0 0.0
      %7189 = vmatpush1.xpose.msra.mxu0 0.0
      %7190 = vmatprep.subr.mxu0 0.0
      %7191 = vmatpush1.xpose.msra.mxu0 0.0
      %7192 = vmatprep.subr.mxu0 0.0
      %7193 = vmatpush1.xpose.msra.mxu0 0.0
      %7194 = vmatprep.subr.mxu0 0.0
      %7195 = vmatpush1.xpose.msra.mxu0 0.0
      %7196 = vmatprep.subr.mxu0 0.0
      %7197 = vmatpush1.xpose.msra.mxu0 0.0
      %7198 = vmatprep.subr.mxu0 0.0
      %7199 = vmatpush1.xpose.msra.mxu0 0.0
      %7200 = vmatprep.mubr.f32.mxu0 0.0
      %7201 = vmatmul.mubr.f32.gmra.mrb[0].mxu0 %v7131
      %v7202 = vpop.f32.mrb[0].mxu0
      %v7203 = vadd.f32 0.0, %v7202
      %v7204 = vpop.f32.mrb[0].mxu0
      %7205 = vdwg.mxu0
      %v7206 = vsel %vm564, %v6839, 0
      %v7209 = vsel %vm564, %v6958, 0
      %7211 = vmatprep.subr.mxu0 0.0
      %7212 = vmatpush1.xpose.msra.mxu0 %v7209
      %7213 = vmatprep.subr.mxu0 0.0
      %7214 = vmatpush1.xpose.msra.mxu0 0.0
      %7215 = vmatprep.subr.mxu0 0.0
      %7216 = vmatpush1.xpose.msra.mxu0 0.0
      %7217 = vmatprep.subr.mxu0 0.0
      %7218 = vmatpush1.xpose.msra.mxu0 0.0
      %7219 = vmatprep.subr.mxu0 0.0
      %7220 = vmatpush1.xpose.msra.mxu0 0.0
      %7221 = vmatprep.subr.mxu0 0.0
      %7222 = vmatpush1.xpose.msra.mxu0 0.0
      %7223 = vmatprep.subr.mxu0 0.0
      %7224 = vmatpush1.xpose.msra.mxu0 0.0
      %7225 = vmatprep.subr.mxu0 0.0
      %7226 = vmatpush1.xpose.msra.mxu0 0.0
      %7227 = vmatprep.subr.mxu0 0.0
      %7228 = vmatpush1.xpose.msra.mxu0 0.0
      %7229 = vmatprep.subr.mxu0 0.0
      %7230 = vmatpush1.xpose.msra.mxu0 0.0
      %7231 = vmatprep.subr.mxu0 0.0
      %7232 = vmatpush1.xpose.msra.mxu0 0.0
      %7233 = vmatprep.subr.mxu0 0.0
      %7234 = vmatpush1.xpose.msra.mxu0 0.0
      %7235 = vmatprep.subr.mxu0 0.0
      %7236 = vmatpush1.xpose.msra.mxu0 0.0
      %7237 = vmatprep.subr.mxu0 0.0
      %7238 = vmatpush1.xpose.msra.mxu0 0.0
      %7239 = vmatprep.subr.mxu0 0.0
      %7240 = vmatpush1.xpose.msra.mxu0 0.0
      %7241 = vmatprep.subr.mxu0 0.0
      %7242 = vmatpush1.xpose.msra.mxu0 0.0
      %7243 = vmatprep.subr.mxu0 0.0
      %7244 = vmatpush1.xpose.msra.mxu0 0.0
      %7245 = vmatprep.subr.mxu0 0.0
      %7246 = vmatpush1.xpose.msra.mxu0 0.0
      %7247 = vmatprep.subr.mxu0 0.0
      %7248 = vmatpush1.xpose.msra.mxu0 0.0
      %7249 = vmatprep.subr.mxu0 0.0
      %7250 = vmatpush1.xpose.msra.mxu0 0.0
      %7251 = vmatprep.subr.mxu0 0.0
      %7252 = vmatpush1.xpose.msra.mxu0 0.0
      %7253 = vmatprep.subr.mxu0 0.0
      %7254 = vmatpush1.xpose.msra.mxu0 0.0
      %7255 = vmatprep.subr.mxu0 0.0
      %7256 = vmatpush1.xpose.msra.mxu0 0.0
      %7257 = vmatprep.subr.mxu0 0.0
      %7258 = vmatpush1.xpose.msra.mxu0 0.0
      %7259 = vmatprep.subr.mxu0 0.0
      %7260 = vmatpush1.xpose.msra.mxu0 0.0
      %7261 = vmatprep.subr.mxu0 0.0
      %7262 = vmatpush1.xpose.msra.mxu0 0.0
      %7263 = vmatprep.subr.mxu0 0.0
      %7264 = vmatpush1.xpose.msra.mxu0 0.0
      %7265 = vmatprep.subr.mxu0 0.0
      %7266 = vmatpush1.xpose.msra.mxu0 0.0
      %7267 = vmatprep.subr.mxu0 0.0
      %7268 = vmatpush1.xpose.msra.mxu0 0.0
      %7269 = vmatprep.subr.mxu0 0.0
      %7270 = vmatpush1.xpose.msra.mxu0 0.0
      %7271 = vmatprep.subr.mxu0 0.0
      %7272 = vmatpush1.xpose.msra.mxu0 0.0
      %7273 = vmatprep.subr.mxu0 0.0
      %7274 = vmatpush1.xpose.msra.mxu0 0.0
      %7275 = vmatprep.mubr.f32.mxu0 0.0
      %7276 = vmatmul.mubr.f32.gmra.mrb[0].mxu0 %v7206
      %v7277 = vpop.f32.mrb[0].mxu0
      %v7278 = vadd.f32 0.0, %v7277
      %v7279 = vpop.f32.mrb[0].mxu0
      %7280 = vdwg.mxu0
      %v7281 = vsel %vm564, %v6822, 0
      %v7284 = vsel %vm564, %v6963, 0
      %7286 = vmatprep.subr.mxu0 0.0
      %7287 = vmatpush1.xpose.msra.mxu0 %v7284
      %7288 = vmatprep.subr.mxu0 0.0
      %7289 = vmatpush1.xpose.msra.mxu0 0.0
      %7290 = vmatprep.subr.mxu0 0.0
      %7291 = vmatpush1.xpose.msra.mxu0 0.0
      %7292 = vmatprep.subr.mxu0 0.0
      %7293 = vmatpush1.xpose.msra.mxu0 0.0
      %7294 = vmatprep.subr.mxu0 0.0
      %7295 = vmatpush1.xpose.msra.mxu0 0.0
      %7296 = vmatprep.subr.mxu0 0.0
      %7297 = vmatpush1.xpose.msra.mxu0 0.0
      %7298 = vmatprep.subr.mxu0 0.0
      %7299 = vmatpush1.xpose.msra.mxu0 0.0
      %7300 = vmatprep.subr.mxu0 0.0
      %7301 = vmatpush1.xpose.msra.mxu0 0.0
      %7302 = vmatprep.subr.mxu0 0.0
      %7303 = vmatpush1.xpose.msra.mxu0 0.0
      %7304 = vmatprep.subr.mxu0 0.0
      %7305 = vmatpush1.xpose.msra.mxu0 0.0
      %7306 = vmatprep.subr.mxu0 0.0
      %7307 = vmatpush1.xpose.msra.mxu0 0.0
      %7308 = vmatprep.subr.mxu0 0.0
      %7309 = vmatpush1.xpose.msra.mxu0 0.0
      %7310 = vmatprep.subr.mxu0 0.0
      %7311 = vmatpush1.xpose.msra.mxu0 0.0
      %7312 = vmatprep.subr.mxu0 0.0
      %7313 = vmatpush1.xpose.msra.mxu0 0.0
      %7314 = vmatprep.subr.mxu0 0.0
      %7315 = vmatpush1.xpose.msra.mxu0 0.0
      %7316 = vmatprep.subr.mxu0 0.0
      %7317 = vmatpush1.xpose.msra.mxu0 0.0
      %7318 = vmatprep.subr.mxu0 0.0
      %7319 = vmatpush1.xpose.msra.mxu0 0.0
      %7320 = vmatprep.subr.mxu0 0.0
      %7321 = vmatpush1.xpose.msra.mxu0 0.0
      %7322 = vmatprep.subr.mxu0 0.0
      %7323 = vmatpush1.xpose.msra.mxu0 0.0
      %7324 = vmatprep.subr.mxu0 0.0
      %7325 = vmatpush1.xpose.msra.mxu0 0.0
      %7326 = vmatprep.subr.mxu0 0.0
      %7327 = vmatpush1.xpose.msra.mxu0 0.0
      %7328 = vmatprep.subr.mxu0 0.0
      %7329 = vmatpush1.xpose.msra.mxu0 0.0
      %7330 = vmatprep.subr.mxu0 0.0
      %7331 = vmatpush1.xpose.msra.mxu0 0.0
      %7332 = vmatprep.subr.mxu0 0.0
      %7333 = vmatpush1.xpose.msra.mxu0 0.0
      %7334 = vmatprep.subr.mxu0 0.0
      %7335 = vmatpush1.xpose.msra.mxu0 0.0
      %7336 = vmatprep.subr.mxu0 0.0
      %7337 = vmatpush1.xpose.msra.mxu0 0.0
      %7338 = vmatprep.subr.mxu0 0.0
      %7339 = vmatpush1.xpose.msra.mxu0 0.0
      %7340 = vmatprep.subr.mxu0 0.0
      %7341 = vmatpush1.xpose.msra.mxu0 0.0
      %7342 = vmatprep.subr.mxu0 0.0
      %7343 = vmatpush1.xpose.msra.mxu0 0.0
      %7344 = vmatprep.subr.mxu0 0.0
      %7345 = vmatpush1.xpose.msra.mxu0 0.0
      %7346 = vmatprep.subr.mxu0 0.0
      %7347 = vmatpush1.xpose.msra.mxu0 0.0
      %7348 = vmatprep.subr.mxu0 0.0
      %7349 = vmatpush1.xpose.msra.mxu0 0.0
      %7350 = vmatprep.mubr.f32.mxu0 0.0
      %7351 = vmatmul.mubr.f32.gmra.mrb[0].mxu0 %v7281
      %v7352 = vpop.f32.mrb[0].mxu0
      %v7353 = vadd.f32 0.0, %v7352
      %v7354 = vpop.f32.mrb[0].mxu0
      %7355 = vdwg.mxu0
      %v7356 = vsel %vm564, %v6836, 0
      %v7359 = vsel %vm564, %v6968, 0
      %7361 = vmatprep.subr.mxu0 0.0
      %7362 = vmatpush1.xpose.msra.mxu0 %v7359
      %7363 = vmatprep.subr.mxu0 0.0
      %7364 = vmatpush1.xpose.msra.mxu0 0.0
      %7365 = vmatprep.subr.mxu0 0.0
      %7366 = vmatpush1.xpose.msra.mxu0 0.0
      %7367 = vmatprep.subr.mxu0 0.0
      %7368 = vmatpush1.xpose.msra.mxu0 0.0
      %7369 = vmatprep.subr.mxu0 0.0
      %7370 = vmatpush1.xpose.msra.mxu0 0.0
      %7371 = vmatprep.subr.mxu0 0.0
      %7372 = vmatpush1.xpose.msra.mxu0 0.0
      %7373 = vmatprep.subr.mxu0 0.0
      %7374 = vmatpush1.xpose.msra.mxu0 0.0
      %7375 = vmatprep.subr.mxu0 0.0
      %7376 = vmatpush1.xpose.msra.mxu0 0.0
      %7377 = vmatprep.subr.mxu0 0.0
      %7378 = vmatpush1.xpose.msra.mxu0 0.0
      %7379 = vmatprep.subr.mxu0 0.0
      %7380 = vmatpush1.xpose.msra.mxu0 0.0
      %7381 = vmatprep.subr.mxu0 0.0
      %7382 = vmatpush1.xpose.msra.mxu0 0.0
      %7383 = vmatprep.subr.mxu0 0.0
      %7384 = vmatpush1.xpose.msra.mxu0 0.0
      %7385 = vmatprep.subr.mxu0 0.0
      %7386 = vmatpush1.xpose.msra.mxu0 0.0
      %7387 = vmatprep.subr.mxu0 0.0
      %7388 = vmatpush1.xpose.msra.mxu0 0.0
      %7389 = vmatprep.subr.mxu0 0.0
      %7390 = vmatpush1.xpose.msra.mxu0 0.0
      %7391 = vmatprep.subr.mxu0 0.0
      %7392 = vmatpush1.xpose.msra.mxu0 0.0
      %7393 = vmatprep.subr.mxu0 0.0
      %7394 = vmatpush1.xpose.msra.mxu0 0.0
      %7395 = vmatprep.subr.mxu0 0.0
      %7396 = vmatpush1.xpose.msra.mxu0 0.0
      %7397 = vmatprep.subr.mxu0 0.0
      %7398 = vmatpush1.xpose.msra.mxu0 0.0
      %7399 = vmatprep.subr.mxu0 0.0
      %7400 = vmatpush1.xpose.msra.mxu0 0.0
      %7401 = vmatprep.subr.mxu0 0.0
      %7402 = vmatpush1.xpose.msra.mxu0 0.0
      %7403 = vmatprep.subr.mxu0 0.0
      %7404 = vmatpush1.xpose.msra.mxu0 0.0
      %7405 = vmatprep.subr.mxu0 0.0
      %7406 = vmatpush1.xpose.msra.mxu0 0.0
      %7407 = vmatprep.subr.mxu0 0.0
      %7408 = vmatpush1.xpose.msra.mxu0 0.0
      %7409 = vmatprep.subr.mxu0 0.0
      %7410 = vmatpush1.xpose.msra.mxu0 0.0
      %7411 = vmatprep.subr.mxu0 0.0
      %7412 = vmatpush1.xpose.msra.mxu0 0.0
      %7413 = vmatprep.subr.mxu0 0.0
      %7414 = vmatpush1.xpose.msra.mxu0 0.0
      %7415 = vmatprep.subr.mxu0 0.0
      %7416 = vmatpush1.xpose.msra.mxu0 0.0
      %7417 = vmatprep.subr.mxu0 0.0
      %7418 = vmatpush1.xpose.msra.mxu0 0.0
      %7419 = vmatprep.subr.mxu0 0.0
      %7420 = vmatpush1.xpose.msra.mxu0 0.0
      %7421 = vmatprep.subr.mxu0 0.0
      %7422 = vmatpush1.xpose.msra.mxu0 0.0
      %7423 = vmatprep.subr.mxu0 0.0
      %7424 = vmatpush1.xpose.msra.mxu0 0.0
      %7425 = vmatprep.mubr.f32.mxu0 0.0
      %7426 = vmatmul.mubr.f32.gmra.mrb[0].mxu0 %v7356
      %v7427 = vpop.f32.mrb[0].mxu0
      %v7428 = vadd.f32 0.0, %v7427
      %v7429 = vpop.f32.mrb[0].mxu0
      %7430 = vdwg.mxu0
      %v7431 = vsel %vm564, %v6838, 0
      %v7434 = vsel %vm564, %v6973, 0
      %7436 = vmatprep.subr.mxu0 0.0
      %7437 = vmatpush1.xpose.msra.mxu0 %v7434
      %7438 = vmatprep.subr.mxu0 0.0
      %7439 = vmatpush1.xpose.msra.mxu0 0.0
      %7440 = vmatprep.subr.mxu0 0.0
      %7441 = vmatpush1.xpose.msra.mxu0 0.0
      %7442 = vmatprep.subr.mxu0 0.0
      %7443 = vmatpush1.xpose.msra.mxu0 0.0
      %7444 = vmatprep.subr.mxu0 0.0
      %7445 = vmatpush1.xpose.msra.mxu0 0.0
      %7446 = vmatprep.subr.mxu0 0.0
      %7447 = vmatpush1.xpose.msra.mxu0 0.0
      %7448 = vmatprep.subr.mxu0 0.0
      %7449 = vmatpush1.xpose.msra.mxu0 0.0
      %7450 = vmatprep.subr.mxu0 0.0
      %7451 = vmatpush1.xpose.msra.mxu0 0.0
      %7452 = vmatprep.subr.mxu0 0.0
      %7453 = vmatpush1.xpose.msra.mxu0 0.0
      %7454 = vmatprep.subr.mxu0 0.0
      %7455 = vmatpush1.xpose.msra.mxu0 0.0
      %7456 = vmatprep.subr.mxu0 0.0
      %7457 = vmatpush1.xpose.msra.mxu0 0.0
      %7458 = vmatprep.subr.mxu0 0.0
      %7459 = vmatpush1.xpose.msra.mxu0 0.0
      %7460 = vmatprep.subr.mxu0 0.0
      %7461 = vmatpush1.xpose.msra.mxu0 0.0
      %7462 = vmatprep.subr.mxu0 0.0
      %7463 = vmatpush1.xpose.msra.mxu0 0.0
      %7464 = vmatprep.subr.mxu0 0.0
      %7465 = vmatpush1.xpose.msra.mxu0 0.0
      %7466 = vmatprep.subr.mxu0 0.0
      %7467 = vmatpush1.xpose.msra.mxu0 0.0
      %7468 = vmatprep.subr.mxu0 0.0
      %7469 = vmatpush1.xpose.msra.mxu0 0.0
      %7470 = vmatprep.subr.mxu0 0.0
      %7471 = vmatpush1.xpose.msra.mxu0 0.0
      %7472 = vmatprep.subr.mxu0 0.0
      %7473 = vmatpush1.xpose.msra.mxu0 0.0
      %7474 = vmatprep.subr.mxu0 0.0
      %7475 = vmatpush1.xpose.msra.mxu0 0.0
      %7476 = vmatprep.subr.mxu0 0.0
      %7477 = vmatpush1.xpose.msra.mxu0 0.0
      %7478 = vmatprep.subr.mxu0 0.0
      %7479 = vmatpush1.xpose.msra.mxu0 0.0
      %7480 = vmatprep.subr.mxu0 0.0
      %7481 = vmatpush1.xpose.msra.mxu0 0.0
      %7482 = vmatprep.subr.mxu0 0.0
      %7483 = vmatpush1.xpose.msra.mxu0 0.0
      %7484 = vmatprep.subr.mxu0 0.0
      %7485 = vmatpush1.xpose.msra.mxu0 0.0
      %7486 = vmatprep.subr.mxu0 0.0
      %7487 = vmatpush1.xpose.msra.mxu0 0.0
      %7488 = vmatprep.subr.mxu0 0.0
      %7489 = vmatpush1.xpose.msra.mxu0 0.0
      %7490 = vmatprep.subr.mxu0 0.0
      %7491 = vmatpush1.xpose.msra.mxu0 0.0
      %7492 = vmatprep.subr.mxu0 0.0
      %7493 = vmatpush1.xpose.msra.mxu0 0.0
      %7494 = vmatprep.subr.mxu0 0.0
      %7495 = vmatpush1.xpose.msra.mxu0 0.0
      %7496 = vmatprep.subr.mxu0 0.0
      %7497 = vmatpush1.xpose.msra.mxu0 0.0
      %7498 = vmatprep.subr.mxu0 0.0
      %7499 = vmatpush1.xpose.msra.mxu0 0.0
      %7500 = vmatprep.mubr.f32.mxu0 0.0
      %7501 = vmatmul.mubr.f32.gmra.mrb[0].mxu0 %v7431
      %v7502 = vpop.f32.mrb[0].mxu0
      %v7503 = vadd.f32 0.0, %v7502
      %v7504 = vpop.f32.mrb[0].mxu0
      %7505 = vdwg.mxu0
      %v7506 = vsel %vm564, %v6840, 0
      %v7509 = vsel %vm564, %v6978, 0
      %7511 = vmatprep.subr.mxu0 0.0
      %7512 = vmatpush1.xpose.msra.mxu0 %v7509
      %7513 = vmatprep.subr.mxu0 0.0
      %7514 = vmatpush1.xpose.msra.mxu0 0.0
      %7515 = vmatprep.subr.mxu0 0.0
      %7516 = vmatpush1.xpose.msra.mxu0 0.0
      %7517 = vmatprep.subr.mxu0 0.0
      %7518 = vmatpush1.xpose.msra.mxu0 0.0
      %7519 = vmatprep.subr.mxu0 0.0
      %7520 = vmatpush1.xpose.msra.mxu0 0.0
      %7521 = vmatprep.subr.mxu0 0.0
      %7522 = vmatpush1.xpose.msra.mxu0 0.0
      %7523 = vmatprep.subr.mxu0 0.0
      %7524 = vmatpush1.xpose.msra.mxu0 0.0
      %7525 = vmatprep.subr.mxu0 0.0
      %7526 = vmatpush1.xpose.msra.mxu0 0.0
      %7527 = vmatprep.subr.mxu0 0.0
      %7528 = vmatpush1.xpose.msra.mxu0 0.0
      %7529 = vmatprep.subr.mxu0 0.0
      %7530 = vmatpush1.xpose.msra.mxu0 0.0
      %7531 = vmatprep.subr.mxu0 0.0
      %7532 = vmatpush1.xpose.msra.mxu0 0.0
      %7533 = vmatprep.subr.mxu0 0.0
      %7534 = vmatpush1.xpose.msra.mxu0 0.0
      %7535 = vmatprep.subr.mxu0 0.0
      %7536 = vmatpush1.xpose.msra.mxu0 0.0
      %7537 = vmatprep.subr.mxu0 0.0
      %7538 = vmatpush1.xpose.msra.mxu0 0.0
      %7539 = vmatprep.subr.mxu0 0.0
      %7540 = vmatpush1.xpose.msra.mxu0 0.0
      %7541 = vmatprep.subr.mxu0 0.0
      %7542 = vmatpush1.xpose.msra.mxu0 0.0
      %7543 = vmatprep.subr.mxu0 0.0
      %7544 = vmatpush1.xpose.msra.mxu0 0.0
      %7545 = vmatprep.subr.mxu0 0.0
      %7546 = vmatpush1.xpose.msra.mxu0 0.0
      %7547 = vmatprep.subr.mxu0 0.0
      %7548 = vmatpush1.xpose.msra.mxu0 0.0
      %7549 = vmatprep.subr.mxu0 0.0
      %7550 = vmatpush1.xpose.msra.mxu0 0.0
      %7551 = vmatprep.subr.mxu0 0.0
      %7552 = vmatpush1.xpose.msra.mxu0 0.0
      %7553 = vmatprep.subr.mxu0 0.0
      %7554 = vmatpush1.xpose.msra.mxu0 0.0
      %7555 = vmatprep.subr.mxu0 0.0
      %7556 = vmatpush1.xpose.msra.mxu0 0.0
      %7557 = vmatprep.subr.mxu0 0.0
      %7558 = vmatpush1.xpose.msra.mxu0 0.0
      %7559 = vmatprep.subr.mxu0 0.0
      %7560 = vmatpush1.xpose.msra.mxu0 0.0
      %7561 = vmatprep.subr.mxu0 0.0
      %7562 = vmatpush1.xpose.msra.mxu0 0.0
      %7563 = vmatprep.subr.mxu0 0.0
      %7564 = vmatpush1.xpose.msra.mxu0 0.0
      %7565 = vmatprep.subr.mxu0 0.0
      %7566 = vmatpush1.xpose.msra.mxu0 0.0
      %7567 = vmatprep.subr.mxu0 0.0
      %7568 = vmatpush1.xpose.msra.mxu0 0.0
      %7569 = vmatprep.subr.mxu0 0.0
      %7570 = vmatpush1.xpose.msra.mxu0 0.0
      %7571 = vmatprep.subr.mxu0 0.0
      %7572 = vmatpush1.xpose.msra.mxu0 0.0
      %7573 = vmatprep.subr.mxu0 0.0
      %7574 = vmatpush1.xpose.msra.mxu0 0.0
      %7575 = vmatprep.mubr.f32.mxu0 0.0
      %7576 = vmatmul.mubr.f32.gmra.mrb[0].mxu0 %v7506
      %v7577 = vpop.f32.mrb[0].mxu0
      %v7578 = vadd.f32 0.0, %v7577
      %v7579 = vpop.f32.mrb[0].mxu0
      %7580 = vdwg.mxu0
      %v7581 = vmul.f32 %v7053, 0.17677669
      %v7582 = vmul.f32 %v7128, 0.17677669
      %v7583 = vmul.f32 %v7203, 0.17677669
      %v7584 = vmul.f32 %v7278, 0.17677669
      %v7585 = vmul.f32 %v7353, 0.17677669
      %v7586 = vmul.f32 %v7428, 0.17677669
      %v7587 = vmul.f32 %v7503, 0.17677669
      %v7588 = vmul.f32 %v7578, 0.17677669
      %v7589 = vadd.f32 %v7581, %v375
      %v7590 = vadd.f32 %v7582, %v376
      %v7591 = vadd.f32 %v7583, %v377
      %v7592 = vadd.f32 %v7584, %v378
      %v7593 = vadd.f32 %v7585, %v379
      %v7594 = vadd.f32 %v7586, %v380
      %v7595 = vadd.f32 %v7587, %v381
      %v7596 = vadd.f32 %v7588, %v382
      %v7597 = vsel %vm1287, %v7589, -inf
      %7598 = vmax.xlane.f32.xlu0 %v7597
      %v7599 = vpop.xlane.xlu0 %7598
      %v7600 = vsel %vm1287, %v7590, -inf
      %7601 = vmax.xlane.f32.xlu0 %v7600
      %v7602 = vpop.xlane.xlu0 %7601
      %v7603 = vsel %vm1287, %v7591, -inf
      %7604 = vmax.xlane.f32.xlu0 %v7603
      %v7605 = vpop.xlane.xlu0 %7604
      %v7606 = vsel %vm1287, %v7592, -inf
      %7607 = vmax.xlane.f32.xlu0 %v7606
      %v7608 = vpop.xlane.xlu0 %7607
      %v7609 = vsel %vm1287, %v7593, -inf
      %7610 = vmax.xlane.f32.xlu0 %v7609
      %v7611 = vpop.xlane.xlu0 %7610
      %v7612 = vsel %vm1287, %v7594, -inf
      %7613 = vmax.xlane.f32.xlu0 %v7612
      %v7614 = vpop.xlane.xlu0 %7613
      %v7615 = vsel %vm1287, %v7595, -inf
      %7616 = vmax.xlane.f32.xlu0 %v7615
      %v7617 = vpop.xlane.xlu0 %7616
      %v7618 = vsel %vm1287, %v7596, -inf
      %7619 = vmax.xlane.f32.xlu0 %v7618
      %v7620 = vpop.xlane.xlu0 %7619
      %v7621 = vsub.f32 %v7589, %v7599
      %v7622 = vsub.f32 %v7590, %v7602
      %v7623 = vsub.f32 %v7591, %v7605
      %v7624 = vsub.f32 %v7592, %v7608
      %v7625 = vsub.f32 %v7593, %v7611
      %v7626 = vsub.f32 %v7594, %v7614
      %v7627 = vsub.f32 %v7595, %v7617
      %v7628 = vsub.f32 %v7596, %v7620
      %v7629 = vmul.f32 %v7621, 1.442695
      %v7630 = vpow.pop %v7629
      %v7631 = vmul.f32 %v7622, 1.442695
      %v7632 = vpow.pop %v7631
      %v7633 = vmul.f32 %v7623, 1.442695
      %v7634 = vpow.pop %v7633
      %v7635 = vmul.f32 %v7624, 1.442695
      %v7636 = vpow.pop %v7635
      %v7637 = vmul.f32 %v7625, 1.442695
      %v7638 = vpow.pop %v7637
      %v7639 = vmul.f32 %v7626, 1.442695
      %v7640 = vpow.pop %v7639
      %v7641 = vmul.f32 %v7627, 1.442695
      %v7642 = vpow.pop %v7641
      %v7643 = vmul.f32 %v7628, 1.442695
      %v7644 = vpow.pop %v7643
      %v7645 = vsel %vm1287, %v7630, 0.0
      %7646 = vadd.xlane.f32.xlu0 %v7645
      %v7647 = vpop.xlane.xlu0 %7646
      %v7648 = vsel %vm1287, %v7632, 0.0
      %7649 = vadd.xlane.f32.xlu0 %v7648
      %v7650 = vpop.xlane.xlu0 %7649
      %v7651 = vsel %vm1287, %v7634, 0.0
      %7652 = vadd.xlane.f32.xlu0 %v7651
      %v7653 = vpop.xlane.xlu0 %7652
      %v7654 = vsel %vm1287, %v7636, 0.0
      %7655 = vadd.xlane.f32.xlu0 %v7654
      %v7656 = vpop.xlane.xlu0 %7655
      %v7657 = vsel %vm1287, %v7638, 0.0
      %7658 = vadd.xlane.f32.xlu0 %v7657
      %v7659 = vpop.xlane.xlu0 %7658
      %v7660 = vsel %vm1287, %v7640, 0.0
      %7661 = vadd.xlane.f32.xlu0 %v7660
      %v7662 = vpop.xlane.xlu0 %7661
      %v7663 = vsel %vm1287, %v7642, 0.0
      %7664 = vadd.xlane.f32.xlu0 %v7663
      %v7665 = vpop.xlane.xlu0 %7664
      %v7666 = vsel %vm1287, %v7644, 0.0
      %7667 = vadd.xlane.f32.xlu0 %v7666
      %v7668 = vpop.xlane.xlu0 %7667
      %v7669 = vrcp.pop %v7647
      %v7670 = vrcp.pop %v7650
      %v7671 = vrcp.pop %v7653
      %v7672 = vrcp.pop %v7656
      %v7673 = vrcp.pop %v7659
      %v7674 = vrcp.pop %v7662
      %v7675 = vrcp.pop %v7665
      %v7676 = vrcp.pop %v7668
      %v7677 = vmul.f32 %v7630, %v7669
      %v7678 = vmul.f32 %v7632, %v7670
      %v7679 = vmul.f32 %v7634, %v7671
      %v7680 = vmul.f32 %v7636, %v7672
      %v7681 = vmul.f32 %v7638, %v7673
      %v7682 = vmul.f32 %v7640, %v7674
      %v7683 = vmul.f32 %v7642, %v7675
      %v7684 = vmul.f32 %v7644, %v7676
      %7685 = vrot.lane.b32.xlu0 %v6943, 96
      %v7686 = vpop.permute.xlu0 %7685
      %v7689 = vsel %vm702, %v7677, 0
      %7691 = vmatprep.subr.mxu0 0.0
      %7692 = vmatpush1.msra.mxu0 %v7686
      %7693 = vmatprep.subr.mxu0 0.0
      %7694 = vmatpush1.msra.mxu0 0.0
      %7695 = vmatprep.subr.mxu0 0.0
      %7696 = vmatpush1.msra.mxu0 0.0
      %7697 = vmatprep.subr.mxu0 0.0
      %7698 = vmatpush1.msra.mxu0 0.0
      %7699 = vmatprep.subr.mxu0 0.0
      %7700 = vmatpush1.msra.mxu0 0.0
      %7701 = vmatprep.subr.mxu0 0.0
      %7702 = vmatpush1.msra.mxu0 0.0
      %7703 = vmatprep.subr.mxu0 0.0
      %7704 = vmatpush1.msra.mxu0 0.0
      %7705 = vmatprep.subr.mxu0 0.0
      %7706 = vmatpush1.msra.mxu0 0.0
      %7707 = vmatprep.subr.mxu0 0.0
      %7708 = vmatpush1.msra.mxu0 0.0
      %7709 = vmatprep.subr.mxu0 0.0
      %7710 = vmatpush1.msra.mxu0 0.0
      %7711 = vmatprep.subr.mxu0 0.0
      %7712 = vmatpush1.msra.mxu0 0.0
      %7713 = vmatprep.subr.mxu0 0.0
      %7714 = vmatpush1.msra.mxu0 0.0
      %7715 = vmatprep.subr.mxu0 0.0
      %7716 = vmatpush1.msra.mxu0 0.0
      %7717 = vmatprep.subr.mxu0 0.0
      %7718 = vmatpush1.msra.mxu0 0.0
      %7719 = vmatprep.subr.mxu0 0.0
      %7720 = vmatpush1.msra.mxu0 0.0
      %7721 = vmatprep.subr.mxu0 0.0
      %7722 = vmatpush1.msra.mxu0 0.0
      %7723 = vmatprep.subr.mxu0 0.0
      %7724 = vmatpush1.msra.mxu0 0.0
      %7725 = vmatprep.subr.mxu0 0.0
      %7726 = vmatpush1.msra.mxu0 0.0
      %7727 = vmatprep.subr.mxu0 0.0
      %7728 = vmatpush1.msra.mxu0 0.0
      %7729 = vmatprep.subr.mxu0 0.0
      %7730 = vmatpush1.msra.mxu0 0.0
      %7731 = vmatprep.subr.mxu0 0.0
      %7732 = vmatpush1.msra.mxu0 0.0
      %7733 = vmatprep.subr.mxu0 0.0
      %7734 = vmatpush1.msra.mxu0 0.0
      %7735 = vmatprep.subr.mxu0 0.0
      %7736 = vmatpush1.msra.mxu0 0.0
      %7737 = vmatprep.subr.mxu0 0.0
      %7738 = vmatpush1.msra.mxu0 0.0
      %7739 = vmatprep.subr.mxu0 0.0
      %7740 = vmatpush1.msra.mxu0 0.0
      %7741 = vmatprep.subr.mxu0 0.0
      %7742 = vmatpush1.msra.mxu0 0.0
      %7743 = vmatprep.subr.mxu0 0.0
      %7744 = vmatpush1.msra.mxu0 0.0
      %7745 = vmatprep.subr.mxu0 0.0
      %7746 = vmatpush1.msra.mxu0 0.0
      %7747 = vmatprep.subr.mxu0 0.0
      %7748 = vmatpush1.msra.mxu0 0.0
      %7749 = vmatprep.subr.mxu0 0.0
      %7750 = vmatpush1.msra.mxu0 0.0
      %7751 = vmatprep.subr.mxu0 0.0
      %7752 = vmatpush1.msra.mxu0 0.0
      %7753 = vmatprep.subr.mxu0 0.0
      %7754 = vmatpush1.msra.mxu0 0.0
      %7755 = vmatprep.mubr.f32.mxu0 0.0
      %7756 = vmatmul.mubr.f32.gmra.mrb[0].mxu0 %v7689
      %v7757 = vpop.f32.mrb[0].mxu0
      %v7758 = vadd.f32 0.0, %v7757
      %v7759 = vpop.f32.mrb[0].mxu0
      %7760 = vdwg.mxu0
      %7761 = vrot.lane.b32.xlu0 %v6948, 96
      %v7762 = vpop.permute.xlu0 %7761
      %v7765 = vsel %vm702, %v7678, 0
      %7767 = vmatprep.subr.mxu0 0.0
      %7768 = vmatpush1.msra.mxu0 %v7762
      %7769 = vmatprep.subr.mxu0 0.0
      %7770 = vmatpush1.msra.mxu0 0.0
      %7771 = vmatprep.subr.mxu0 0.0
      %7772 = vmatpush1.msra.mxu0 0.0
      %7773 = vmatprep.subr.mxu0 0.0
      %7774 = vmatpush1.msra.mxu0 0.0
      %7775 = vmatprep.subr.mxu0 0.0
      %7776 = vmatpush1.msra.mxu0 0.0
      %7777 = vmatprep.subr.mxu0 0.0
      %7778 = vmatpush1.msra.mxu0 0.0
      %7779 = vmatprep.subr.mxu0 0.0
      %7780 = vmatpush1.msra.mxu0 0.0
      %7781 = vmatprep.subr.mxu0 0.0
      %7782 = vmatpush1.msra.mxu0 0.0
      %7783 = vmatprep.subr.mxu0 0.0
      %7784 = vmatpush1.msra.mxu0 0.0
      %7785 = vmatprep.subr.mxu0 0.0
      %7786 = vmatpush1.msra.mxu0 0.0
      %7787 = vmatprep.subr.mxu0 0.0
      %7788 = vmatpush1.msra.mxu0 0.0
      %7789 = vmatprep.subr.mxu0 0.0
      %7790 = vmatpush1.msra.mxu0 0.0
      %7791 = vmatprep.subr.mxu0 0.0
      %7792 = vmatpush1.msra.mxu0 0.0
      %7793 = vmatprep.subr.mxu0 0.0
      %7794 = vmatpush1.msra.mxu0 0.0
      %7795 = vmatprep.subr.mxu0 0.0
      %7796 = vmatpush1.msra.mxu0 0.0
      %7797 = vmatprep.subr.mxu0 0.0
      %7798 = vmatpush1.msra.mxu0 0.0
      %7799 = vmatprep.subr.mxu0 0.0
      %7800 = vmatpush1.msra.mxu0 0.0
      %7801 = vmatprep.subr.mxu0 0.0
      %7802 = vmatpush1.msra.mxu0 0.0
      %7803 = vmatprep.subr.mxu0 0.0
      %7804 = vmatpush1.msra.mxu0 0.0
      %7805 = vmatprep.subr.mxu0 0.0
      %7806 = vmatpush1.msra.mxu0 0.0
      %7807 = vmatprep.subr.mxu0 0.0
      %7808 = vmatpush1.msra.mxu0 0.0
      %7809 = vmatprep.subr.mxu0 0.0
      %7810 = vmatpush1.msra.mxu0 0.0
      %7811 = vmatprep.subr.mxu0 0.0
      %7812 = vmatpush1.msra.mxu0 0.0
      %7813 = vmatprep.subr.mxu0 0.0
      %7814 = vmatpush1.msra.mxu0 0.0
      %7815 = vmatprep.subr.mxu0 0.0
      %7816 = vmatpush1.msra.mxu0 0.0
      %7817 = vmatprep.subr.mxu0 0.0
      %7818 = vmatpush1.msra.mxu0 0.0
      %7819 = vmatprep.subr.mxu0 0.0
      %7820 = vmatpush1.msra.mxu0 0.0
      %7821 = vmatprep.subr.mxu0 0.0
      %7822 = vmatpush1.msra.mxu0 0.0
      %7823 = vmatprep.subr.mxu0 0.0
      %7824 = vmatpush1.msra.mxu0 0.0
      %7825 = vmatprep.subr.mxu0 0.0
      %7826 = vmatpush1.msra.mxu0 0.0
      %7827 = vmatprep.subr.mxu0 0.0
      %7828 = vmatpush1.msra.mxu0 0.0
      %7829 = vmatprep.subr.mxu0 0.0
      %7830 = vmatpush1.msra.mxu0 0.0
      %7831 = vmatprep.mubr.f32.mxu0 0.0
      %7832 = vmatmul.mubr.f32.gmra.mrb[0].mxu0 %v7765
      %v7833 = vpop.f32.mrb[0].mxu0
      %v7834 = vadd.f32 0.0, %v7833
      %v7835 = vpop.f32.mrb[0].mxu0
      %7836 = vdwg.mxu0
      %7837 = vrot.lane.b32.xlu0 %v6953, 96
      %v7838 = vpop.permute.xlu0 %7837
      %v7841 = vsel %vm702, %v7679, 0
      %7843 = vmatprep.subr.mxu0 0.0
      %7844 = vmatpush1.msra.mxu0 %v7838
      %7845 = vmatprep.subr.mxu0 0.0
      %7846 = vmatpush1.msra.mxu0 0.0
      %7847 = vmatprep.subr.mxu0 0.0
      %7848 = vmatpush1.msra.mxu0 0.0
      %7849 = vmatprep.subr.mxu0 0.0
      %7850 = vmatpush1.msra.mxu0 0.0
      %7851 = vmatprep.subr.mxu0 0.0
      %7852 = vmatpush1.msra.mxu0 0.0
      %7853 = vmatprep.subr.mxu0 0.0
      %7854 = vmatpush1.msra.mxu0 0.0
      %7855 = vmatprep.subr.mxu0 0.0
      %7856 = vmatpush1.msra.mxu0 0.0
      %7857 = vmatprep.subr.mxu0 0.0
      %7858 = vmatpush1.msra.mxu0 0.0
      %7859 = vmatprep.subr.mxu0 0.0
      %7860 = vmatpush1.msra.mxu0 0.0
      %7861 = vmatprep.subr.mxu0 0.0
      %7862 = vmatpush1.msra.mxu0 0.0
      %7863 = vmatprep.subr.mxu0 0.0
      %7864 = vmatpush1.msra.mxu0 0.0
      %7865 = vmatprep.subr.mxu0 0.0
      %7866 = vmatpush1.msra.mxu0 0.0
      %7867 = vmatprep.subr.mxu0 0.0
      %7868 = vmatpush1.msra.mxu0 0.0
      %7869 = vmatprep.subr.mxu0 0.0
      %7870 = vmatpush1.msra.mxu0 0.0
      %7871 = vmatprep.subr.mxu0 0.0
      %7872 = vmatpush1.msra.mxu0 0.0
      %7873 = vmatprep.subr.mxu0 0.0
      %7874 = vmatpush1.msra.mxu0 0.0
      %7875 = vmatprep.subr.mxu0 0.0
      %7876 = vmatpush1.msra.mxu0 0.0
      %7877 = vmatprep.subr.mxu0 0.0
      %7878 = vmatpush1.msra.mxu0 0.0
      %7879 = vmatprep.subr.mxu0 0.0
      %7880 = vmatpush1.msra.mxu0 0.0
      %7881 = vmatprep.subr.mxu0 0.0
      %7882 = vmatpush1.msra.mxu0 0.0
      %7883 = vmatprep.subr.mxu0 0.0
      %7884 = vmatpush1.msra.mxu0 0.0
      %7885 = vmatprep.subr.mxu0 0.0
      %7886 = vmatpush1.msra.mxu0 0.0
      %7887 = vmatprep.subr.mxu0 0.0
      %7888 = vmatpush1.msra.mxu0 0.0
      %7889 = vmatprep.subr.mxu0 0.0
      %7890 = vmatpush1.msra.mxu0 0.0
      %7891 = vmatprep.subr.mxu0 0.0
      %7892 = vmatpush1.msra.mxu0 0.0
      %7893 = vmatprep.subr.mxu0 0.0
      %7894 = vmatpush1.msra.mxu0 0.0
      %7895 = vmatprep.subr.mxu0 0.0
      %7896 = vmatpush1.msra.mxu0 0.0
      %7897 = vmatprep.subr.mxu0 0.0
      %7898 = vmatpush1.msra.mxu0 0.0
      %7899 = vmatprep.subr.mxu0 0.0
      %7900 = vmatpush1.msra.mxu0 0.0
      %7901 = vmatprep.subr.mxu0 0.0
      %7902 = vmatpush1.msra.mxu0 0.0
      %7903 = vmatprep.subr.mxu0 0.0
      %7904 = vmatpush1.msra.mxu0 0.0
      %7905 = vmatprep.subr.mxu0 0.0
      %7906 = vmatpush1.msra.mxu0 0.0
      %7907 = vmatprep.mubr.f32.mxu0 0.0
      %7908 = vmatmul.mubr.f32.gmra.mrb[0].mxu0 %v7841
      %v7909 = vpop.f32.mrb[0].mxu0
      %v7910 = vadd.f32 0.0, %v7909
      %v7911 = vpop.f32.mrb[0].mxu0
      %7912 = vdwg.mxu0
      %7913 = vrot.lane.b32.xlu0 %v6958, 96
      %v7914 = vpop.permute.xlu0 %7913
      %v7917 = vsel %vm702, %v7680, 0
      %7919 = vmatprep.subr.mxu0 0.0
      %7920 = vmatpush1.msra.mxu0 %v7914
      %7921 = vmatprep.subr.mxu0 0.0
      %7922 = vmatpush1.msra.mxu0 0.0
      %7923 = vmatprep.subr.mxu0 0.0
      %7924 = vmatpush1.msra.mxu0 0.0
      %7925 = vmatprep.subr.mxu0 0.0
      %7926 = vmatpush1.msra.mxu0 0.0
      %7927 = vmatprep.subr.mxu0 0.0
      %7928 = vmatpush1.msra.mxu0 0.0
      %7929 = vmatprep.subr.mxu0 0.0
      %7930 = vmatpush1.msra.mxu0 0.0
      %7931 = vmatprep.subr.mxu0 0.0
      %7932 = vmatpush1.msra.mxu0 0.0
      %7933 = vmatprep.subr.mxu0 0.0
      %7934 = vmatpush1.msra.mxu0 0.0
      %7935 = vmatprep.subr.mxu0 0.0
      %7936 = vmatpush1.msra.mxu0 0.0
      %7937 = vmatprep.subr.mxu0 0.0
      %7938 = vmatpush1.msra.mxu0 0.0
      %7939 = vmatprep.subr.mxu0 0.0
      %7940 = vmatpush1.msra.mxu0 0.0
      %7941 = vmatprep.subr.mxu0 0.0
      %7942 = vmatpush1.msra.mxu0 0.0
      %7943 = vmatprep.subr.mxu0 0.0
      %7944 = vmatpush1.msra.mxu0 0.0
      %7945 = vmatprep.subr.mxu0 0.0
      %7946 = vmatpush1.msra.mxu0 0.0
      %7947 = vmatprep.subr.mxu0 0.0
      %7948 = vmatpush1.msra.mxu0 0.0
      %7949 = vmatprep.subr.mxu0 0.0
      %7950 = vmatpush1.msra.mxu0 0.0
      %7951 = vmatprep.subr.mxu0 0.0
      %7952 = vmatpush1.msra.mxu0 0.0
      %7953 = vmatprep.subr.mxu0 0.0
      %7954 = vmatpush1.msra.mxu0 0.0
      %7955 = vmatprep.subr.mxu0 0.0
      %7956 = vmatpush1.msra.mxu0 0.0
      %7957 = vmatprep.subr.mxu0 0.0
      %7958 = vmatpush1.msra.mxu0 0.0
      %7959 = vmatprep.subr.mxu0 0.0
      %7960 = vmatpush1.msra.mxu0 0.0
      %7961 = vmatprep.subr.mxu0 0.0
      %7962 = vmatpush1.msra.mxu0 0.0
      %7963 = vmatprep.subr.mxu0 0.0
      %7964 = vmatpush1.msra.mxu0 0.0
      %7965 = vmatprep.subr.mxu0 0.0
      %7966 = vmatpush1.msra.mxu0 0.0
      %7967 = vmatprep.subr.mxu0 0.0
      %7968 = vmatpush1.msra.mxu0 0.0
      %7969 = vmatprep.subr.mxu0 0.0
      %7970 = vmatpush1.msra.mxu0 0.0
      %7971 = vmatprep.subr.mxu0 0.0
      %7972 = vmatpush1.msra.mxu0 0.0
      %7973 = vmatprep.subr.mxu0 0.0
      %7974 = vmatpush1.msra.mxu0 0.0
      %7975 = vmatprep.subr.mxu0 0.0
      %7976 = vmatpush1.msra.mxu0 0.0
      %7977 = vmatprep.subr.mxu0 0.0
      %7978 = vmatpush1.msra.mxu0 0.0
      %7979 = vmatprep.subr.mxu0 0.0
      %7980 = vmatpush1.msra.mxu0 0.0
      %7981 = vmatprep.subr.mxu0 0.0
      %7982 = vmatpush1.msra.mxu0 0.0
      %7983 = vmatprep.mubr.f32.mxu0 0.0
      %7984 = vmatmul.mubr.f32.gmra.mrb[0].mxu0 %v7917
      %v7985 = vpop.f32.mrb[0].mxu0
      %v7986 = vadd.f32 0.0, %v7985
      %v7987 = vpop.f32.mrb[0].mxu0
      %7988 = vdwg.mxu0
      %7989 = vrot.lane.b32.xlu0 %v6963, 96
      %v7990 = vpop.permute.xlu0 %7989
      %v7993 = vsel %vm702, %v7681, 0
      %7995 = vmatprep.subr.mxu0 0.0
      %7996 = vmatpush1.msra.mxu0 %v7990
      %7997 = vmatprep.subr.mxu0 0.0
      %7998 = vmatpush1.msra.mxu0 0.0
      %7999 = vmatprep.subr.mxu0 0.0
      %8000 = vmatpush1.msra.mxu0 0.0
      %8001 = vmatprep.subr.mxu0 0.0
      %8002 = vmatpush1.msra.mxu0 0.0
      %8003 = vmatprep.subr.mxu0 0.0
      %8004 = vmatpush1.msra.mxu0 0.0
      %8005 = vmatprep.subr.mxu0 0.0
      %8006 = vmatpush1.msra.mxu0 0.0
      %8007 = vmatprep.subr.mxu0 0.0
      %8008 = vmatpush1.msra.mxu0 0.0
      %8009 = vmatprep.subr.mxu0 0.0
      %8010 = vmatpush1.msra.mxu0 0.0
      %8011 = vmatprep.subr.mxu0 0.0
      %8012 = vmatpush1.msra.mxu0 0.0
      %8013 = vmatprep.subr.mxu0 0.0
      %8014 = vmatpush1.msra.mxu0 0.0
      %8015 = vmatprep.subr.mxu0 0.0
      %8016 = vmatpush1.msra.mxu0 0.0
      %8017 = vmatprep.subr.mxu0 0.0
      %8018 = vmatpush1.msra.mxu0 0.0
      %8019 = vmatprep.subr.mxu0 0.0
      %8020 = vmatpush1.msra.mxu0 0.0
      %8021 = vmatprep.subr.mxu0 0.0
      %8022 = vmatpush1.msra.mxu0 0.0
      %8023 = vmatprep.subr.mxu0 0.0
      %8024 = vmatpush1.msra.mxu0 0.0
      %8025 = vmatprep.subr.mxu0 0.0
      %8026 = vmatpush1.msra.mxu0 0.0
      %8027 = vmatprep.subr.mxu0 0.0
      %8028 = vmatpush1.msra.mxu0 0.0
      %8029 = vmatprep.subr.mxu0 0.0
      %8030 = vmatpush1.msra.mxu0 0.0
      %8031 = vmatprep.subr.mxu0 0.0
      %8032 = vmatpush1.msra.mxu0 0.0
      %8033 = vmatprep.subr.mxu0 0.0
      %8034 = vmatpush1.msra.mxu0 0.0
      %8035 = vmatprep.subr.mxu0 0.0
      %8036 = vmatpush1.msra.mxu0 0.0
      %8037 = vmatprep.subr.mxu0 0.0
      %8038 = vmatpush1.msra.mxu0 0.0
      %8039 = vmatprep.subr.mxu0 0.0
      %8040 = vmatpush1.msra.mxu0 0.0
      %8041 = vmatprep.subr.mxu0 0.0
      %8042 = vmatpush1.msra.mxu0 0.0
      %8043 = vmatprep.subr.mxu0 0.0
      %8044 = vmatpush1.msra.mxu0 0.0
      %8045 = vmatprep.subr.mxu0 0.0
      %8046 = vmatpush1.msra.mxu0 0.0
      %8047 = vmatprep.subr.mxu0 0.0
      %8048 = vmatpush1.msra.mxu0 0.0
      %8049 = vmatprep.subr.mxu0 0.0
      %8050 = vmatpush1.msra.mxu0 0.0
      %8051 = vmatprep.subr.mxu0 0.0
      %8052 = vmatpush1.msra.mxu0 0.0
      %8053 = vmatprep.subr.mxu0 0.0
      %8054 = vmatpush1.msra.mxu0 0.0
      %8055 = vmatprep.subr.mxu0 0.0
      %8056 = vmatpush1.msra.mxu0 0.0
      %8057 = vmatprep.subr.mxu0 0.0
      %8058 = vmatpush1.msra.mxu0 0.0
      %8059 = vmatprep.mubr.f32.mxu0 0.0
      %8060 = vmatmul.mubr.f32.gmra.mrb[0].mxu0 %v7993
      %v8061 = vpop.f32.mrb[0].mxu0
      %v8062 = vadd.f32 0.0, %v8061
      %v8063 = vpop.f32.mrb[0].mxu0
      %8064 = vdwg.mxu0
      %8065 = vrot.lane.b32.xlu0 %v6968, 96
      %v8066 = vpop.permute.xlu0 %8065
      %v8069 = vsel %vm702, %v7682, 0
      %8071 = vmatprep.subr.mxu0 0.0
      %8072 = vmatpush1.msra.mxu0 %v8066
      %8073 = vmatprep.subr.mxu0 0.0
      %8074 = vmatpush1.msra.mxu0 0.0
      %8075 = vmatprep.subr.mxu0 0.0
      %8076 = vmatpush1.msra.mxu0 0.0
      %8077 = vmatprep.subr.mxu0 0.0
      %8078 = vmatpush1.msra.mxu0 0.0
      %8079 = vmatprep.subr.mxu0 0.0
      %8080 = vmatpush1.msra.mxu0 0.0
      %8081 = vmatprep.subr.mxu0 0.0
      %8082 = vmatpush1.msra.mxu0 0.0
      %8083 = vmatprep.subr.mxu0 0.0
      %8084 = vmatpush1.msra.mxu0 0.0
      %8085 = vmatprep.subr.mxu0 0.0
      %8086 = vmatpush1.msra.mxu0 0.0
      %8087 = vmatprep.subr.mxu0 0.0
      %8088 = vmatpush1.msra.mxu0 0.0
      %8089 = vmatprep.subr.mxu0 0.0
      %8090 = vmatpush1.msra.mxu0 0.0
      %8091 = vmatprep.subr.mxu0 0.0
      %8092 = vmatpush1.msra.mxu0 0.0
      %8093 = vmatprep.subr.mxu0 0.0
      %8094 = vmatpush1.msra.mxu0 0.0
      %8095 = vmatprep.subr.mxu0 0.0
      %8096 = vmatpush1.msra.mxu0 0.0
      %8097 = vmatprep.subr.mxu0 0.0
      %8098 = vmatpush1.msra.mxu0 0.0
      %8099 = vmatprep.subr.mxu0 0.0
      %8100 = vmatpush1.msra.mxu0 0.0
      %8101 = vmatprep.subr.mxu0 0.0
      %8102 = vmatpush1.msra.mxu0 0.0
      %8103 = vmatprep.subr.mxu0 0.0
      %8104 = vmatpush1.msra.mxu0 0.0
      %8105 = vmatprep.subr.mxu0 0.0
      %8106 = vmatpush1.msra.mxu0 0.0
      %8107 = vmatprep.subr.mxu0 0.0
      %8108 = vmatpush1.msra.mxu0 0.0
      %8109 = vmatprep.subr.mxu0 0.0
      %8110 = vmatpush1.msra.mxu0 0.0
      %8111 = vmatprep.subr.mxu0 0.0
      %8112 = vmatpush1.msra.mxu0 0.0
      %8113 = vmatprep.subr.mxu0 0.0
      %8114 = vmatpush1.msra.mxu0 0.0
      %8115 = vmatprep.subr.mxu0 0.0
      %8116 = vmatpush1.msra.mxu0 0.0
      %8117 = vmatprep.subr.mxu0 0.0
      %8118 = vmatpush1.msra.mxu0 0.0
      %8119 = vmatprep.subr.mxu0 0.0
      %8120 = vmatpush1.msra.mxu0 0.0
      %8121 = vmatprep.subr.mxu0 0.0
      %8122 = vmatpush1.msra.mxu0 0.0
      %8123 = vmatprep.subr.mxu0 0.0
      %8124 = vmatpush1.msra.mxu0 0.0
      %8125 = vmatprep.subr.mxu0 0.0
      %8126 = vmatpush1.msra.mxu0 0.0
      %8127 = vmatprep.subr.mxu0 0.0
      %8128 = vmatpush1.msra.mxu0 0.0
      %8129 = vmatprep.subr.mxu0 0.0
      %8130 = vmatpush1.msra.mxu0 0.0
      %8131 = vmatprep.subr.mxu0 0.0
      %8132 = vmatpush1.msra.mxu0 0.0
      %8133 = vmatprep.subr.mxu0 0.0
      %8134 = vmatpush1.msra.mxu0 0.0
      %8135 = vmatprep.mubr.f32.mxu0 0.0
      %8136 = vmatmul.mubr.f32.gmra.mrb[0].mxu0 %v8069
      %v8137 = vpop.f32.mrb[0].mxu0
      %v8138 = vadd.f32 0.0, %v8137
      %v8139 = vpop.f32.mrb[0].mxu0
      %8140 = vdwg.mxu0
      %8141 = vrot.lane.b32.xlu0 %v6973, 96
      %v8142 = vpop.permute.xlu0 %8141
      %v8145 = vsel %vm702, %v7683, 0
      %8147 = vmatprep.subr.mxu0 0.0
      %8148 = vmatpush1.msra.mxu0 %v8142
      %8149 = vmatprep.subr.mxu0 0.0
      %8150 = vmatpush1.msra.mxu0 0.0
      %8151 = vmatprep.subr.mxu0 0.0
      %8152 = vmatpush1.msra.mxu0 0.0
      %8153 = vmatprep.subr.mxu0 0.0
      %8154 = vmatpush1.msra.mxu0 0.0
      %8155 = vmatprep.subr.mxu0 0.0
      %8156 = vmatpush1.msra.mxu0 0.0
      %8157 = vmatprep.subr.mxu0 0.0
      %8158 = vmatpush1.msra.mxu0 0.0
      %8159 = vmatprep.subr.mxu0 0.0
      %8160 = vmatpush1.msra.mxu0 0.0
      %8161 = vmatprep.subr.mxu0 0.0
      %8162 = vmatpush1.msra.mxu0 0.0
      %8163 = vmatprep.subr.mxu0 0.0
      %8164 = vmatpush1.msra.mxu0 0.0
      %8165 = vmatprep.subr.mxu0 0.0
      %8166 = vmatpush1.msra.mxu0 0.0
      %8167 = vmatprep.subr.mxu0 0.0
      %8168 = vmatpush1.msra.mxu0 0.0
      %8169 = vmatprep.subr.mxu0 0.0
      %8170 = vmatpush1.msra.mxu0 0.0
      %8171 = vmatprep.subr.mxu0 0.0
      %8172 = vmatpush1.msra.mxu0 0.0
      %8173 = vmatprep.subr.mxu0 0.0
      %8174 = vmatpush1.msra.mxu0 0.0
      %8175 = vmatprep.subr.mxu0 0.0
      %8176 = vmatpush1.msra.mxu0 0.0
      %8177 = vmatprep.subr.mxu0 0.0
      %8178 = vmatpush1.msra.mxu0 0.0
      %8179 = vmatprep.subr.mxu0 0.0
      %8180 = vmatpush1.msra.mxu0 0.0
      %8181 = vmatprep.subr.mxu0 0.0
      %8182 = vmatpush1.msra.mxu0 0.0
      %8183 = vmatprep.subr.mxu0 0.0
      %8184 = vmatpush1.msra.mxu0 0.0
      %8185 = vmatprep.subr.mxu0 0.0
      %8186 = vmatpush1.msra.mxu0 0.0
      %8187 = vmatprep.subr.mxu0 0.0
      %8188 = vmatpush1.msra.mxu0 0.0
      %8189 = vmatprep.subr.mxu0 0.0
      %8190 = vmatpush1.msra.mxu0 0.0
      %8191 = vmatprep.subr.mxu0 0.0
      %8192 = vmatpush1.msra.mxu0 0.0
      %8193 = vmatprep.subr.mxu0 0.0
      %8194 = vmatpush1.msra.mxu0 0.0
      %8195 = vmatprep.subr.mxu0 0.0
      %8196 = vmatpush1.msra.mxu0 0.0
      %8197 = vmatprep.subr.mxu0 0.0
      %8198 = vmatpush1.msra.mxu0 0.0
      %8199 = vmatprep.subr.mxu0 0.0
      %8200 = vmatpush1.msra.mxu0 0.0
      %8201 = vmatprep.subr.mxu0 0.0
      %8202 = vmatpush1.msra.mxu0 0.0
      %8203 = vmatprep.subr.mxu0 0.0
      %8204 = vmatpush1.msra.mxu0 0.0
      %8205 = vmatprep.subr.mxu0 0.0
      %8206 = vmatpush1.msra.mxu0 0.0
      %8207 = vmatprep.subr.mxu0 0.0
      %8208 = vmatpush1.msra.mxu0 0.0
      %8209 = vmatprep.subr.mxu0 0.0
      %8210 = vmatpush1.msra.mxu0 0.0
      %8211 = vmatprep.mubr.f32.mxu0 0.0
      %8212 = vmatmul.mubr.f32.gmra.mrb[0].mxu0 %v8145
      %v8213 = vpop.f32.mrb[0].mxu0
      %v8214 = vadd.f32 0.0, %v8213
      %v8215 = vpop.f32.mrb[0].mxu0
      %8216 = vdwg.mxu0
      %8217 = vrot.lane.b32.xlu0 %v6978, 96
      %v8218 = vpop.permute.xlu0 %8217
      %v8221 = vsel %vm702, %v7684, 0
      %8223 = vmatprep.subr.mxu0 0.0
      %8224 = vmatpush1.msra.mxu0 %v8218
      %8225 = vmatprep.subr.mxu0 0.0
      %8226 = vmatpush1.msra.mxu0 0.0
      %8227 = vmatprep.subr.mxu0 0.0
      %8228 = vmatpush1.msra.mxu0 0.0
      %8229 = vmatprep.subr.mxu0 0.0
      %8230 = vmatpush1.msra.mxu0 0.0
      %8231 = vmatprep.subr.mxu0 0.0
      %8232 = vmatpush1.msra.mxu0 0.0
      %8233 = vmatprep.subr.mxu0 0.0
      %8234 = vmatpush1.msra.mxu0 0.0
      %8235 = vmatprep.subr.mxu0 0.0
      %8236 = vmatpush1.msra.mxu0 0.0
      %8237 = vmatprep.subr.mxu0 0.0
      %8238 = vmatpush1.msra.mxu0 0.0
      %8239 = vmatprep.subr.mxu0 0.0
      %8240 = vmatpush1.msra.mxu0 0.0
      %8241 = vmatprep.subr.mxu0 0.0
      %8242 = vmatpush1.msra.mxu0 0.0
      %8243 = vmatprep.subr.mxu0 0.0
      %8244 = vmatpush1.msra.mxu0 0.0
      %8245 = vmatprep.subr.mxu0 0.0
      %8246 = vmatpush1.msra.mxu0 0.0
      %8247 = vmatprep.subr.mxu0 0.0
      %8248 = vmatpush1.msra.mxu0 0.0
      %8249 = vmatprep.subr.mxu0 0.0
      %8250 = vmatpush1.msra.mxu0 0.0
      %8251 = vmatprep.subr.mxu0 0.0
      %8252 = vmatpush1.msra.mxu0 0.0
      %8253 = vmatprep.subr.mxu0 0.0
      %8254 = vmatpush1.msra.mxu0 0.0
      %8255 = vmatprep.subr.mxu0 0.0
      %8256 = vmatpush1.msra.mxu0 0.0
      %8257 = vmatprep.subr.mxu0 0.0
      %8258 = vmatpush1.msra.mxu0 0.0
      %8259 = vmatprep.subr.mxu0 0.0
      %8260 = vmatpush1.msra.mxu0 0.0
      %8261 = vmatprep.subr.mxu0 0.0
      %8262 = vmatpush1.msra.mxu0 0.0
      %8263 = vmatprep.subr.mxu0 0.0
      %8264 = vmatpush1.msra.mxu0 0.0
      %8265 = vmatprep.subr.mxu0 0.0
      %8266 = vmatpush1.msra.mxu0 0.0
      %8267 = vmatprep.subr.mxu0 0.0
      %8268 = vmatpush1.msra.mxu0 0.0
      %8269 = vmatprep.subr.mxu0 0.0
      %8270 = vmatpush1.msra.mxu0 0.0
      %8271 = vmatprep.subr.mxu0 0.0
      %8272 = vmatpush1.msra.mxu0 0.0
      %8273 = vmatprep.subr.mxu0 0.0
      %8274 = vmatpush1.msra.mxu0 0.0
      %8275 = vmatprep.subr.mxu0 0.0
      %8276 = vmatpush1.msra.mxu0 0.0
      %8277 = vmatprep.subr.mxu0 0.0
      %8278 = vmatpush1.msra.mxu0 0.0
      %8279 = vmatprep.subr.mxu0 0.0
      %8280 = vmatpush1.msra.mxu0 0.0
      %8281 = vmatprep.subr.mxu0 0.0
      %8282 = vmatpush1.msra.mxu0 0.0
      %8283 = vmatprep.subr.mxu0 0.0
      %8284 = vmatpush1.msra.mxu0 0.0
      %8285 = vmatprep.subr.mxu0 0.0
      %8286 = vmatpush1.msra.mxu0 0.0
      %8287 = vmatprep.mubr.f32.mxu0 0.0
      %8288 = vmatmul.mubr.f32.gmra.mrb[0].mxu0 %v8221
      %v8289 = vpop.f32.mrb[0].mxu0
      %v8290 = vadd.f32 0.0, %v8289
      %v8291 = vpop.f32.mrb[0].mxu0
      %8292 = vdwg.mxu0
      %v8293 = vld [vmem:[%s5 + $0x48] sm:$0xff]
      %v8294 = vld [vmem:[%s5 + $0xb8] sm:$0xff]
      %v8295 = vld [vmem:[%s5 + $0x128] sm:$0xff]
      %v8296 = vld [vmem:[%s5 + $0x198] sm:$0xff]
      %v8297 = vld [vmem:[%s6 + $0x4] sm:$0x1]
      %v8299 = vlaneseq
      %v8300 = vshrl.u32 %v8299, 7
      %v8301 = vsub.s32 0, %v8300
      %v8302 = vrot.slane %v8297, %v8301
      %v8311 = vrot.slane %v7834, 7
      %v8312 = vsel %vm6521, %v8311, %v7758
      %v8313 = vrot.slane %v7910, 6
      %v8314 = vsel %vm6524, %v8313, %v8312
      %v8315 = vrot.slane %v7986, 5
      %v8316 = vsel %vm6527, %v8315, %v8314
      %v8317 = vrot.slane %v8062, 4
      %v8318 = vsel %vm6530, %v8317, %v8316
      %v8319 = vrot.slane %v8138, 3
      %v8320 = vsel %vm6533, %v8319, %v8318
      %v8321 = vrot.slane %v8214, 2
      %v8322 = vsel %vm6536, %v8321, %v8320
      %v8323 = vrot.slane %v8290, 1
      %v8324 = vsel %vm6539, %v8323, %v8322
      %8325 = vrot.lane.b32.xlu0 %v8302, 64
      %v8326 = vpop.permute.xlu0 %8325
      %v8328 = vsel %vm564, %v8324, 0
      %8330 = vmatprep.subr.mxu0 0.0
      %8331 = vmatpush1.msra.mxu0 %v8293
      %8332 = vmatprep.subr.mxu0 0.0
      %8333 = vmatpush1.msra.mxu0 %v8294
      %8334 = vmatprep.subr.mxu0 0.0
      %8335 = vmatpush1.msra.mxu0 %v8295
      %8336 = vmatprep.subr.mxu0 0.0
      %8337 = vmatpush1.msra.mxu0 %v8296
      %8338 = vmatprep.subr.mxu0 0.0
      %8339 = vmatpush1.msra.mxu0 0.0
      %8340 = vmatprep.subr.mxu0 0.0
      %8341 = vmatpush1.msra.mxu0 0.0
      %8342 = vmatprep.subr.mxu0 0.0
      %8343 = vmatpush1.msra.mxu0 0.0
      %8344 = vmatprep.subr.mxu0 0.0
      %8345 = vmatpush1.msra.mxu0 0.0
      %8346 = vmatprep.subr.mxu0 0.0
      %8347 = vmatpush1.msra.mxu0 0.0
      %8348 = vmatprep.subr.mxu0 0.0
      %8349 = vmatpush1.msra.mxu0 0.0
      %8350 = vmatprep.subr.mxu0 0.0
      %8351 = vmatpush1.msra.mxu0 0.0
      %8352 = vmatprep.subr.mxu0 0.0
      %8353 = vmatpush1.msra.mxu0 0.0
      %8354 = vmatprep.subr.mxu0 0.0
      %8355 = vmatpush1.msra.mxu0 0.0
      %8356 = vmatprep.subr.mxu0 0.0
      %8357 = vmatpush1.msra.mxu0 0.0
      %8358 = vmatprep.subr.mxu0 0.0
      %8359 = vmatpush1.msra.mxu0 0.0
      %8360 = vmatprep.subr.mxu0 0.0
      %8361 = vmatpush1.msra.mxu0 0.0
      %8362 = vmatprep.subr.mxu0 0.0
      %8363 = vmatpush1.msra.mxu0 0.0
      %8364 = vmatprep.subr.mxu0 0.0
      %8365 = vmatpush1.msra.mxu0 0.0
      %8366 = vmatprep.subr.mxu0 0.0
      %8367 = vmatpush1.msra.mxu0 0.0
      %8368 = vmatprep.subr.mxu0 0.0
      %8369 = vmatpush1.msra.mxu0 0.0
      %8370 = vmatprep.subr.mxu0 0.0
      %8371 = vmatpush1.msra.mxu0 0.0
      %8372 = vmatprep.subr.mxu0 0.0
      %8373 = vmatpush1.msra.mxu0 0.0
      %8374 = vmatprep.subr.mxu0 0.0
      %8375 = vmatpush1.msra.mxu0 0.0
      %8376 = vmatprep.subr.mxu0 0.0
      %8377 = vmatpush1.msra.mxu0 0.0
      %8378 = vmatprep.subr.mxu0 0.0
      %8379 = vmatpush1.msra.mxu0 0.0
      %8380 = vmatprep.subr.mxu0 0.0
      %8381 = vmatpush1.msra.mxu0 0.0
      %8382 = vmatprep.subr.mxu0 0.0
      %8383 = vmatpush1.msra.mxu0 0.0
      %8384 = vmatprep.subr.mxu0 0.0
      %8385 = vmatpush1.msra.mxu0 0.0
      %8386 = vmatprep.subr.mxu0 0.0
      %8387 = vmatpush1.msra.mxu0 0.0
      %8388 = vmatprep.subr.mxu0 0.0
      %8389 = vmatpush1.msra.mxu0 0.0
      %8390 = vmatprep.subr.mxu0 0.0
      %8391 = vmatpush1.msra.mxu0 0.0
      %8392 = vmatprep.subr.mxu0 0.0
      %8393 = vmatpush1.msra.mxu0 0.0
      %8394 = vmatprep.mubr.f32.mxu0 0.0
      %8395 = vmatmul.mubr.f32.gmra.mrb[0].mxu0 %v8328
      %v8396 = vpop.f32.mrb[0].mxu0
      %v8397 = vadd.f32 %v8326, %v8396
      %v8398 = vpop.f32.mrb[0].mxu0
      %8399 = vdwg.mxu0
      %v8400 = vld [vmem:[%s5 + $0x50] sm:$0xff]
      %v8401 = vld [vmem:[%s5 + $0xc0] sm:$0xff]
      %v8402 = vld [vmem:[%s5 + $0x130] sm:$0xff]
      %v8403 = vld [vmem:[%s5 + $0x1a0] sm:$0xff]
      %8404 = vrot.lane.b32.xlu0 %v8302, 32
      %v8405 = vpop.permute.xlu0 %8404
      %8407 = vmatprep.subr.mxu0 0.0
      %8408 = vmatpush1.msra.mxu0 %v8400
      %8409 = vmatprep.subr.mxu0 0.0
      %8410 = vmatpush1.msra.mxu0 %v8401
      %8411 = vmatprep.subr.mxu0 0.0
      %8412 = vmatpush1.msra.mxu0 %v8402
      %8413 = vmatprep.subr.mxu0 0.0
      %8414 = vmatpush1.msra.mxu0 %v8403
      %8415 = vmatprep.subr.mxu0 0.0
      %8416 = vmatpush1.msra.mxu0 0.0
      %8417 = vmatprep.subr.mxu0 0.0
      %8418 = vmatpush1.msra.mxu0 0.0
      %8419 = vmatprep.subr.mxu0 0.0
      %8420 = vmatpush1.msra.mxu0 0.0
      %8421 = vmatprep.subr.mxu0 0.0
      %8422 = vmatpush1.msra.mxu0 0.0
      %8423 = vmatprep.subr.mxu0 0.0
      %8424 = vmatpush1.msra.mxu0 0.0
      %8425 = vmatprep.subr.mxu0 0.0
      %8426 = vmatpush1.msra.mxu0 0.0
      %8427 = vmatprep.subr.mxu0 0.0
      %8428 = vmatpush1.msra.mxu0 0.0
      %8429 = vmatprep.subr.mxu0 0.0
      %8430 = vmatpush1.msra.mxu0 0.0
      %8431 = vmatprep.subr.mxu0 0.0
      %8432 = vmatpush1.msra.mxu0 0.0
      %8433 = vmatprep.subr.mxu0 0.0
      %8434 = vmatpush1.msra.mxu0 0.0
      %8435 = vmatprep.subr.mxu0 0.0
      %8436 = vmatpush1.msra.mxu0 0.0
      %8437 = vmatprep.subr.mxu0 0.0
      %8438 = vmatpush1.msra.mxu0 0.0
      %8439 = vmatprep.subr.mxu0 0.0
      %8440 = vmatpush1.msra.mxu0 0.0
      %8441 = vmatprep.subr.mxu0 0.0
      %8442 = vmatpush1.msra.mxu0 0.0
      %8443 = vmatprep.subr.mxu0 0.0
      %8444 = vmatpush1.msra.mxu0 0.0
      %8445 = vmatprep.subr.mxu0 0.0
      %8446 = vmatpush1.msra.mxu0 0.0
      %8447 = vmatprep.subr.mxu0 0.0
      %8448 = vmatpush1.msra.mxu0 0.0
      %8449 = vmatprep.subr.mxu0 0.0
      %8450 = vmatpush1.msra.mxu0 0.0
      %8451 = vmatprep.subr.mxu0 0.0
      %8452 = vmatpush1.msra.mxu0 0.0
      %8453 = vmatprep.subr.mxu0 0.0
      %8454 = vmatpush1.msra.mxu0 0.0
      %8455 = vmatprep.subr.mxu0 0.0
      %8456 = vmatpush1.msra.mxu0 0.0
      %8457 = vmatprep.subr.mxu0 0.0
      %8458 = vmatpush1.msra.mxu0 0.0
      %8459 = vmatprep.subr.mxu0 0.0
      %8460 = vmatpush1.msra.mxu0 0.0
      %8461 = vmatprep.subr.mxu0 0.0
      %8462 = vmatpush1.msra.mxu0 0.0
      %8463 = vmatprep.subr.mxu0 0.0
      %8464 = vmatpush1.msra.mxu0 0.0
      %8465 = vmatprep.subr.mxu0 0.0
      %8466 = vmatpush1.msra.mxu0 0.0
      %8467 = vmatprep.subr.mxu0 0.0
      %8468 = vmatpush1.msra.mxu0 0.0
      %8469 = vmatprep.subr.mxu0 0.0
      %8470 = vmatpush1.msra.mxu0 0.0
      %8471 = vmatprep.mubr.f32.mxu0 0.0
      %8472 = vmatmul.mubr.f32.gmra.mrb[0].mxu0 %v6719
      %v8473 = vpop.f32.mrb[0].mxu0
      %v8474 = vadd.f32 %v8405, %v8473
      %v8475 = vpop.f32.mrb[0].mxu0
      %8476 = vdwg.mxu0
      %v8478 = vcombine.high %v8474, %v8474
      %v8480 = vunpack.c.l.s4 1966171168
      %v8481 = vunpack.c.0.s8 %v8480
      %v8482 = vlaneseq
      %v8483 = vshrl.u32 %v8482, 7
      %v8484 = vsub.s32 %v8481, %v8483
      %v8485 = vrot.slane %v8474, %v8484
      %v8487 = vunpack.c.l.s4 1966171168
      %v8488 = vunpack.c.0.s8 %v8487
      %v8489 = vlaneseq
      %v8490 = vshrl.u32 %v8489, 7
      %v8491 = vsub.s32 %v8488, %v8490
      %v8492 = vrot.slane %v8478, %v8491
      %v8493 = vcombine.high %v8485, %v8485
      %v8494 = vcombine.high %v8492, %v8492
      %v8496 = vunpack.c.l.s4 1966171168
      %v8497 = vunpack.c.0.s8 %v8496
      %v8498 = vlaneseq
      %v8499 = vshrl.u32 %v8498, 7
      %v8500 = vsub.s32 %v8497, %v8499
      %v8501 = vrot.slane %v8485, %v8500
      %v8503 = vunpack.c.l.s4 1966171168
      %v8504 = vunpack.c.0.s8 %v8503
      %v8505 = vlaneseq
      %v8506 = vshrl.u32 %v8505, 7
      %v8507 = vsub.s32 %v8504, %v8506
      %v8508 = vrot.slane %v8492, %v8507
      %v8510 = vunpack.c.l.s4 1966171168
      %v8511 = vunpack.c.0.s8 %v8510
      %v8512 = vlaneseq
      %v8513 = vshrl.u32 %v8512, 7
      %v8514 = vsub.s32 %v8511, %v8513
      %v8515 = vrot.slane %v8493, %v8514
      %v8517 = vunpack.c.l.s4 1966171168
      %v8518 = vunpack.c.0.s8 %v8517
      %v8519 = vlaneseq
      %v8520 = vshrl.u32 %v8519, 7
      %v8521 = vsub.s32 %v8518, %v8520
      %v8522 = vrot.slane %v8494, %v8521
      %v8523 = vcombine.high %v8501, %v8501
      %v8524 = vcombine.high %v8508, %v8508
      %v8525 = vcombine.high %v8515, %v8515
      %v8526 = vcombine.high %v8522, %v8522
      %v8527 = vld [vmem:[%s5 + $0x58] sm:$0xff]
      %v8528 = vld [vmem:[%s5 + $0xc8] sm:$0xff]
      %v8529 = vld [vmem:[%s5 + $0x138] sm:$0xff]
      %v8530 = vld [vmem:[%s5 + $0x1a8] sm:$0xff]
      %v8531 = vld [vmem:[%s6 + $0x5] sm:$0x1]
      %v8533 = vlaneseq
      %v8534 = vshrl.u32 %v8533, 7
      %v8535 = vsub.s32 0, %v8534
      %v8536 = vrot.slane %v8531, %v8535
      %v8539 = vsel %vm564, %v5834, 0
      %v8542 = vsel %vm564, %v5839, 0
      %v8545 = vsel %vm564, %v5844, 0
      %v8548 = vsel %vm564, %v5849, 0
      %v8551 = vsel %vm564, %v5854, 0
      %v8554 = vsel %vm564, %v5859, 0
      %v8557 = vsel %vm564, %v5864, 0
      %v8560 = vsel %vm564, %v5869, 0
      %8562 = vmatprep.subr.mxu0 0.0
      %8563 = vmatpush1.msra.mxu0 %v8527
      %8564 = vmatprep.subr.mxu0 0.0
      %8565 = vmatpush1.msra.mxu0 %v8528
      %8566 = vmatprep.subr.mxu0 0.0
      %8567 = vmatpush1.msra.mxu0 %v8529
      %8568 = vmatprep.subr.mxu0 0.0
      %8569 = vmatpush1.msra.mxu0 %v8530
      %8570 = vmatprep.subr.mxu0 0.0
      %8571 = vmatpush1.msra.mxu0 0.0
      %8572 = vmatprep.subr.mxu0 0.0
      %8573 = vmatpush1.msra.mxu0 0.0
      %8574 = vmatprep.subr.mxu0 0.0
      %8575 = vmatpush1.msra.mxu0 0.0
      %8576 = vmatprep.subr.mxu0 0.0
      %8577 = vmatpush1.msra.mxu0 0.0
      %8578 = vmatprep.subr.mxu0 0.0
      %8579 = vmatpush1.msra.mxu0 0.0
      %8580 = vmatprep.subr.mxu0 0.0
      %8581 = vmatpush1.msra.mxu0 0.0
      %8582 = vmatprep.subr.mxu0 0.0
      %8583 = vmatpush1.msra.mxu0 0.0
      %8584 = vmatprep.subr.mxu0 0.0
      %8585 = vmatpush1.msra.mxu0 0.0
      %8586 = vmatprep.subr.mxu0 0.0
      %8587 = vmatpush1.msra.mxu0 0.0
      %8588 = vmatprep.subr.mxu0 0.0
      %8589 = vmatpush1.msra.mxu0 0.0
      %8590 = vmatprep.subr.mxu0 0.0
      %8591 = vmatpush1.msra.mxu0 0.0
      %8592 = vmatprep.subr.mxu0 0.0
      %8593 = vmatpush1.msra.mxu0 0.0
      %8594 = vmatprep.subr.mxu0 0.0
      %8595 = vmatpush1.msra.mxu0 0.0
      %8596 = vmatprep.subr.mxu0 0.0
      %8597 = vmatpush1.msra.mxu0 0.0
      %8598 = vmatprep.subr.mxu0 0.0
      %8599 = vmatpush1.msra.mxu0 0.0
      %8600 = vmatprep.subr.mxu0 0.0
      %8601 = vmatpush1.msra.mxu0 0.0
      %8602 = vmatprep.subr.mxu0 0.0
      %8603 = vmatpush1.msra.mxu0 0.0
      %8604 = vmatprep.subr.mxu0 0.0
      %8605 = vmatpush1.msra.mxu0 0.0
      %8606 = vmatprep.subr.mxu0 0.0
      %8607 = vmatpush1.msra.mxu0 0.0
      %8608 = vmatprep.subr.mxu0 0.0
      %8609 = vmatpush1.msra.mxu0 0.0
      %8610 = vmatprep.subr.mxu0 0.0
      %8611 = vmatpush1.msra.mxu0 0.0
      %8612 = vmatprep.subr.mxu0 0.0
      %8613 = vmatpush1.msra.mxu0 0.0
      %8614 = vmatprep.subr.mxu0 0.0
      %8615 = vmatpush1.msra.mxu0 0.0
      %8616 = vmatprep.subr.mxu0 0.0
      %8617 = vmatpush1.msra.mxu0 0.0
      %8618 = vmatprep.subr.mxu0 0.0
      %8619 = vmatpush1.msra.mxu0 0.0
      %8620 = vmatprep.subr.mxu0 0.0
      %8621 = vmatpush1.msra.mxu0 0.0
      %8622 = vmatprep.subr.mxu0 0.0
      %8623 = vmatpush1.msra.mxu0 0.0
      %8624 = vmatprep.subr.mxu0 0.0
      %8625 = vmatpush1.msra.mxu0 0.0
      %8626 = vmatprep.mubr.f32.mxu0 0.0
      %8627 = vmatmul.mubr.f32.gmra.mrb[0].mxu0 %v8539
      %v8628 = vpop.f32.mrb[0].mxu0
      %v8629 = vadd.f32 %v8536, %v8628
      %v8630 = vpop.f32.mrb[0].mxu0
      %8631 = vmatprep.mubr.f32.mxu0 0.0
      %8632 = vmatmul.mubr.f32.gmra.mrb[0].mxu0 %v8542
      %v8633 = vpop.f32.mrb[0].mxu0
      %v8634 = vadd.f32 %v8536, %v8633
      %v8635 = vpop.f32.mrb[0].mxu0
      %8636 = vmatprep.mubr.f32.mxu0 0.0
      %8637 = vmatmul.mubr.f32.gmra.mrb[0].mxu0 %v8545
      %v8638 = vpop.f32.mrb[0].mxu0
      %v8639 = vadd.f32 %v8536, %v8638
      %v8640 = vpop.f32.mrb[0].mxu0
      %8641 = vmatprep.mubr.f32.mxu0 0.0
      %8642 = vmatmul.mubr.f32.gmra.mrb[0].mxu0 %v8548
      %v8643 = vpop.f32.mrb[0].mxu0
      %v8644 = vadd.f32 %v8536, %v8643
      %v8645 = vpop.f32.mrb[0].mxu0
      %8646 = vmatprep.mubr.f32.mxu0 0.0
      %8647 = vmatmul.mubr.f32.gmra.mrb[0].mxu0 %v8551
      %v8648 = vpop.f32.mrb[0].mxu0
      %v8649 = vadd.f32 %v8536, %v8648
      %v8650 = vpop.f32.mrb[0].mxu0
      %8651 = vmatprep.mubr.f32.mxu0 0.0
      %8652 = vmatmul.mubr.f32.gmra.mrb[0].mxu0 %v8554
      %v8653 = vpop.f32.mrb[0].mxu0
      %v8654 = vadd.f32 %v8536, %v8653
      %v8655 = vpop.f32.mrb[0].mxu0
      %8656 = vmatprep.mubr.f32.mxu0 0.0
      %8657 = vmatmul.mubr.f32.gmra.mrb[0].mxu0 %v8557
      %v8658 = vpop.f32.mrb[0].mxu0
      %v8659 = vadd.f32 %v8536, %v8658
      %v8660 = vpop.f32.mrb[0].mxu0
      %8661 = vmatprep.mubr.f32.mxu0 0.0
      %8662 = vmatmul.mubr.f32.gmra.mrb[0].mxu0 %v8560
      %v8663 = vpop.f32.mrb[0].mxu0
      %v8664 = vadd.f32 %v8536, %v8663
      %v8665 = vpop.f32.mrb[0].mxu0
      %8666 = vdwg.mxu0
      %v8667 = vsel %vm564, %v8501, 0
      %v8670 = vsel %vm564, %v8629, 0
      %8672 = vmatprep.subr.mxu0 0.0
      %8673 = vmatpush1.xpose.msra.mxu0 %v8670
      %8674 = vmatprep.subr.mxu0 0.0
      %8675 = vmatpush1.xpose.msra.mxu0 0.0
      %8676 = vmatprep.subr.mxu0 0.0
      %8677 = vmatpush1.xpose.msra.mxu0 0.0
      %8678 = vmatprep.subr.mxu0 0.0
      %8679 = vmatpush1.xpose.msra.mxu0 0.0
      %8680 = vmatprep.subr.mxu0 0.0
      %8681 = vmatpush1.xpose.msra.mxu0 0.0
      %8682 = vmatprep.subr.mxu0 0.0
      %8683 = vmatpush1.xpose.msra.mxu0 0.0
      %8684 = vmatprep.subr.mxu0 0.0
      %8685 = vmatpush1.xpose.msra.mxu0 0.0
      %8686 = vmatprep.subr.mxu0 0.0
      %8687 = vmatpush1.xpose.msra.mxu0 0.0
      %8688 = vmatprep.subr.mxu0 0.0
      %8689 = vmatpush1.xpose.msra.mxu0 0.0
      %8690 = vmatprep.subr.mxu0 0.0
      %8691 = vmatpush1.xpose.msra.mxu0 0.0
      %8692 = vmatprep.subr.mxu0 0.0
      %8693 = vmatpush1.xpose.msra.mxu0 0.0
      %8694 = vmatprep.subr.mxu0 0.0
      %8695 = vmatpush1.xpose.msra.mxu0 0.0
      %8696 = vmatprep.subr.mxu0 0.0
      %8697 = vmatpush1.xpose.msra.mxu0 0.0
      %8698 = vmatprep.subr.mxu0 0.0
      %8699 = vmatpush1.xpose.msra.mxu0 0.0
      %8700 = vmatprep.subr.mxu0 0.0
      %8701 = vmatpush1.xpose.msra.mxu0 0.0
      %8702 = vmatprep.subr.mxu0 0.0
      %8703 = vmatpush1.xpose.msra.mxu0 0.0
      %8704 = vmatprep.subr.mxu0 0.0
      %8705 = vmatpush1.xpose.msra.mxu0 0.0
      %8706 = vmatprep.subr.mxu0 0.0
      %8707 = vmatpush1.xpose.msra.mxu0 0.0
      %8708 = vmatprep.subr.mxu0 0.0
      %8709 = vmatpush1.xpose.msra.mxu0 0.0
      %8710 = vmatprep.subr.mxu0 0.0
      %8711 = vmatpush1.xpose.msra.mxu0 0.0
      %8712 = vmatprep.subr.mxu0 0.0
      %8713 = vmatpush1.xpose.msra.mxu0 0.0
      %8714 = vmatprep.subr.mxu0 0.0
      %8715 = vmatpush1.xpose.msra.mxu0 0.0
      %8716 = vmatprep.subr.mxu0 0.0
      %8717 = vmatpush1.xpose.msra.mxu0 0.0
      %8718 = vmatprep.subr.mxu0 0.0
      %8719 = vmatpush1.xpose.msra.mxu0 0.0
      %8720 = vmatprep.subr.mxu0 0.0
      %8721 = vmatpush1.xpose.msra.mxu0 0.0
      %8722 = vmatprep.subr.mxu0 0.0
      %8723 = vmatpush1.xpose.msra.mxu0 0.0
      %8724 = vmatprep.subr.mxu0 0.0
      %8725 = vmatpush1.xpose.msra.mxu0 0.0
      %8726 = vmatprep.subr.mxu0 0.0
      %8727 = vmatpush1.xpose.msra.mxu0 0.0
      %8728 = vmatprep.subr.mxu0 0.0
      %8729 = vmatpush1.xpose.msra.mxu0 0.0
      %8730 = vmatprep.subr.mxu0 0.0
      %8731 = vmatpush1.xpose.msra.mxu0 0.0
      %8732 = vmatprep.subr.mxu0 0.0
      %8733 = vmatpush1.xpose.msra.mxu0 0.0
      %8734 = vmatprep.subr.mxu0 0.0
      %8735 = vmatpush1.xpose.msra.mxu0 0.0
      %8736 = vmatprep.mubr.f32.mxu0 0.0
      %8737 = vmatmul.mubr.f32.gmra.mrb[0].mxu0 %v8667
      %v8738 = vpop.f32.mrb[0].mxu0
      %v8739 = vadd.f32 0.0, %v8738
      %v8740 = vpop.f32.mrb[0].mxu0
      %8741 = vdwg.mxu0
      %v8742 = vsel %vm564, %v8515, 0
      %v8745 = vsel %vm564, %v8634, 0
      %8747 = vmatprep.subr.mxu0 0.0
      %8748 = vmatpush1.xpose.msra.mxu0 %v8745
      %8749 = vmatprep.subr.mxu0 0.0
      %8750 = vmatpush1.xpose.msra.mxu0 0.0
      %8751 = vmatprep.subr.mxu0 0.0
      %8752 = vmatpush1.xpose.msra.mxu0 0.0
      %8753 = vmatprep.subr.mxu0 0.0
      %8754 = vmatpush1.xpose.msra.mxu0 0.0
      %8755 = vmatprep.subr.mxu0 0.0
      %8756 = vmatpush1.xpose.msra.mxu0 0.0
      %8757 = vmatprep.subr.mxu0 0.0
      %8758 = vmatpush1.xpose.msra.mxu0 0.0
      %8759 = vmatprep.subr.mxu0 0.0
      %8760 = vmatpush1.xpose.msra.mxu0 0.0
      %8761 = vmatprep.subr.mxu0 0.0
      %8762 = vmatpush1.xpose.msra.mxu0 0.0
      %8763 = vmatprep.subr.mxu0 0.0
      %8764 = vmatpush1.xpose.msra.mxu0 0.0
      %8765 = vmatprep.subr.mxu0 0.0
      %8766 = vmatpush1.xpose.msra.mxu0 0.0
      %8767 = vmatprep.subr.mxu0 0.0
      %8768 = vmatpush1.xpose.msra.mxu0 0.0
      %8769 = vmatprep.subr.mxu0 0.0
      %8770 = vmatpush1.xpose.msra.mxu0 0.0
      %8771 = vmatprep.subr.mxu0 0.0
      %8772 = vmatpush1.xpose.msra.mxu0 0.0
      %8773 = vmatprep.subr.mxu0 0.0
      %8774 = vmatpush1.xpose.msra.mxu0 0.0
      %8775 = vmatprep.subr.mxu0 0.0
      %8776 = vmatpush1.xpose.msra.mxu0 0.0
      %8777 = vmatprep.subr.mxu0 0.0
      %8778 = vmatpush1.xpose.msra.mxu0 0.0
      %8779 = vmatprep.subr.mxu0 0.0
      %8780 = vmatpush1.xpose.msra.mxu0 0.0
      %8781 = vmatprep.subr.mxu0 0.0
      %8782 = vmatpush1.xpose.msra.mxu0 0.0
      %8783 = vmatprep.subr.mxu0 0.0
      %8784 = vmatpush1.xpose.msra.mxu0 0.0
      %8785 = vmatprep.subr.mxu0 0.0
      %8786 = vmatpush1.xpose.msra.mxu0 0.0
      %8787 = vmatprep.subr.mxu0 0.0
      %8788 = vmatpush1.xpose.msra.mxu0 0.0
      %8789 = vmatprep.subr.mxu0 0.0
      %8790 = vmatpush1.xpose.msra.mxu0 0.0
      %8791 = vmatprep.subr.mxu0 0.0
      %8792 = vmatpush1.xpose.msra.mxu0 0.0
      %8793 = vmatprep.subr.mxu0 0.0
      %8794 = vmatpush1.xpose.msra.mxu0 0.0
      %8795 = vmatprep.subr.mxu0 0.0
      %8796 = vmatpush1.xpose.msra.mxu0 0.0
      %8797 = vmatprep.subr.mxu0 0.0
      %8798 = vmatpush1.xpose.msra.mxu0 0.0
      %8799 = vmatprep.subr.mxu0 0.0
      %8800 = vmatpush1.xpose.msra.mxu0 0.0
      %8801 = vmatprep.subr.mxu0 0.0
      %8802 = vmatpush1.xpose.msra.mxu0 0.0
      %8803 = vmatprep.subr.mxu0 0.0
      %8804 = vmatpush1.xpose.msra.mxu0 0.0
      %8805 = vmatprep.subr.mxu0 0.0
      %8806 = vmatpush1.xpose.msra.mxu0 0.0
      %8807 = vmatprep.subr.mxu0 0.0
      %8808 = vmatpush1.xpose.msra.mxu0 0.0
      %8809 = vmatprep.subr.mxu0 0.0
      %8810 = vmatpush1.xpose.msra.mxu0 0.0
      %8811 = vmatprep.mubr.f32.mxu0 0.0
      %8812 = vmatmul.mubr.f32.gmra.mrb[0].mxu0 %v8742
      %v8813 = vpop.f32.mrb[0].mxu0
      %v8814 = vadd.f32 0.0, %v8813
      %v8815 = vpop.f32.mrb[0].mxu0
      %8816 = vdwg.mxu0
      %v8817 = vsel %vm564, %v8523, 0
      %v8820 = vsel %vm564, %v8639, 0
      %8822 = vmatprep.subr.mxu0 0.0
      %8823 = vmatpush1.xpose.msra.mxu0 %v8820
      %8824 = vmatprep.subr.mxu0 0.0
      %8825 = vmatpush1.xpose.msra.mxu0 0.0
      %8826 = vmatprep.subr.mxu0 0.0
      %8827 = vmatpush1.xpose.msra.mxu0 0.0
      %8828 = vmatprep.subr.mxu0 0.0
      %8829 = vmatpush1.xpose.msra.mxu0 0.0
      %8830 = vmatprep.subr.mxu0 0.0
      %8831 = vmatpush1.xpose.msra.mxu0 0.0
      %8832 = vmatprep.subr.mxu0 0.0
      %8833 = vmatpush1.xpose.msra.mxu0 0.0
      %8834 = vmatprep.subr.mxu0 0.0
      %8835 = vmatpush1.xpose.msra.mxu0 0.0
      %8836 = vmatprep.subr.mxu0 0.0
      %8837 = vmatpush1.xpose.msra.mxu0 0.0
      %8838 = vmatprep.subr.mxu0 0.0
      %8839 = vmatpush1.xpose.msra.mxu0 0.0
      %8840 = vmatprep.subr.mxu0 0.0
      %8841 = vmatpush1.xpose.msra.mxu0 0.0
      %8842 = vmatprep.subr.mxu0 0.0
      %8843 = vmatpush1.xpose.msra.mxu0 0.0
      %8844 = vmatprep.subr.mxu0 0.0
      %8845 = vmatpush1.xpose.msra.mxu0 0.0
      %8846 = vmatprep.subr.mxu0 0.0
      %8847 = vmatpush1.xpose.msra.mxu0 0.0
      %8848 = vmatprep.subr.mxu0 0.0
      %8849 = vmatpush1.xpose.msra.mxu0 0.0
      %8850 = vmatprep.subr.mxu0 0.0
      %8851 = vmatpush1.xpose.msra.mxu0 0.0
      %8852 = vmatprep.subr.mxu0 0.0
      %8853 = vmatpush1.xpose.msra.mxu0 0.0
      %8854 = vmatprep.subr.mxu0 0.0
      %8855 = vmatpush1.xpose.msra.mxu0 0.0
      %8856 = vmatprep.subr.mxu0 0.0
      %8857 = vmatpush1.xpose.msra.mxu0 0.0
      %8858 = vmatprep.subr.mxu0 0.0
      %8859 = vmatpush1.xpose.msra.mxu0 0.0
      %8860 = vmatprep.subr.mxu0 0.0
      %8861 = vmatpush1.xpose.msra.mxu0 0.0
      %8862 = vmatprep.subr.mxu0 0.0
      %8863 = vmatpush1.xpose.msra.mxu0 0.0
      %8864 = vmatprep.subr.mxu0 0.0
      %8865 = vmatpush1.xpose.msra.mxu0 0.0
      %8866 = vmatprep.subr.mxu0 0.0
      %8867 = vmatpush1.xpose.msra.mxu0 0.0
      %8868 = vmatprep.subr.mxu0 0.0
      %8869 = vmatpush1.xpose.msra.mxu0 0.0
      %8870 = vmatprep.subr.mxu0 0.0
      %8871 = vmatpush1.xpose.msra.mxu0 0.0
      %8872 = vmatprep.subr.mxu0 0.0
      %8873 = vmatpush1.xpose.msra.mxu0 0.0
      %8874 = vmatprep.subr.mxu0 0.0
      %8875 = vmatpush1.xpose.msra.mxu0 0.0
      %8876 = vmatprep.subr.mxu0 0.0
      %8877 = vmatpush1.xpose.msra.mxu0 0.0
      %8878 = vmatprep.subr.mxu0 0.0
      %8879 = vmatpush1.xpose.msra.mxu0 0.0
      %8880 = vmatprep.subr.mxu0 0.0
      %8881 = vmatpush1.xpose.msra.mxu0 0.0
      %8882 = vmatprep.subr.mxu0 0.0
      %8883 = vmatpush1.xpose.msra.mxu0 0.0
      %8884 = vmatprep.subr.mxu0 0.0
      %8885 = vmatpush1.xpose.msra.mxu0 0.0
      %8886 = vmatprep.mubr.f32.mxu0 0.0
      %8887 = vmatmul.mubr.f32.gmra.mrb[0].mxu0 %v8817
      %v8888 = vpop.f32.mrb[0].mxu0
      %v8889 = vadd.f32 0.0, %v8888
      %v8890 = vpop.f32.mrb[0].mxu0
      %8891 = vdwg.mxu0
      %v8892 = vsel %vm564, %v8525, 0
      %v8895 = vsel %vm564, %v8644, 0
      %8897 = vmatprep.subr.mxu0 0.0
      %8898 = vmatpush1.xpose.msra.mxu0 %v8895
      %8899 = vmatprep.subr.mxu0 0.0
      %8900 = vmatpush1.xpose.msra.mxu0 0.0
      %8901 = vmatprep.subr.mxu0 0.0
      %8902 = vmatpush1.xpose.msra.mxu0 0.0
      %8903 = vmatprep.subr.mxu0 0.0
      %8904 = vmatpush1.xpose.msra.mxu0 0.0
      %8905 = vmatprep.subr.mxu0 0.0
      %8906 = vmatpush1.xpose.msra.mxu0 0.0
      %8907 = vmatprep.subr.mxu0 0.0
      %8908 = vmatpush1.xpose.msra.mxu0 0.0
      %8909 = vmatprep.subr.mxu0 0.0
      %8910 = vmatpush1.xpose.msra.mxu0 0.0
      %8911 = vmatprep.subr.mxu0 0.0
      %8912 = vmatpush1.xpose.msra.mxu0 0.0
      %8913 = vmatprep.subr.mxu0 0.0
      %8914 = vmatpush1.xpose.msra.mxu0 0.0
      %8915 = vmatprep.subr.mxu0 0.0
      %8916 = vmatpush1.xpose.msra.mxu0 0.0
      %8917 = vmatprep.subr.mxu0 0.0
      %8918 = vmatpush1.xpose.msra.mxu0 0.0
      %8919 = vmatprep.subr.mxu0 0.0
      %8920 = vmatpush1.xpose.msra.mxu0 0.0
      %8921 = vmatprep.subr.mxu0 0.0
      %8922 = vmatpush1.xpose.msra.mxu0 0.0
      %8923 = vmatprep.subr.mxu0 0.0
      %8924 = vmatpush1.xpose.msra.mxu0 0.0
      %8925 = vmatprep.subr.mxu0 0.0
      %8926 = vmatpush1.xpose.msra.mxu0 0.0
      %8927 = vmatprep.subr.mxu0 0.0
      %8928 = vmatpush1.xpose.msra.mxu0 0.0
      %8929 = vmatprep.subr.mxu0 0.0
      %8930 = vmatpush1.xpose.msra.mxu0 0.0
      %8931 = vmatprep.subr.mxu0 0.0
      %8932 = vmatpush1.xpose.msra.mxu0 0.0
      %8933 = vmatprep.subr.mxu0 0.0
      %8934 = vmatpush1.xpose.msra.mxu0 0.0
      %8935 = vmatprep.subr.mxu0 0.0
      %8936 = vmatpush1.xpose.msra.mxu0 0.0
      %8937 = vmatprep.subr.mxu0 0.0
      %8938 = vmatpush1.xpose.msra.mxu0 0.0
      %8939 = vmatprep.subr.mxu0 0.0
      %8940 = vmatpush1.xpose.msra.mxu0 0.0
      %8941 = vmatprep.subr.mxu0 0.0
      %8942 = vmatpush1.xpose.msra.mxu0 0.0
      %8943 = vmatprep.subr.mxu0 0.0
      %8944 = vmatpush1.xpose.msra.mxu0 0.0
      %8945 = vmatprep.subr.mxu0 0.0
      %8946 = vmatpush1.xpose.msra.mxu0 0.0
      %8947 = vmatprep.subr.mxu0 0.0
      %8948 = vmatpush1.xpose.msra.mxu0 0.0
      %8949 = vmatprep.subr.mxu0 0.0
      %8950 = vmatpush1.xpose.msra.mxu0 0.0
      %8951 = vmatprep.subr.mxu0 0.0
      %8952 = vmatpush1.xpose.msra.mxu0 0.0
      %8953 = vmatprep.subr.mxu0 0.0
      %8954 = vmatpush1.xpose.msra.mxu0 0.0
      %8955 = vmatprep.subr.mxu0 0.0
      %8956 = vmatpush1.xpose.msra.mxu0 0.0
      %8957 = vmatprep.subr.mxu0 0.0
      %8958 = vmatpush1.xpose.msra.mxu0 0.0
      %8959 = vmatprep.subr.mxu0 0.0
      %8960 = vmatpush1.xpose.msra.mxu0 0.0
      %8961 = vmatprep.mubr.f32.mxu0 0.0
      %8962 = vmatmul.mubr.f32.gmra.mrb[0].mxu0 %v8892
      %v8963 = vpop.f32.mrb[0].mxu0
      %v8964 = vadd.f32 0.0, %v8963
      %v8965 = vpop.f32.mrb[0].mxu0
      %8966 = vdwg.mxu0
      %v8967 = vsel %vm564, %v8508, 0
      %v8970 = vsel %vm564, %v8649, 0
      %8972 = vmatprep.subr.mxu0 0.0
      %8973 = vmatpush1.xpose.msra.mxu0 %v8970
      %8974 = vmatprep.subr.mxu0 0.0
      %8975 = vmatpush1.xpose.msra.mxu0 0.0
      %8976 = vmatprep.subr.mxu0 0.0
      %8977 = vmatpush1.xpose.msra.mxu0 0.0
      %8978 = vmatprep.subr.mxu0 0.0
      %8979 = vmatpush1.xpose.msra.mxu0 0.0
      %8980 = vmatprep.subr.mxu0 0.0
      %8981 = vmatpush1.xpose.msra.mxu0 0.0
      %8982 = vmatprep.subr.mxu0 0.0
      %8983 = vmatpush1.xpose.msra.mxu0 0.0
      %8984 = vmatprep.subr.mxu0 0.0
      %8985 = vmatpush1.xpose.msra.mxu0 0.0
      %8986 = vmatprep.subr.mxu0 0.0
      %8987 = vmatpush1.xpose.msra.mxu0 0.0
      %8988 = vmatprep.subr.mxu0 0.0
      %8989 = vmatpush1.xpose.msra.mxu0 0.0
      %8990 = vmatprep.subr.mxu0 0.0
      %8991 = vmatpush1.xpose.msra.mxu0 0.0
      %8992 = vmatprep.subr.mxu0 0.0
      %8993 = vmatpush1.xpose.msra.mxu0 0.0
      %8994 = vmatprep.subr.mxu0 0.0
      %8995 = vmatpush1.xpose.msra.mxu0 0.0
      %8996 = vmatprep.subr.mxu0 0.0
      %8997 = vmatpush1.xpose.msra.mxu0 0.0
      %8998 = vmatprep.subr.mxu0 0.0
      %8999 = vmatpush1.xpose.msra.mxu0 0.0
      %9000 = vmatprep.subr.mxu0 0.0
      %9001 = vmatpush1.xpose.msra.mxu0 0.0
      %9002 = vmatprep.subr.mxu0 0.0
      %9003 = vmatpush1.xpose.msra.mxu0 0.0
      %9004 = vmatprep.subr.mxu0 0.0
      %9005 = vmatpush1.xpose.msra.mxu0 0.0
      %9006 = vmatprep.subr.mxu0 0.0
      %9007 = vmatpush1.xpose.msra.mxu0 0.0
      %9008 = vmatprep.subr.mxu0 0.0
      %9009 = vmatpush1.xpose.msra.mxu0 0.0
      %9010 = vmatprep.subr.mxu0 0.0
      %9011 = vmatpush1.xpose.msra.mxu0 0.0
      %9012 = vmatprep.subr.mxu0 0.0
      %9013 = vmatpush1.xpose.msra.mxu0 0.0
      %9014 = vmatprep.subr.mxu0 0.0
      %9015 = vmatpush1.xpose.msra.mxu0 0.0
      %9016 = vmatprep.subr.mxu0 0.0
      %9017 = vmatpush1.xpose.msra.mxu0 0.0
      %9018 = vmatprep.subr.mxu0 0.0
      %9019 = vmatpush1.xpose.msra.mxu0 0.0
      %9020 = vmatprep.subr.mxu0 0.0
      %9021 = vmatpush1.xpose.msra.mxu0 0.0
      %9022 = vmatprep.subr.mxu0 0.0
      %9023 = vmatpush1.xpose.msra.mxu0 0.0
      %9024 = vmatprep.subr.mxu0 0.0
      %9025 = vmatpush1.xpose.msra.mxu0 0.0
      %9026 = vmatprep.subr.mxu0 0.0
      %9027 = vmatpush1.xpose.msra.mxu0 0.0
      %9028 = vmatprep.subr.mxu0 0.0
      %9029 = vmatpush1.xpose.msra.mxu0 0.0
      %9030 = vmatprep.subr.mxu0 0.0
      %9031 = vmatpush1.xpose.msra.mxu0 0.0
      %9032 = vmatprep.subr.mxu0 0.0
      %9033 = vmatpush1.xpose.msra.mxu0 0.0
      %9034 = vmatprep.subr.mxu0 0.0
      %9035 = vmatpush1.xpose.msra.mxu0 0.0
      %9036 = vmatprep.mubr.f32.mxu0 0.0
      %9037 = vmatmul.mubr.f32.gmra.mrb[0].mxu0 %v8967
      %v9038 = vpop.f32.mrb[0].mxu0
      %v9039 = vadd.f32 0.0, %v9038
      %v9040 = vpop.f32.mrb[0].mxu0
      %9041 = vdwg.mxu0
      %v9042 = vsel %vm564, %v8522, 0
      %v9045 = vsel %vm564, %v8654, 0
      %9047 = vmatprep.subr.mxu0 0.0
      %9048 = vmatpush1.xpose.msra.mxu0 %v9045
      %9049 = vmatprep.subr.mxu0 0.0
      %9050 = vmatpush1.xpose.msra.mxu0 0.0
      %9051 = vmatprep.subr.mxu0 0.0
      %9052 = vmatpush1.xpose.msra.mxu0 0.0
      %9053 = vmatprep.subr.mxu0 0.0
      %9054 = vmatpush1.xpose.msra.mxu0 0.0
      %9055 = vmatprep.subr.mxu0 0.0
      %9056 = vmatpush1.xpose.msra.mxu0 0.0
      %9057 = vmatprep.subr.mxu0 0.0
      %9058 = vmatpush1.xpose.msra.mxu0 0.0
      %9059 = vmatprep.subr.mxu0 0.0
      %9060 = vmatpush1.xpose.msra.mxu0 0.0
      %9061 = vmatprep.subr.mxu0 0.0
      %9062 = vmatpush1.xpose.msra.mxu0 0.0
      %9063 = vmatprep.subr.mxu0 0.0
      %9064 = vmatpush1.xpose.msra.mxu0 0.0
      %9065 = vmatprep.subr.mxu0 0.0
      %9066 = vmatpush1.xpose.msra.mxu0 0.0
      %9067 = vmatprep.subr.mxu0 0.0
      %9068 = vmatpush1.xpose.msra.mxu0 0.0
      %9069 = vmatprep.subr.mxu0 0.0
      %9070 = vmatpush1.xpose.msra.mxu0 0.0
      %9071 = vmatprep.subr.mxu0 0.0
      %9072 = vmatpush1.xpose.msra.mxu0 0.0
      %9073 = vmatprep.subr.mxu0 0.0
      %9074 = vmatpush1.xpose.msra.mxu0 0.0
      %9075 = vmatprep.subr.mxu0 0.0
      %9076 = vmatpush1.xpose.msra.mxu0 0.0
      %9077 = vmatprep.subr.mxu0 0.0
      %9078 = vmatpush1.xpose.msra.mxu0 0.0
      %9079 = vmatprep.subr.mxu0 0.0
      %9080 = vmatpush1.xpose.msra.mxu0 0.0
      %9081 = vmatprep.subr.mxu0 0.0
      %9082 = vmatpush1.xpose.msra.mxu0 0.0
      %9083 = vmatprep.subr.mxu0 0.0
      %9084 = vmatpush1.xpose.msra.mxu0 0.0
      %9085 = vmatprep.subr.mxu0 0.0
      %9086 = vmatpush1.xpose.msra.mxu0 0.0
      %9087 = vmatprep.subr.mxu0 0.0
      %9088 = vmatpush1.xpose.msra.mxu0 0.0
      %9089 = vmatprep.subr.mxu0 0.0
      %9090 = vmatpush1.xpose.msra.mxu0 0.0
      %9091 = vmatprep.subr.mxu0 0.0
      %9092 = vmatpush1.xpose.msra.mxu0 0.0
      %9093 = vmatprep.subr.mxu0 0.0
      %9094 = vmatpush1.xpose.msra.mxu0 0.0
      %9095 = vmatprep.subr.mxu0 0.0
      %9096 = vmatpush1.xpose.msra.mxu0 0.0
      %9097 = vmatprep.subr.mxu0 0.0
      %9098 = vmatpush1.xpose.msra.mxu0 0.0
      %9099 = vmatprep.subr.mxu0 0.0
      %9100 = vmatpush1.xpose.msra.mxu0 0.0
      %9101 = vmatprep.subr.mxu0 0.0
      %9102 = vmatpush1.xpose.msra.mxu0 0.0
      %9103 = vmatprep.subr.mxu0 0.0
      %9104 = vmatpush1.xpose.msra.mxu0 0.0
      %9105 = vmatprep.subr.mxu0 0.0
      %9106 = vmatpush1.xpose.msra.mxu0 0.0
      %9107 = vmatprep.subr.mxu0 0.0
      %9108 = vmatpush1.xpose.msra.mxu0 0.0
      %9109 = vmatprep.subr.mxu0 0.0
      %9110 = vmatpush1.xpose.msra.mxu0 0.0
      %9111 = vmatprep.mubr.f32.mxu0 0.0
      %9112 = vmatmul.mubr.f32.gmra.mrb[0].mxu0 %v9042
      %v9113 = vpop.f32.mrb[0].mxu0
      %v9114 = vadd.f32 0.0, %v9113
      %v9115 = vpop.f32.mrb[0].mxu0
      %9116 = vdwg.mxu0
      %v9117 = vsel %vm564, %v8524, 0
      %v9120 = vsel %vm564, %v8659, 0
      %9122 = vmatprep.subr.mxu0 0.0
      %9123 = vmatpush1.xpose.msra.mxu0 %v9120
      %9124 = vmatprep.subr.mxu0 0.0
      %9125 = vmatpush1.xpose.msra.mxu0 0.0
      %9126 = vmatprep.subr.mxu0 0.0
      %9127 = vmatpush1.xpose.msra.mxu0 0.0
      %9128 = vmatprep.subr.mxu0 0.0
      %9129 = vmatpush1.xpose.msra.mxu0 0.0
      %9130 = vmatprep.subr.mxu0 0.0
      %9131 = vmatpush1.xpose.msra.mxu0 0.0
      %9132 = vmatprep.subr.mxu0 0.0
      %9133 = vmatpush1.xpose.msra.mxu0 0.0
      %9134 = vmatprep.subr.mxu0 0.0
      %9135 = vmatpush1.xpose.msra.mxu0 0.0
      %9136 = vmatprep.subr.mxu0 0.0
      %9137 = vmatpush1.xpose.msra.mxu0 0.0
      %9138 = vmatprep.subr.mxu0 0.0
      %9139 = vmatpush1.xpose.msra.mxu0 0.0
      %9140 = vmatprep.subr.mxu0 0.0
      %9141 = vmatpush1.xpose.msra.mxu0 0.0
      %9142 = vmatprep.subr.mxu0 0.0
      %9143 = vmatpush1.xpose.msra.mxu0 0.0
      %9144 = vmatprep.subr.mxu0 0.0
      %9145 = vmatpush1.xpose.msra.mxu0 0.0
      %9146 = vmatprep.subr.mxu0 0.0
      %9147 = vmatpush1.xpose.msra.mxu0 0.0
      %9148 = vmatprep.subr.mxu0 0.0
      %9149 = vmatpush1.xpose.msra.mxu0 0.0
      %9150 = vmatprep.subr.mxu0 0.0
      %9151 = vmatpush1.xpose.msra.mxu0 0.0
      %9152 = vmatprep.subr.mxu0 0.0
      %9153 = vmatpush1.xpose.msra.mxu0 0.0
      %9154 = vmatprep.subr.mxu0 0.0
      %9155 = vmatpush1.xpose.msra.mxu0 0.0
      %9156 = vmatprep.subr.mxu0 0.0
      %9157 = vmatpush1.xpose.msra.mxu0 0.0
      %9158 = vmatprep.subr.mxu0 0.0
      %9159 = vmatpush1.xpose.msra.mxu0 0.0
      %9160 = vmatprep.subr.mxu0 0.0
      %9161 = vmatpush1.xpose.msra.mxu0 0.0
      %9162 = vmatprep.subr.mxu0 0.0
      %9163 = vmatpush1.xpose.msra.mxu0 0.0
      %9164 = vmatprep.subr.mxu0 0.0
      %9165 = vmatpush1.xpose.msra.mxu0 0.0
      %9166 = vmatprep.subr.mxu0 0.0
      %9167 = vmatpush1.xpose.msra.mxu0 0.0
      %9168 = vmatprep.subr.mxu0 0.0
      %9169 = vmatpush1.xpose.msra.mxu0 0.0
      %9170 = vmatprep.subr.mxu0 0.0
      %9171 = vmatpush1.xpose.msra.mxu0 0.0
      %9172 = vmatprep.subr.mxu0 0.0
      %9173 = vmatpush1.xpose.msra.mxu0 0.0
      %9174 = vmatprep.subr.mxu0 0.0
      %9175 = vmatpush1.xpose.msra.mxu0 0.0
      %9176 = vmatprep.subr.mxu0 0.0
      %9177 = vmatpush1.xpose.msra.mxu0 0.0
      %9178 = vmatprep.subr.mxu0 0.0
      %9179 = vmatpush1.xpose.msra.mxu0 0.0
      %9180 = vmatprep.subr.mxu0 0.0
      %9181 = vmatpush1.xpose.msra.mxu0 0.0
      %9182 = vmatprep.subr.mxu0 0.0
      %9183 = vmatpush1.xpose.msra.mxu0 0.0
      %9184 = vmatprep.subr.mxu0 0.0
      %9185 = vmatpush1.xpose.msra.mxu0 0.0
      %9186 = vmatprep.mubr.f32.mxu0 0.0
      %9187 = vmatmul.mubr.f32.gmra.mrb[0].mxu0 %v9117
      %v9188 = vpop.f32.mrb[0].mxu0
      %v9189 = vadd.f32 0.0, %v9188
      %v9190 = vpop.f32.mrb[0].mxu0
      %9191 = vdwg.mxu0
      %v9192 = vsel %vm564, %v8526, 0
      %v9195 = vsel %vm564, %v8664, 0
      %9197 = vmatprep.subr.mxu0 0.0
      %9198 = vmatpush1.xpose.msra.mxu0 %v9195
      %9199 = vmatprep.subr.mxu0 0.0
      %9200 = vmatpush1.xpose.msra.mxu0 0.0
      %9201 = vmatprep.subr.mxu0 0.0
      %9202 = vmatpush1.xpose.msra.mxu0 0.0
      %9203 = vmatprep.subr.mxu0 0.0
      %9204 = vmatpush1.xpose.msra.mxu0 0.0
      %9205 = vmatprep.subr.mxu0 0.0
      %9206 = vmatpush1.xpose.msra.mxu0 0.0
      %9207 = vmatprep.subr.mxu0 0.0
      %9208 = vmatpush1.xpose.msra.mxu0 0.0
      %9209 = vmatprep.subr.mxu0 0.0
      %9210 = vmatpush1.xpose.msra.mxu0 0.0
      %9211 = vmatprep.subr.mxu0 0.0
      %9212 = vmatpush1.xpose.msra.mxu0 0.0
      %9213 = vmatprep.subr.mxu0 0.0
      %9214 = vmatpush1.xpose.msra.mxu0 0.0
      %9215 = vmatprep.subr.mxu0 0.0
      %9216 = vmatpush1.xpose.msra.mxu0 0.0
      %9217 = vmatprep.subr.mxu0 0.0
      %9218 = vmatpush1.xpose.msra.mxu0 0.0
      %9219 = vmatprep.subr.mxu0 0.0
      %9220 = vmatpush1.xpose.msra.mxu0 0.0
      %9221 = vmatprep.subr.mxu0 0.0
      %9222 = vmatpush1.xpose.msra.mxu0 0.0
      %9223 = vmatprep.subr.mxu0 0.0
      %9224 = vmatpush1.xpose.msra.mxu0 0.0
      %9225 = vmatprep.subr.mxu0 0.0
      %9226 = vmatpush1.xpose.msra.mxu0 0.0
      %9227 = vmatprep.subr.mxu0 0.0
      %9228 = vmatpush1.xpose.msra.mxu0 0.0
      %9229 = vmatprep.subr.mxu0 0.0
      %9230 = vmatpush1.xpose.msra.mxu0 0.0
      %9231 = vmatprep.subr.mxu0 0.0
      %9232 = vmatpush1.xpose.msra.mxu0 0.0
      %9233 = vmatprep.subr.mxu0 0.0
      %9234 = vmatpush1.xpose.msra.mxu0 0.0
      %9235 = vmatprep.subr.mxu0 0.0
      %9236 = vmatpush1.xpose.msra.mxu0 0.0
      %9237 = vmatprep.subr.mxu0 0.0
      %9238 = vmatpush1.xpose.msra.mxu0 0.0
      %9239 = vmatprep.subr.mxu0 0.0
      %9240 = vmatpush1.xpose.msra.mxu0 0.0
      %9241 = vmatprep.subr.mxu0 0.0
      %9242 = vmatpush1.xpose.msra.mxu0 0.0
      %9243 = vmatprep.subr.mxu0 0.0
      %9244 = vmatpush1.xpose.msra.mxu0 0.0
      %9245 = vmatprep.subr.mxu0 0.0
      %9246 = vmatpush1.xpose.msra.mxu0 0.0
      %9247 = vmatprep.subr.mxu0 0.0
      %9248 = vmatpush1.xpose.msra.mxu0 0.0
      %9249 = vmatprep.subr.mxu0 0.0
      %9250 = vmatpush1.xpose.msra.mxu0 0.0
      %9251 = vmatprep.subr.mxu0 0.0
      %9252 = vmatpush1.xpose.msra.mxu0 0.0
      %9253 = vmatprep.subr.mxu0 0.0
      %9254 = vmatpush1.xpose.msra.mxu0 0.0
      %9255 = vmatprep.subr.mxu0 0.0
      %9256 = vmatpush1.xpose.msra.mxu0 0.0
      %9257 = vmatprep.subr.mxu0 0.0
      %9258 = vmatpush1.xpose.msra.mxu0 0.0
      %9259 = vmatprep.subr.mxu0 0.0
      %9260 = vmatpush1.xpose.msra.mxu0 0.0
      %9261 = vmatprep.mubr.f32.mxu0 0.0
      %9262 = vmatmul.mubr.f32.gmra.mrb[0].mxu0 %v9192
      %v9263 = vpop.f32.mrb[0].mxu0
      %v9264 = vadd.f32 0.0, %v9263
      %v9265 = vpop.f32.mrb[0].mxu0
      %9266 = vdwg.mxu0
      %v9267 = vmul.f32 %v8739, 0.17677669
      %v9268 = vmul.f32 %v8814, 0.17677669
      %v9269 = vmul.f32 %v8889, 0.17677669
      %v9270 = vmul.f32 %v8964, 0.17677669
      %v9271 = vmul.f32 %v9039, 0.17677669
      %v9272 = vmul.f32 %v9114, 0.17677669
      %v9273 = vmul.f32 %v9189, 0.17677669
      %v9274 = vmul.f32 %v9264, 0.17677669
      %v9275 = vadd.f32 %v9267, %v391
      %v9276 = vadd.f32 %v9268, %v392
      %v9277 = vadd.f32 %v9269, %v393
      %v9278 = vadd.f32 %v9270, %v394
      %v9279 = vadd.f32 %v9271, %v395
      %v9280 = vadd.f32 %v9272, %v396
      %v9281 = vadd.f32 %v9273, %v397
      %v9282 = vadd.f32 %v9274, %v398
      %v9283 = vsel %vm1287, %v9275, -inf
      %9284 = vmax.xlane.f32.xlu0 %v9283
      %v9285 = vpop.xlane.xlu0 %9284
      %v9286 = vsel %vm1287, %v9276, -inf
      %9287 = vmax.xlane.f32.xlu0 %v9286
      %v9288 = vpop.xlane.xlu0 %9287
      %v9289 = vsel %vm1287, %v9277, -inf
      %9290 = vmax.xlane.f32.xlu0 %v9289
      %v9291 = vpop.xlane.xlu0 %9290
      %v9292 = vsel %vm1287, %v9278, -inf
      %9293 = vmax.xlane.f32.xlu0 %v9292
      %v9294 = vpop.xlane.xlu0 %9293
      %v9295 = vsel %vm1287, %v9279, -inf
      %9296 = vmax.xlane.f32.xlu0 %v9295
      %v9297 = vpop.xlane.xlu0 %9296
      %v9298 = vsel %vm1287, %v9280, -inf
      %9299 = vmax.xlane.f32.xlu0 %v9298
      %v9300 = vpop.xlane.xlu0 %9299
      %v9301 = vsel %vm1287, %v9281, -inf
      %9302 = vmax.xlane.f32.xlu0 %v9301
      %v9303 = vpop.xlane.xlu0 %9302
      %v9304 = vsel %vm1287, %v9282, -inf
      %9305 = vmax.xlane.f32.xlu0 %v9304
      %v9306 = vpop.xlane.xlu0 %9305
      %v9307 = vsub.f32 %v9275, %v9285
      %v9308 = vsub.f32 %v9276, %v9288
      %v9309 = vsub.f32 %v9277, %v9291
      %v9310 = vsub.f32 %v9278, %v9294
      %v9311 = vsub.f32 %v9279, %v9297
      %v9312 = vsub.f32 %v9280, %v9300
      %v9313 = vsub.f32 %v9281, %v9303
      %v9314 = vsub.f32 %v9282, %v9306
      %v9315 = vmul.f32 %v9307, 1.442695
      %v9316 = vpow.pop %v9315
      %v9317 = vmul.f32 %v9308, 1.442695
      %v9318 = vpow.pop %v9317
      %v9319 = vmul.f32 %v9309, 1.442695
      %v9320 = vpow.pop %v9319
      %v9321 = vmul.f32 %v9310, 1.442695
      %v9322 = vpow.pop %v9321
      %v9323 = vmul.f32 %v9311, 1.442695
      %v9324 = vpow.pop %v9323
      %v9325 = vmul.f32 %v9312, 1.442695
      %v9326 = vpow.pop %v9325
      %v9327 = vmul.f32 %v9313, 1.442695
      %v9328 = vpow.pop %v9327
      %v9329 = vmul.f32 %v9314, 1.442695
      %v9330 = vpow.pop %v9329
      %v9331 = vsel %vm1287, %v9316, 0.0
      %9332 = vadd.xlane.f32.xlu0 %v9331
      %v9333 = vpop.xlane.xlu0 %9332
      %v9334 = vsel %vm1287, %v9318, 0.0
      %9335 = vadd.xlane.f32.xlu0 %v9334
      %v9336 = vpop.xlane.xlu0 %9335
      %v9337 = vsel %vm1287, %v9320, 0.0
      %9338 = vadd.xlane.f32.xlu0 %v9337
      %v9339 = vpop.xlane.xlu0 %9338
      %v9340 = vsel %vm1287, %v9322, 0.0
      %9341 = vadd.xlane.f32.xlu0 %v9340
      %v9342 = vpop.xlane.xlu0 %9341
      %v9343 = vsel %vm1287, %v9324, 0.0
      %9344 = vadd.xlane.f32.xlu0 %v9343
      %v9345 = vpop.xlane.xlu0 %9344
      %v9346 = vsel %vm1287, %v9326, 0.0
      %9347 = vadd.xlane.f32.xlu0 %v9346
      %v9348 = vpop.xlane.xlu0 %9347
      %v9349 = vsel %vm1287, %v9328, 0.0
      %9350 = vadd.xlane.f32.xlu0 %v9349
      %v9351 = vpop.xlane.xlu0 %9350
      %v9352 = vsel %vm1287, %v9330, 0.0
      %9353 = vadd.xlane.f32.xlu0 %v9352
      %v9354 = vpop.xlane.xlu0 %9353
      %v9355 = vrcp.pop %v9333
      %v9356 = vrcp.pop %v9336
      %v9357 = vrcp.pop %v9339
      %v9358 = vrcp.pop %v9342
      %v9359 = vrcp.pop %v9345
      %v9360 = vrcp.pop %v9348
      %v9361 = vrcp.pop %v9351
      %v9362 = vrcp.pop %v9354
      %v9363 = vmul.f32 %v9316, %v9355
      %v9364 = vmul.f32 %v9318, %v9356
      %v9365 = vmul.f32 %v9320, %v9357
      %v9366 = vmul.f32 %v9322, %v9358
      %v9367 = vmul.f32 %v9324, %v9359
      %v9368 = vmul.f32 %v9326, %v9360
      %v9369 = vmul.f32 %v9328, %v9361
      %v9370 = vmul.f32 %v9330, %v9362
      %9371 = vrot.lane.b32.xlu0 %v8629, 96
      %v9372 = vpop.permute.xlu0 %9371
      %v9375 = vsel %vm702, %v9363, 0
      %9377 = vmatprep.subr.mxu0 0.0
      %9378 = vmatpush1.msra.mxu0 %v9372
      %9379 = vmatprep.subr.mxu0 0.0
      %9380 = vmatpush1.msra.mxu0 0.0
      %9381 = vmatprep.subr.mxu0 0.0
      %9382 = vmatpush1.msra.mxu0 0.0
      %9383 = vmatprep.subr.mxu0 0.0
      %9384 = vmatpush1.msra.mxu0 0.0
      %9385 = vmatprep.subr.mxu0 0.0
      %9386 = vmatpush1.msra.mxu0 0.0
      %9387 = vmatprep.subr.mxu0 0.0
      %9388 = vmatpush1.msra.mxu0 0.0
      %9389 = vmatprep.subr.mxu0 0.0
      %9390 = vmatpush1.msra.mxu0 0.0
      %9391 = vmatprep.subr.mxu0 0.0
      %9392 = vmatpush1.msra.mxu0 0.0
      %9393 = vmatprep.subr.mxu0 0.0
      %9394 = vmatpush1.msra.mxu0 0.0
      %9395 = vmatprep.subr.mxu0 0.0
      %9396 = vmatpush1.msra.mxu0 0.0
      %9397 = vmatprep.subr.mxu0 0.0
      %9398 = vmatpush1.msra.mxu0 0.0
      %9399 = vmatprep.subr.mxu0 0.0
      %9400 = vmatpush1.msra.mxu0 0.0
      %9401 = vmatprep.subr.mxu0 0.0
      %9402 = vmatpush1.msra.mxu0 0.0
      %9403 = vmatprep.subr.mxu0 0.0
      %9404 = vmatpush1.msra.mxu0 0.0
      %9405 = vmatprep.subr.mxu0 0.0
      %9406 = vmatpush1.msra.mxu0 0.0
      %9407 = vmatprep.subr.mxu0 0.0
      %9408 = vmatpush1.msra.mxu0 0.0
      %9409 = vmatprep.subr.mxu0 0.0
      %9410 = vmatpush1.msra.mxu0 0.0
      %9411 = vmatprep.subr.mxu0 0.0
      %9412 = vmatpush1.msra.mxu0 0.0
      %9413 = vmatprep.subr.mxu0 0.0
      %9414 = vmatpush1.msra.mxu0 0.0
      %9415 = vmatprep.subr.mxu0 0.0
      %9416 = vmatpush1.msra.mxu0 0.0
      %9417 = vmatprep.subr.mxu0 0.0
      %9418 = vmatpush1.msra.mxu0 0.0
      %9419 = vmatprep.subr.mxu0 0.0
      %9420 = vmatpush1.msra.mxu0 0.0
      %9421 = vmatprep.subr.mxu0 0.0
      %9422 = vmatpush1.msra.mxu0 0.0
      %9423 = vmatprep.subr.mxu0 0.0
      %9424 = vmatpush1.msra.mxu0 0.0
      %9425 = vmatprep.subr.mxu0 0.0
      %9426 = vmatpush1.msra.mxu0 0.0
      %9427 = vmatprep.subr.mxu0 0.0
      %9428 = vmatpush1.msra.mxu0 0.0
      %9429 = vmatprep.subr.mxu0 0.0
      %9430 = vmatpush1.msra.mxu0 0.0
      %9431 = vmatprep.subr.mxu0 0.0
      %9432 = vmatpush1.msra.mxu0 0.0
      %9433 = vmatprep.subr.mxu0 0.0
      %9434 = vmatpush1.msra.mxu0 0.0
      %9435 = vmatprep.subr.mxu0 0.0
      %9436 = vmatpush1.msra.mxu0 0.0
      %9437 = vmatprep.subr.mxu0 0.0
      %9438 = vmatpush1.msra.mxu0 0.0
      %9439 = vmatprep.subr.mxu0 0.0
      %9440 = vmatpush1.msra.mxu0 0.0
      %9441 = vmatprep.mubr.f32.mxu0 0.0
      %9442 = vmatmul.mubr.f32.gmra.mrb[0].mxu0 %v9375
      %v9443 = vpop.f32.mrb[0].mxu0
      %v9444 = vadd.f32 0.0, %v9443
      %v9445 = vpop.f32.mrb[0].mxu0
      %9446 = vdwg.mxu0
      %9447 = vrot.lane.b32.xlu0 %v8634, 96
      %v9448 = vpop.permute.xlu0 %9447
      %v9451 = vsel %vm702, %v9364, 0
      %9453 = vmatprep.subr.mxu0 0.0
      %9454 = vmatpush1.msra.mxu0 %v9448
      %9455 = vmatprep.subr.mxu0 0.0
      %9456 = vmatpush1.msra.mxu0 0.0
      %9457 = vmatprep.subr.mxu0 0.0
      %9458 = vmatpush1.msra.mxu0 0.0
      %9459 = vmatprep.subr.mxu0 0.0
      %9460 = vmatpush1.msra.mxu0 0.0
      %9461 = vmatprep.subr.mxu0 0.0
      %9462 = vmatpush1.msra.mxu0 0.0
      %9463 = vmatprep.subr.mxu0 0.0
      %9464 = vmatpush1.msra.mxu0 0.0
      %9465 = vmatprep.subr.mxu0 0.0
      %9466 = vmatpush1.msra.mxu0 0.0
      %9467 = vmatprep.subr.mxu0 0.0
      %9468 = vmatpush1.msra.mxu0 0.0
      %9469 = vmatprep.subr.mxu0 0.0
      %9470 = vmatpush1.msra.mxu0 0.0
      %9471 = vmatprep.subr.mxu0 0.0
      %9472 = vmatpush1.msra.mxu0 0.0
      %9473 = vmatprep.subr.mxu0 0.0
      %9474 = vmatpush1.msra.mxu0 0.0
      %9475 = vmatprep.subr.mxu0 0.0
      %9476 = vmatpush1.msra.mxu0 0.0
      %9477 = vmatprep.subr.mxu0 0.0
      %9478 = vmatpush1.msra.mxu0 0.0
      %9479 = vmatprep.subr.mxu0 0.0
      %9480 = vmatpush1.msra.mxu0 0.0
      %9481 = vmatprep.subr.mxu0 0.0
      %9482 = vmatpush1.msra.mxu0 0.0
      %9483 = vmatprep.subr.mxu0 0.0
      %9484 = vmatpush1.msra.mxu0 0.0
      %9485 = vmatprep.subr.mxu0 0.0
      %9486 = vmatpush1.msra.mxu0 0.0
      %9487 = vmatprep.subr.mxu0 0.0
      %9488 = vmatpush1.msra.mxu0 0.0
      %9489 = vmatprep.subr.mxu0 0.0
      %9490 = vmatpush1.msra.mxu0 0.0
      %9491 = vmatprep.subr.mxu0 0.0
      %9492 = vmatpush1.msra.mxu0 0.0
      %9493 = vmatprep.subr.mxu0 0.0
      %9494 = vmatpush1.msra.mxu0 0.0
      %9495 = vmatprep.subr.mxu0 0.0
      %9496 = vmatpush1.msra.mxu0 0.0
      %9497 = vmatprep.subr.mxu0 0.0
      %9498 = vmatpush1.msra.mxu0 0.0
      %9499 = vmatprep.subr.mxu0 0.0
      %9500 = vmatpush1.msra.mxu0 0.0
      %9501 = vmatprep.subr.mxu0 0.0
      %9502 = vmatpush1.msra.mxu0 0.0
      %9503 = vmatprep.subr.mxu0 0.0
      %9504 = vmatpush1.msra.mxu0 0.0
      %9505 = vmatprep.subr.mxu0 0.0
      %9506 = vmatpush1.msra.mxu0 0.0
      %9507 = vmatprep.subr.mxu0 0.0
      %9508 = vmatpush1.msra.mxu0 0.0
      %9509 = vmatprep.subr.mxu0 0.0
      %9510 = vmatpush1.msra.mxu0 0.0
      %9511 = vmatprep.subr.mxu0 0.0
      %9512 = vmatpush1.msra.mxu0 0.0
      %9513 = vmatprep.subr.mxu0 0.0
      %9514 = vmatpush1.msra.mxu0 0.0
      %9515 = vmatprep.subr.mxu0 0.0
      %9516 = vmatpush1.msra.mxu0 0.0
      %9517 = vmatprep.mubr.f32.mxu0 0.0
      %9518 = vmatmul.mubr.f32.gmra.mrb[0].mxu0 %v9451
      %v9519 = vpop.f32.mrb[0].mxu0
      %v9520 = vadd.f32 0.0, %v9519
      %v9521 = vpop.f32.mrb[0].mxu0
      %9522 = vdwg.mxu0
      %9523 = vrot.lane.b32.xlu0 %v8639, 96
      %v9524 = vpop.permute.xlu0 %9523
      %v9527 = vsel %vm702, %v9365, 0
      %9529 = vmatprep.subr.mxu0 0.0
      %9530 = vmatpush1.msra.mxu0 %v9524
      %9531 = vmatprep.subr.mxu0 0.0
      %9532 = vmatpush1.msra.mxu0 0.0
      %9533 = vmatprep.subr.mxu0 0.0
      %9534 = vmatpush1.msra.mxu0 0.0
      %9535 = vmatprep.subr.mxu0 0.0
      %9536 = vmatpush1.msra.mxu0 0.0
      %9537 = vmatprep.subr.mxu0 0.0
      %9538 = vmatpush1.msra.mxu0 0.0
      %9539 = vmatprep.subr.mxu0 0.0
      %9540 = vmatpush1.msra.mxu0 0.0
      %9541 = vmatprep.subr.mxu0 0.0
      %9542 = vmatpush1.msra.mxu0 0.0
      %9543 = vmatprep.subr.mxu0 0.0
      %9544 = vmatpush1.msra.mxu0 0.0
      %9545 = vmatprep.subr.mxu0 0.0
      %9546 = vmatpush1.msra.mxu0 0.0
      %9547 = vmatprep.subr.mxu0 0.0
      %9548 = vmatpush1.msra.mxu0 0.0
      %9549 = vmatprep.subr.mxu0 0.0
      %9550 = vmatpush1.msra.mxu0 0.0
      %9551 = vmatprep.subr.mxu0 0.0
      %9552 = vmatpush1.msra.mxu0 0.0
      %9553 = vmatprep.subr.mxu0 0.0
      %9554 = vmatpush1.msra.mxu0 0.0
      %9555 = vmatprep.subr.mxu0 0.0
      %9556 = vmatpush1.msra.mxu0 0.0
      %9557 = vmatprep.subr.mxu0 0.0
      %9558 = vmatpush1.msra.mxu0 0.0
      %9559 = vmatprep.subr.mxu0 0.0
      %9560 = vmatpush1.msra.mxu0 0.0
      %9561 = vmatprep.subr.mxu0 0.0
      %9562 = vmatpush1.msra.mxu0 0.0
      %9563 = vmatprep.subr.mxu0 0.0
      %9564 = vmatpush1.msra.mxu0 0.0
      %9565 = vmatprep.subr.mxu0 0.0
      %9566 = vmatpush1.msra.mxu0 0.0
      %9567 = vmatprep.subr.mxu0 0.0
      %9568 = vmatpush1.msra.mxu0 0.0
      %9569 = vmatprep.subr.mxu0 0.0
      %9570 = vmatpush1.msra.mxu0 0.0
      %9571 = vmatprep.subr.mxu0 0.0
      %9572 = vmatpush1.msra.mxu0 0.0
      %9573 = vmatprep.subr.mxu0 0.0
      %9574 = vmatpush1.msra.mxu0 0.0
      %9575 = vmatprep.subr.mxu0 0.0
      %9576 = vmatpush1.msra.mxu0 0.0
      %9577 = vmatprep.subr.mxu0 0.0
      %9578 = vmatpush1.msra.mxu0 0.0
      %9579 = vmatprep.subr.mxu0 0.0
      %9580 = vmatpush1.msra.mxu0 0.0
      %9581 = vmatprep.subr.mxu0 0.0
      %9582 = vmatpush1.msra.mxu0 0.0
      %9583 = vmatprep.subr.mxu0 0.0
      %9584 = vmatpush1.msra.mxu0 0.0
      %9585 = vmatprep.subr.mxu0 0.0
      %9586 = vmatpush1.msra.mxu0 0.0
      %9587 = vmatprep.subr.mxu0 0.0
      %9588 = vmatpush1.msra.mxu0 0.0
      %9589 = vmatprep.subr.mxu0 0.0
      %9590 = vmatpush1.msra.mxu0 0.0
      %9591 = vmatprep.subr.mxu0 0.0
      %9592 = vmatpush1.msra.mxu0 0.0
      %9593 = vmatprep.mubr.f32.mxu0 0.0
      %9594 = vmatmul.mubr.f32.gmra.mrb[0].mxu0 %v9527
      %v9595 = vpop.f32.mrb[0].mxu0
      %v9596 = vadd.f32 0.0, %v9595
      %v9597 = vpop.f32.mrb[0].mxu0
      %9598 = vdwg.mxu0
      %9599 = vrot.lane.b32.xlu0 %v8644, 96
      %v9600 = vpop.permute.xlu0 %9599
      %v9603 = vsel %vm702, %v9366, 0
      %9605 = vmatprep.subr.mxu0 0.0
      %9606 = vmatpush1.msra.mxu0 %v9600
      %9607 = vmatprep.subr.mxu0 0.0
      %9608 = vmatpush1.msra.mxu0 0.0
      %9609 = vmatprep.subr.mxu0 0.0
      %9610 = vmatpush1.msra.mxu0 0.0
      %9611 = vmatprep.subr.mxu0 0.0
      %9612 = vmatpush1.msra.mxu0 0.0
      %9613 = vmatprep.subr.mxu0 0.0
      %9614 = vmatpush1.msra.mxu0 0.0
      %9615 = vmatprep.subr.mxu0 0.0
      %9616 = vmatpush1.msra.mxu0 0.0
      %9617 = vmatprep.subr.mxu0 0.0
      %9618 = vmatpush1.msra.mxu0 0.0
      %9619 = vmatprep.subr.mxu0 0.0
      %9620 = vmatpush1.msra.mxu0 0.0
      %9621 = vmatprep.subr.mxu0 0.0
      %9622 = vmatpush1.msra.mxu0 0.0
      %9623 = vmatprep.subr.mxu0 0.0
      %9624 = vmatpush1.msra.mxu0 0.0
      %9625 = vmatprep.subr.mxu0 0.0
      %9626 = vmatpush1.msra.mxu0 0.0
      %9627 = vmatprep.subr.mxu0 0.0
      %9628 = vmatpush1.msra.mxu0 0.0
      %9629 = vmatprep.subr.mxu0 0.0
      %9630 = vmatpush1.msra.mxu0 0.0
      %9631 = vmatprep.subr.mxu0 0.0
      %9632 = vmatpush1.msra.mxu0 0.0
      %9633 = vmatprep.subr.mxu0 0.0
      %9634 = vmatpush1.msra.mxu0 0.0
      %9635 = vmatprep.subr.mxu0 0.0
      %9636 = vmatpush1.msra.mxu0 0.0
      %9637 = vmatprep.subr.mxu0 0.0
      %9638 = vmatpush1.msra.mxu0 0.0
      %9639 = vmatprep.subr.mxu0 0.0
      %9640 = vmatpush1.msra.mxu0 0.0
      %9641 = vmatprep.subr.mxu0 0.0
      %9642 = vmatpush1.msra.mxu0 0.0
      %9643 = vmatprep.subr.mxu0 0.0
      %9644 = vmatpush1.msra.mxu0 0.0
      %9645 = vmatprep.subr.mxu0 0.0
      %9646 = vmatpush1.msra.mxu0 0.0
      %9647 = vmatprep.subr.mxu0 0.0
      %9648 = vmatpush1.msra.mxu0 0.0
      %9649 = vmatprep.subr.mxu0 0.0
      %9650 = vmatpush1.msra.mxu0 0.0
      %9651 = vmatprep.subr.mxu0 0.0
      %9652 = vmatpush1.msra.mxu0 0.0
      %9653 = vmatprep.subr.mxu0 0.0
      %9654 = vmatpush1.msra.mxu0 0.0
      %9655 = vmatprep.subr.mxu0 0.0
      %9656 = vmatpush1.msra.mxu0 0.0
      %9657 = vmatprep.subr.mxu0 0.0
      %9658 = vmatpush1.msra.mxu0 0.0
      %9659 = vmatprep.subr.mxu0 0.0
      %9660 = vmatpush1.msra.mxu0 0.0
      %9661 = vmatprep.subr.mxu0 0.0
      %9662 = vmatpush1.msra.mxu0 0.0
      %9663 = vmatprep.subr.mxu0 0.0
      %9664 = vmatpush1.msra.mxu0 0.0
      %9665 = vmatprep.subr.mxu0 0.0
      %9666 = vmatpush1.msra.mxu0 0.0
      %9667 = vmatprep.subr.mxu0 0.0
      %9668 = vmatpush1.msra.mxu0 0.0
      %9669 = vmatprep.mubr.f32.mxu0 0.0
      %9670 = vmatmul.mubr.f32.gmra.mrb[0].mxu0 %v9603
      %v9671 = vpop.f32.mrb[0].mxu0
      %v9672 = vadd.f32 0.0, %v9671
      %v9673 = vpop.f32.mrb[0].mxu0
      %9674 = vdwg.mxu0
      %9675 = vrot.lane.b32.xlu0 %v8649, 96
      %v9676 = vpop.permute.xlu0 %9675
      %v9679 = vsel %vm702, %v9367, 0
      %9681 = vmatprep.subr.mxu0 0.0
      %9682 = vmatpush1.msra.mxu0 %v9676
      %9683 = vmatprep.subr.mxu0 0.0
      %9684 = vmatpush1.msra.mxu0 0.0
      %9685 = vmatprep.subr.mxu0 0.0
      %9686 = vmatpush1.msra.mxu0 0.0
      %9687 = vmatprep.subr.mxu0 0.0
      %9688 = vmatpush1.msra.mxu0 0.0
      %9689 = vmatprep.subr.mxu0 0.0
      %9690 = vmatpush1.msra.mxu0 0.0
      %9691 = vmatprep.subr.mxu0 0.0
      %9692 = vmatpush1.msra.mxu0 0.0
      %9693 = vmatprep.subr.mxu0 0.0
      %9694 = vmatpush1.msra.mxu0 0.0
      %9695 = vmatprep.subr.mxu0 0.0
      %9696 = vmatpush1.msra.mxu0 0.0
      %9697 = vmatprep.subr.mxu0 0.0
      %9698 = vmatpush1.msra.mxu0 0.0
      %9699 = vmatprep.subr.mxu0 0.0
      %9700 = vmatpush1.msra.mxu0 0.0
      %9701 = vmatprep.subr.mxu0 0.0
      %9702 = vmatpush1.msra.mxu0 0.0
      %9703 = vmatprep.subr.mxu0 0.0
      %9704 = vmatpush1.msra.mxu0 0.0
      %9705 = vmatprep.subr.mxu0 0.0
      %9706 = vmatpush1.msra.mxu0 0.0
      %9707 = vmatprep.subr.mxu0 0.0
      %9708 = vmatpush1.msra.mxu0 0.0
      %9709 = vmatprep.subr.mxu0 0.0
      %9710 = vmatpush1.msra.mxu0 0.0
      %9711 = vmatprep.subr.mxu0 0.0
      %9712 = vmatpush1.msra.mxu0 0.0
      %9713 = vmatprep.subr.mxu0 0.0
      %9714 = vmatpush1.msra.mxu0 0.0
      %9715 = vmatprep.subr.mxu0 0.0
      %9716 = vmatpush1.msra.mxu0 0.0
      %9717 = vmatprep.subr.mxu0 0.0
      %9718 = vmatpush1.msra.mxu0 0.0
      %9719 = vmatprep.subr.mxu0 0.0
      %9720 = vmatpush1.msra.mxu0 0.0
      %9721 = vmatprep.subr.mxu0 0.0
      %9722 = vmatpush1.msra.mxu0 0.0
      %9723 = vmatprep.subr.mxu0 0.0
      %9724 = vmatpush1.msra.mxu0 0.0
      %9725 = vmatprep.subr.mxu0 0.0
      %9726 = vmatpush1.msra.mxu0 0.0
      %9727 = vmatprep.subr.mxu0 0.0
      %9728 = vmatpush1.msra.mxu0 0.0
      %9729 = vmatprep.subr.mxu0 0.0
      %9730 = vmatpush1.msra.mxu0 0.0
      %9731 = vmatprep.subr.mxu0 0.0
      %9732 = vmatpush1.msra.mxu0 0.0
      %9733 = vmatprep.subr.mxu0 0.0
      %9734 = vmatpush1.msra.mxu0 0.0
      %9735 = vmatprep.subr.mxu0 0.0
      %9736 = vmatpush1.msra.mxu0 0.0
      %9737 = vmatprep.subr.mxu0 0.0
      %9738 = vmatpush1.msra.mxu0 0.0
      %9739 = vmatprep.subr.mxu0 0.0
      %9740 = vmatpush1.msra.mxu0 0.0
      %9741 = vmatprep.subr.mxu0 0.0
      %9742 = vmatpush1.msra.mxu0 0.0
      %9743 = vmatprep.subr.mxu0 0.0
      %9744 = vmatpush1.msra.mxu0 0.0
      %9745 = vmatprep.mubr.f32.mxu0 0.0
      %9746 = vmatmul.mubr.f32.gmra.mrb[0].mxu0 %v9679
      %v9747 = vpop.f32.mrb[0].mxu0
      %v9748 = vadd.f32 0.0, %v9747
      %v9749 = vpop.f32.mrb[0].mxu0
      %9750 = vdwg.mxu0
      %9751 = vrot.lane.b32.xlu0 %v8654, 96
      %v9752 = vpop.permute.xlu0 %9751
      %v9755 = vsel %vm702, %v9368, 0
      %9757 = vmatprep.subr.mxu0 0.0
      %9758 = vmatpush1.msra.mxu0 %v9752
      %9759 = vmatprep.subr.mxu0 0.0
      %9760 = vmatpush1.msra.mxu0 0.0
      %9761 = vmatprep.subr.mxu0 0.0
      %9762 = vmatpush1.msra.mxu0 0.0
      %9763 = vmatprep.subr.mxu0 0.0
      %9764 = vmatpush1.msra.mxu0 0.0
      %9765 = vmatprep.subr.mxu0 0.0
      %9766 = vmatpush1.msra.mxu0 0.0
      %9767 = vmatprep.subr.mxu0 0.0
      %9768 = vmatpush1.msra.mxu0 0.0
      %9769 = vmatprep.subr.mxu0 0.0
      %9770 = vmatpush1.msra.mxu0 0.0
      %9771 = vmatprep.subr.mxu0 0.0
      %9772 = vmatpush1.msra.mxu0 0.0
      %9773 = vmatprep.subr.mxu0 0.0
      %9774 = vmatpush1.msra.mxu0 0.0
      %9775 = vmatprep.subr.mxu0 0.0
      %9776 = vmatpush1.msra.mxu0 0.0
      %9777 = vmatprep.subr.mxu0 0.0
      %9778 = vmatpush1.msra.mxu0 0.0
      %9779 = vmatprep.subr.mxu0 0.0
      %9780 = vmatpush1.msra.mxu0 0.0
      %9781 = vmatprep.subr.mxu0 0.0
      %9782 = vmatpush1.msra.mxu0 0.0
      %9783 = vmatprep.subr.mxu0 0.0
      %9784 = vmatpush1.msra.mxu0 0.0
      %9785 = vmatprep.subr.mxu0 0.0
      %9786 = vmatpush1.msra.mxu0 0.0
      %9787 = vmatprep.subr.mxu0 0.0
      %9788 = vmatpush1.msra.mxu0 0.0
      %9789 = vmatprep.subr.mxu0 0.0
      %9790 = vmatpush1.msra.mxu0 0.0
      %9791 = vmatprep.subr.mxu0 0.0
      %9792 = vmatpush1.msra.mxu0 0.0
      %9793 = vmatprep.subr.mxu0 0.0
      %9794 = vmatpush1.msra.mxu0 0.0
      %9795 = vmatprep.subr.mxu0 0.0
      %9796 = vmatpush1.msra.mxu0 0.0
      %9797 = vmatprep.subr.mxu0 0.0
      %9798 = vmatpush1.msra.mxu0 0.0
      %9799 = vmatprep.subr.mxu0 0.0
      %9800 = vmatpush1.msra.mxu0 0.0
      %9801 = vmatprep.subr.mxu0 0.0
      %9802 = vmatpush1.msra.mxu0 0.0
      %9803 = vmatprep.subr.mxu0 0.0
      %9804 = vmatpush1.msra.mxu0 0.0
      %9805 = vmatprep.subr.mxu0 0.0
      %9806 = vmatpush1.msra.mxu0 0.0
      %9807 = vmatprep.subr.mxu0 0.0
      %9808 = vmatpush1.msra.mxu0 0.0
      %9809 = vmatprep.subr.mxu0 0.0
      %9810 = vmatpush1.msra.mxu0 0.0
      %9811 = vmatprep.subr.mxu0 0.0
      %9812 = vmatpush1.msra.mxu0 0.0
      %9813 = vmatprep.subr.mxu0 0.0
      %9814 = vmatpush1.msra.mxu0 0.0
      %9815 = vmatprep.subr.mxu0 0.0
      %9816 = vmatpush1.msra.mxu0 0.0
      %9817 = vmatprep.subr.mxu0 0.0
      %9818 = vmatpush1.msra.mxu0 0.0
      %9819 = vmatprep.subr.mxu0 0.0
      %9820 = vmatpush1.msra.mxu0 0.0
      %9821 = vmatprep.mubr.f32.mxu0 0.0
      %9822 = vmatmul.mubr.f32.gmra.mrb[0].mxu0 %v9755
      %v9823 = vpop.f32.mrb[0].mxu0
      %v9824 = vadd.f32 0.0, %v9823
      %v9825 = vpop.f32.mrb[0].mxu0
      %9826 = vdwg.mxu0
      %9827 = vrot.lane.b32.xlu0 %v8659, 96
      %v9828 = vpop.permute.xlu0 %9827
      %v9831 = vsel %vm702, %v9369, 0
      %9833 = vmatprep.subr.mxu0 0.0
      %9834 = vmatpush1.msra.mxu0 %v9828
      %9835 = vmatprep.subr.mxu0 0.0
      %9836 = vmatpush1.msra.mxu0 0.0
      %9837 = vmatprep.subr.mxu0 0.0
      %9838 = vmatpush1.msra.mxu0 0.0
      %9839 = vmatprep.subr.mxu0 0.0
      %9840 = vmatpush1.msra.mxu0 0.0
      %9841 = vmatprep.subr.mxu0 0.0
      %9842 = vmatpush1.msra.mxu0 0.0
      %9843 = vmatprep.subr.mxu0 0.0
      %9844 = vmatpush1.msra.mxu0 0.0
      %9845 = vmatprep.subr.mxu0 0.0
      %9846 = vmatpush1.msra.mxu0 0.0
      %9847 = vmatprep.subr.mxu0 0.0
      %9848 = vmatpush1.msra.mxu0 0.0
      %9849 = vmatprep.subr.mxu0 0.0
      %9850 = vmatpush1.msra.mxu0 0.0
      %9851 = vmatprep.subr.mxu0 0.0
      %9852 = vmatpush1.msra.mxu0 0.0
      %9853 = vmatprep.subr.mxu0 0.0
      %9854 = vmatpush1.msra.mxu0 0.0
      %9855 = vmatprep.subr.mxu0 0.0
      %9856 = vmatpush1.msra.mxu0 0.0
      %9857 = vmatprep.subr.mxu0 0.0
      %9858 = vmatpush1.msra.mxu0 0.0
      %9859 = vmatprep.subr.mxu0 0.0
      %9860 = vmatpush1.msra.mxu0 0.0
      %9861 = vmatprep.subr.mxu0 0.0
      %9862 = vmatpush1.msra.mxu0 0.0
      %9863 = vmatprep.subr.mxu0 0.0
      %9864 = vmatpush1.msra.mxu0 0.0
      %9865 = vmatprep.subr.mxu0 0.0
      %9866 = vmatpush1.msra.mxu0 0.0
      %9867 = vmatprep.subr.mxu0 0.0
      %9868 = vmatpush1.msra.mxu0 0.0
      %9869 = vmatprep.subr.mxu0 0.0
      %9870 = vmatpush1.msra.mxu0 0.0
      %9871 = vmatprep.subr.mxu0 0.0
      %9872 = vmatpush1.msra.mxu0 0.0
      %9873 = vmatprep.subr.mxu0 0.0
      %9874 = vmatpush1.msra.mxu0 0.0
      %9875 = vmatprep.subr.mxu0 0.0
      %9876 = vmatpush1.msra.mxu0 0.0
      %9877 = vmatprep.subr.mxu0 0.0
      %9878 = vmatpush1.msra.mxu0 0.0
      %9879 = vmatprep.subr.mxu0 0.0
      %9880 = vmatpush1.msra.mxu0 0.0
      %9881 = vmatprep.subr.mxu0 0.0
      %9882 = vmatpush1.msra.mxu0 0.0
      %9883 = vmatprep.subr.mxu0 0.0
      %9884 = vmatpush1.msra.mxu0 0.0
      %9885 = vmatprep.subr.mxu0 0.0
      %9886 = vmatpush1.msra.mxu0 0.0
      %9887 = vmatprep.subr.mxu0 0.0
      %9888 = vmatpush1.msra.mxu0 0.0
      %9889 = vmatprep.subr.mxu0 0.0
      %9890 = vmatpush1.msra.mxu0 0.0
      %9891 = vmatprep.subr.mxu0 0.0
      %9892 = vmatpush1.msra.mxu0 0.0
      %9893 = vmatprep.subr.mxu0 0.0
      %9894 = vmatpush1.msra.mxu0 0.0
      %9895 = vmatprep.subr.mxu0 0.0
      %9896 = vmatpush1.msra.mxu0 0.0
      %9897 = vmatprep.mubr.f32.mxu0 0.0
      %9898 = vmatmul.mubr.f32.gmra.mrb[0].mxu0 %v9831
      %v9899 = vpop.f32.mrb[0].mxu0
      %v9900 = vadd.f32 0.0, %v9899
      %v9901 = vpop.f32.mrb[0].mxu0
      %9902 = vdwg.mxu0
      %9903 = vrot.lane.b32.xlu0 %v8664, 96
      %v9904 = vpop.permute.xlu0 %9903
      %v9907 = vsel %vm702, %v9370, 0
      %9909 = vmatprep.subr.mxu0 0.0
      %9910 = vmatpush1.msra.mxu0 %v9904
      %9911 = vmatprep.subr.mxu0 0.0
      %9912 = vmatpush1.msra.mxu0 0.0
      %9913 = vmatprep.subr.mxu0 0.0
      %9914 = vmatpush1.msra.mxu0 0.0
      %9915 = vmatprep.subr.mxu0 0.0
      %9916 = vmatpush1.msra.mxu0 0.0
      %9917 = vmatprep.subr.mxu0 0.0
      %9918 = vmatpush1.msra.mxu0 0.0
      %9919 = vmatprep.subr.mxu0 0.0
      %9920 = vmatpush1.msra.mxu0 0.0
      %9921 = vmatprep.subr.mxu0 0.0
      %9922 = vmatpush1.msra.mxu0 0.0
      %9923 = vmatprep.subr.mxu0 0.0
      %9924 = vmatpush1.msra.mxu0 0.0
      %9925 = vmatprep.subr.mxu0 0.0
      %9926 = vmatpush1.msra.mxu0 0.0
      %9927 = vmatprep.subr.mxu0 0.0
      %9928 = vmatpush1.msra.mxu0 0.0
      %9929 = vmatprep.subr.mxu0 0.0
      %9930 = vmatpush1.msra.mxu0 0.0
      %9931 = vmatprep.subr.mxu0 0.0
      %9932 = vmatpush1.msra.mxu0 0.0
      %9933 = vmatprep.subr.mxu0 0.0
      %9934 = vmatpush1.msra.mxu0 0.0
      %9935 = vmatprep.subr.mxu0 0.0
      %9936 = vmatpush1.msra.mxu0 0.0
      %9937 = vmatprep.subr.mxu0 0.0
      %9938 = vmatpush1.msra.mxu0 0.0
      %9939 = vmatprep.subr.mxu0 0.0
      %9940 = vmatpush1.msra.mxu0 0.0
      %9941 = vmatprep.subr.mxu0 0.0
      %9942 = vmatpush1.msra.mxu0 0.0
      %9943 = vmatprep.subr.mxu0 0.0
      %9944 = vmatpush1.msra.mxu0 0.0
      %9945 = vmatprep.subr.mxu0 0.0
      %9946 = vmatpush1.msra.mxu0 0.0
      %9947 = vmatprep.subr.mxu0 0.0
      %9948 = vmatpush1.msra.mxu0 0.0
      %9949 = vmatprep.subr.mxu0 0.0
      %9950 = vmatpush1.msra.mxu0 0.0
      %9951 = vmatprep.subr.mxu0 0.0
      %9952 = vmatpush1.msra.mxu0 0.0
      %9953 = vmatprep.subr.mxu0 0.0
      %9954 = vmatpush1.msra.mxu0 0.0
      %9955 = vmatprep.subr.mxu0 0.0
      %9956 = vmatpush1.msra.mxu0 0.0
      %9957 = vmatprep.subr.mxu0 0.0
      %9958 = vmatpush1.msra.mxu0 0.0
      %9959 = vmatprep.subr.mxu0 0.0
      %9960 = vmatpush1.msra.mxu0 0.0
      %9961 = vmatprep.subr.mxu0 0.0
      %9962 = vmatpush1.msra.mxu0 0.0
      %9963 = vmatprep.subr.mxu0 0.0
      %9964 = vmatpush1.msra.mxu0 0.0
      %9965 = vmatprep.subr.mxu0 0.0
      %9966 = vmatpush1.msra.mxu0 0.0
      %9967 = vmatprep.subr.mxu0 0.0
      %9968 = vmatpush1.msra.mxu0 0.0
      %9969 = vmatprep.subr.mxu0 0.0
      %9970 = vmatpush1.msra.mxu0 0.0
      %9971 = vmatprep.subr.mxu0 0.0
      %9972 = vmatpush1.msra.mxu0 0.0
      %9973 = vmatprep.mubr.f32.mxu0 0.0
      %9974 = vmatmul.mubr.f32.gmra.mrb[0].mxu0 %v9907
      %v9975 = vpop.f32.mrb[0].mxu0
      %v9976 = vadd.f32 0.0, %v9975
      %v9977 = vpop.f32.mrb[0].mxu0
      %9978 = vdwg.mxu0
      %v9979 = vld [vmem:[%s5 + $0x60] sm:$0xff]
      %v9980 = vld [vmem:[%s5 + $0xd0] sm:$0xff]
      %v9981 = vld [vmem:[%s5 + $0x140] sm:$0xff]
      %v9982 = vld [vmem:[%s5 + $0x1b0] sm:$0xff]
      %v9983 = vld [vmem:[%s6 + $0x5] sm:$0x1]
      %v9985 = vlaneseq
      %v9986 = vshrl.u32 %v9985, 7
      %v9987 = vsub.s32 0, %v9986
      %v9988 = vrot.slane %v9983, %v9987
      %v9997 = vrot.slane %v9520, 7
      %v9998 = vsel %vm6521, %v9997, %v9444
      %v9999 = vrot.slane %v9596, 6
      %v10000 = vsel %vm6524, %v9999, %v9998
      %v10001 = vrot.slane %v9672, 5
      %v10002 = vsel %vm6527, %v10001, %v10000
      %v10003 = vrot.slane %v9748, 4
      %v10004 = vsel %vm6530, %v10003, %v10002
      %v10005 = vrot.slane %v9824, 3
      %v10006 = vsel %vm6533, %v10005, %v10004
      %v10007 = vrot.slane %v9900, 2
      %v10008 = vsel %vm6536, %v10007, %v10006
      %v10009 = vrot.slane %v9976, 1
      %v10010 = vsel %vm6539, %v10009, %v10008
      %10011 = vrot.lane.b32.xlu0 %v9988, 64
      %v10012 = vpop.permute.xlu0 %10011
      %v10014 = vsel %vm564, %v10010, 0
      %10016 = vmatprep.subr.mxu0 0.0
      %10017 = vmatpush1.msra.mxu0 %v9979
      %10018 = vmatprep.subr.mxu0 0.0
      %10019 = vmatpush1.msra.mxu0 %v9980
      %10020 = vmatprep.subr.mxu0 0.0
      %10021 = vmatpush1.msra.mxu0 %v9981
      %10022 = vmatprep.subr.mxu0 0.0
      %10023 = vmatpush1.msra.mxu0 %v9982
      %10024 = vmatprep.subr.mxu0 0.0
      %10025 = vmatpush1.msra.mxu0 0.0
      %10026 = vmatprep.subr.mxu0 0.0
      %10027 = vmatpush1.msra.mxu0 0.0
      %10028 = vmatprep.subr.mxu0 0.0
      %10029 = vmatpush1.msra.mxu0 0.0
      %10030 = vmatprep.subr.mxu0 0.0
      %10031 = vmatpush1.msra.mxu0 0.0
      %10032 = vmatprep.subr.mxu0 0.0
      %10033 = vmatpush1.msra.mxu0 0.0
      %10034 = vmatprep.subr.mxu0 0.0
      %10035 = vmatpush1.msra.mxu0 0.0
      %10036 = vmatprep.subr.mxu0 0.0
      %10037 = vmatpush1.msra.mxu0 0.0
      %10038 = vmatprep.subr.mxu0 0.0
      %10039 = vmatpush1.msra.mxu0 0.0
      %10040 = vmatprep.subr.mxu0 0.0
      %10041 = vmatpush1.msra.mxu0 0.0
      %10042 = vmatprep.subr.mxu0 0.0
      %10043 = vmatpush1.msra.mxu0 0.0
      %10044 = vmatprep.subr.mxu0 0.0
      %10045 = vmatpush1.msra.mxu0 0.0
      %10046 = vmatprep.subr.mxu0 0.0
      %10047 = vmatpush1.msra.mxu0 0.0
      %10048 = vmatprep.subr.mxu0 0.0
      %10049 = vmatpush1.msra.mxu0 0.0
      %10050 = vmatprep.subr.mxu0 0.0
      %10051 = vmatpush1.msra.mxu0 0.0
      %10052 = vmatprep.subr.mxu0 0.0
      %10053 = vmatpush1.msra.mxu0 0.0
      %10054 = vmatprep.subr.mxu0 0.0
      %10055 = vmatpush1.msra.mxu0 0.0
      %10056 = vmatprep.subr.mxu0 0.0
      %10057 = vmatpush1.msra.mxu0 0.0
      %10058 = vmatprep.subr.mxu0 0.0
      %10059 = vmatpush1.msra.mxu0 0.0
      %10060 = vmatprep.subr.mxu0 0.0
      %10061 = vmatpush1.msra.mxu0 0.0
      %10062 = vmatprep.subr.mxu0 0.0
      %10063 = vmatpush1.msra.mxu0 0.0
      %10064 = vmatprep.subr.mxu0 0.0
      %10065 = vmatpush1.msra.mxu0 0.0
      %10066 = vmatprep.subr.mxu0 0.0
      %10067 = vmatpush1.msra.mxu0 0.0
      %10068 = vmatprep.subr.mxu0 0.0
      %10069 = vmatpush1.msra.mxu0 0.0
      %10070 = vmatprep.subr.mxu0 0.0
      %10071 = vmatpush1.msra.mxu0 0.0
      %10072 = vmatprep.subr.mxu0 0.0
      %10073 = vmatpush1.msra.mxu0 0.0
      %10074 = vmatprep.subr.mxu0 0.0
      %10075 = vmatpush1.msra.mxu0 0.0
      %10076 = vmatprep.subr.mxu0 0.0
      %10077 = vmatpush1.msra.mxu0 0.0
      %10078 = vmatprep.subr.mxu0 0.0
      %10079 = vmatpush1.msra.mxu0 0.0
      %10080 = vmatprep.mubr.f32.mxu0 0.0
      %10081 = vmatmul.mubr.f32.gmra.mrb[0].mxu0 %v10014
      %v10082 = vpop.f32.mrb[0].mxu0
      %v10083 = vadd.f32 %v10012, %v10082
      %v10084 = vpop.f32.mrb[0].mxu0
      %10085 = vdwg.mxu0
      %v10086 = vld [vmem:[%s4 + $0x60] sm:$0xff]
      %v10087 = vld [vmem:[%s4 + $0x68] sm:$0xff]
      %v10088 = vld [vmem:[%s4 + $0x70] sm:$0xff]
      %v10089 = vld [vmem:[%s4 + $0x78] sm:$0xff]
      %v10090 = vld [vmem:[%s4 + $0x80] sm:$0xff]
      %v10091 = vld [vmem:[%s4 + $0x88] sm:$0xff]
      %v10092 = vld [vmem:[%s4 + $0x90] sm:$0xff]
      %v10093 = vld [vmem:[%s4 + $0x98] sm:$0xff]
      %v10094 = vld [vmem:[%s4 + $0xa0] sm:$0xff]
      %v10095 = vld [vmem:[%s4 + $0xa8] sm:$0xff]
      %v10096 = vld [vmem:[%s4 + $0xb0] sm:$0xff]
      %v10097 = vld [vmem:[%s4 + $0xb8] sm:$0xff]
      %v10099 = vsel %vm564, %v8397, 0
      %10101 = vmatprep.subr.mxu0 0.0
      %10102 = vmatpush1.msra.mxu0 %v10090
      %10103 = vmatprep.subr.mxu0 0.0
      %10104 = vmatpush1.msra.mxu0 %v10091
      %10105 = vmatprep.subr.mxu0 0.0
      %10106 = vmatpush1.msra.mxu0 %v10092
      %10107 = vmatprep.subr.mxu0 0.0
      %10108 = vmatpush1.msra.mxu0 %v10093
      %10109 = vmatprep.subr.mxu0 0.0
      %10110 = vmatpush1.msra.mxu0 0.0
      %10111 = vmatprep.subr.mxu0 0.0
      %10112 = vmatpush1.msra.mxu0 0.0
      %10113 = vmatprep.subr.mxu0 0.0
      %10114 = vmatpush1.msra.mxu0 0.0
      %10115 = vmatprep.subr.mxu0 0.0
      %10116 = vmatpush1.msra.mxu0 0.0
      %10117 = vmatprep.subr.mxu0 0.0
      %10118 = vmatpush1.msra.mxu0 0.0
      %10119 = vmatprep.subr.mxu0 0.0
      %10120 = vmatpush1.msra.mxu0 0.0
      %10121 = vmatprep.subr.mxu0 0.0
      %10122 = vmatpush1.msra.mxu0 0.0
      %10123 = vmatprep.subr.mxu0 0.0
      %10124 = vmatpush1.msra.mxu0 0.0
      %10125 = vmatprep.subr.mxu0 0.0
      %10126 = vmatpush1.msra.mxu0 0.0
      %10127 = vmatprep.subr.mxu0 0.0
      %10128 = vmatpush1.msra.mxu0 0.0
      %10129 = vmatprep.subr.mxu0 0.0
      %10130 = vmatpush1.msra.mxu0 0.0
      %10131 = vmatprep.subr.mxu0 0.0
      %10132 = vmatpush1.msra.mxu0 0.0
      %10133 = vmatprep.subr.mxu0 0.0
      %10134 = vmatpush1.msra.mxu0 0.0
      %10135 = vmatprep.subr.mxu0 0.0
      %10136 = vmatpush1.msra.mxu0 0.0
      %10137 = vmatprep.subr.mxu0 0.0
      %10138 = vmatpush1.msra.mxu0 0.0
      %10139 = vmatprep.subr.mxu0 0.0
      %10140 = vmatpush1.msra.mxu0 0.0
      %10141 = vmatprep.subr.mxu0 0.0
      %10142 = vmatpush1.msra.mxu0 0.0
      %10143 = vmatprep.subr.mxu0 0.0
      %10144 = vmatpush1.msra.mxu0 0.0
      %10145 = vmatprep.subr.mxu0 0.0
      %10146 = vmatpush1.msra.mxu0 0.0
      %10147 = vmatprep.subr.mxu0 0.0
      %10148 = vmatpush1.msra.mxu0 0.0
      %10149 = vmatprep.subr.mxu0 0.0
      %10150 = vmatpush1.msra.mxu0 0.0
      %10151 = vmatprep.subr.mxu0 0.0
      %10152 = vmatpush1.msra.mxu0 0.0
      %10153 = vmatprep.subr.mxu0 0.0
      %10154 = vmatpush1.msra.mxu0 0.0
      %10155 = vmatprep.subr.mxu0 0.0
      %10156 = vmatpush1.msra.mxu0 0.0
      %10157 = vmatprep.subr.mxu0 0.0
      %10158 = vmatpush1.msra.mxu0 0.0
      %10159 = vmatprep.subr.mxu0 0.0
      %10160 = vmatpush1.msra.mxu0 0.0
      %10161 = vmatprep.subr.mxu0 0.0
      %10162 = vmatpush1.msra.mxu0 0.0
      %10163 = vmatprep.subr.mxu0 0.0
      %10164 = vmatpush1.msra.mxu0 0.0
      %10165 = vmatprep.mubr.f32.mxu0 0.0
      %10166 = vmatmul.mubr.f32.gmra.mrb[0].mxu0 %v10099
      %v10167 = vpop.f32.mrb[0].mxu0
      %v10168 = vadd.f32 0.0, %v10167
      %v10169 = vpop.f32.mrb[0].mxu0
      %10170 = vdwg.mxu0
      %v10179 = vrot.slane %v1323, 7
      %v10180 = vsel %vm6521, %v10179, %v1321
      %v10181 = vrot.slane %v1325, 6
      %v10182 = vsel %vm6524, %v10181, %v10180
      %v10183 = vrot.slane %v1327, 5
      %v10184 = vsel %vm6527, %v10183, %v10182
      %v10185 = vrot.slane %v1329, 4
      %v10186 = vsel %vm6530, %v10185, %v10184
      %v10187 = vrot.slane %v1331, 3
      %v10188 = vsel %vm6533, %v10187, %v10186
      %v10189 = vrot.slane %v1333, 2
      %v10190 = vsel %vm6536, %v10189, %v10188
      %v10191 = vrot.slane %v1335, 1
      %v10192 = vsel %vm6539, %v10191, %v10190
      %v10193 = vsel %vm564, %v10192, 0
      %10195 = vmatprep.subr.mxu0 0.0
      %10196 = vmatpush1.msra.mxu0 %v10086
      %10197 = vmatprep.subr.mxu0 0.0
      %10198 = vmatpush1.msra.mxu0 %v10087
      %10199 = vmatprep.subr.mxu0 0.0
      %10200 = vmatpush1.msra.mxu0 %v10088
      %10201 = vmatprep.subr.mxu0 0.0
      %10202 = vmatpush1.msra.mxu0 %v10089
      %10203 = vmatprep.subr.mxu0 0.0
      %10204 = vmatpush1.msra.mxu0 0.0
      %10205 = vmatprep.subr.mxu0 0.0
      %10206 = vmatpush1.msra.mxu0 0.0
      %10207 = vmatprep.subr.mxu0 0.0
      %10208 = vmatpush1.msra.mxu0 0.0
      %10209 = vmatprep.subr.mxu0 0.0
      %10210 = vmatpush1.msra.mxu0 0.0
      %10211 = vmatprep.subr.mxu0 0.0
      %10212 = vmatpush1.msra.mxu0 0.0
      %10213 = vmatprep.subr.mxu0 0.0
      %10214 = vmatpush1.msra.mxu0 0.0
      %10215 = vmatprep.subr.mxu0 0.0
      %10216 = vmatpush1.msra.mxu0 0.0
      %10217 = vmatprep.subr.mxu0 0.0
      %10218 = vmatpush1.msra.mxu0 0.0
      %10219 = vmatprep.subr.mxu0 0.0
      %10220 = vmatpush1.msra.mxu0 0.0
      %10221 = vmatprep.subr.mxu0 0.0
      %10222 = vmatpush1.msra.mxu0 0.0
      %10223 = vmatprep.subr.mxu0 0.0
      %10224 = vmatpush1.msra.mxu0 0.0
      %10225 = vmatprep.subr.mxu0 0.0
      %10226 = vmatpush1.msra.mxu0 0.0
      %10227 = vmatprep.subr.mxu0 0.0
      %10228 = vmatpush1.msra.mxu0 0.0
      %10229 = vmatprep.subr.mxu0 0.0
      %10230 = vmatpush1.msra.mxu0 0.0
      %10231 = vmatprep.subr.mxu0 0.0
      %10232 = vmatpush1.msra.mxu0 0.0
      %10233 = vmatprep.subr.mxu0 0.0
      %10234 = vmatpush1.msra.mxu0 0.0
      %10235 = vmatprep.subr.mxu0 0.0
      %10236 = vmatpush1.msra.mxu0 0.0
      %10237 = vmatprep.subr.mxu0 0.0
      %10238 = vmatpush1.msra.mxu0 0.0
      %10239 = vmatprep.subr.mxu0 0.0
      %10240 = vmatpush1.msra.mxu0 0.0
      %10241 = vmatprep.subr.mxu0 0.0
      %10242 = vmatpush1.msra.mxu0 0.0
      %10243 = vmatprep.subr.mxu0 0.0
      %10244 = vmatpush1.msra.mxu0 0.0
      %10245 = vmatprep.subr.mxu0 0.0
      %10246 = vmatpush1.msra.mxu0 0.0
      %10247 = vmatprep.subr.mxu0 0.0
      %10248 = vmatpush1.msra.mxu0 0.0
      %10249 = vmatprep.subr.mxu0 0.0
      %10250 = vmatpush1.msra.mxu0 0.0
      %10251 = vmatprep.subr.mxu0 0.0
      %10252 = vmatpush1.msra.mxu0 0.0
      %10253 = vmatprep.subr.mxu0 0.0
      %10254 = vmatpush1.msra.mxu0 0.0
      %10255 = vmatprep.subr.mxu0 0.0
      %10256 = vmatpush1.msra.mxu0 0.0
      %10257 = vmatprep.subr.mxu0 0.0
      %10258 = vmatpush1.msra.mxu0 0.0
      %10259 = vmatprep.mubr.f32.mxu0 0.0
      %10260 = vmatmul.mubr.f32.gmra.mrb[0].mxu0 %v10193
      %v10261 = vpop.f32.mrb[0].mxu0
      %v10262 = vadd.f32 %v10168, %v10261
      %v10263 = vpop.f32.mrb[0].mxu0
      %10264 = vdwg.mxu0
      %v10266 = vsel %vm564, %v10083, 0
      %10268 = vmatprep.subr.mxu0 0.0
      %10269 = vmatpush1.msra.mxu0 %v10094
      %10270 = vmatprep.subr.mxu0 0.0
      %10271 = vmatpush1.msra.mxu0 %v10095
      %10272 = vmatprep.subr.mxu0 0.0
      %10273 = vmatpush1.msra.mxu0 %v10096
      %10274 = vmatprep.subr.mxu0 0.0
      %10275 = vmatpush1.msra.mxu0 %v10097
      %10276 = vmatprep.subr.mxu0 0.0
      %10277 = vmatpush1.msra.mxu0 0.0
      %10278 = vmatprep.subr.mxu0 0.0
      %10279 = vmatpush1.msra.mxu0 0.0
      %10280 = vmatprep.subr.mxu0 0.0
      %10281 = vmatpush1.msra.mxu0 0.0
      %10282 = vmatprep.subr.mxu0 0.0
      %10283 = vmatpush1.msra.mxu0 0.0
      %10284 = vmatprep.subr.mxu0 0.0
      %10285 = vmatpush1.msra.mxu0 0.0
      %10286 = vmatprep.subr.mxu0 0.0
      %10287 = vmatpush1.msra.mxu0 0.0
      %10288 = vmatprep.subr.mxu0 0.0
      %10289 = vmatpush1.msra.mxu0 0.0
      %10290 = vmatprep.subr.mxu0 0.0
      %10291 = vmatpush1.msra.mxu0 0.0
      %10292 = vmatprep.subr.mxu0 0.0
      %10293 = vmatpush1.msra.mxu0 0.0
      %10294 = vmatprep.subr.mxu0 0.0
      %10295 = vmatpush1.msra.mxu0 0.0
      %10296 = vmatprep.subr.mxu0 0.0
      %10297 = vmatpush1.msra.mxu0 0.0
      %10298 = vmatprep.subr.mxu0 0.0
      %10299 = vmatpush1.msra.mxu0 0.0
      %10300 = vmatprep.subr.mxu0 0.0
      %10301 = vmatpush1.msra.mxu0 0.0
      %10302 = vmatprep.subr.mxu0 0.0
      %10303 = vmatpush1.msra.mxu0 0.0
      %10304 = vmatprep.subr.mxu0 0.0
      %10305 = vmatpush1.msra.mxu0 0.0
      %10306 = vmatprep.subr.mxu0 0.0
      %10307 = vmatpush1.msra.mxu0 0.0
      %10308 = vmatprep.subr.mxu0 0.0
      %10309 = vmatpush1.msra.mxu0 0.0
      %10310 = vmatprep.subr.mxu0 0.0
      %10311 = vmatpush1.msra.mxu0 0.0
      %10312 = vmatprep.subr.mxu0 0.0
      %10313 = vmatpush1.msra.mxu0 0.0
      %10314 = vmatprep.subr.mxu0 0.0
      %10315 = vmatpush1.msra.mxu0 0.0
      %10316 = vmatprep.subr.mxu0 0.0
      %10317 = vmatpush1.msra.mxu0 0.0
      %10318 = vmatprep.subr.mxu0 0.0
      %10319 = vmatpush1.msra.mxu0 0.0
      %10320 = vmatprep.subr.mxu0 0.0
      %10321 = vmatpush1.msra.mxu0 0.0
      %10322 = vmatprep.subr.mxu0 0.0
      %10323 = vmatpush1.msra.mxu0 0.0
      %10324 = vmatprep.subr.mxu0 0.0
      %10325 = vmatpush1.msra.mxu0 0.0
      %10326 = vmatprep.subr.mxu0 0.0
      %10327 = vmatpush1.msra.mxu0 0.0
      %10328 = vmatprep.subr.mxu0 0.0
      %10329 = vmatpush1.msra.mxu0 0.0
      %10330 = vmatprep.subr.mxu0 0.0
      %10331 = vmatpush1.msra.mxu0 0.0
      %10332 = vmatprep.mubr.f32.mxu0 0.0
      %10333 = vmatmul.mubr.f32.gmra.mrb[0].mxu0 %v10266
      %v10334 = vpop.f32.mrb[0].mxu0
      %v10335 = vadd.f32 0.0, %v10334
      %v10336 = vpop.f32.mrb[0].mxu0
      %10337 = vdwg.mxu0
      %v10338 = vadd.f32 %v10262, %v10335
      %10339 = vrot.lane.b32.xlu0 %v9988, 32
      %v10340 = vpop.permute.xlu0 %10339
      %v10342 = vadd.f32 %v10338, %v10340
      %v10343 = vmax.f32 %v10342, 0.0
      %v10344 = vld [vmem:[%s5 + $0x68] sm:$0xff]
      %v10345 = vld [vmem:[%s5 + $0xd8] sm:$0xff]
      %v10346 = vld [vmem:[%s5 + $0x148] sm:$0xff]
      %v10347 = vld [vmem:[%s5 + $0x1b8] sm:$0xff]
      %v10348 = vld [vmem:[%s6 + $0x6] sm:$0x1]
      %v10350 = vlaneseq
      %v10351 = vshrl.u32 %v10350, 7
      %v10352 = vsub.s32 0, %v10351
      %v10353 = vrot.slane %v10348, %v10352
      %v10356 = vsel %vm564, %v10343, 0
      %10358 = vmatprep.subr.mxu0 0.0
      %10359 = vmatpush1.msra.mxu0 %v10344
      %10360 = vmatprep.subr.mxu0 0.0
      %10361 = vmatpush1.msra.mxu0 %v10345
      %10362 = vmatprep.subr.mxu0 0.0
      %10363 = vmatpush1.msra.mxu0 %v10346
      %10364 = vmatprep.subr.mxu0 0.0
      %10365 = vmatpush1.msra.mxu0 %v10347
      %10366 = vmatprep.subr.mxu0 0.0
      %10367 = vmatpush1.msra.mxu0 0.0
      %10368 = vmatprep.subr.mxu0 0.0
      %10369 = vmatpush1.msra.mxu0 0.0
      %10370 = vmatprep.subr.mxu0 0.0
      %10371 = vmatpush1.msra.mxu0 0.0
      %10372 = vmatprep.subr.mxu0 0.0
      %10373 = vmatpush1.msra.mxu0 0.0
      %10374 = vmatprep.subr.mxu0 0.0
      %10375 = vmatpush1.msra.mxu0 0.0
      %10376 = vmatprep.subr.mxu0 0.0
      %10377 = vmatpush1.msra.mxu0 0.0
      %10378 = vmatprep.subr.mxu0 0.0
      %10379 = vmatpush1.msra.mxu0 0.0
      %10380 = vmatprep.subr.mxu0 0.0
      %10381 = vmatpush1.msra.mxu0 0.0
      %10382 = vmatprep.subr.mxu0 0.0
      %10383 = vmatpush1.msra.mxu0 0.0
      %10384 = vmatprep.subr.mxu0 0.0
      %10385 = vmatpush1.msra.mxu0 0.0
      %10386 = vmatprep.subr.mxu0 0.0
      %10387 = vmatpush1.msra.mxu0 0.0
      %10388 = vmatprep.subr.mxu0 0.0
      %10389 = vmatpush1.msra.mxu0 0.0
      %10390 = vmatprep.subr.mxu0 0.0
      %10391 = vmatpush1.msra.mxu0 0.0
      %10392 = vmatprep.subr.mxu0 0.0
      %10393 = vmatpush1.msra.mxu0 0.0
      %10394 = vmatprep.subr.mxu0 0.0
      %10395 = vmatpush1.msra.mxu0 0.0
      %10396 = vmatprep.subr.mxu0 0.0
      %10397 = vmatpush1.msra.mxu0 0.0
      %10398 = vmatprep.subr.mxu0 0.0
      %10399 = vmatpush1.msra.mxu0 0.0
      %10400 = vmatprep.subr.mxu0 0.0
      %10401 = vmatpush1.msra.mxu0 0.0
      %10402 = vmatprep.subr.mxu0 0.0
      %10403 = vmatpush1.msra.mxu0 0.0
      %10404 = vmatprep.subr.mxu0 0.0
      %10405 = vmatpush1.msra.mxu0 0.0
      %10406 = vmatprep.subr.mxu0 0.0
      %10407 = vmatpush1.msra.mxu0 0.0
      %10408 = vmatprep.subr.mxu0 0.0
      %10409 = vmatpush1.msra.mxu0 0.0
      %10410 = vmatprep.subr.mxu0 0.0
      %10411 = vmatpush1.msra.mxu0 0.0
      %10412 = vmatprep.subr.mxu0 0.0
      %10413 = vmatpush1.msra.mxu0 0.0
      %10414 = vmatprep.subr.mxu0 0.0
      %10415 = vmatpush1.msra.mxu0 0.0
      %10416 = vmatprep.subr.mxu0 0.0
      %10417 = vmatpush1.msra.mxu0 0.0
      %10418 = vmatprep.subr.mxu0 0.0
      %10419 = vmatpush1.msra.mxu0 0.0
      %10420 = vmatprep.subr.mxu0 0.0
      %10421 = vmatpush1.msra.mxu0 0.0
      %10422 = vmatprep.mubr.f32.mxu0 0.0
      %10423 = vmatmul.mubr.f32.gmra.mrb[0].mxu0 %v10356
      %v10424 = vpop.f32.mrb[0].mxu0
      %v10425 = vadd.f32 %v10353, %v10424
      %v10426 = vpop.f32.mrb[0].mxu0
      %10427 = vdwg.mxu0
      %v10428 = vxor.u32 %v10425, 2147483648
      %v10429 = vmul.f32 %v10428, 1.442695
      %v10430 = vpow.pop %v10429
      %v10431 = vadd.f32 %v10430, 1.0
      %v10432 = vrcp.pop %v10431
      %v10433 = vmul.f32 1.0, %v10432
      %10435 = vset.pattern.permute.xlu0 0
      %10436 = vperm.xlu0 %10435, %v10433
      %v10437 = vpop.permute.xlu0 %10436
      %v10438 = vlaneseq
      %v10439 = vand.u32 %v10438, 127
      %v10440 = vlaneseq
      %v10441 = vshrl.u32 %v10440, 7
      %v10442 = vsub.s32 %v10439, %v10441
      %v10443 = vrot.slane %v10437, %v10442
      %10445 = vst.msk [vmem:[%s342] sm:$0x1] %vm1287, %v10443
      %p10446 = scmp.lt.s32.totalorder %s18, 1
      %s10447 = scalar_select %p10446, %s18, 1
      %s10448 = scalar_lea.vmem %s7, %s10447
      // Predicated region
      $region49: #{set_conv_with_attention.1} parent=47 // pred_check
        %p10449 = pneg %p203
      $region50: #{set_conv_with_attention.1} parent=47 // pred_check_branch
        %10451 = sbr.rel (%p10449) target = $region52
      $region51: #{set_conv_with_attention.1} parent=47 // pred_region
        _
      $region52: #{set_conv_with_attention.1} parent=47 // pred_fallthru
        _
    $region48: #{set_conv_with_attention.1} parent=5 // pred_fallthru
      _
    %p10452 = scmp.le.s32.totalorder 2, %s13
    // Predicated region
    $region53: #{set_conv_with_attention.1} parent=5 // pred_check
      %p10453 = pneg %p10452
    $region54: #{set_conv_with_attention.1} parent=5 // pred_check_branch
      %10455 = sbr.rel (%p10453) target = $region56
    $region55: #{set_conv_with_attention.1} parent=5 // pred_region
      %s10456 = ssub.s32 %s13, 2
      // Predicated region
      $region57: #{set_conv_with_attention.1} parent=55 // pred_check
        %p10457 = pneg %p209
      $region58: #{set_conv_with_attention.1} parent=55 // pred_check_branch
        %10459 = sbr.rel (%p10457) target = $region60
      $region59: #{set_conv_with_attention.1} parent=55 // pred_region
        %p10460 = scmp.lt.s32.totalorder %s19, 1
        %s10461 = scalar_select %p10460, %s19, 1
        %s10462 = scalar_lea.vmem %s7, %s10461
      $region60: #{set_conv_with_attention.1} parent=55 // pred_fallthru
        _
    $region56: #{set_conv_with_attention.1} parent=5 // pred_fallthru
      _
  $region6: #{set_conv_with_attention.1} parent=0 // loop_footer
    %s17 = sadd.s32 1, %s13
  $region7: #{set_conv_with_attention.1} parent=0 // loop_footer_branch
    %12 = sbr.rel target = $region3
  $region8: #{set_conv_with_attention.1} parent=0 // loop_exit
    _

</llo_original>
